<compile_context>
chip_gen: v6e
topology: v6e:2x2x1
jax: 0.10.0
libtpu: 0.0.40
codegen_flags: <defaults>
</compile_context>

<pallas_src>
import jax
import jax.numpy as jnp
from jax.experimental import pallas as pl
from jax.experimental.pallas import tpu as pltpu


# --------------------------------------------------------------------------
# Fused Pallas kernel
# --------------------------------------------------------------------------
def _lenet_fused_kernel(x_ref, m1_ref, b1_ref, m2_ref, b2_ref,
                        w1_ref, c1_ref, w2_ref, c2_ref, w3_ref, c3_ref,
                        o_ref):
    f32 = jnp.float32
    n_batch = x_ref.shape[0]
    ktaps = 5                            # conv kernel width (= #shifted matmuls)
    blk1 = m1_ref.shape[1] // ktaps      # 32: rows of the conv1 input slab
    blk2 = m2_ref.shape[1] // ktaps      # 88: rows of the (padded) pool1 slab
    fblk = w1_ref.shape[1] // ktaps      # 80: rows of the pool2 slab
    conv1_ow = 28                        # conv1 output width
    conv2_ow = 10                        # conv2 output width

    def shifted_conv(m_ref, act, blk, out_w, b_ref):
        """relu( sum_j M[:, j*blk:(j+1)*blk] @ act[:, j:j+out_w] + bias )."""
        acc = jnp.dot(m_ref[:, 0:blk], act[:, 0:out_w],
                      preferred_element_type=f32)
        for j in range(1, ktaps):
            acc = acc + jnp.dot(m_ref[:, j * blk:(j + 1) * blk],
                                act[:, j:j + out_w],
                                preferred_element_type=f32)
        return jnp.maximum(acc + b_ref[...], 0.0)

    def max_pool_2x2(z, out_rows):
        """2x2 / stride-2 max pool of a channel-stacked slab z[(c*H + y), x].

        `out_rows` may include trailing zero rows (selection rows whose source
        index falls past the end of `z` select nothing and stay 0); this keeps
        the next conv's sublane blocks 8-aligned."""
        rows, cols = z.shape
        cp = jnp.maximum(z[:, :cols - 1], z[:, 1:])     # horizontal pair max
        rp = jnp.maximum(cp[:rows - 1, :], cp[1:, :])   # vertical pair max
        sel_r = (jax.lax.broadcasted_iota(jnp.int32, (out_rows, rows - 1), 1)
                 == 2 * jax.lax.broadcasted_iota(jnp.int32, (out_rows, rows - 1), 0)
                 ).astype(f32)
        sel_c = (jax.lax.broadcasted_iota(jnp.int32, (cols - 1, cols // 2), 0)
                 == 2 * jax.lax.broadcasted_iota(jnp.int32, (cols - 1, cols // 2), 1)
                 ).astype(f32)
        picked = jnp.dot(sel_r, rp, preferred_element_type=f32)   # even rows
        return jnp.dot(picked, sel_c, preferred_element_type=f32)  # even cols

    for n in range(n_batch):                   # tiny static batch: unrolled
        xn = x_ref[n]                                           # (32, 32)
        z1 = shifted_conv(m1_ref, xn, blk1, conv1_ow, b1_ref)   # (168, 28)
        p1 = max_pool_2x2(z1, blk2)                             # (88, 14)
        z2 = shifted_conv(m2_ref, p1, blk2, conv2_ow, b2_ref)   # (160, 10)
        p2 = max_pool_2x2(z2, fblk)                             # (80, 5)

        # fc1: weights were permuted at init so that column block `xc`
        # multiplies pool2 column `xc` (rows ordered c*5 + y) -> no flatten.
        h = jnp.dot(w1_ref[:, 0:fblk], p2[:, 0:1], preferred_element_type=f32)
        for xc in range(1, ktaps):
            h = h + jnp.dot(w1_ref[:, xc * fblk:(xc + 1) * fblk],
                            p2[:, xc:xc + 1], preferred_element_type=f32)
        h = jnp.maximum(h + c1_ref[...], 0.0)                   # (120, 1)
        h = jnp.maximum(jnp.dot(w2_ref[...], h, preferred_element_type=f32)
                        + c2_ref[...], 0.0)                     # (84, 1)
        logits = (jnp.dot(w3_ref[...], h, preferred_element_type=f32)
                  + c3_ref[...])                                # (10, 1)
        o_ref[:, n:n + 1] = logits


# --------------------------------------------------------------------------
# Parameters (PyTorch layout) and one-time repacking for the fused kernel
# --------------------------------------------------------------------------
def init_params(key):
    """Deterministic PyTorch-style uniform(-1/sqrt(fan_in), +1/sqrt(fan_in))."""
    def uniform(k, shape, fan_in):
        bound = 1.0 / jnp.sqrt(float(fan_in))
        return jax.random.uniform(k, shape, jnp.float32, -bound, bound)

    ks = jax.random.split(key, 10)
    return {
        "conv1_w": uniform(ks[0], (6, 1, 5, 5), 1 * 5 * 5),
        "conv1_b": uniform(ks[1], (6,), 1 * 5 * 5),
        "conv2_w": uniform(ks[2], (16, 6, 5, 5), 6 * 5 * 5),
        "conv2_b": uniform(ks[3], (16,), 6 * 5 * 5),
        "fc1_w": uniform(ks[4], (120, 400), 400),
        "fc1_b": uniform(ks[5], (120,), 400),
        "fc2_w": uniform(ks[6], (84, 120), 120),
        "fc2_b": uniform(ks[7], (84,), 120),
        "fc3_w": uniform(ks[8], (10, 84), 84),
        "fc3_b": uniform(ks[9], (10,), 84),
    }


def _conv_band_matrix(w, out_h, in_h, blk):
    """Banded block-Toeplitz matrix M with
         M[co*out_h + yo, j*blk + ci*in_h + yi] = w[co, ci, yi - yo, j]
    (zero outside the band and in the alignment-padding columns), so that a
    valid stride-1 cross-correlation becomes
         conv[co, yo, xo] = sum_j (M[:, j*blk:(j+1)*blk] @ act[:, xo + j])
    on the channel-stacked activation slab act[ci*in_h + yi, xi]."""
    co, ci, kh, kw = w.shape
    yo = jnp.arange(out_h)[:, None, None]
    ki = jnp.arange(kh)[None, :, None]
    yi = jnp.arange(in_h)[None, None, :]
    taps = (yi == yo + ki).astype(jnp.float32)                  # (out_h, kh, in_h)
    full = jnp.einsum("abij,oiy->aojby", w.astype(jnp.float32), taps)
    full = full.reshape(co * out_h, kw, ci * in_h)
    if blk > ci * in_h:
        full = jnp.pad(full, ((0, 0), (0, 0), (0, blk - ci * in_h)))
    return full.reshape(co * out_h, kw * blk)


def prepare_params(params):
    """One-time repack of PyTorch-layout params into the kernel's layouts."""
    # fc1 columns reordered from (c*25 + y*5 + x) to (x*80 + c*5 + y) so the
    # kernel consumes the pooled slab column-by-column (folds the NCHW flatten).
    w1p = (params["fc1_w"].reshape(120, 16, 5, 5)
           .transpose(0, 3, 1, 2).reshape(120, 400))
    return {
        "m1": _conv_band_matrix(params["conv1_w"], 28, 32, 32),   # (168, 160)
        "b1": jnp.repeat(params["conv1_b"], 28)[:, None],         # (168, 1)
        "m2": _conv_band_matrix(params["conv2_w"], 10, 14, 88),   # (160, 440)
        "b2": jnp.repeat(params["conv2_b"], 10)[:, None],         # (160, 1)
        "w1": w1p,                                                # (120, 400)
        "c1": params["fc1_b"][:, None],                           # (120, 1)
        "w2": params["fc2_w"],                                    # (84, 120)
        "c2": params["fc2_b"][:, None],                           # (84, 1)
        "w3": params["fc3_w"],                                    # (10, 84)
        "c3": params["fc3_b"][:, None],                           # (10, 1)
    }


# --------------------------------------------------------------------------
# Forward pass (mirrors Net.forward) — one pallas_call per forward
# --------------------------------------------------------------------------
@jax.jit
def net_forward(prep, x_nchw):
    n = x_nchw.shape[0]
    x = x_nchw.reshape(n, 32, 32).astype(jnp.float32)   # Cin=1 squeezed; free
    out_t = pl.pallas_call(
        _lenet_fused_kernel,
        out_shape=jax.ShapeDtypeStruct((10, n), jnp.float32),
        in_specs=[pl.BlockSpec(memory_space=pltpu.MemorySpace.VMEM)] * 11,
        out_specs=pl.BlockSpec(memory_space=pltpu.MemorySpace.VMEM),
    )(x, prep["m1"], prep["b1"], prep["m2"], prep["b2"],
      prep["w1"], prep["c1"], prep["w2"], prep["c2"], prep["w3"], prep["c3"])
    # Kernel works in (features, batch-column) orientation; flip 80 bytes back.
    return out_t.T


# --------------------------------------------------------------------------
# Pure-XLA reference of the same module (for a one-off correctness check)
# --------------------------------------------------------------------------
def reference_forward(params, x_nchw):
    hi = jax.lax.Precision.HIGHEST
    x = x_nchw.astype(jnp.float32)

    def conv(v, w, b):
        y = jax.lax.conv_general_dilated(
            v, w, window_strides=(1, 1), padding="VALID",
            dimension_numbers=("NCHW", "OIHW", "NCHW"), precision=hi)
        return y + b[None, :, None, None]

    def pool(v):
        return jax.lax.reduce_window(v, -jnp.inf, jax.lax.max,
                                     (1, 1, 2, 2), (1, 1, 2, 2), "VALID")

    x = pool(jax.nn.relu(conv(x, params["conv1_w"], params["conv1_b"])))
    x = pool(jax.nn.relu(conv(x, params["conv2_w"], params["conv2_b"])))
    x = x.reshape(x.shape[0], -1)                       # NCHW flatten (C,H,W)
    x = jax.nn.relu(jnp.dot(x, params["fc1_w"].T, precision=hi) + params["fc1_b"])
    x = jax.nn.relu(jnp.dot(x, params["fc2_w"].T, precision=hi) + params["fc2_b"])
    return jnp.dot(x, params["fc3_w"].T, precision=hi) + params["fc3_b"]


if __name__ == "__main__":
    key = jax.random.PRNGKey(0)
    pkey, xkey = jax.random.split(key)
    params = init_params(pkey)
    prep = prepare_params(params)       # one-time layout work, off the hot path

    # LeNet geometry requires 32x32 single-channel inputs (16*5*5 flatten).
    x = jax.random.normal(xkey, (2, 1, 32, 32), dtype=jnp.float32)

    out = jax.block_until_ready(net_forward(prep, x))
    assert out.shape == (2, 10), out.shape
    assert bool(jnp.all(jnp.isfinite(out)))

    ref = reference_forward(params, x)
    assert bool(jnp.allclose(out, ref, atol=5e-2, rtol=5e-2)), (out, ref)

    print("KERNEL_OK")
</pallas_src>

<mosaic_0001>
module attributes {stable_mosaic.version = 11 : i64} {
  func.func @_lenet_fused_kernel(%arg0: memref<2x32x32xf32, #tpu.memory_space<vmem>>, %arg1: memref<168x160xf32, #tpu.memory_space<vmem>>, %arg2: memref<168x1xf32, #tpu.memory_space<vmem>>, %arg3: memref<160x440xf32, #tpu.memory_space<vmem>>, %arg4: memref<160x1xf32, #tpu.memory_space<vmem>>, %arg5: memref<120x400xf32, #tpu.memory_space<vmem>>, %arg6: memref<120x1xf32, #tpu.memory_space<vmem>>, %arg7: memref<84x120xf32, #tpu.memory_space<vmem>>, %arg8: memref<84x1xf32, #tpu.memory_space<vmem>>, %arg9: memref<10x84xf32, #tpu.memory_space<vmem>>, %arg10: memref<10x1xf32, #tpu.memory_space<vmem>>, %arg11: memref<10x2xf32, #tpu.memory_space<vmem>>) attributes {dimension_semantics = [], scalar_prefetch = 0 : i64, scratch_operands = 0 : i64, tpu.core_type = #tpu.core_type<tc>} {
    %c0 = arith.constant 0 : index
    %c0_0 = arith.constant 0 : index
    %c0_1 = arith.constant 0 : index
    %0 = vector.load %arg0[%c0, %c0_0, %c0_1] : memref<2x32x32xf32, #tpu.memory_space<vmem>>, vector<1x32x32xf32>
    %1 = vector.shape_cast %0 : vector<1x32x32xf32> to vector<32x32xf32>
    %c0_2 = arith.constant 0 : index
    %c0_3 = arith.constant 0 : index
    %2 = vector.load %arg1[%c0_2, %c0_3] : memref<168x160xf32, #tpu.memory_space<vmem>>, vector<168x32xf32>
    %3 = vector.extract_strided_slice %1 {offsets = [0, 0], sizes = [32, 28], strides = [1, 1]} : vector<32x32xf32> to vector<32x28xf32>
    %cst = arith.constant dense<0.000000e+00> : vector<168x28xf32>
    %4 = tpu.matmul %2, %3, %cst {dimension_numbers = #tpu.dot_dimension_numbers<[1], [0], [0], [1], [0, 0, 1, 1], [], []>} : vector<168x32xf32>, vector<32x28xf32>, vector<168x28xf32> -> vector<168x28xf32>
    %c0_4 = arith.constant 0 : index
    %c32 = arith.constant 32 : index
    %5 = vector.load %arg1[%c0_4, %c32] : memref<168x160xf32, #tpu.memory_space<vmem>>, vector<168x32xf32>
    %6 = vector.extract_strided_slice %1 {offsets = [0, 1], sizes = [32, 28], strides = [1, 1]} : vector<32x32xf32> to vector<32x28xf32>
    %cst_5 = arith.constant dense<0.000000e+00> : vector<168x28xf32>
    %7 = tpu.matmul %5, %6, %cst_5 {dimension_numbers = #tpu.dot_dimension_numbers<[1], [0], [0], [1], [0, 0, 1, 1], [], []>} : vector<168x32xf32>, vector<32x28xf32>, vector<168x28xf32> -> vector<168x28xf32>
    %8 = arith.addf %4, %7 : vector<168x28xf32>
    %c0_6 = arith.constant 0 : index
    %c64 = arith.constant 64 : index
    %9 = vector.load %arg1[%c0_6, %c64] : memref<168x160xf32, #tpu.memory_space<vmem>>, vector<168x32xf32>
    %10 = vector.extract_strided_slice %1 {offsets = [0, 2], sizes = [32, 28], strides = [1, 1]} : vector<32x32xf32> to vector<32x28xf32>
    %cst_7 = arith.constant dense<0.000000e+00> : vector<168x28xf32>
    %11 = tpu.matmul %9, %10, %cst_7 {dimension_numbers = #tpu.dot_dimension_numbers<[1], [0], [0], [1], [0, 0, 1, 1], [], []>} : vector<168x32xf32>, vector<32x28xf32>, vector<168x28xf32> -> vector<168x28xf32>
    %12 = arith.addf %8, %11 : vector<168x28xf32>
    %c0_8 = arith.constant 0 : index
    %c96 = arith.constant 96 : index
    %13 = vector.load %arg1[%c0_8, %c96] : memref<168x160xf32, #tpu.memory_space<vmem>>, vector<168x32xf32>
    %14 = vector.extract_strided_slice %1 {offsets = [0, 3], sizes = [32, 28], strides = [1, 1]} : vector<32x32xf32> to vector<32x28xf32>
    %cst_9 = arith.constant dense<0.000000e+00> : vector<168x28xf32>
    %15 = tpu.matmul %13, %14, %cst_9 {dimension_numbers = #tpu.dot_dimension_numbers<[1], [0], [0], [1], [0, 0, 1, 1], [], []>} : vector<168x32xf32>, vector<32x28xf32>, vector<168x28xf32> -> vector<168x28xf32>
    %16 = arith.addf %12, %15 : vector<168x28xf32>
    %c0_10 = arith.constant 0 : index
    %c128 = arith.constant 128 : index
    %17 = vector.load %arg1[%c0_10, %c128] : memref<168x160xf32, #tpu.memory_space<vmem>>, vector<168x32xf32>
    %18 = vector.extract_strided_slice %1 {offsets = [0, 4], sizes = [32, 28], strides = [1, 1]} : vector<32x32xf32> to vector<32x28xf32>
    %cst_11 = arith.constant dense<0.000000e+00> : vector<168x28xf32>
    %19 = tpu.matmul %17, %18, %cst_11 {dimension_numbers = #tpu.dot_dimension_numbers<[1], [0], [0], [1], [0, 0, 1, 1], [], []>} : vector<168x32xf32>, vector<32x28xf32>, vector<168x28xf32> -> vector<168x28xf32>
    %20 = arith.addf %16, %19 : vector<168x28xf32>
    %c0_12 = arith.constant 0 : index
    %c0_13 = arith.constant 0 : index
    %21 = vector.load %arg2[%c0_12, %c0_13] : memref<168x1xf32, #tpu.memory_space<vmem>>, vector<168x1xf32>
    %22 = vector.broadcast %21 : vector<168x1xf32> to vector<168x28xf32>
    %23 = arith.addf %20, %22 : vector<168x28xf32>
    %cst_14 = arith.constant 0.000000e+00 : f32
    %24 = vector.broadcast %cst_14 : f32 to vector<168x28xf32>
    %25 = arith.maximumf %23, %24 : vector<168x28xf32>
    %26 = vector.extract_strided_slice %25 {offsets = [0, 0], sizes = [168, 27], strides = [1, 1]} : vector<168x28xf32> to vector<168x27xf32>
    %27 = vector.extract_strided_slice %25 {offsets = [0, 1], sizes = [168, 27], strides = [1, 1]} : vector<168x28xf32> to vector<168x27xf32>
    %28 = arith.maximumf %26, %27 : vector<168x27xf32>
    %29 = vector.extract_strided_slice %28 {offsets = [0, 0], sizes = [167, 27], strides = [1, 1]} : vector<168x27xf32> to vector<167x27xf32>
    %30 = vector.extract_strided_slice %28 {offsets = [1, 0], sizes = [167, 27], strides = [1, 1]} : vector<168x27xf32> to vector<167x27xf32>
    %31 = arith.maximumf %29, %30 : vector<167x27xf32>
    %32 = tpu.iota {dimensions = array<i32: 1>} : vector<88x167xi32>
    %33 = tpu.iota {dimensions = array<i32: 0>} : vector<88x167xi32>
    %c2_i32 = arith.constant 2 : i32
    %34 = vector.broadcast %c2_i32 : i32 to vector<88x167xi32>
    %35 = arith.muli %34, %33 : vector<88x167xi32>
    %36 = arith.cmpi eq, %32, %35 : vector<88x167xi32>
    %37 = arith.extui %36 : vector<88x167xi1> to vector<88x167xi32>
    %38 = arith.sitofp %37 : vector<88x167xi32> to vector<88x167xf32>
    %39 = tpu.iota {dimensions = array<i32: 0>} : vector<27x14xi32>
    %40 = tpu.iota {dimensions = array<i32: 1>} : vector<27x14xi32>
    %c2_i32_15 = arith.constant 2 : i32
    %41 = vector.broadcast %c2_i32_15 : i32 to vector<27x14xi32>
    %42 = arith.muli %41, %40 : vector<27x14xi32>
    %43 = arith.cmpi eq, %39, %42 : vector<27x14xi32>
    %44 = arith.extui %43 : vector<27x14xi1> to vector<27x14xi32>
    %45 = arith.sitofp %44 : vector<27x14xi32> to vector<27x14xf32>
    %cst_16 = arith.constant dense<0.000000e+00> : vector<88x27xf32>
    %46 = tpu.matmul %38, %31, %cst_16 {dimension_numbers = #tpu.dot_dimension_numbers<[1], [0], [0], [1], [0, 0, 1, 1], [], []>} : vector<88x167xf32>, vector<167x27xf32>, vector<88x27xf32> -> vector<88x27xf32>
    %cst_17 = arith.constant dense<0.000000e+00> : vector<88x14xf32>
    %47 = tpu.matmul %46, %45, %cst_17 {dimension_numbers = #tpu.dot_dimension_numbers<[1], [0], [0], [1], [0, 0, 1, 1], [], []>} : vector<88x27xf32>, vector<27x14xf32>, vector<88x14xf32> -> vector<88x14xf32>
    %c0_18 = arith.constant 0 : index
    %c0_19 = arith.constant 0 : index
    %48 = vector.load %arg3[%c0_18, %c0_19] : memref<160x440xf32, #tpu.memory_space<vmem>>, vector<160x88xf32>
    %49 = vector.extract_strided_slice %47 {offsets = [0, 0], sizes = [88, 10], strides = [1, 1]} : vector<88x14xf32> to vector<88x10xf32>
    %cst_20 = arith.constant dense<0.000000e+00> : vector<160x10xf32>
    %50 = tpu.matmul %48, %49, %cst_20 {dimension_numbers = #tpu.dot_dimension_numbers<[1], [0], [0], [1], [0, 0, 1, 1], [], []>} : vector<160x88xf32>, vector<88x10xf32>, vector<160x10xf32> -> vector<160x10xf32>
    %c0_21 = arith.constant 0 : index
    %c88 = arith.constant 88 : index
    %51 = vector.load %arg3[%c0_21, %c88] : memref<160x440xf32, #tpu.memory_space<vmem>>, vector<160x88xf32>
    %52 = vector.extract_strided_slice %47 {offsets = [0, 1], sizes = [88, 10], strides = [1, 1]} : vector<88x14xf32> to vector<88x10xf32>
    %cst_22 = arith.constant dense<0.000000e+00> : vector<160x10xf32>
    %53 = tpu.matmul %51, %52, %cst_22 {dimension_numbers = #tpu.dot_dimension_numbers<[1], [0], [0], [1], [0, 0, 1, 1], [], []>} : vector<160x88xf32>, vector<88x10xf32>, vector<160x10xf32> -> vector<160x10xf32>
    %54 = arith.addf %50, %53 : vector<160x10xf32>
    %c0_23 = arith.constant 0 : index
    %c176 = arith.constant 176 : index
    %55 = vector.load %arg3[%c0_23, %c176] : memref<160x440xf32, #tpu.memory_space<vmem>>, vector<160x88xf32>
    %56 = vector.extract_strided_slice %47 {offsets = [0, 2], sizes = [88, 10], strides = [1, 1]} : vector<88x14xf32> to vector<88x10xf32>
    %cst_24 = arith.constant dense<0.000000e+00> : vector<160x10xf32>
    %57 = tpu.matmul %55, %56, %cst_24 {dimension_numbers = #tpu.dot_dimension_numbers<[1], [0], [0], [1], [0, 0, 1, 1], [], []>} : vector<160x88xf32>, vector<88x10xf32>, vector<160x10xf32> -> vector<160x10xf32>
    %58 = arith.addf %54, %57 : vector<160x10xf32>
    %c0_25 = arith.constant 0 : index
    %c264 = arith.constant 264 : index
    %59 = vector.load %arg3[%c0_25, %c264] : memref<160x440xf32, #tpu.memory_space<vmem>>, vector<160x88xf32>
    %60 = vector.extract_strided_slice %47 {offsets = [0, 3], sizes = [88, 10], strides = [1, 1]} : vector<88x14xf32> to vector<88x10xf32>
    %cst_26 = arith.constant dense<0.000000e+00> : vector<160x10xf32>
    %61 = tpu.matmul %59, %60, %cst_26 {dimension_numbers = #tpu.dot_dimension_numbers<[1], [0], [0], [1], [0, 0, 1, 1], [], []>} : vector<160x88xf32>, vector<88x10xf32>, vector<160x10xf32> -> vector<160x10xf32>
    %62 = arith.addf %58, %61 : vector<160x10xf32>
    %c0_27 = arith.constant 0 : index
    %c352 = arith.constant 352 : index
    %63 = vector.load %arg3[%c0_27, %c352] : memref<160x440xf32, #tpu.memory_space<vmem>>, vector<160x88xf32>
    %64 = vector.extract_strided_slice %47 {offsets = [0, 4], sizes = [88, 10], strides = [1, 1]} : vector<88x14xf32> to vector<88x10xf32>
    %cst_28 = arith.constant dense<0.000000e+00> : vector<160x10xf32>
    %65 = tpu.matmul %63, %64, %cst_28 {dimension_numbers = #tpu.dot_dimension_numbers<[1], [0], [0], [1], [0, 0, 1, 1], [], []>} : vector<160x88xf32>, vector<88x10xf32>, vector<160x10xf32> -> vector<160x10xf32>
    %66 = arith.addf %62, %65 : vector<160x10xf32>
    %c0_29 = arith.constant 0 : index
    %c0_30 = arith.constant 0 : index
    %67 = vector.load %arg4[%c0_29, %c0_30] : memref<160x1xf32, #tpu.memory_space<vmem>>, vector<160x1xf32>
    %68 = vector.broadcast %67 : vector<160x1xf32> to vector<160x10xf32>
    %69 = arith.addf %66, %68 : vector<160x10xf32>
    %cst_31 = arith.constant 0.000000e+00 : f32
    %70 = vector.broadcast %cst_31 : f32 to vector<160x10xf32>
    %71 = arith.maximumf %69, %70 : vector<160x10xf32>
    %72 = vector.extract_strided_slice %71 {offsets = [0, 0], sizes = [160, 9], strides = [1, 1]} : vector<160x10xf32> to vector<160x9xf32>
    %73 = vector.extract_strided_slice %71 {offsets = [0, 1], sizes = [160, 9], strides = [1, 1]} : vector<160x10xf32> to vector<160x9xf32>
    %74 = arith.maximumf %72, %73 : vector<160x9xf32>
    %75 = vector.extract_strided_slice %74 {offsets = [0, 0], sizes = [159, 9], strides = [1, 1]} : vector<160x9xf32> to vector<159x9xf32>
    %76 = vector.extract_strided_slice %74 {offsets = [1, 0], sizes = [159, 9], strides = [1, 1]} : vector<160x9xf32> to vector<159x9xf32>
    %77 = arith.maximumf %75, %76 : vector<159x9xf32>
    %78 = tpu.iota {dimensions = array<i32: 1>} : vector<80x159xi32>
    %79 = tpu.iota {dimensions = array<i32: 0>} : vector<80x159xi32>
    %c2_i32_32 = arith.constant 2 : i32
    %80 = vector.broadcast %c2_i32_32 : i32 to vector<80x159xi32>
    %81 = arith.muli %80, %79 : vector<80x159xi32>
    %82 = arith.cmpi eq, %78, %81 : vector<80x159xi32>
    %83 = arith.extui %82 : vector<80x159xi1> to vector<80x159xi32>
    %84 = arith.sitofp %83 : vector<80x159xi32> to vector<80x159xf32>
    %85 = tpu.iota {dimensions = array<i32: 0>} : vector<9x5xi32>
    %86 = tpu.iota {dimensions = array<i32: 1>} : vector<9x5xi32>
    %c2_i32_33 = arith.constant 2 : i32
    %87 = vector.broadcast %c2_i32_33 : i32 to vector<9x5xi32>
    %88 = arith.muli %87, %86 : vector<9x5xi32>
    %89 = arith.cmpi eq, %85, %88 : vector<9x5xi32>
    %90 = arith.extui %89 : vector<9x5xi1> to vector<9x5xi32>
    %91 = arith.sitofp %90 : vector<9x5xi32> to vector<9x5xf32>
    %cst_34 = arith.constant dense<0.000000e+00> : vector<80x9xf32>
    %92 = tpu.matmul %84, %77, %cst_34 {dimension_numbers = #tpu.dot_dimension_numbers<[1], [0], [0], [1], [0, 0, 1, 1], [], []>} : vector<80x159xf32>, vector<159x9xf32>, vector<80x9xf32> -> vector<80x9xf32>
    %cst_35 = arith.constant dense<0.000000e+00> : vector<80x5xf32>
    %93 = tpu.matmul %92, %91, %cst_35 {dimension_numbers = #tpu.dot_dimension_numbers<[1], [0], [0], [1], [0, 0, 1, 1], [], []>} : vector<80x9xf32>, vector<9x5xf32>, vector<80x5xf32> -> vector<80x5xf32>
    %c0_36 = arith.constant 0 : index
    %c0_37 = arith.constant 0 : index
    %94 = vector.load %arg5[%c0_36, %c0_37] : memref<120x400xf32, #tpu.memory_space<vmem>>, vector<120x80xf32>
    %95 = vector.extract_strided_slice %93 {offsets = [0, 0], sizes = [80, 1], strides = [1, 1]} : vector<80x5xf32> to vector<80x1xf32>
    %cst_38 = arith.constant dense<0.000000e+00> : vector<120x1xf32>
    %96 = tpu.matmul %94, %95, %cst_38 {dimension_numbers = #tpu.dot_dimension_numbers<[1], [0], [0], [1], [0, 0, 1, 1], [], []>} : vector<120x80xf32>, vector<80x1xf32>, vector<120x1xf32> -> vector<120x1xf32>
    %c0_39 = arith.constant 0 : index
    %c80 = arith.constant 80 : index
    %97 = vector.load %arg5[%c0_39, %c80] : memref<120x400xf32, #tpu.memory_space<vmem>>, vector<120x80xf32>
    %98 = vector.extract_strided_slice %93 {offsets = [0, 1], sizes = [80, 1], strides = [1, 1]} : vector<80x5xf32> to vector<80x1xf32>
    %cst_40 = arith.constant dense<0.000000e+00> : vector<120x1xf32>
    %99 = tpu.matmul %97, %98, %cst_40 {dimension_numbers = #tpu.dot_dimension_numbers<[1], [0], [0], [1], [0, 0, 1, 1], [], []>} : vector<120x80xf32>, vector<80x1xf32>, vector<120x1xf32> -> vector<120x1xf32>
    %100 = arith.addf %96, %99 : vector<120x1xf32>
    %c0_41 = arith.constant 0 : index
    %c160 = arith.constant 160 : index
    %101 = vector.load %arg5[%c0_41, %c160] : memref<120x400xf32, #tpu.memory_space<vmem>>, vector<120x80xf32>
    %102 = vector.extract_strided_slice %93 {offsets = [0, 2], sizes = [80, 1], strides = [1, 1]} : vector<80x5xf32> to vector<80x1xf32>
    %cst_42 = arith.constant dense<0.000000e+00> : vector<120x1xf32>
    %103 = tpu.matmul %101, %102, %cst_42 {dimension_numbers = #tpu.dot_dimension_numbers<[1], [0], [0], [1], [0, 0, 1, 1], [], []>} : vector<120x80xf32>, vector<80x1xf32>, vector<120x1xf32> -> vector<120x1xf32>
    %104 = arith.addf %100, %103 : vector<120x1xf32>
    %c0_43 = arith.constant 0 : index
    %c240 = arith.constant 240 : index
    %105 = vector.load %arg5[%c0_43, %c240] : memref<120x400xf32, #tpu.memory_space<vmem>>, vector<120x80xf32>
    %106 = vector.extract_strided_slice %93 {offsets = [0, 3], sizes = [80, 1], strides = [1, 1]} : vector<80x5xf32> to vector<80x1xf32>
    %cst_44 = arith.constant dense<0.000000e+00> : vector<120x1xf32>
    %107 = tpu.matmul %105, %106, %cst_44 {dimension_numbers = #tpu.dot_dimension_numbers<[1], [0], [0], [1], [0, 0, 1, 1], [], []>} : vector<120x80xf32>, vector<80x1xf32>, vector<120x1xf32> -> vector<120x1xf32>
    %108 = arith.addf %104, %107 : vector<120x1xf32>
    %c0_45 = arith.constant 0 : index
    %c320 = arith.constant 320 : index
    %109 = vector.load %arg5[%c0_45, %c320] : memref<120x400xf32, #tpu.memory_space<vmem>>, vector<120x80xf32>
    %110 = vector.extract_strided_slice %93 {offsets = [0, 4], sizes = [80, 1], strides = [1, 1]} : vector<80x5xf32> to vector<80x1xf32>
    %cst_46 = arith.constant dense<0.000000e+00> : vector<120x1xf32>
    %111 = tpu.matmul %109, %110, %cst_46 {dimension_numbers = #tpu.dot_dimension_numbers<[1], [0], [0], [1], [0, 0, 1, 1], [], []>} : vector<120x80xf32>, vector<80x1xf32>, vector<120x1xf32> -> vector<120x1xf32>
    %112 = arith.addf %108, %111 : vector<120x1xf32>
    %c0_47 = arith.constant 0 : index
    %c0_48 = arith.constant 0 : index
    %113 = vector.load %arg6[%c0_47, %c0_48] : memref<120x1xf32, #tpu.memory_space<vmem>>, vector<120x1xf32>
    %114 = arith.addf %112, %113 : vector<120x1xf32>
    %cst_49 = arith.constant 0.000000e+00 : f32
    %115 = vector.broadcast %cst_49 : f32 to vector<120x1xf32>
    %116 = arith.maximumf %114, %115 : vector<120x1xf32>
    %c0_50 = arith.constant 0 : index
    %c0_51 = arith.constant 0 : index
    %117 = vector.load %arg7[%c0_50, %c0_51] : memref<84x120xf32, #tpu.memory_space<vmem>>, vector<84x120xf32>
    %cst_52 = arith.constant dense<0.000000e+00> : vector<84x1xf32>
    %118 = tpu.matmul %117, %116, %cst_52 {dimension_numbers = #tpu.dot_dimension_numbers<[1], [0], [0], [1], [0, 0, 1, 1], [], []>} : vector<84x120xf32>, vector<120x1xf32>, vector<84x1xf32> -> vector<84x1xf32>
    %c0_53 = arith.constant 0 : index
    %c0_54 = arith.constant 0 : index
    %119 = vector.load %arg8[%c0_53, %c0_54] : memref<84x1xf32, #tpu.memory_space<vmem>>, vector<84x1xf32>
    %120 = arith.addf %118, %119 : vector<84x1xf32>
    %cst_55 = arith.constant 0.000000e+00 : f32
    %121 = vector.broadcast %cst_55 : f32 to vector<84x1xf32>
    %122 = arith.maximumf %120, %121 : vector<84x1xf32>
    %c0_56 = arith.constant 0 : index
    %c0_57 = arith.constant 0 : index
    %123 = vector.load %arg9[%c0_56, %c0_57] : memref<10x84xf32, #tpu.memory_space<vmem>>, vector<10x84xf32>
    %cst_58 = arith.constant dense<0.000000e+00> : vector<10x1xf32>
    %124 = tpu.matmul %123, %122, %cst_58 {dimension_numbers = #tpu.dot_dimension_numbers<[1], [0], [0], [1], [0, 0, 1, 1], [], []>} : vector<10x84xf32>, vector<84x1xf32>, vector<10x1xf32> -> vector<10x1xf32>
    %c0_59 = arith.constant 0 : index
    %c0_60 = arith.constant 0 : index
    %125 = vector.load %arg10[%c0_59, %c0_60] : memref<10x1xf32, #tpu.memory_space<vmem>>, vector<10x1xf32>
    %126 = arith.addf %124, %125 : vector<10x1xf32>
    %c0_61 = arith.constant 0 : index
    %c0_62 = arith.constant 0 : index
    %127 = vector.load %arg11[%c0_61, %c0_62] : memref<10x2xf32, #tpu.memory_space<vmem>>, vector<10x1xf32>
    tpu.vector_store %arg11[%c0_61, %c0_62], %126 {strides = array<i32>} : memref<10x2xf32, #tpu.memory_space<vmem>>, vector<10x1xf32>,
    %c1 = arith.constant 1 : index
    %c0_63 = arith.constant 0 : index
    %c0_64 = arith.constant 0 : index
    %128 = vector.load %arg0[%c1, %c0_63, %c0_64] : memref<2x32x32xf32, #tpu.memory_space<vmem>>, vector<1x32x32xf32>
    %129 = vector.shape_cast %128 : vector<1x32x32xf32> to vector<32x32xf32>
    %c0_65 = arith.constant 0 : index
    %c0_66 = arith.constant 0 : index
    %130 = vector.load %arg1[%c0_65, %c0_66] : memref<168x160xf32, #tpu.memory_space<vmem>>, vector<168x32xf32>
    %131 = vector.extract_strided_slice %129 {offsets = [0, 0], sizes = [32, 28], strides = [1, 1]} : vector<32x32xf32> to vector<32x28xf32>
    %cst_67 = arith.constant dense<0.000000e+00> : vector<168x28xf32>
    %132 = tpu.matmul %130, %131, %cst_67 {dimension_numbers = #tpu.dot_dimension_numbers<[1], [0], [0], [1], [0, 0, 1, 1], [], []>} : vector<168x32xf32>, vector<32x28xf32>, vector<168x28xf32> -> vector<168x28xf32>
    %c0_68 = arith.constant 0 : index
    %c32_69 = arith.constant 32 : index
    %133 = vector.load %arg1[%c0_68, %c32_69] : memref<168x160xf32, #tpu.memory_space<vmem>>, vector<168x32xf32>
    %134 = vector.extract_strided_slice %129 {offsets = [0, 1], sizes = [32, 28], strides = [1, 1]} : vector<32x32xf32> to vector<32x28xf32>
    %cst_70 = arith.constant dense<0.000000e+00> : vector<168x28xf32>
    %135 = tpu.matmul %133, %134, %cst_70 {dimension_numbers = #tpu.dot_dimension_numbers<[1], [0], [0], [1], [0, 0, 1, 1], [], []>} : vector<168x32xf32>, vector<32x28xf32>, vector<168x28xf32> -> vector<168x28xf32>
    %136 = arith.addf %132, %135 : vector<168x28xf32>
    %c0_71 = arith.constant 0 : index
    %c64_72 = arith.constant 64 : index
    %137 = vector.load %arg1[%c0_71, %c64_72] : memref<168x160xf32, #tpu.memory_space<vmem>>, vector<168x32xf32>
    %138 = vector.extract_strided_slice %129 {offsets = [0, 2], sizes = [32, 28], strides = [1, 1]} : vector<32x32xf32> to vector<32x28xf32>
    %cst_73 = arith.constant dense<0.000000e+00> : vector<168x28xf32>
    %139 = tpu.matmul %137, %138, %cst_73 {dimension_numbers = #tpu.dot_dimension_numbers<[1], [0], [0], [1], [0, 0, 1, 1], [], []>} : vector<168x32xf32>, vector<32x28xf32>, vector<168x28xf32> -> vector<168x28xf32>
    %140 = arith.addf %136, %139 : vector<168x28xf32>
    %c0_74 = arith.constant 0 : index
    %c96_75 = arith.constant 96 : index
    %141 = vector.load %arg1[%c0_74, %c96_75] : memref<168x160xf32, #tpu.memory_space<vmem>>, vector<168x32xf32>
    %142 = vector.extract_strided_slice %129 {offsets = [0, 3], sizes = [32, 28], strides = [1, 1]} : vector<32x32xf32> to vector<32x28xf32>
    %cst_76 = arith.constant dense<0.000000e+00> : vector<168x28xf32>
    %143 = tpu.matmul %141, %142, %cst_76 {dimension_numbers = #tpu.dot_dimension_numbers<[1], [0], [0], [1], [0, 0, 1, 1], [], []>} : vector<168x32xf32>, vector<32x28xf32>, vector<168x28xf32> -> vector<168x28xf32>
    %144 = arith.addf %140, %143 : vector<168x28xf32>
    %c0_77 = arith.constant 0 : index
    %c128_78 = arith.constant 128 : index
    %145 = vector.load %arg1[%c0_77, %c128_78] : memref<168x160xf32, #tpu.memory_space<vmem>>, vector<168x32xf32>
    %146 = vector.extract_strided_slice %129 {offsets = [0, 4], sizes = [32, 28], strides = [1, 1]} : vector<32x32xf32> to vector<32x28xf32>
    %cst_79 = arith.constant dense<0.000000e+00> : vector<168x28xf32>
    %147 = tpu.matmul %145, %146, %cst_79 {dimension_numbers = #tpu.dot_dimension_numbers<[1], [0], [0], [1], [0, 0, 1, 1], [], []>} : vector<168x32xf32>, vector<32x28xf32>, vector<168x28xf32> -> vector<168x28xf32>
    %148 = arith.addf %144, %147 : vector<168x28xf32>
    %c0_80 = arith.constant 0 : index
    %c0_81 = arith.constant 0 : index
    %149 = vector.load %arg2[%c0_80, %c0_81] : memref<168x1xf32, #tpu.memory_space<vmem>>, vector<168x1xf32>
    %150 = vector.broadcast %149 : vector<168x1xf32> to vector<168x28xf32>
    %151 = arith.addf %148, %150 : vector<168x28xf32>
    %cst_82 = arith.constant 0.000000e+00 : f32
    %152 = vector.broadcast %cst_82 : f32 to vector<168x28xf32>
    %153 = arith.maximumf %151, %152 : vector<168x28xf32>
    %154 = vector.extract_strided_slice %153 {offsets = [0, 0], sizes = [168, 27], strides = [1, 1]} : vector<168x28xf32> to vector<168x27xf32>
    %155 = vector.extract_strided_slice %153 {offsets = [0, 1], sizes = [168, 27], strides = [1, 1]} : vector<168x28xf32> to vector<168x27xf32>
    %156 = arith.maximumf %154, %155 : vector<168x27xf32>
    %157 = vector.extract_strided_slice %156 {offsets = [0, 0], sizes = [167, 27], strides = [1, 1]} : vector<168x27xf32> to vector<167x27xf32>
    %158 = vector.extract_strided_slice %156 {offsets = [1, 0], sizes = [167, 27], strides = [1, 1]} : vector<168x27xf32> to vector<167x27xf32>
    %159 = arith.maximumf %157, %158 : vector<167x27xf32>
    %160 = tpu.iota {dimensions = array<i32: 1>} : vector<88x167xi32>
    %161 = tpu.iota {dimensions = array<i32: 0>} : vector<88x167xi32>
    %c2_i32_83 = arith.constant 2 : i32
    %162 = vector.broadcast %c2_i32_83 : i32 to vector<88x167xi32>
    %163 = arith.muli %162, %161 : vector<88x167xi32>
    %164 = arith.cmpi eq, %160, %163 : vector<88x167xi32>
    %165 = arith.extui %164 : vector<88x167xi1> to vector<88x167xi32>
    %166 = arith.sitofp %165 : vector<88x167xi32> to vector<88x167xf32>
    %167 = tpu.iota {dimensions = array<i32: 0>} : vector<27x14xi32>
    %168 = tpu.iota {dimensions = array<i32: 1>} : vector<27x14xi32>
    %c2_i32_84 = arith.constant 2 : i32
    %169 = vector.broadcast %c2_i32_84 : i32 to vector<27x14xi32>
    %170 = arith.muli %169, %168 : vector<27x14xi32>
    %171 = arith.cmpi eq, %167, %170 : vector<27x14xi32>
    %172 = arith.extui %171 : vector<27x14xi1> to vector<27x14xi32>
    %173 = arith.sitofp %172 : vector<27x14xi32> to vector<27x14xf32>
    %cst_85 = arith.constant dense<0.000000e+00> : vector<88x27xf32>
    %174 = tpu.matmul %166, %159, %cst_85 {dimension_numbers = #tpu.dot_dimension_numbers<[1], [0], [0], [1], [0, 0, 1, 1], [], []>} : vector<88x167xf32>, vector<167x27xf32>, vector<88x27xf32> -> vector<88x27xf32>
    %cst_86 = arith.constant dense<0.000000e+00> : vector<88x14xf32>
    %175 = tpu.matmul %174, %173, %cst_86 {dimension_numbers = #tpu.dot_dimension_numbers<[1], [0], [0], [1], [0, 0, 1, 1], [], []>} : vector<88x27xf32>, vector<27x14xf32>, vector<88x14xf32> -> vector<88x14xf32>
    %c0_87 = arith.constant 0 : index
    %c0_88 = arith.constant 0 : index
    %176 = vector.load %arg3[%c0_87, %c0_88] : memref<160x440xf32, #tpu.memory_space<vmem>>, vector<160x88xf32>
    %177 = vector.extract_strided_slice %175 {offsets = [0, 0], sizes = [88, 10], strides = [1, 1]} : vector<88x14xf32> to vector<88x10xf32>
    %cst_89 = arith.constant dense<0.000000e+00> : vector<160x10xf32>
    %178 = tpu.matmul %176, %177, %cst_89 {dimension_numbers = #tpu.dot_dimension_numbers<[1], [0], [0], [1], [0, 0, 1, 1], [], []>} : vector<160x88xf32>, vector<88x10xf32>, vector<160x10xf32> -> vector<160x10xf32>
    %c0_90 = arith.constant 0 : index
    %c88_91 = arith.constant 88 : index
    %179 = vector.load %arg3[%c0_90, %c88_91] : memref<160x440xf32, #tpu.memory_space<vmem>>, vector<160x88xf32>
    %180 = vector.extract_strided_slice %175 {offsets = [0, 1], sizes = [88, 10], strides = [1, 1]} : vector<88x14xf32> to vector<88x10xf32>
    %cst_92 = arith.constant dense<0.000000e+00> : vector<160x10xf32>
    %181 = tpu.matmul %179, %180, %cst_92 {dimension_numbers = #tpu.dot_dimension_numbers<[1], [0], [0], [1], [0, 0, 1, 1], [], []>} : vector<160x88xf32>, vector<88x10xf32>, vector<160x10xf32> -> vector<160x10xf32>
    %182 = arith.addf %178, %181 : vector<160x10xf32>
    %c0_93 = arith.constant 0 : index
    %c176_94 = arith.constant 176 : index
    %183 = vector.load %arg3[%c0_93, %c176_94] : memref<160x440xf32, #tpu.memory_space<vmem>>, vector<160x88xf32>
    %184 = vector.extract_strided_slice %175 {offsets = [0, 2], sizes = [88, 10], strides = [1, 1]} : vector<88x14xf32> to vector<88x10xf32>
    %cst_95 = arith.constant dense<0.000000e+00> : vector<160x10xf32>
    %185 = tpu.matmul %183, %184, %cst_95 {dimension_numbers = #tpu.dot_dimension_numbers<[1], [0], [0], [1], [0, 0, 1, 1], [], []>} : vector<160x88xf32>, vector<88x10xf32>, vector<160x10xf32> -> vector<160x10xf32>
    %186 = arith.addf %182, %185 : vector<160x10xf32>
    %c0_96 = arith.constant 0 : index
    %c264_97 = arith.constant 264 : index
    %187 = vector.load %arg3[%c0_96, %c264_97] : memref<160x440xf32, #tpu.memory_space<vmem>>, vector<160x88xf32>
    %188 = vector.extract_strided_slice %175 {offsets = [0, 3], sizes = [88, 10], strides = [1, 1]} : vector<88x14xf32> to vector<88x10xf32>
    %cst_98 = arith.constant dense<0.000000e+00> : vector<160x10xf32>
    %189 = tpu.matmul %187, %188, %cst_98 {dimension_numbers = #tpu.dot_dimension_numbers<[1], [0], [0], [1], [0, 0, 1, 1], [], []>} : vector<160x88xf32>, vector<88x10xf32>, vector<160x10xf32> -> vector<160x10xf32>
    %190 = arith.addf %186, %189 : vector<160x10xf32>
    %c0_99 = arith.constant 0 : index
    %c352_100 = arith.constant 352 : index
    %191 = vector.load %arg3[%c0_99, %c352_100] : memref<160x440xf32, #tpu.memory_space<vmem>>, vector<160x88xf32>
    %192 = vector.extract_strided_slice %175 {offsets = [0, 4], sizes = [88, 10], strides = [1, 1]} : vector<88x14xf32> to vector<88x10xf32>
    %cst_101 = arith.constant dense<0.000000e+00> : vector<160x10xf32>
    %193 = tpu.matmul %191, %192, %cst_101 {dimension_numbers = #tpu.dot_dimension_numbers<[1], [0], [0], [1], [0, 0, 1, 1], [], []>} : vector<160x88xf32>, vector<88x10xf32>, vector<160x10xf32> -> vector<160x10xf32>
    %194 = arith.addf %190, %193 : vector<160x10xf32>
    %c0_102 = arith.constant 0 : index
    %c0_103 = arith.constant 0 : index
    %195 = vector.load %arg4[%c0_102, %c0_103] : memref<160x1xf32, #tpu.memory_space<vmem>>, vector<160x1xf32>
    %196 = vector.broadcast %195 : vector<160x1xf32> to vector<160x10xf32>
    %197 = arith.addf %194, %196 : vector<160x10xf32>
    %cst_104 = arith.constant 0.000000e+00 : f32
    %198 = vector.broadcast %cst_104 : f32 to vector<160x10xf32>
    %199 = arith.maximumf %197, %198 : vector<160x10xf32>
    %200 = vector.extract_strided_slice %199 {offsets = [0, 0], sizes = [160, 9], strides = [1, 1]} : vector<160x10xf32> to vector<160x9xf32>
    %201 = vector.extract_strided_slice %199 {offsets = [0, 1], sizes = [160, 9], strides = [1, 1]} : vector<160x10xf32> to vector<160x9xf32>
    %202 = arith.maximumf %200, %201 : vector<160x9xf32>
    %203 = vector.extract_strided_slice %202 {offsets = [0, 0], sizes = [159, 9], strides = [1, 1]} : vector<160x9xf32> to vector<159x9xf32>
    %204 = vector.extract_strided_slice %202 {offsets = [1, 0], sizes = [159, 9], strides = [1, 1]} : vector<160x9xf32> to vector<159x9xf32>
    %205 = arith.maximumf %203, %204 : vector<159x9xf32>
    %206 = tpu.iota {dimensions = array<i32: 1>} : vector<80x159xi32>
    %207 = tpu.iota {dimensions = array<i32: 0>} : vector<80x159xi32>
    %c2_i32_105 = arith.constant 2 : i32
    %208 = vector.broadcast %c2_i32_105 : i32 to vector<80x159xi32>
    %209 = arith.muli %208, %207 : vector<80x159xi32>
    %210 = arith.cmpi eq, %206, %209 : vector<80x159xi32>
    %211 = arith.extui %210 : vector<80x159xi1> to vector<80x159xi32>
    %212 = arith.sitofp %211 : vector<80x159xi32> to vector<80x159xf32>
    %213 = tpu.iota {dimensions = array<i32: 0>} : vector<9x5xi32>
    %214 = tpu.iota {dimensions = array<i32: 1>} : vector<9x5xi32>
    %c2_i32_106 = arith.constant 2 : i32
    %215 = vector.broadcast %c2_i32_106 : i32 to vector<9x5xi32>
    %216 = arith.muli %215, %214 : vector<9x5xi32>
    %217 = arith.cmpi eq, %213, %216 : vector<9x5xi32>
    %218 = arith.extui %217 : vector<9x5xi1> to vector<9x5xi32>
    %219 = arith.sitofp %218 : vector<9x5xi32> to vector<9x5xf32>
    %cst_107 = arith.constant dense<0.000000e+00> : vector<80x9xf32>
    %220 = tpu.matmul %212, %205, %cst_107 {dimension_numbers = #tpu.dot_dimension_numbers<[1], [0], [0], [1], [0, 0, 1, 1], [], []>} : vector<80x159xf32>, vector<159x9xf32>, vector<80x9xf32> -> vector<80x9xf32>
    %cst_108 = arith.constant dense<0.000000e+00> : vector<80x5xf32>
    %221 = tpu.matmul %220, %219, %cst_108 {dimension_numbers = #tpu.dot_dimension_numbers<[1], [0], [0], [1], [0, 0, 1, 1], [], []>} : vector<80x9xf32>, vector<9x5xf32>, vector<80x5xf32> -> vector<80x5xf32>
    %c0_109 = arith.constant 0 : index
    %c0_110 = arith.constant 0 : index
    %222 = vector.load %arg5[%c0_109, %c0_110] : memref<120x400xf32, #tpu.memory_space<vmem>>, vector<120x80xf32>
    %223 = vector.extract_strided_slice %221 {offsets = [0, 0], sizes = [80, 1], strides = [1, 1]} : vector<80x5xf32> to vector<80x1xf32>
    %cst_111 = arith.constant dense<0.000000e+00> : vector<120x1xf32>
    %224 = tpu.matmul %222, %223, %cst_111 {dimension_numbers = #tpu.dot_dimension_numbers<[1], [0], [0], [1], [0, 0, 1, 1], [], []>} : vector<120x80xf32>, vector<80x1xf32>, vector<120x1xf32> -> vector<120x1xf32>
    %c0_112 = arith.constant 0 : index
    %c80_113 = arith.constant 80 : index
    %225 = vector.load %arg5[%c0_112, %c80_113] : memref<120x400xf32, #tpu.memory_space<vmem>>, vector<120x80xf32>
    %226 = vector.extract_strided_slice %221 {offsets = [0, 1], sizes = [80, 1], strides = [1, 1]} : vector<80x5xf32> to vector<80x1xf32>
    %cst_114 = arith.constant dense<0.000000e+00> : vector<120x1xf32>
    %227 = tpu.matmul %225, %226, %cst_114 {dimension_numbers = #tpu.dot_dimension_numbers<[1], [0], [0], [1], [0, 0, 1, 1], [], []>} : vector<120x80xf32>, vector<80x1xf32>, vector<120x1xf32> -> vector<120x1xf32>
    %228 = arith.addf %224, %227 : vector<120x1xf32>
    %c0_115 = arith.constant 0 : index
    %c160_116 = arith.constant 160 : index
    %229 = vector.load %arg5[%c0_115, %c160_116] : memref<120x400xf32, #tpu.memory_space<vmem>>, vector<120x80xf32>
    %230 = vector.extract_strided_slice %221 {offsets = [0, 2], sizes = [80, 1], strides = [1, 1]} : vector<80x5xf32> to vector<80x1xf32>
    %cst_117 = arith.constant dense<0.000000e+00> : vector<120x1xf32>
    %231 = tpu.matmul %229, %230, %cst_117 {dimension_numbers = #tpu.dot_dimension_numbers<[1], [0], [0], [1], [0, 0, 1, 1], [], []>} : vector<120x80xf32>, vector<80x1xf32>, vector<120x1xf32> -> vector<120x1xf32>
    %232 = arith.addf %228, %231 : vector<120x1xf32>
    %c0_118 = arith.constant 0 : index
    %c240_119 = arith.constant 240 : index
    %233 = vector.load %arg5[%c0_118, %c240_119] : memref<120x400xf32, #tpu.memory_space<vmem>>, vector<120x80xf32>
    %234 = vector.extract_strided_slice %221 {offsets = [0, 3], sizes = [80, 1], strides = [1, 1]} : vector<80x5xf32> to vector<80x1xf32>
    %cst_120 = arith.constant dense<0.000000e+00> : vector<120x1xf32>
    %235 = tpu.matmul %233, %234, %cst_120 {dimension_numbers = #tpu.dot_dimension_numbers<[1], [0], [0], [1], [0, 0, 1, 1], [], []>} : vector<120x80xf32>, vector<80x1xf32>, vector<120x1xf32> -> vector<120x1xf32>
    %236 = arith.addf %232, %235 : vector<120x1xf32>
    %c0_121 = arith.constant 0 : index
    %c320_122 = arith.constant 320 : index
    %237 = vector.load %arg5[%c0_121, %c320_122] : memref<120x400xf32, #tpu.memory_space<vmem>>, vector<120x80xf32>
    %238 = vector.extract_strided_slice %221 {offsets = [0, 4], sizes = [80, 1], strides = [1, 1]} : vector<80x5xf32> to vector<80x1xf32>
    %cst_123 = arith.constant dense<0.000000e+00> : vector<120x1xf32>
    %239 = tpu.matmul %237, %238, %cst_123 {dimension_numbers = #tpu.dot_dimension_numbers<[1], [0], [0], [1], [0, 0, 1, 1], [], []>} : vector<120x80xf32>, vector<80x1xf32>, vector<120x1xf32> -> vector<120x1xf32>
    %240 = arith.addf %236, %239 : vector<120x1xf32>
    %c0_124 = arith.constant 0 : index
    %c0_125 = arith.constant 0 : index
    %241 = vector.load %arg6[%c0_124, %c0_125] : memref<120x1xf32, #tpu.memory_space<vmem>>, vector<120x1xf32>
    %242 = arith.addf %240, %241 : vector<120x1xf32>
    %cst_126 = arith.constant 0.000000e+00 : f32
    %243 = vector.broadcast %cst_126 : f32 to vector<120x1xf32>
    %244 = arith.maximumf %242, %243 : vector<120x1xf32>
    %c0_127 = arith.constant 0 : index
    %c0_128 = arith.constant 0 : index
    %245 = vector.load %arg7[%c0_127, %c0_128] : memref<84x120xf32, #tpu.memory_space<vmem>>, vector<84x120xf32>
    %cst_129 = arith.constant dense<0.000000e+00> : vector<84x1xf32>
    %246 = tpu.matmul %245, %244, %cst_129 {dimension_numbers = #tpu.dot_dimension_numbers<[1], [0], [0], [1], [0, 0, 1, 1], [], []>} : vector<84x120xf32>, vector<120x1xf32>, vector<84x1xf32> -> vector<84x1xf32>
    %c0_130 = arith.constant 0 : index
    %c0_131 = arith.constant 0 : index
    %247 = vector.load %arg8[%c0_130, %c0_131] : memref<84x1xf32, #tpu.memory_space<vmem>>, vector<84x1xf32>
    %248 = arith.addf %246, %247 : vector<84x1xf32>
    %cst_132 = arith.constant 0.000000e+00 : f32
    %249 = vector.broadcast %cst_132 : f32 to vector<84x1xf32>
    %250 = arith.maximumf %248, %249 : vector<84x1xf32>
    %c0_133 = arith.constant 0 : index
    %c0_134 = arith.constant 0 : index
    %251 = vector.load %arg9[%c0_133, %c0_134] : memref<10x84xf32, #tpu.memory_space<vmem>>, vector<10x84xf32>
    %cst_135 = arith.constant dense<0.000000e+00> : vector<10x1xf32>
    %252 = tpu.matmul %251, %250, %cst_135 {dimension_numbers = #tpu.dot_dimension_numbers<[1], [0], [0], [1], [0, 0, 1, 1], [], []>} : vector<10x84xf32>, vector<84x1xf32>, vector<10x1xf32> -> vector<10x1xf32>
    %c0_136 = arith.constant 0 : index
    %c0_137 = arith.constant 0 : index
    %253 = vector.load %arg10[%c0_136, %c0_137] : memref<10x1xf32, #tpu.memory_space<vmem>>, vector<10x1xf32>
    %254 = arith.addf %252, %253 : vector<10x1xf32>
    %c0_138 = arith.constant 0 : index
    %c1_139 = arith.constant 1 : index
    %255 = vector.load %arg11[%c0_138, %c1_139] : memref<10x2xf32, #tpu.memory_space<vmem>>, vector<10x1xf32>
    tpu.vector_store %arg11[%c0_138, %c1_139], %254 {strides = array<i32>} : memref<10x2xf32, #tpu.memory_space<vmem>>, vector<10x1xf32>,
    return
  }
}

</mosaic_0001>

<llo_original>
// kernel: net_forward.1
$region0: #{net_forward.1}
  #allocation0 [shape = 'u32[]', space=smem, size = 0x4, offset = 0x4, fixed_abs, tag = 'smem constant byte address 0x4 - core index']
  #allocation1 [shape = 'u32[144,128]{1,0:T(1,128)}', space=vmem, size = 0x12000, scoped, tag = 'internal scratch']
  %s0 = inlined_call_operand.vmem [shape: f32[2,32,32], index: 0, kind: input, shape index: {}]
  %s1 = inlined_call_operand.vmem [shape: f32[168,160], index: 1, kind: input, shape index: {}]
  %s2 = inlined_call_operand.vmem [shape: f32[168,1], index: 2, kind: input, shape index: {}]
  %s3 = inlined_call_operand.vmem [shape: f32[160,440], index: 3, kind: input, shape index: {}]
  %s4 = inlined_call_operand.vmem [shape: f32[160,1], index: 4, kind: input, shape index: {}]
  %s5 = inlined_call_operand.vmem [shape: f32[120,400], index: 5, kind: input, shape index: {}]
  %s6 = inlined_call_operand.vmem [shape: f32[120,1], index: 6, kind: input, shape index: {}]
  %s7 = inlined_call_operand.vmem [shape: f32[84,120], index: 7, kind: input, shape index: {}]
  %s8 = inlined_call_operand.vmem [shape: f32[84,1], index: 8, kind: input, shape index: {}]
  %s9 = inlined_call_operand.vmem [shape: f32[10,84], index: 9, kind: input, shape index: {}]
  %s10 = inlined_call_operand.vmem [shape: f32[10,1], index: 10, kind: input, shape index: {}]
  %s11 = inlined_call_operand.vmem [shape: f32[10,2], index: 11, kind: output, shape index: {}]
  %s12 = sld [smem:[#allocation0]]
  $region54: #{net_forward.1} parent=0
    _
  %s14 = ssub.s32 1, %s12
  %s15 = scalar_select 0, %s14, %s12
  // Predicated region
  $region2: #{net_forward.1} parent=0 // pred_check
    _
  $region3: #{net_forward.1} parent=0 // pred_check_branch
    %17 = sbr.rel (0) target = $region5
  $region4: #{net_forward.1} parent=0 // pred_region
    _
  $region5: #{net_forward.1} parent=0 // pred_fallthru
    _
  // Predicated region
  $region6: #{net_forward.1} parent=0 // pred_check
    _
  $region7: #{net_forward.1} parent=0 // pred_check_branch
    %19 = sbr.rel (0) target = $region9
  $region8: #{net_forward.1} parent=0 // pred_region
    _
  $region9: #{net_forward.1} parent=0 // pred_fallthru
    _
  // Predicated region
  $region10: #{net_forward.1} parent=0 // pred_check
    _
  $region11: #{net_forward.1} parent=0 // pred_check_branch
    %21 = sbr.rel (0) target = $region13
  $region12: #{net_forward.1} parent=0 // pred_region
    _
  $region13: #{net_forward.1} parent=0 // pred_fallthru
    _
  // Predicated region
  $region14: #{net_forward.1} parent=0 // pred_check
    _
  $region15: #{net_forward.1} parent=0 // pred_check_branch
    %23 = sbr.rel (0) target = $region17
  $region16: #{net_forward.1} parent=0 // pred_region
    _
  $region17: #{net_forward.1} parent=0 // pred_fallthru
    _
  // Predicated region
  $region18: #{net_forward.1} parent=0 // pred_check
    _
  $region19: #{net_forward.1} parent=0 // pred_check_branch
    %25 = sbr.rel (0) target = $region21
  $region20: #{net_forward.1} parent=0 // pred_region
    _
  $region21: #{net_forward.1} parent=0 // pred_fallthru
    _
  // Predicated region
  $region22: #{net_forward.1} parent=0 // pred_check
    _
  $region23: #{net_forward.1} parent=0 // pred_check_branch
    %27 = sbr.rel (0) target = $region25
  $region24: #{net_forward.1} parent=0 // pred_region
    _
  $region25: #{net_forward.1} parent=0 // pred_fallthru
    _
  // Predicated region
  $region26: #{net_forward.1} parent=0 // pred_check
    _
  $region27: #{net_forward.1} parent=0 // pred_check_branch
    %29 = sbr.rel (0) target = $region29
  $region28: #{net_forward.1} parent=0 // pred_region
    _
  $region29: #{net_forward.1} parent=0 // pred_fallthru
    _
  // Predicated region
  $region30: #{net_forward.1} parent=0 // pred_check
    _
  $region31: #{net_forward.1} parent=0 // pred_check_branch
    %31 = sbr.rel (0) target = $region33
  $region32: #{net_forward.1} parent=0 // pred_region
    _
  $region33: #{net_forward.1} parent=0 // pred_fallthru
    _
  // Predicated region
  $region34: #{net_forward.1} parent=0 // pred_check
    _
  $region35: #{net_forward.1} parent=0 // pred_check_branch
    %33 = sbr.rel (0) target = $region37
  $region36: #{net_forward.1} parent=0 // pred_region
    _
  $region37: #{net_forward.1} parent=0 // pred_fallthru
    _
  // Predicated region
  $region38: #{net_forward.1} parent=0 // pred_check
    _
  $region39: #{net_forward.1} parent=0 // pred_check_branch
    %35 = sbr.rel (0) target = $region41
  $region40: #{net_forward.1} parent=0 // pred_region
    _
  $region41: #{net_forward.1} parent=0 // pred_fallthru
    _
  // Predicated region
  $region42: #{net_forward.1} parent=0 // pred_check
    _
  $region43: #{net_forward.1} parent=0 // pred_check_branch
    %37 = sbr.rel (0) target = $region45
  $region44: #{net_forward.1} parent=0 // pred_region
    _
  $region45: #{net_forward.1} parent=0 // pred_fallthru
    _
  %v38 = vld [vmem:[%s0] sm:$0xff]
  %v39 = vld [vmem:[%s0 + $0x8] sm:$0xff]
  %v40 = vld [vmem:[%s0 + $0x10] sm:$0xff]
  %v41 = vld [vmem:[%s0 + $0x18] sm:$0xff]
  %v42 = vld [vmem:[%s1] sm:$0xff]
  %v43 = vld [vmem:[%s1 + $0x10] sm:$0xff]
  %v44 = vld [vmem:[%s1 + $0x20] sm:$0xff]
  %v45 = vld [vmem:[%s1 + $0x30] sm:$0xff]
  %v46 = vld [vmem:[%s1 + $0x40] sm:$0xff]
  %v47 = vld [vmem:[%s1 + $0x50] sm:$0xff]
  %v48 = vld [vmem:[%s1 + $0x60] sm:$0xff]
  %v49 = vld [vmem:[%s1 + $0x70] sm:$0xff]
  %v50 = vld [vmem:[%s1 + $0x80] sm:$0xff]
  %v51 = vld [vmem:[%s1 + $0x90] sm:$0xff]
  %v52 = vld [vmem:[%s1 + $0xa0] sm:$0xff]
  %v53 = vld [vmem:[%s1 + $0xb0] sm:$0xff]
  %v54 = vld [vmem:[%s1 + $0xc0] sm:$0xff]
  %v55 = vld [vmem:[%s1 + $0xd0] sm:$0xff]
  %v56 = vld [vmem:[%s1 + $0xe0] sm:$0xff]
  %v57 = vld [vmem:[%s1 + $0xf0] sm:$0xff]
  %v58 = vld [vmem:[%s1 + $0x100] sm:$0xff]
  %v59 = vld [vmem:[%s1 + $0x110] sm:$0xff]
  %v60 = vld [vmem:[%s1 + $0x120] sm:$0xff]
  %v61 = vld [vmem:[%s1 + $0x130] sm:$0xff]
  %v62 = vld [vmem:[%s1 + $0x140] sm:$0xff]
  %84 = vrot.lane.b32.xlu0 %v42, 96
  %v85 = vpop.permute.xlu0 %84
  %86 = vrot.lane.b32.xlu0 %v43, 96
  %v87 = vpop.permute.xlu0 %86
  %88 = vrot.lane.b32.xlu0 %v44, 96
  %v89 = vpop.permute.xlu0 %88
  %90 = vrot.lane.b32.xlu0 %v45, 96
  %v91 = vpop.permute.xlu0 %90
  %92 = vrot.lane.b32.xlu0 %v46, 96
  %v93 = vpop.permute.xlu0 %92
  %94 = vrot.lane.b32.xlu0 %v47, 96
  %v95 = vpop.permute.xlu0 %94
  %96 = vrot.lane.b32.xlu0 %v48, 96
  %v97 = vpop.permute.xlu0 %96
  %98 = vrot.lane.b32.xlu0 %v49, 96
  %v99 = vpop.permute.xlu0 %98
  %100 = vrot.lane.b32.xlu0 %v50, 96
  %v101 = vpop.permute.xlu0 %100
  %102 = vrot.lane.b32.xlu0 %v51, 96
  %v103 = vpop.permute.xlu0 %102
  %104 = vrot.lane.b32.xlu0 %v52, 96
  %v105 = vpop.permute.xlu0 %104
  %106 = vrot.lane.b32.xlu0 %v53, 96
  %v107 = vpop.permute.xlu0 %106
  %108 = vrot.lane.b32.xlu0 %v54, 96
  %v109 = vpop.permute.xlu0 %108
  %110 = vrot.lane.b32.xlu0 %v55, 96
  %v111 = vpop.permute.xlu0 %110
  %112 = vrot.lane.b32.xlu0 %v56, 96
  %v113 = vpop.permute.xlu0 %112
  %114 = vrot.lane.b32.xlu0 %v57, 96
  %v115 = vpop.permute.xlu0 %114
  %116 = vrot.lane.b32.xlu0 %v58, 96
  %v117 = vpop.permute.xlu0 %116
  %118 = vrot.lane.b32.xlu0 %v59, 96
  %v119 = vpop.permute.xlu0 %118
  %120 = vrot.lane.b32.xlu0 %v60, 96
  %v121 = vpop.permute.xlu0 %120
  %122 = vrot.lane.b32.xlu0 %v61, 96
  %v123 = vpop.permute.xlu0 %122
  %124 = vrot.lane.b32.xlu0 %v62, 96
  %v125 = vpop.permute.xlu0 %124
  %130 = vrot.lane.b32.xlu0 %v38, 127
  %v131 = vpop.permute.xlu0 %130
  %132 = vrot.lane.b32.xlu0 %v39, 127
  %v133 = vpop.permute.xlu0 %132
  %134 = vrot.lane.b32.xlu0 %v40, 127
  %v135 = vpop.permute.xlu0 %134
  %136 = vrot.lane.b32.xlu0 %v41, 127
  %v137 = vpop.permute.xlu0 %136
  %vm142 = vcmask 261120
  %v143 = vsel %vm142, %v85, 0
  %v145 = vsel %vm142, %v87, 0
  %v147 = vsel %vm142, %v89, 0
  %v149 = vsel %vm142, %v91, 0
  %v151 = vsel %vm142, %v93, 0
  %v153 = vsel %vm142, %v95, 0
  %v155 = vsel %vm142, %v97, 0
  %v157 = vsel %vm142, %v99, 0
  %v159 = vsel %vm142, %v101, 0
  %v161 = vsel %vm142, %v103, 0
  %v163 = vsel %vm142, %v105, 0
  %v165 = vsel %vm142, %v107, 0
  %v167 = vsel %vm142, %v109, 0
  %v169 = vsel %vm142, %v111, 0
  %v171 = vsel %vm142, %v113, 0
  %v173 = vsel %vm142, %v115, 0
  %v175 = vsel %vm142, %v117, 0
  %v177 = vsel %vm142, %v119, 0
  %v179 = vsel %vm142, %v121, 0
  %v181 = vsel %vm142, %v123, 0
  %v183 = vsel %vm142, %v125, 0
  %185 = vmatprep.subr.mxu0 0.0
  %186 = vmatpush1.msra.mxu0 0.0
  %187 = vmatprep.subr.mxu0 0.0
  %188 = vmatpush1.msra.mxu0 0.0
  %189 = vmatprep.subr.mxu0 0.0
  %190 = vmatpush1.msra.mxu0 0.0
  %191 = vmatprep.subr.mxu0 0.0
  %192 = vmatpush1.msra.mxu0 0.0
  %193 = vmatprep.subr.mxu0 0.0
  %194 = vmatpush1.msra.mxu0 0.0
  %195 = vmatprep.subr.mxu0 0.0
  %196 = vmatpush1.msra.mxu0 0.0
  %197 = vmatprep.subr.mxu0 0.0
  %198 = vmatpush1.msra.mxu0 0.0
  %199 = vmatprep.subr.mxu0 0.0
  %200 = vmatpush1.msra.mxu0 0.0
  %201 = vmatprep.subr.mxu0 0.0
  %202 = vmatpush1.msra.mxu0 0.0
  %203 = vmatprep.subr.mxu0 0.0
  %204 = vmatpush1.msra.mxu0 0.0
  %205 = vmatprep.subr.mxu0 0.0
  %206 = vmatpush1.msra.mxu0 0.0
  %207 = vmatprep.subr.mxu0 0.0
  %208 = vmatpush1.msra.mxu0 0.0
  %209 = vmatprep.subr.mxu0 0.0
  %210 = vmatpush1.msra.mxu0 %v137
  %211 = vmatprep.subr.mxu0 0.0
  %212 = vmatpush1.msra.mxu0 %v135
  %213 = vmatprep.subr.mxu0 0.0
  %214 = vmatpush1.msra.mxu0 %v133
  %215 = vmatprep.subr.mxu0 0.0
  %216 = vmatpush1.msra.mxu0 %v131
  %217 = vmatprep.subr.mxu0 0.0
  %218 = vmatpush2.msra.mxu0 0.0
  %219 = vmatprep.subr.mxu0 0.0
  %220 = vmatpush2.msra.mxu0 0.0
  %221 = vmatprep.subr.mxu0 0.0
  %222 = vmatpush2.msra.mxu0 0.0
  %223 = vmatprep.subr.mxu0 0.0
  %224 = vmatpush2.msra.mxu0 0.0
  %225 = vmatprep.subr.mxu0 0.0
  %226 = vmatpush2.msra.mxu0 0.0
  %227 = vmatprep.subr.mxu0 0.0
  %228 = vmatpush2.msra.mxu0 0.0
  %229 = vmatprep.subr.mxu0 0.0
  %230 = vmatpush2.msra.mxu0 0.0
  %231 = vmatprep.subr.mxu0 0.0
  %232 = vmatpush2.msra.mxu0 0.0
  %233 = vmatprep.subr.mxu0 0.0
  %234 = vmatpush2.msra.mxu0 0.0
  %235 = vmatprep.subr.mxu0 0.0
  %236 = vmatpush2.msra.mxu0 0.0
  %237 = vmatprep.subr.mxu0 0.0
  %238 = vmatpush2.msra.mxu0 0.0
  %239 = vmatprep.subr.mxu0 0.0
  %240 = vmatpush2.msra.mxu0 0.0
  %241 = vmatprep.subr.mxu0 0.0
  %242 = vmatpush2.msra.mxu0 0.0
  %243 = vmatprep.subr.mxu0 0.0
  %244 = vmatpush2.msra.mxu0 0.0
  %245 = vmatprep.subr.mxu0 0.0
  %246 = vmatpush2.msra.mxu0 0.0
  %247 = vmatprep.subr.mxu0 0.0
  %248 = vmatpush2.msra.mxu0 0.0
  %249 = vmatprep.mubr.f32.mxu0 0.0
  %250 = vmatmul.mubr.f32.gmra.mxu0 %v143
  %v251 = vpop.f32.mrf.mxu0
  %v252 = vadd.f32 0.0, %v251
  %v253 = vpop.f32.mrf.mxu0
  %254 = vmatprep.mubr.f32.mxu0 0.0
  %255 = vmatmul.mubr.f32.gmra.mxu0 %v145
  %v256 = vpop.f32.mrf.mxu0
  %v257 = vadd.f32 0.0, %v256
  %v258 = vpop.f32.mrf.mxu0
  %259 = vmatprep.mubr.f32.mxu0 0.0
  %260 = vmatmul.mubr.f32.gmra.mxu0 %v147
  %v261 = vpop.f32.mrf.mxu0
  %v262 = vadd.f32 0.0, %v261
  %v263 = vpop.f32.mrf.mxu0
  %264 = vmatprep.mubr.f32.mxu0 0.0
  %265 = vmatmul.mubr.f32.gmra.mxu0 %v149
  %v266 = vpop.f32.mrf.mxu0
  %v267 = vadd.f32 0.0, %v266
  %v268 = vpop.f32.mrf.mxu0
  %269 = vmatprep.mubr.f32.mxu0 0.0
  %270 = vmatmul.mubr.f32.gmra.mxu0 %v151
  %v271 = vpop.f32.mrf.mxu0
  %v272 = vadd.f32 0.0, %v271
  %v273 = vpop.f32.mrf.mxu0
  %274 = vmatprep.mubr.f32.mxu0 0.0
  %275 = vmatmul.mubr.f32.gmra.mxu0 %v153
  %v276 = vpop.f32.mrf.mxu0
  %v277 = vadd.f32 0.0, %v276
  %v278 = vpop.f32.mrf.mxu0
  %279 = vmatprep.mubr.f32.mxu0 0.0
  %280 = vmatmul.mubr.f32.gmra.mxu0 %v155
  %v281 = vpop.f32.mrf.mxu0
  %v282 = vadd.f32 0.0, %v281
  %v283 = vpop.f32.mrf.mxu0
  %284 = vmatprep.mubr.f32.mxu0 0.0
  %285 = vmatmul.mubr.f32.gmra.mxu0 %v157
  %v286 = vpop.f32.mrf.mxu0
  %v287 = vadd.f32 0.0, %v286
  %v288 = vpop.f32.mrf.mxu0
  %289 = vmatprep.mubr.f32.mxu0 0.0
  %290 = vmatmul.mubr.f32.gmra.mxu0 %v159
  %v291 = vpop.f32.mrf.mxu0
  %v292 = vadd.f32 0.0, %v291
  %v293 = vpop.f32.mrf.mxu0
  %294 = vmatprep.mubr.f32.mxu0 0.0
  %295 = vmatmul.mubr.f32.gmra.mxu0 %v161
  %v296 = vpop.f32.mrf.mxu0
  %v297 = vadd.f32 0.0, %v296
  %v298 = vpop.f32.mrf.mxu0
  %299 = vmatprep.mubr.f32.mxu0 0.0
  %300 = vmatmul.mubr.f32.gmra.mxu0 %v163
  %v301 = vpop.f32.mrf.mxu0
  %v302 = vadd.f32 0.0, %v301
  %v303 = vpop.f32.mrf.mxu0
  %304 = vmatprep.mubr.f32.mxu0 0.0
  %305 = vmatmul.mubr.f32.gmra.mxu0 %v165
  %v306 = vpop.f32.mrf.mxu0
  %v307 = vadd.f32 0.0, %v306
  %v308 = vpop.f32.mrf.mxu0
  %309 = vmatprep.mubr.f32.mxu0 0.0
  %310 = vmatmul.mubr.f32.gmra.mxu0 %v167
  %v311 = vpop.f32.mrf.mxu0
  %v312 = vadd.f32 0.0, %v311
  %v313 = vpop.f32.mrf.mxu0
  %314 = vmatprep.mubr.f32.mxu0 0.0
  %315 = vmatmul.mubr.f32.gmra.mxu0 %v169
  %v316 = vpop.f32.mrf.mxu0
  %v317 = vadd.f32 0.0, %v316
  %v318 = vpop.f32.mrf.mxu0
  %319 = vmatprep.mubr.f32.mxu0 0.0
  %320 = vmatmul.mubr.f32.gmra.mxu0 %v171
  %v321 = vpop.f32.mrf.mxu0
  %v322 = vadd.f32 0.0, %v321
  %v323 = vpop.f32.mrf.mxu0
  %324 = vmatprep.mubr.f32.mxu0 0.0
  %325 = vmatmul.mubr.f32.gmra.mxu0 %v173
  %v326 = vpop.f32.mrf.mxu0
  %v327 = vadd.f32 0.0, %v326
  %v328 = vpop.f32.mrf.mxu0
  %329 = vmatprep.mubr.f32.mxu0 0.0
  %330 = vmatmul.mubr.f32.gmra.mxu0 %v175
  %v331 = vpop.f32.mrf.mxu0
  %v332 = vadd.f32 0.0, %v331
  %v333 = vpop.f32.mrf.mxu0
  %334 = vmatprep.mubr.f32.mxu0 0.0
  %335 = vmatmul.mubr.f32.gmra.mxu0 %v177
  %v336 = vpop.f32.mrf.mxu0
  %v337 = vadd.f32 0.0, %v336
  %v338 = vpop.f32.mrf.mxu0
  %339 = vmatprep.mubr.f32.mxu0 0.0
  %340 = vmatmul.mubr.f32.gmra.mxu0 %v179
  %v341 = vpop.f32.mrf.mxu0
  %v342 = vadd.f32 0.0, %v341
  %v343 = vpop.f32.mrf.mxu0
  %344 = vmatprep.mubr.f32.mxu0 0.0
  %345 = vmatmul.mubr.f32.gmra.mxu0 %v181
  %v346 = vpop.f32.mrf.mxu0
  %v347 = vadd.f32 0.0, %v346
  %v348 = vpop.f32.mrf.mxu0
  %349 = vmatprep.mubr.f32.mxu0 0.0
  %350 = vmatmul.mubr.f32.gmra.mxu0 %v183
  %v351 = vpop.f32.mrf.mxu0
  %v352 = vadd.f32 0.0, %v351
  %v353 = vpop.f32.mrf.mxu0
  %354 = vdwg.mxu0
  %v355 = vsel %vm142, %v42, 0
  %v357 = vsel %vm142, %v43, 0
  %v359 = vsel %vm142, %v44, 0
  %v361 = vsel %vm142, %v45, 0
  %v363 = vsel %vm142, %v46, 0
  %v365 = vsel %vm142, %v47, 0
  %v367 = vsel %vm142, %v48, 0
  %v369 = vsel %vm142, %v49, 0
  %v371 = vsel %vm142, %v50, 0
  %v373 = vsel %vm142, %v51, 0
  %v375 = vsel %vm142, %v52, 0
  %v377 = vsel %vm142, %v53, 0
  %v379 = vsel %vm142, %v54, 0
  %v381 = vsel %vm142, %v55, 0
  %v383 = vsel %vm142, %v56, 0
  %v385 = vsel %vm142, %v57, 0
  %v387 = vsel %vm142, %v58, 0
  %v389 = vsel %vm142, %v59, 0
  %v391 = vsel %vm142, %v60, 0
  %v393 = vsel %vm142, %v61, 0
  %v395 = vsel %vm142, %v62, 0
  %397 = vmatprep.subr.mxu0 0.0
  %398 = vmatpush1.msra.mxu0 0.0
  %399 = vmatprep.subr.mxu0 0.0
  %400 = vmatpush1.msra.mxu0 0.0
  %401 = vmatprep.subr.mxu0 0.0
  %402 = vmatpush1.msra.mxu0 0.0
  %403 = vmatprep.subr.mxu0 0.0
  %404 = vmatpush1.msra.mxu0 0.0
  %405 = vmatprep.subr.mxu0 0.0
  %406 = vmatpush1.msra.mxu0 0.0
  %407 = vmatprep.subr.mxu0 0.0
  %408 = vmatpush1.msra.mxu0 0.0
  %409 = vmatprep.subr.mxu0 0.0
  %410 = vmatpush1.msra.mxu0 0.0
  %411 = vmatprep.subr.mxu0 0.0
  %412 = vmatpush1.msra.mxu0 0.0
  %413 = vmatprep.subr.mxu0 0.0
  %414 = vmatpush1.msra.mxu0 0.0
  %415 = vmatprep.subr.mxu0 0.0
  %416 = vmatpush1.msra.mxu0 0.0
  %417 = vmatprep.subr.mxu0 0.0
  %418 = vmatpush1.msra.mxu0 0.0
  %419 = vmatprep.subr.mxu0 0.0
  %420 = vmatpush1.msra.mxu0 0.0
  %421 = vmatprep.subr.mxu0 0.0
  %422 = vmatpush1.msra.mxu0 %v41
  %423 = vmatprep.subr.mxu0 0.0
  %424 = vmatpush1.msra.mxu0 %v40
  %425 = vmatprep.subr.mxu0 0.0
  %426 = vmatpush1.msra.mxu0 %v39
  %427 = vmatprep.subr.mxu0 0.0
  %428 = vmatpush1.msra.mxu0 %v38
  %429 = vmatprep.subr.mxu0 0.0
  %430 = vmatpush2.msra.mxu0 0.0
  %431 = vmatprep.subr.mxu0 0.0
  %432 = vmatpush2.msra.mxu0 0.0
  %433 = vmatprep.subr.mxu0 0.0
  %434 = vmatpush2.msra.mxu0 0.0
  %435 = vmatprep.subr.mxu0 0.0
  %436 = vmatpush2.msra.mxu0 0.0
  %437 = vmatprep.subr.mxu0 0.0
  %438 = vmatpush2.msra.mxu0 0.0
  %439 = vmatprep.subr.mxu0 0.0
  %440 = vmatpush2.msra.mxu0 0.0
  %441 = vmatprep.subr.mxu0 0.0
  %442 = vmatpush2.msra.mxu0 0.0
  %443 = vmatprep.subr.mxu0 0.0
  %444 = vmatpush2.msra.mxu0 0.0
  %445 = vmatprep.subr.mxu0 0.0
  %446 = vmatpush2.msra.mxu0 0.0
  %447 = vmatprep.subr.mxu0 0.0
  %448 = vmatpush2.msra.mxu0 0.0
  %449 = vmatprep.subr.mxu0 0.0
  %450 = vmatpush2.msra.mxu0 0.0
  %451 = vmatprep.subr.mxu0 0.0
  %452 = vmatpush2.msra.mxu0 0.0
  %453 = vmatprep.subr.mxu0 0.0
  %454 = vmatpush2.msra.mxu0 0.0
  %455 = vmatprep.subr.mxu0 0.0
  %456 = vmatpush2.msra.mxu0 0.0
  %457 = vmatprep.subr.mxu0 0.0
  %458 = vmatpush2.msra.mxu0 0.0
  %459 = vmatprep.subr.mxu0 0.0
  %460 = vmatpush2.msra.mxu0 0.0
  %461 = vmatprep.mubr.f32.mxu0 0.0
  %462 = vmatmul.mubr.f32.gmra.mxu0 %v355
  %v463 = vpop.f32.mrf.mxu0
  %v464 = vadd.f32 %v252, %v463
  %v465 = vpop.f32.mrf.mxu0
  %466 = vmatprep.mubr.f32.mxu0 0.0
  %467 = vmatmul.mubr.f32.gmra.mxu0 %v357
  %v468 = vpop.f32.mrf.mxu0
  %v469 = vadd.f32 %v257, %v468
  %v470 = vpop.f32.mrf.mxu0
  %471 = vmatprep.mubr.f32.mxu0 0.0
  %472 = vmatmul.mubr.f32.gmra.mxu0 %v359
  %v473 = vpop.f32.mrf.mxu0
  %v474 = vadd.f32 %v262, %v473
  %v475 = vpop.f32.mrf.mxu0
  %476 = vmatprep.mubr.f32.mxu0 0.0
  %477 = vmatmul.mubr.f32.gmra.mxu0 %v361
  %v478 = vpop.f32.mrf.mxu0
  %v479 = vadd.f32 %v267, %v478
  %v480 = vpop.f32.mrf.mxu0
  %481 = vmatprep.mubr.f32.mxu0 0.0
  %482 = vmatmul.mubr.f32.gmra.mxu0 %v363
  %v483 = vpop.f32.mrf.mxu0
  %v484 = vadd.f32 %v272, %v483
  %v485 = vpop.f32.mrf.mxu0
  %486 = vmatprep.mubr.f32.mxu0 0.0
  %487 = vmatmul.mubr.f32.gmra.mxu0 %v365
  %v488 = vpop.f32.mrf.mxu0
  %v489 = vadd.f32 %v277, %v488
  %v490 = vpop.f32.mrf.mxu0
  %491 = vmatprep.mubr.f32.mxu0 0.0
  %492 = vmatmul.mubr.f32.gmra.mxu0 %v367
  %v493 = vpop.f32.mrf.mxu0
  %v494 = vadd.f32 %v282, %v493
  %v495 = vpop.f32.mrf.mxu0
  %496 = vmatprep.mubr.f32.mxu0 0.0
  %497 = vmatmul.mubr.f32.gmra.mxu0 %v369
  %v498 = vpop.f32.mrf.mxu0
  %v499 = vadd.f32 %v287, %v498
  %v500 = vpop.f32.mrf.mxu0
  %501 = vmatprep.mubr.f32.mxu0 0.0
  %502 = vmatmul.mubr.f32.gmra.mxu0 %v371
  %v503 = vpop.f32.mrf.mxu0
  %v504 = vadd.f32 %v292, %v503
  %v505 = vpop.f32.mrf.mxu0
  %506 = vmatprep.mubr.f32.mxu0 0.0
  %507 = vmatmul.mubr.f32.gmra.mxu0 %v373
  %v508 = vpop.f32.mrf.mxu0
  %v509 = vadd.f32 %v297, %v508
  %v510 = vpop.f32.mrf.mxu0
  %511 = vmatprep.mubr.f32.mxu0 0.0
  %512 = vmatmul.mubr.f32.gmra.mxu0 %v375
  %v513 = vpop.f32.mrf.mxu0
  %v514 = vadd.f32 %v302, %v513
  %v515 = vpop.f32.mrf.mxu0
  %516 = vmatprep.mubr.f32.mxu0 0.0
  %517 = vmatmul.mubr.f32.gmra.mxu0 %v377
  %v518 = vpop.f32.mrf.mxu0
  %v519 = vadd.f32 %v307, %v518
  %v520 = vpop.f32.mrf.mxu0
  %521 = vmatprep.mubr.f32.mxu0 0.0
  %522 = vmatmul.mubr.f32.gmra.mxu0 %v379
  %v523 = vpop.f32.mrf.mxu0
  %v524 = vadd.f32 %v312, %v523
  %v525 = vpop.f32.mrf.mxu0
  %526 = vmatprep.mubr.f32.mxu0 0.0
  %527 = vmatmul.mubr.f32.gmra.mxu0 %v381
  %v528 = vpop.f32.mrf.mxu0
  %v529 = vadd.f32 %v317, %v528
  %v530 = vpop.f32.mrf.mxu0
  %531 = vmatprep.mubr.f32.mxu0 0.0
  %532 = vmatmul.mubr.f32.gmra.mxu0 %v383
  %v533 = vpop.f32.mrf.mxu0
  %v534 = vadd.f32 %v322, %v533
  %v535 = vpop.f32.mrf.mxu0
  %536 = vmatprep.mubr.f32.mxu0 0.0
  %537 = vmatmul.mubr.f32.gmra.mxu0 %v385
  %v538 = vpop.f32.mrf.mxu0
  %v539 = vadd.f32 %v327, %v538
  %v540 = vpop.f32.mrf.mxu0
  %541 = vmatprep.mubr.f32.mxu0 0.0
  %542 = vmatmul.mubr.f32.gmra.mxu0 %v387
  %v543 = vpop.f32.mrf.mxu0
  %v544 = vadd.f32 %v332, %v543
  %v545 = vpop.f32.mrf.mxu0
  %546 = vmatprep.mubr.f32.mxu0 0.0
  %547 = vmatmul.mubr.f32.gmra.mxu0 %v389
  %v548 = vpop.f32.mrf.mxu0
  %v549 = vadd.f32 %v337, %v548
  %v550 = vpop.f32.mrf.mxu0
  %551 = vmatprep.mubr.f32.mxu0 0.0
  %552 = vmatmul.mubr.f32.gmra.mxu0 %v391
  %v553 = vpop.f32.mrf.mxu0
  %v554 = vadd.f32 %v342, %v553
  %v555 = vpop.f32.mrf.mxu0
  %556 = vmatprep.mubr.f32.mxu0 0.0
  %557 = vmatmul.mubr.f32.gmra.mxu0 %v393
  %v558 = vpop.f32.mrf.mxu0
  %v559 = vadd.f32 %v347, %v558
  %v560 = vpop.f32.mrf.mxu0
  %561 = vmatprep.mubr.f32.mxu0 0.0
  %562 = vmatmul.mubr.f32.gmra.mxu0 %v395
  %v563 = vpop.f32.mrf.mxu0
  %v564 = vadd.f32 %v352, %v563
  %v565 = vpop.f32.mrf.mxu0
  %566 = vdwg.mxu0
  %567 = vrot.lane.b32.xlu0 %v42, 64
  %v568 = vpop.permute.xlu0 %567
  %569 = vrot.lane.b32.xlu0 %v43, 64
  %v570 = vpop.permute.xlu0 %569
  %571 = vrot.lane.b32.xlu0 %v44, 64
  %v572 = vpop.permute.xlu0 %571
  %573 = vrot.lane.b32.xlu0 %v45, 64
  %v574 = vpop.permute.xlu0 %573
  %575 = vrot.lane.b32.xlu0 %v46, 64
  %v576 = vpop.permute.xlu0 %575
  %577 = vrot.lane.b32.xlu0 %v47, 64
  %v578 = vpop.permute.xlu0 %577
  %579 = vrot.lane.b32.xlu0 %v48, 64
  %v580 = vpop.permute.xlu0 %579
  %581 = vrot.lane.b32.xlu0 %v49, 64
  %v582 = vpop.permute.xlu0 %581
  %583 = vrot.lane.b32.xlu0 %v50, 64
  %v584 = vpop.permute.xlu0 %583
  %585 = vrot.lane.b32.xlu0 %v51, 64
  %v586 = vpop.permute.xlu0 %585
  %587 = vrot.lane.b32.xlu0 %v52, 64
  %v588 = vpop.permute.xlu0 %587
  %589 = vrot.lane.b32.xlu0 %v53, 64
  %v590 = vpop.permute.xlu0 %589
  %591 = vrot.lane.b32.xlu0 %v54, 64
  %v592 = vpop.permute.xlu0 %591
  %593 = vrot.lane.b32.xlu0 %v55, 64
  %v594 = vpop.permute.xlu0 %593
  %595 = vrot.lane.b32.xlu0 %v56, 64
  %v596 = vpop.permute.xlu0 %595
  %597 = vrot.lane.b32.xlu0 %v57, 64
  %v598 = vpop.permute.xlu0 %597
  %599 = vrot.lane.b32.xlu0 %v58, 64
  %v600 = vpop.permute.xlu0 %599
  %601 = vrot.lane.b32.xlu0 %v59, 64
  %v602 = vpop.permute.xlu0 %601
  %603 = vrot.lane.b32.xlu0 %v60, 64
  %v604 = vpop.permute.xlu0 %603
  %605 = vrot.lane.b32.xlu0 %v61, 64
  %v606 = vpop.permute.xlu0 %605
  %607 = vrot.lane.b32.xlu0 %v62, 64
  %v608 = vpop.permute.xlu0 %607
  %609 = vrot.lane.b32.xlu0 %v38, 126
  %v610 = vpop.permute.xlu0 %609
  %611 = vrot.lane.b32.xlu0 %v39, 126
  %v612 = vpop.permute.xlu0 %611
  %613 = vrot.lane.b32.xlu0 %v40, 126
  %v614 = vpop.permute.xlu0 %613
  %615 = vrot.lane.b32.xlu0 %v41, 126
  %v616 = vpop.permute.xlu0 %615
  %v621 = vsel %vm142, %v568, 0
  %v623 = vsel %vm142, %v570, 0
  %v625 = vsel %vm142, %v572, 0
  %v627 = vsel %vm142, %v574, 0
  %v629 = vsel %vm142, %v576, 0
  %v631 = vsel %vm142, %v578, 0
  %v633 = vsel %vm142, %v580, 0
  %v635 = vsel %vm142, %v582, 0
  %v637 = vsel %vm142, %v584, 0
  %v639 = vsel %vm142, %v586, 0
  %v641 = vsel %vm142, %v588, 0
  %v643 = vsel %vm142, %v590, 0
  %v645 = vsel %vm142, %v592, 0
  %v647 = vsel %vm142, %v594, 0
  %v649 = vsel %vm142, %v596, 0
  %v651 = vsel %vm142, %v598, 0
  %v653 = vsel %vm142, %v600, 0
  %v655 = vsel %vm142, %v602, 0
  %v657 = vsel %vm142, %v604, 0
  %v659 = vsel %vm142, %v606, 0
  %v661 = vsel %vm142, %v608, 0
  %663 = vmatprep.subr.mxu0 0.0
  %664 = vmatpush1.msra.mxu0 0.0
  %665 = vmatprep.subr.mxu0 0.0
  %666 = vmatpush1.msra.mxu0 0.0
  %667 = vmatprep.subr.mxu0 0.0
  %668 = vmatpush1.msra.mxu0 0.0
  %669 = vmatprep.subr.mxu0 0.0
  %670 = vmatpush1.msra.mxu0 0.0
  %671 = vmatprep.subr.mxu0 0.0
  %672 = vmatpush1.msra.mxu0 0.0
  %673 = vmatprep.subr.mxu0 0.0
  %674 = vmatpush1.msra.mxu0 0.0
  %675 = vmatprep.subr.mxu0 0.0
  %676 = vmatpush1.msra.mxu0 0.0
  %677 = vmatprep.subr.mxu0 0.0
  %678 = vmatpush1.msra.mxu0 0.0
  %679 = vmatprep.subr.mxu0 0.0
  %680 = vmatpush1.msra.mxu0 0.0
  %681 = vmatprep.subr.mxu0 0.0
  %682 = vmatpush1.msra.mxu0 0.0
  %683 = vmatprep.subr.mxu0 0.0
  %684 = vmatpush1.msra.mxu0 0.0
  %685 = vmatprep.subr.mxu0 0.0
  %686 = vmatpush1.msra.mxu0 0.0
  %687 = vmatprep.subr.mxu0 0.0
  %688 = vmatpush1.msra.mxu0 %v616
  %689 = vmatprep.subr.mxu0 0.0
  %690 = vmatpush1.msra.mxu0 %v614
  %691 = vmatprep.subr.mxu0 0.0
  %692 = vmatpush1.msra.mxu0 %v612
  %693 = vmatprep.subr.mxu0 0.0
  %694 = vmatpush1.msra.mxu0 %v610
  %695 = vmatprep.subr.mxu0 0.0
  %696 = vmatpush2.msra.mxu0 0.0
  %697 = vmatprep.subr.mxu0 0.0
  %698 = vmatpush2.msra.mxu0 0.0
  %699 = vmatprep.subr.mxu0 0.0
  %700 = vmatpush2.msra.mxu0 0.0
  %701 = vmatprep.subr.mxu0 0.0
  %702 = vmatpush2.msra.mxu0 0.0
  %703 = vmatprep.subr.mxu0 0.0
  %704 = vmatpush2.msra.mxu0 0.0
  %705 = vmatprep.subr.mxu0 0.0
  %706 = vmatpush2.msra.mxu0 0.0
  %707 = vmatprep.subr.mxu0 0.0
  %708 = vmatpush2.msra.mxu0 0.0
  %709 = vmatprep.subr.mxu0 0.0
  %710 = vmatpush2.msra.mxu0 0.0
  %711 = vmatprep.subr.mxu0 0.0
  %712 = vmatpush2.msra.mxu0 0.0
  %713 = vmatprep.subr.mxu0 0.0
  %714 = vmatpush2.msra.mxu0 0.0
  %715 = vmatprep.subr.mxu0 0.0
  %716 = vmatpush2.msra.mxu0 0.0
  %717 = vmatprep.subr.mxu0 0.0
  %718 = vmatpush2.msra.mxu0 0.0
  %719 = vmatprep.subr.mxu0 0.0
  %720 = vmatpush2.msra.mxu0 0.0
  %721 = vmatprep.subr.mxu0 0.0
  %722 = vmatpush2.msra.mxu0 0.0
  %723 = vmatprep.subr.mxu0 0.0
  %724 = vmatpush2.msra.mxu0 0.0
  %725 = vmatprep.subr.mxu0 0.0
  %726 = vmatpush2.msra.mxu0 0.0
  %727 = vmatprep.mubr.f32.mxu0 0.0
  %728 = vmatmul.mubr.f32.gmra.mxu0 %v621
  %v729 = vpop.f32.mrf.mxu0
  %v730 = vadd.f32 0.0, %v729
  %v731 = vpop.f32.mrf.mxu0
  %732 = vmatprep.mubr.f32.mxu0 0.0
  %733 = vmatmul.mubr.f32.gmra.mxu0 %v623
  %v734 = vpop.f32.mrf.mxu0
  %v735 = vadd.f32 0.0, %v734
  %v736 = vpop.f32.mrf.mxu0
  %737 = vmatprep.mubr.f32.mxu0 0.0
  %738 = vmatmul.mubr.f32.gmra.mxu0 %v625
  %v739 = vpop.f32.mrf.mxu0
  %v740 = vadd.f32 0.0, %v739
  %v741 = vpop.f32.mrf.mxu0
  %742 = vmatprep.mubr.f32.mxu0 0.0
  %743 = vmatmul.mubr.f32.gmra.mxu0 %v627
  %v744 = vpop.f32.mrf.mxu0
  %v745 = vadd.f32 0.0, %v744
  %v746 = vpop.f32.mrf.mxu0
  %747 = vmatprep.mubr.f32.mxu0 0.0
  %748 = vmatmul.mubr.f32.gmra.mxu0 %v629
  %v749 = vpop.f32.mrf.mxu0
  %v750 = vadd.f32 0.0, %v749
  %v751 = vpop.f32.mrf.mxu0
  %752 = vmatprep.mubr.f32.mxu0 0.0
  %753 = vmatmul.mubr.f32.gmra.mxu0 %v631
  %v754 = vpop.f32.mrf.mxu0
  %v755 = vadd.f32 0.0, %v754
  %v756 = vpop.f32.mrf.mxu0
  %757 = vmatprep.mubr.f32.mxu0 0.0
  %758 = vmatmul.mubr.f32.gmra.mxu0 %v633
  %v759 = vpop.f32.mrf.mxu0
  %v760 = vadd.f32 0.0, %v759
  %v761 = vpop.f32.mrf.mxu0
  %762 = vmatprep.mubr.f32.mxu0 0.0
  %763 = vmatmul.mubr.f32.gmra.mxu0 %v635
  %v764 = vpop.f32.mrf.mxu0
  %v765 = vadd.f32 0.0, %v764
  %v766 = vpop.f32.mrf.mxu0
  %767 = vmatprep.mubr.f32.mxu0 0.0
  %768 = vmatmul.mubr.f32.gmra.mxu0 %v637
  %v769 = vpop.f32.mrf.mxu0
  %v770 = vadd.f32 0.0, %v769
  %v771 = vpop.f32.mrf.mxu0
  %772 = vmatprep.mubr.f32.mxu0 0.0
  %773 = vmatmul.mubr.f32.gmra.mxu0 %v639
  %v774 = vpop.f32.mrf.mxu0
  %v775 = vadd.f32 0.0, %v774
  %v776 = vpop.f32.mrf.mxu0
  %777 = vmatprep.mubr.f32.mxu0 0.0
  %778 = vmatmul.mubr.f32.gmra.mxu0 %v641
  %v779 = vpop.f32.mrf.mxu0
  %v780 = vadd.f32 0.0, %v779
  %v781 = vpop.f32.mrf.mxu0
  %782 = vmatprep.mubr.f32.mxu0 0.0
  %783 = vmatmul.mubr.f32.gmra.mxu0 %v643
  %v784 = vpop.f32.mrf.mxu0
  %v785 = vadd.f32 0.0, %v784
  %v786 = vpop.f32.mrf.mxu0
  %787 = vmatprep.mubr.f32.mxu0 0.0
  %788 = vmatmul.mubr.f32.gmra.mxu0 %v645
  %v789 = vpop.f32.mrf.mxu0
  %v790 = vadd.f32 0.0, %v789
  %v791 = vpop.f32.mrf.mxu0
  %792 = vmatprep.mubr.f32.mxu0 0.0
  %793 = vmatmul.mubr.f32.gmra.mxu0 %v647
  %v794 = vpop.f32.mrf.mxu0
  %v795 = vadd.f32 0.0, %v794
  %v796 = vpop.f32.mrf.mxu0
  %797 = vmatprep.mubr.f32.mxu0 0.0
  %798 = vmatmul.mubr.f32.gmra.mxu0 %v649
  %v799 = vpop.f32.mrf.mxu0
  %v800 = vadd.f32 0.0, %v799
  %v801 = vpop.f32.mrf.mxu0
  %802 = vmatprep.mubr.f32.mxu0 0.0
  %803 = vmatmul.mubr.f32.gmra.mxu0 %v651
  %v804 = vpop.f32.mrf.mxu0
  %v805 = vadd.f32 0.0, %v804
  %v806 = vpop.f32.mrf.mxu0
  %807 = vmatprep.mubr.f32.mxu0 0.0
  %808 = vmatmul.mubr.f32.gmra.mxu0 %v653
  %v809 = vpop.f32.mrf.mxu0
  %v810 = vadd.f32 0.0, %v809
  %v811 = vpop.f32.mrf.mxu0
  %812 = vmatprep.mubr.f32.mxu0 0.0
  %813 = vmatmul.mubr.f32.gmra.mxu0 %v655
  %v814 = vpop.f32.mrf.mxu0
  %v815 = vadd.f32 0.0, %v814
  %v816 = vpop.f32.mrf.mxu0
  %817 = vmatprep.mubr.f32.mxu0 0.0
  %818 = vmatmul.mubr.f32.gmra.mxu0 %v657
  %v819 = vpop.f32.mrf.mxu0
  %v820 = vadd.f32 0.0, %v819
  %v821 = vpop.f32.mrf.mxu0
  %822 = vmatprep.mubr.f32.mxu0 0.0
  %823 = vmatmul.mubr.f32.gmra.mxu0 %v659
  %v824 = vpop.f32.mrf.mxu0
  %v825 = vadd.f32 0.0, %v824
  %v826 = vpop.f32.mrf.mxu0
  %827 = vmatprep.mubr.f32.mxu0 0.0
  %828 = vmatmul.mubr.f32.gmra.mxu0 %v661
  %v829 = vpop.f32.mrf.mxu0
  %v830 = vadd.f32 0.0, %v829
  %v831 = vpop.f32.mrf.mxu0
  %832 = vdwg.mxu0
  %v833 = vadd.f32 %v464, %v730
  %v834 = vadd.f32 %v469, %v735
  %v835 = vadd.f32 %v474, %v740
  %v836 = vadd.f32 %v479, %v745
  %v837 = vadd.f32 %v484, %v750
  %v838 = vadd.f32 %v489, %v755
  %v839 = vadd.f32 %v494, %v760
  %v840 = vadd.f32 %v499, %v765
  %v841 = vadd.f32 %v504, %v770
  %v842 = vadd.f32 %v509, %v775
  %v843 = vadd.f32 %v514, %v780
  %v844 = vadd.f32 %v519, %v785
  %v845 = vadd.f32 %v524, %v790
  %v846 = vadd.f32 %v529, %v795
  %v847 = vadd.f32 %v534, %v800
  %v848 = vadd.f32 %v539, %v805
  %v849 = vadd.f32 %v544, %v810
  %v850 = vadd.f32 %v549, %v815
  %v851 = vadd.f32 %v554, %v820
  %v852 = vadd.f32 %v559, %v825
  %v853 = vadd.f32 %v564, %v830
  %854 = vrot.lane.b32.xlu0 %v42, 32
  %v855 = vpop.permute.xlu0 %854
  %856 = vrot.lane.b32.xlu0 %v43, 32
  %v857 = vpop.permute.xlu0 %856
  %858 = vrot.lane.b32.xlu0 %v44, 32
  %v859 = vpop.permute.xlu0 %858
  %860 = vrot.lane.b32.xlu0 %v45, 32
  %v861 = vpop.permute.xlu0 %860
  %862 = vrot.lane.b32.xlu0 %v46, 32
  %v863 = vpop.permute.xlu0 %862
  %864 = vrot.lane.b32.xlu0 %v47, 32
  %v865 = vpop.permute.xlu0 %864
  %866 = vrot.lane.b32.xlu0 %v48, 32
  %v867 = vpop.permute.xlu0 %866
  %868 = vrot.lane.b32.xlu0 %v49, 32
  %v869 = vpop.permute.xlu0 %868
  %870 = vrot.lane.b32.xlu0 %v50, 32
  %v871 = vpop.permute.xlu0 %870
  %872 = vrot.lane.b32.xlu0 %v51, 32
  %v873 = vpop.permute.xlu0 %872
  %874 = vrot.lane.b32.xlu0 %v52, 32
  %v875 = vpop.permute.xlu0 %874
  %876 = vrot.lane.b32.xlu0 %v53, 32
  %v877 = vpop.permute.xlu0 %876
  %878 = vrot.lane.b32.xlu0 %v54, 32
  %v879 = vpop.permute.xlu0 %878
  %880 = vrot.lane.b32.xlu0 %v55, 32
  %v881 = vpop.permute.xlu0 %880
  %882 = vrot.lane.b32.xlu0 %v56, 32
  %v883 = vpop.permute.xlu0 %882
  %884 = vrot.lane.b32.xlu0 %v57, 32
  %v885 = vpop.permute.xlu0 %884
  %886 = vrot.lane.b32.xlu0 %v58, 32
  %v887 = vpop.permute.xlu0 %886
  %888 = vrot.lane.b32.xlu0 %v59, 32
  %v889 = vpop.permute.xlu0 %888
  %890 = vrot.lane.b32.xlu0 %v60, 32
  %v891 = vpop.permute.xlu0 %890
  %892 = vrot.lane.b32.xlu0 %v61, 32
  %v893 = vpop.permute.xlu0 %892
  %894 = vrot.lane.b32.xlu0 %v62, 32
  %v895 = vpop.permute.xlu0 %894
  %896 = vrot.lane.b32.xlu0 %v38, 125
  %v897 = vpop.permute.xlu0 %896
  %898 = vrot.lane.b32.xlu0 %v39, 125
  %v899 = vpop.permute.xlu0 %898
  %900 = vrot.lane.b32.xlu0 %v40, 125
  %v901 = vpop.permute.xlu0 %900
  %902 = vrot.lane.b32.xlu0 %v41, 125
  %v903 = vpop.permute.xlu0 %902
  %v908 = vsel %vm142, %v855, 0
  %v910 = vsel %vm142, %v857, 0
  %v912 = vsel %vm142, %v859, 0
  %v914 = vsel %vm142, %v861, 0
  %v916 = vsel %vm142, %v863, 0
  %v918 = vsel %vm142, %v865, 0
  %v920 = vsel %vm142, %v867, 0
  %v922 = vsel %vm142, %v869, 0
  %v924 = vsel %vm142, %v871, 0
  %v926 = vsel %vm142, %v873, 0
  %v928 = vsel %vm142, %v875, 0
  %v930 = vsel %vm142, %v877, 0
  %v932 = vsel %vm142, %v879, 0
  %v934 = vsel %vm142, %v881, 0
  %v936 = vsel %vm142, %v883, 0
  %v938 = vsel %vm142, %v885, 0
  %v940 = vsel %vm142, %v887, 0
  %v942 = vsel %vm142, %v889, 0
  %v944 = vsel %vm142, %v891, 0
  %v946 = vsel %vm142, %v893, 0
  %v948 = vsel %vm142, %v895, 0
  %950 = vmatprep.subr.mxu0 0.0
  %951 = vmatpush1.msra.mxu0 0.0
  %952 = vmatprep.subr.mxu0 0.0
  %953 = vmatpush1.msra.mxu0 0.0
  %954 = vmatprep.subr.mxu0 0.0
  %955 = vmatpush1.msra.mxu0 0.0
  %956 = vmatprep.subr.mxu0 0.0
  %957 = vmatpush1.msra.mxu0 0.0
  %958 = vmatprep.subr.mxu0 0.0
  %959 = vmatpush1.msra.mxu0 0.0
  %960 = vmatprep.subr.mxu0 0.0
  %961 = vmatpush1.msra.mxu0 0.0
  %962 = vmatprep.subr.mxu0 0.0
  %963 = vmatpush1.msra.mxu0 0.0
  %964 = vmatprep.subr.mxu0 0.0
  %965 = vmatpush1.msra.mxu0 0.0
  %966 = vmatprep.subr.mxu0 0.0
  %967 = vmatpush1.msra.mxu0 0.0
  %968 = vmatprep.subr.mxu0 0.0
  %969 = vmatpush1.msra.mxu0 0.0
  %970 = vmatprep.subr.mxu0 0.0
  %971 = vmatpush1.msra.mxu0 0.0
  %972 = vmatprep.subr.mxu0 0.0
  %973 = vmatpush1.msra.mxu0 0.0
  %974 = vmatprep.subr.mxu0 0.0
  %975 = vmatpush1.msra.mxu0 %v903
  %976 = vmatprep.subr.mxu0 0.0
  %977 = vmatpush1.msra.mxu0 %v901
  %978 = vmatprep.subr.mxu0 0.0
  %979 = vmatpush1.msra.mxu0 %v899
  %980 = vmatprep.subr.mxu0 0.0
  %981 = vmatpush1.msra.mxu0 %v897
  %982 = vmatprep.subr.mxu0 0.0
  %983 = vmatpush2.msra.mxu0 0.0
  %984 = vmatprep.subr.mxu0 0.0
  %985 = vmatpush2.msra.mxu0 0.0
  %986 = vmatprep.subr.mxu0 0.0
  %987 = vmatpush2.msra.mxu0 0.0
  %988 = vmatprep.subr.mxu0 0.0
  %989 = vmatpush2.msra.mxu0 0.0
  %990 = vmatprep.subr.mxu0 0.0
  %991 = vmatpush2.msra.mxu0 0.0
  %992 = vmatprep.subr.mxu0 0.0
  %993 = vmatpush2.msra.mxu0 0.0
  %994 = vmatprep.subr.mxu0 0.0
  %995 = vmatpush2.msra.mxu0 0.0
  %996 = vmatprep.subr.mxu0 0.0
  %997 = vmatpush2.msra.mxu0 0.0
  %998 = vmatprep.subr.mxu0 0.0
  %999 = vmatpush2.msra.mxu0 0.0
  %1000 = vmatprep.subr.mxu0 0.0
  %1001 = vmatpush2.msra.mxu0 0.0
  %1002 = vmatprep.subr.mxu0 0.0
  %1003 = vmatpush2.msra.mxu0 0.0
  %1004 = vmatprep.subr.mxu0 0.0
  %1005 = vmatpush2.msra.mxu0 0.0
  %1006 = vmatprep.subr.mxu0 0.0
  %1007 = vmatpush2.msra.mxu0 0.0
  %1008 = vmatprep.subr.mxu0 0.0
  %1009 = vmatpush2.msra.mxu0 0.0
  %1010 = vmatprep.subr.mxu0 0.0
  %1011 = vmatpush2.msra.mxu0 0.0
  %1012 = vmatprep.subr.mxu0 0.0
  %1013 = vmatpush2.msra.mxu0 0.0
  %1014 = vmatprep.mubr.f32.mxu0 0.0
  %1015 = vmatmul.mubr.f32.gmra.mxu0 %v908
  %v1016 = vpop.f32.mrf.mxu0
  %v1017 = vadd.f32 0.0, %v1016
  %v1018 = vpop.f32.mrf.mxu0
  %1019 = vmatprep.mubr.f32.mxu0 0.0
  %1020 = vmatmul.mubr.f32.gmra.mxu0 %v910
  %v1021 = vpop.f32.mrf.mxu0
  %v1022 = vadd.f32 0.0, %v1021
  %v1023 = vpop.f32.mrf.mxu0
  %1024 = vmatprep.mubr.f32.mxu0 0.0
  %1025 = vmatmul.mubr.f32.gmra.mxu0 %v912
  %v1026 = vpop.f32.mrf.mxu0
  %v1027 = vadd.f32 0.0, %v1026
  %v1028 = vpop.f32.mrf.mxu0
  %1029 = vmatprep.mubr.f32.mxu0 0.0
  %1030 = vmatmul.mubr.f32.gmra.mxu0 %v914
  %v1031 = vpop.f32.mrf.mxu0
  %v1032 = vadd.f32 0.0, %v1031
  %v1033 = vpop.f32.mrf.mxu0
  %1034 = vmatprep.mubr.f32.mxu0 0.0
  %1035 = vmatmul.mubr.f32.gmra.mxu0 %v916
  %v1036 = vpop.f32.mrf.mxu0
  %v1037 = vadd.f32 0.0, %v1036
  %v1038 = vpop.f32.mrf.mxu0
  %1039 = vmatprep.mubr.f32.mxu0 0.0
  %1040 = vmatmul.mubr.f32.gmra.mxu0 %v918
  %v1041 = vpop.f32.mrf.mxu0
  %v1042 = vadd.f32 0.0, %v1041
  %v1043 = vpop.f32.mrf.mxu0
  %1044 = vmatprep.mubr.f32.mxu0 0.0
  %1045 = vmatmul.mubr.f32.gmra.mxu0 %v920
  %v1046 = vpop.f32.mrf.mxu0
  %v1047 = vadd.f32 0.0, %v1046
  %v1048 = vpop.f32.mrf.mxu0
  %1049 = vmatprep.mubr.f32.mxu0 0.0
  %1050 = vmatmul.mubr.f32.gmra.mxu0 %v922
  %v1051 = vpop.f32.mrf.mxu0
  %v1052 = vadd.f32 0.0, %v1051
  %v1053 = vpop.f32.mrf.mxu0
  %1054 = vmatprep.mubr.f32.mxu0 0.0
  %1055 = vmatmul.mubr.f32.gmra.mxu0 %v924
  %v1056 = vpop.f32.mrf.mxu0
  %v1057 = vadd.f32 0.0, %v1056
  %v1058 = vpop.f32.mrf.mxu0
  %1059 = vmatprep.mubr.f32.mxu0 0.0
  %1060 = vmatmul.mubr.f32.gmra.mxu0 %v926
  %v1061 = vpop.f32.mrf.mxu0
  %v1062 = vadd.f32 0.0, %v1061
  %v1063 = vpop.f32.mrf.mxu0
  %1064 = vmatprep.mubr.f32.mxu0 0.0
  %1065 = vmatmul.mubr.f32.gmra.mxu0 %v928
  %v1066 = vpop.f32.mrf.mxu0
  %v1067 = vadd.f32 0.0, %v1066
  %v1068 = vpop.f32.mrf.mxu0
  %1069 = vmatprep.mubr.f32.mxu0 0.0
  %1070 = vmatmul.mubr.f32.gmra.mxu0 %v930
  %v1071 = vpop.f32.mrf.mxu0
  %v1072 = vadd.f32 0.0, %v1071
  %v1073 = vpop.f32.mrf.mxu0
  %1074 = vmatprep.mubr.f32.mxu0 0.0
  %1075 = vmatmul.mubr.f32.gmra.mxu0 %v932
  %v1076 = vpop.f32.mrf.mxu0
  %v1077 = vadd.f32 0.0, %v1076
  %v1078 = vpop.f32.mrf.mxu0
  %1079 = vmatprep.mubr.f32.mxu0 0.0
  %1080 = vmatmul.mubr.f32.gmra.mxu0 %v934
  %v1081 = vpop.f32.mrf.mxu0
  %v1082 = vadd.f32 0.0, %v1081
  %v1083 = vpop.f32.mrf.mxu0
  %1084 = vmatprep.mubr.f32.mxu0 0.0
  %1085 = vmatmul.mubr.f32.gmra.mxu0 %v936
  %v1086 = vpop.f32.mrf.mxu0
  %v1087 = vadd.f32 0.0, %v1086
  %v1088 = vpop.f32.mrf.mxu0
  %1089 = vmatprep.mubr.f32.mxu0 0.0
  %1090 = vmatmul.mubr.f32.gmra.mxu0 %v938
  %v1091 = vpop.f32.mrf.mxu0
  %v1092 = vadd.f32 0.0, %v1091
  %v1093 = vpop.f32.mrf.mxu0
  %1094 = vmatprep.mubr.f32.mxu0 0.0
  %1095 = vmatmul.mubr.f32.gmra.mxu0 %v940
  %v1096 = vpop.f32.mrf.mxu0
  %v1097 = vadd.f32 0.0, %v1096
  %v1098 = vpop.f32.mrf.mxu0
  %1099 = vmatprep.mubr.f32.mxu0 0.0
  %1100 = vmatmul.mubr.f32.gmra.mxu0 %v942
  %v1101 = vpop.f32.mrf.mxu0
  %v1102 = vadd.f32 0.0, %v1101
  %v1103 = vpop.f32.mrf.mxu0
  %1104 = vmatprep.mubr.f32.mxu0 0.0
  %1105 = vmatmul.mubr.f32.gmra.mxu0 %v944
  %v1106 = vpop.f32.mrf.mxu0
  %v1107 = vadd.f32 0.0, %v1106
  %v1108 = vpop.f32.mrf.mxu0
  %1109 = vmatprep.mubr.f32.mxu0 0.0
  %1110 = vmatmul.mubr.f32.gmra.mxu0 %v946
  %v1111 = vpop.f32.mrf.mxu0
  %v1112 = vadd.f32 0.0, %v1111
  %v1113 = vpop.f32.mrf.mxu0
  %1114 = vmatprep.mubr.f32.mxu0 0.0
  %1115 = vmatmul.mubr.f32.gmra.mxu0 %v948
  %v1116 = vpop.f32.mrf.mxu0
  %v1117 = vadd.f32 0.0, %v1116
  %v1118 = vpop.f32.mrf.mxu0
  %1119 = vdwg.mxu0
  %v1120 = vadd.f32 %v833, %v1017
  %v1121 = vadd.f32 %v834, %v1022
  %v1122 = vadd.f32 %v835, %v1027
  %v1123 = vadd.f32 %v836, %v1032
  %v1124 = vadd.f32 %v837, %v1037
  %v1125 = vadd.f32 %v838, %v1042
  %v1126 = vadd.f32 %v839, %v1047
  %v1127 = vadd.f32 %v840, %v1052
  %v1128 = vadd.f32 %v841, %v1057
  %v1129 = vadd.f32 %v842, %v1062
  %v1130 = vadd.f32 %v843, %v1067
  %v1131 = vadd.f32 %v844, %v1072
  %v1132 = vadd.f32 %v845, %v1077
  %v1133 = vadd.f32 %v846, %v1082
  %v1134 = vadd.f32 %v847, %v1087
  %v1135 = vadd.f32 %v848, %v1092
  %v1136 = vadd.f32 %v849, %v1097
  %v1137 = vadd.f32 %v850, %v1102
  %v1138 = vadd.f32 %v851, %v1107
  %v1139 = vadd.f32 %v852, %v1112
  %v1140 = vadd.f32 %v853, %v1117
  %v1141 = vld [vmem:[%s1 + $0x8] sm:$0xff]
  %v1142 = vld [vmem:[%s1 + $0x18] sm:$0xff]
  %v1143 = vld [vmem:[%s1 + $0x28] sm:$0xff]
  %v1144 = vld [vmem:[%s1 + $0x38] sm:$0xff]
  %v1145 = vld [vmem:[%s1 + $0x48] sm:$0xff]
  %v1146 = vld [vmem:[%s1 + $0x58] sm:$0xff]
  %v1147 = vld [vmem:[%s1 + $0x68] sm:$0xff]
  %v1148 = vld [vmem:[%s1 + $0x78] sm:$0xff]
  %v1149 = vld [vmem:[%s1 + $0x88] sm:$0xff]
  %v1150 = vld [vmem:[%s1 + $0x98] sm:$0xff]
  %v1151 = vld [vmem:[%s1 + $0xa8] sm:$0xff]
  %v1152 = vld [vmem:[%s1 + $0xb8] sm:$0xff]
  %v1153 = vld [vmem:[%s1 + $0xc8] sm:$0xff]
  %v1154 = vld [vmem:[%s1 + $0xd8] sm:$0xff]
  %v1155 = vld [vmem:[%s1 + $0xe8] sm:$0xff]
  %v1156 = vld [vmem:[%s1 + $0xf8] sm:$0xff]
  %v1157 = vld [vmem:[%s1 + $0x108] sm:$0xff]
  %v1158 = vld [vmem:[%s1 + $0x118] sm:$0xff]
  %v1159 = vld [vmem:[%s1 + $0x128] sm:$0xff]
  %v1160 = vld [vmem:[%s1 + $0x138] sm:$0xff]
  %v1161 = vld [vmem:[%s1 + $0x148] sm:$0xff]
  %1162 = vrot.lane.b32.xlu0 %v38, 124
  %v1163 = vpop.permute.xlu0 %1162
  %1164 = vrot.lane.b32.xlu0 %v39, 124
  %v1165 = vpop.permute.xlu0 %1164
  %1166 = vrot.lane.b32.xlu0 %v40, 124
  %v1167 = vpop.permute.xlu0 %1166
  %1168 = vrot.lane.b32.xlu0 %v41, 124
  %v1169 = vpop.permute.xlu0 %1168
  %v1175 = vsel %vm142, %v1141, 0
  %v1178 = vsel %vm142, %v1142, 0
  %v1181 = vsel %vm142, %v1143, 0
  %v1184 = vsel %vm142, %v1144, 0
  %v1187 = vsel %vm142, %v1145, 0
  %v1190 = vsel %vm142, %v1146, 0
  %v1193 = vsel %vm142, %v1147, 0
  %v1196 = vsel %vm142, %v1148, 0
  %v1199 = vsel %vm142, %v1149, 0
  %v1202 = vsel %vm142, %v1150, 0
  %v1205 = vsel %vm142, %v1151, 0
  %v1208 = vsel %vm142, %v1152, 0
  %v1211 = vsel %vm142, %v1153, 0
  %v1214 = vsel %vm142, %v1154, 0
  %v1217 = vsel %vm142, %v1155, 0
  %v1220 = vsel %vm142, %v1156, 0
  %v1223 = vsel %vm142, %v1157, 0
  %v1226 = vsel %vm142, %v1158, 0
  %v1229 = vsel %vm142, %v1159, 0
  %v1232 = vsel %vm142, %v1160, 0
  %v1235 = vsel %vm142, %v1161, 0
  %1237 = vmatprep.subr.mxu0 0.0
  %1238 = vmatpush1.msra.mxu0 0.0
  %1239 = vmatprep.subr.mxu0 0.0
  %1240 = vmatpush1.msra.mxu0 0.0
  %1241 = vmatprep.subr.mxu0 0.0
  %1242 = vmatpush1.msra.mxu0 0.0
  %1243 = vmatprep.subr.mxu0 0.0
  %1244 = vmatpush1.msra.mxu0 0.0
  %1245 = vmatprep.subr.mxu0 0.0
  %1246 = vmatpush1.msra.mxu0 0.0
  %1247 = vmatprep.subr.mxu0 0.0
  %1248 = vmatpush1.msra.mxu0 0.0
  %1249 = vmatprep.subr.mxu0 0.0
  %1250 = vmatpush1.msra.mxu0 0.0
  %1251 = vmatprep.subr.mxu0 0.0
  %1252 = vmatpush1.msra.mxu0 0.0
  %1253 = vmatprep.subr.mxu0 0.0
  %1254 = vmatpush1.msra.mxu0 0.0
  %1255 = vmatprep.subr.mxu0 0.0
  %1256 = vmatpush1.msra.mxu0 0.0
  %1257 = vmatprep.subr.mxu0 0.0
  %1258 = vmatpush1.msra.mxu0 0.0
  %1259 = vmatprep.subr.mxu0 0.0
  %1260 = vmatpush1.msra.mxu0 0.0
  %1261 = vmatprep.subr.mxu0 0.0
  %1262 = vmatpush1.msra.mxu0 %v1169
  %1263 = vmatprep.subr.mxu0 0.0
  %1264 = vmatpush1.msra.mxu0 %v1167
  %1265 = vmatprep.subr.mxu0 0.0
  %1266 = vmatpush1.msra.mxu0 %v1165
  %1267 = vmatprep.subr.mxu0 0.0
  %1268 = vmatpush1.msra.mxu0 %v1163
  %1269 = vmatprep.subr.mxu0 0.0
  %1270 = vmatpush2.msra.mxu0 0.0
  %1271 = vmatprep.subr.mxu0 0.0
  %1272 = vmatpush2.msra.mxu0 0.0
  %1273 = vmatprep.subr.mxu0 0.0
  %1274 = vmatpush2.msra.mxu0 0.0
  %1275 = vmatprep.subr.mxu0 0.0
  %1276 = vmatpush2.msra.mxu0 0.0
  %1277 = vmatprep.subr.mxu0 0.0
  %1278 = vmatpush2.msra.mxu0 0.0
  %1279 = vmatprep.subr.mxu0 0.0
  %1280 = vmatpush2.msra.mxu0 0.0
  %1281 = vmatprep.subr.mxu0 0.0
  %1282 = vmatpush2.msra.mxu0 0.0
  %1283 = vmatprep.subr.mxu0 0.0
  %1284 = vmatpush2.msra.mxu0 0.0
  %1285 = vmatprep.subr.mxu0 0.0
  %1286 = vmatpush2.msra.mxu0 0.0
  %1287 = vmatprep.subr.mxu0 0.0
  %1288 = vmatpush2.msra.mxu0 0.0
  %1289 = vmatprep.subr.mxu0 0.0
  %1290 = vmatpush2.msra.mxu0 0.0
  %1291 = vmatprep.subr.mxu0 0.0
  %1292 = vmatpush2.msra.mxu0 0.0
  %1293 = vmatprep.subr.mxu0 0.0
  %1294 = vmatpush2.msra.mxu0 0.0
  %1295 = vmatprep.subr.mxu0 0.0
  %1296 = vmatpush2.msra.mxu0 0.0
  %1297 = vmatprep.subr.mxu0 0.0
  %1298 = vmatpush2.msra.mxu0 0.0
  %1299 = vmatprep.subr.mxu0 0.0
  %1300 = vmatpush2.msra.mxu0 0.0
  %1301 = vmatprep.mubr.f32.mxu0 0.0
  %1302 = vmatmul.mubr.f32.gmra.mxu0 %v1175
  %v1303 = vpop.f32.mrf.mxu0
  %v1304 = vadd.f32 0.0, %v1303
  %v1305 = vpop.f32.mrf.mxu0
  %1306 = vmatprep.mubr.f32.mxu0 0.0
  %1307 = vmatmul.mubr.f32.gmra.mxu0 %v1178
  %v1308 = vpop.f32.mrf.mxu0
  %v1309 = vadd.f32 0.0, %v1308
  %v1310 = vpop.f32.mrf.mxu0
  %1311 = vmatprep.mubr.f32.mxu0 0.0
  %1312 = vmatmul.mubr.f32.gmra.mxu0 %v1181
  %v1313 = vpop.f32.mrf.mxu0
  %v1314 = vadd.f32 0.0, %v1313
  %v1315 = vpop.f32.mrf.mxu0
  %1316 = vmatprep.mubr.f32.mxu0 0.0
  %1317 = vmatmul.mubr.f32.gmra.mxu0 %v1184
  %v1318 = vpop.f32.mrf.mxu0
  %v1319 = vadd.f32 0.0, %v1318
  %v1320 = vpop.f32.mrf.mxu0
  %1321 = vmatprep.mubr.f32.mxu0 0.0
  %1322 = vmatmul.mubr.f32.gmra.mxu0 %v1187
  %v1323 = vpop.f32.mrf.mxu0
  %v1324 = vadd.f32 0.0, %v1323
  %v1325 = vpop.f32.mrf.mxu0
  %1326 = vmatprep.mubr.f32.mxu0 0.0
  %1327 = vmatmul.mubr.f32.gmra.mxu0 %v1190
  %v1328 = vpop.f32.mrf.mxu0
  %v1329 = vadd.f32 0.0, %v1328
  %v1330 = vpop.f32.mrf.mxu0
  %1331 = vmatprep.mubr.f32.mxu0 0.0
  %1332 = vmatmul.mubr.f32.gmra.mxu0 %v1193
  %v1333 = vpop.f32.mrf.mxu0
  %v1334 = vadd.f32 0.0, %v1333
  %v1335 = vpop.f32.mrf.mxu0
  %1336 = vmatprep.mubr.f32.mxu0 0.0
  %1337 = vmatmul.mubr.f32.gmra.mxu0 %v1196
  %v1338 = vpop.f32.mrf.mxu0
  %v1339 = vadd.f32 0.0, %v1338
  %v1340 = vpop.f32.mrf.mxu0
  %1341 = vmatprep.mubr.f32.mxu0 0.0
  %1342 = vmatmul.mubr.f32.gmra.mxu0 %v1199
  %v1343 = vpop.f32.mrf.mxu0
  %v1344 = vadd.f32 0.0, %v1343
  %v1345 = vpop.f32.mrf.mxu0
  %1346 = vmatprep.mubr.f32.mxu0 0.0
  %1347 = vmatmul.mubr.f32.gmra.mxu0 %v1202
  %v1348 = vpop.f32.mrf.mxu0
  %v1349 = vadd.f32 0.0, %v1348
  %v1350 = vpop.f32.mrf.mxu0
  %1351 = vmatprep.mubr.f32.mxu0 0.0
  %1352 = vmatmul.mubr.f32.gmra.mxu0 %v1205
  %v1353 = vpop.f32.mrf.mxu0
  %v1354 = vadd.f32 0.0, %v1353
  %v1355 = vpop.f32.mrf.mxu0
  %1356 = vmatprep.mubr.f32.mxu0 0.0
  %1357 = vmatmul.mubr.f32.gmra.mxu0 %v1208
  %v1358 = vpop.f32.mrf.mxu0
  %v1359 = vadd.f32 0.0, %v1358
  %v1360 = vpop.f32.mrf.mxu0
  %1361 = vmatprep.mubr.f32.mxu0 0.0
  %1362 = vmatmul.mubr.f32.gmra.mxu0 %v1211
  %v1363 = vpop.f32.mrf.mxu0
  %v1364 = vadd.f32 0.0, %v1363
  %v1365 = vpop.f32.mrf.mxu0
  %1366 = vmatprep.mubr.f32.mxu0 0.0
  %1367 = vmatmul.mubr.f32.gmra.mxu0 %v1214
  %v1368 = vpop.f32.mrf.mxu0
  %v1369 = vadd.f32 0.0, %v1368
  %v1370 = vpop.f32.mrf.mxu0
  %1371 = vmatprep.mubr.f32.mxu0 0.0
  %1372 = vmatmul.mubr.f32.gmra.mxu0 %v1217
  %v1373 = vpop.f32.mrf.mxu0
  %v1374 = vadd.f32 0.0, %v1373
  %v1375 = vpop.f32.mrf.mxu0
  %1376 = vmatprep.mubr.f32.mxu0 0.0
  %1377 = vmatmul.mubr.f32.gmra.mxu0 %v1220
  %v1378 = vpop.f32.mrf.mxu0
  %v1379 = vadd.f32 0.0, %v1378
  %v1380 = vpop.f32.mrf.mxu0
  %1381 = vmatprep.mubr.f32.mxu0 0.0
  %1382 = vmatmul.mubr.f32.gmra.mxu0 %v1223
  %v1383 = vpop.f32.mrf.mxu0
  %v1384 = vadd.f32 0.0, %v1383
  %v1385 = vpop.f32.mrf.mxu0
  %1386 = vmatprep.mubr.f32.mxu0 0.0
  %1387 = vmatmul.mubr.f32.gmra.mxu0 %v1226
  %v1388 = vpop.f32.mrf.mxu0
  %v1389 = vadd.f32 0.0, %v1388
  %v1390 = vpop.f32.mrf.mxu0
  %1391 = vmatprep.mubr.f32.mxu0 0.0
  %1392 = vmatmul.mubr.f32.gmra.mxu0 %v1229
  %v1393 = vpop.f32.mrf.mxu0
  %v1394 = vadd.f32 0.0, %v1393
  %v1395 = vpop.f32.mrf.mxu0
  %1396 = vmatprep.mubr.f32.mxu0 0.0
  %1397 = vmatmul.mubr.f32.gmra.mxu0 %v1232
  %v1398 = vpop.f32.mrf.mxu0
  %v1399 = vadd.f32 0.0, %v1398
  %v1400 = vpop.f32.mrf.mxu0
  %1401 = vmatprep.mubr.f32.mxu0 0.0
  %1402 = vmatmul.mubr.f32.gmra.mxu0 %v1235
  %v1403 = vpop.f32.mrf.mxu0
  %v1404 = vadd.f32 0.0, %v1403
  %v1405 = vpop.f32.mrf.mxu0
  %1406 = vdwg.mxu0
  %v1407 = vadd.f32 %v1120, %v1304
  %v1408 = vadd.f32 %v1121, %v1309
  %v1409 = vadd.f32 %v1122, %v1314
  %v1410 = vadd.f32 %v1123, %v1319
  %v1411 = vadd.f32 %v1124, %v1324
  %v1412 = vadd.f32 %v1125, %v1329
  %v1413 = vadd.f32 %v1126, %v1334
  %v1414 = vadd.f32 %v1127, %v1339
  %v1415 = vadd.f32 %v1128, %v1344
  %v1416 = vadd.f32 %v1129, %v1349
  %v1417 = vadd.f32 %v1130, %v1354
  %v1418 = vadd.f32 %v1131, %v1359
  %v1419 = vadd.f32 %v1132, %v1364
  %v1420 = vadd.f32 %v1133, %v1369
  %v1421 = vadd.f32 %v1134, %v1374
  %v1422 = vadd.f32 %v1135, %v1379
  %v1423 = vadd.f32 %v1136, %v1384
  %v1424 = vadd.f32 %v1137, %v1389
  %v1425 = vadd.f32 %v1138, %v1394
  %v1426 = vadd.f32 %v1139, %v1399
  %v1427 = vadd.f32 %v1140, %v1404
  %v1428 = vld [vmem:[%s2] sm:$0xff]
  %v1429 = vld [vmem:[%s2 + $0x8] sm:$0xff]
  %v1430 = vld [vmem:[%s2 + $0x10] sm:$0xff]
  %v1431 = vld [vmem:[%s2 + $0x18] sm:$0xff]
  %v1432 = vld [vmem:[%s2 + $0x20] sm:$0xff]
  %v1433 = vld [vmem:[%s2 + $0x28] sm:$0xff]
  %v1434 = vld [vmem:[%s2 + $0x30] sm:$0xff]
  %v1435 = vld [vmem:[%s2 + $0x38] sm:$0xff]
  %v1436 = vld [vmem:[%s2 + $0x40] sm:$0xff]
  %v1437 = vld [vmem:[%s2 + $0x48] sm:$0xff]
  %v1438 = vld [vmem:[%s2 + $0x50] sm:$0xff]
  %v1439 = vld [vmem:[%s2 + $0x58] sm:$0xff]
  %v1440 = vld [vmem:[%s2 + $0x60] sm:$0xff]
  %v1441 = vld [vmem:[%s2 + $0x68] sm:$0xff]
  %v1442 = vld [vmem:[%s2 + $0x70] sm:$0xff]
  %v1443 = vld [vmem:[%s2 + $0x78] sm:$0xff]
  %v1444 = vld [vmem:[%s2 + $0x80] sm:$0xff]
  %v1445 = vld [vmem:[%s2 + $0x88] sm:$0xff]
  %v1446 = vld [vmem:[%s2 + $0x90] sm:$0xff]
  %v1447 = vld [vmem:[%s2 + $0x98] sm:$0xff]
  %v1448 = vld [vmem:[%s2 + $0xa0] sm:$0xff]
  %1450 = vset.pattern.permute.xlu0 0
  %1451 = vperm.xlu0 %1450, %v1428
  %v1452 = vpop.permute.xlu0 %1451
  %1455 = vset.pattern.permute.xlu0 0
  %1456 = vperm.xlu0 %1455, %v1429
  %v1457 = vpop.permute.xlu0 %1456
  %1460 = vset.pattern.permute.xlu0 0
  %1461 = vperm.xlu0 %1460, %v1430
  %v1462 = vpop.permute.xlu0 %1461
  %1465 = vset.pattern.permute.xlu0 0
  %1466 = vperm.xlu0 %1465, %v1431
  %v1467 = vpop.permute.xlu0 %1466
  %1470 = vset.pattern.permute.xlu0 0
  %1471 = vperm.xlu0 %1470, %v1432
  %v1472 = vpop.permute.xlu0 %1471
  %1475 = vset.pattern.permute.xlu0 0
  %1476 = vperm.xlu0 %1475, %v1433
  %v1477 = vpop.permute.xlu0 %1476
  %1480 = vset.pattern.permute.xlu0 0
  %1481 = vperm.xlu0 %1480, %v1434
  %v1482 = vpop.permute.xlu0 %1481
  %1485 = vset.pattern.permute.xlu0 0
  %1486 = vperm.xlu0 %1485, %v1435
  %v1487 = vpop.permute.xlu0 %1486
  %1490 = vset.pattern.permute.xlu0 0
  %1491 = vperm.xlu0 %1490, %v1436
  %v1492 = vpop.permute.xlu0 %1491
  %1495 = vset.pattern.permute.xlu0 0
  %1496 = vperm.xlu0 %1495, %v1437
  %v1497 = vpop.permute.xlu0 %1496
  %1500 = vset.pattern.permute.xlu0 0
  %1501 = vperm.xlu0 %1500, %v1438
  %v1502 = vpop.permute.xlu0 %1501
  %1505 = vset.pattern.permute.xlu0 0
  %1506 = vperm.xlu0 %1505, %v1439
  %v1507 = vpop.permute.xlu0 %1506
  %1510 = vset.pattern.permute.xlu0 0
  %1511 = vperm.xlu0 %1510, %v1440
  %v1512 = vpop.permute.xlu0 %1511
  %1515 = vset.pattern.permute.xlu0 0
  %1516 = vperm.xlu0 %1515, %v1441
  %v1517 = vpop.permute.xlu0 %1516
  %1520 = vset.pattern.permute.xlu0 0
  %1521 = vperm.xlu0 %1520, %v1442
  %v1522 = vpop.permute.xlu0 %1521
  %1525 = vset.pattern.permute.xlu0 0
  %1526 = vperm.xlu0 %1525, %v1443
  %v1527 = vpop.permute.xlu0 %1526
  %1530 = vset.pattern.permute.xlu0 0
  %1531 = vperm.xlu0 %1530, %v1444
  %v1532 = vpop.permute.xlu0 %1531
  %1535 = vset.pattern.permute.xlu0 0
  %1536 = vperm.xlu0 %1535, %v1445
  %v1537 = vpop.permute.xlu0 %1536
  %1540 = vset.pattern.permute.xlu0 0
  %1541 = vperm.xlu0 %1540, %v1446
  %v1542 = vpop.permute.xlu0 %1541
  %1545 = vset.pattern.permute.xlu0 0
  %1546 = vperm.xlu0 %1545, %v1447
  %v1547 = vpop.permute.xlu0 %1546
  %1550 = vset.pattern.permute.xlu0 0
  %1551 = vperm.xlu0 %1550, %v1448
  %v1552 = vpop.permute.xlu0 %1551
  %v1554 = vadd.f32 %v1407, %v1452
  %v1555 = vadd.f32 %v1408, %v1457
  %v1556 = vadd.f32 %v1409, %v1462
  %v1557 = vadd.f32 %v1410, %v1467
  %v1558 = vadd.f32 %v1411, %v1472
  %v1559 = vadd.f32 %v1412, %v1477
  %v1560 = vadd.f32 %v1413, %v1482
  %v1561 = vadd.f32 %v1414, %v1487
  %v1562 = vadd.f32 %v1415, %v1492
  %v1563 = vadd.f32 %v1416, %v1497
  %v1564 = vadd.f32 %v1417, %v1502
  %v1565 = vadd.f32 %v1418, %v1507
  %v1566 = vadd.f32 %v1419, %v1512
  %v1567 = vadd.f32 %v1420, %v1517
  %v1568 = vadd.f32 %v1421, %v1522
  %v1569 = vadd.f32 %v1422, %v1527
  %v1570 = vadd.f32 %v1423, %v1532
  %v1571 = vadd.f32 %v1424, %v1537
  %v1572 = vadd.f32 %v1425, %v1542
  %v1573 = vadd.f32 %v1426, %v1547
  %v1574 = vadd.f32 %v1427, %v1552
  %v1575 = vmax.f32 %v1554, 0.0
  %v1576 = vmax.f32 %v1555, 0.0
  %v1577 = vmax.f32 %v1556, 0.0
  %v1578 = vmax.f32 %v1557, 0.0
  %v1579 = vmax.f32 %v1558, 0.0
  %v1580 = vmax.f32 %v1559, 0.0
  %v1581 = vmax.f32 %v1560, 0.0
  %v1582 = vmax.f32 %v1561, 0.0
  %v1583 = vmax.f32 %v1562, 0.0
  %v1584 = vmax.f32 %v1563, 0.0
  %v1585 = vmax.f32 %v1564, 0.0
  %v1586 = vmax.f32 %v1565, 0.0
  %v1587 = vmax.f32 %v1566, 0.0
  %v1588 = vmax.f32 %v1567, 0.0
  %v1589 = vmax.f32 %v1568, 0.0
  %v1590 = vmax.f32 %v1569, 0.0
  %v1591 = vmax.f32 %v1570, 0.0
  %v1592 = vmax.f32 %v1571, 0.0
  %v1593 = vmax.f32 %v1572, 0.0
  %v1594 = vmax.f32 %v1573, 0.0
  %v1595 = vmax.f32 %v1574, 0.0
  %1617 = vrot.lane.b32.xlu0 %v1575, 127
  %v1618 = vpop.permute.xlu0 %1617
  %1619 = vrot.lane.b32.xlu0 %v1576, 127
  %v1620 = vpop.permute.xlu0 %1619
  %1621 = vrot.lane.b32.xlu0 %v1577, 127
  %v1622 = vpop.permute.xlu0 %1621
  %1623 = vrot.lane.b32.xlu0 %v1578, 127
  %v1624 = vpop.permute.xlu0 %1623
  %1625 = vrot.lane.b32.xlu0 %v1579, 127
  %v1626 = vpop.permute.xlu0 %1625
  %1627 = vrot.lane.b32.xlu0 %v1580, 127
  %v1628 = vpop.permute.xlu0 %1627
  %1629 = vrot.lane.b32.xlu0 %v1581, 127
  %v1630 = vpop.permute.xlu0 %1629
  %1631 = vrot.lane.b32.xlu0 %v1582, 127
  %v1632 = vpop.permute.xlu0 %1631
  %1633 = vrot.lane.b32.xlu0 %v1583, 127
  %v1634 = vpop.permute.xlu0 %1633
  %1635 = vrot.lane.b32.xlu0 %v1584, 127
  %v1636 = vpop.permute.xlu0 %1635
  %1637 = vrot.lane.b32.xlu0 %v1585, 127
  %v1638 = vpop.permute.xlu0 %1637
  %1639 = vrot.lane.b32.xlu0 %v1586, 127
  %v1640 = vpop.permute.xlu0 %1639
  %1641 = vrot.lane.b32.xlu0 %v1587, 127
  %v1642 = vpop.permute.xlu0 %1641
  %1643 = vrot.lane.b32.xlu0 %v1588, 127
  %v1644 = vpop.permute.xlu0 %1643
  %1645 = vrot.lane.b32.xlu0 %v1589, 127
  %v1646 = vpop.permute.xlu0 %1645
  %1647 = vrot.lane.b32.xlu0 %v1590, 127
  %v1648 = vpop.permute.xlu0 %1647
  %1649 = vrot.lane.b32.xlu0 %v1591, 127
  %v1650 = vpop.permute.xlu0 %1649
  %1651 = vrot.lane.b32.xlu0 %v1592, 127
  %v1652 = vpop.permute.xlu0 %1651
  %1653 = vrot.lane.b32.xlu0 %v1593, 127
  %v1654 = vpop.permute.xlu0 %1653
  %1655 = vrot.lane.b32.xlu0 %v1594, 127
  %v1656 = vpop.permute.xlu0 %1655
  %1657 = vrot.lane.b32.xlu0 %v1595, 127
  %v1658 = vpop.permute.xlu0 %1657
  %v1680 = vmax.f32 %v1575, %v1618
  %v1681 = vmax.f32 %v1576, %v1620
  %v1682 = vmax.f32 %v1577, %v1622
  %v1683 = vmax.f32 %v1578, %v1624
  %v1684 = vmax.f32 %v1579, %v1626
  %v1685 = vmax.f32 %v1580, %v1628
  %v1686 = vmax.f32 %v1581, %v1630
  %v1687 = vmax.f32 %v1582, %v1632
  %v1688 = vmax.f32 %v1583, %v1634
  %v1689 = vmax.f32 %v1584, %v1636
  %v1690 = vmax.f32 %v1585, %v1638
  %v1691 = vmax.f32 %v1586, %v1640
  %v1692 = vmax.f32 %v1587, %v1642
  %v1693 = vmax.f32 %v1588, %v1644
  %v1694 = vmax.f32 %v1589, %v1646
  %v1695 = vmax.f32 %v1590, %v1648
  %v1696 = vmax.f32 %v1591, %v1650
  %v1697 = vmax.f32 %v1592, %v1652
  %v1698 = vmax.f32 %v1593, %v1654
  %v1699 = vmax.f32 %v1594, %v1656
  %v1700 = vmax.f32 %v1595, %v1658
  %vm1722 = vcmask 1046528
  %v1723 = vrot.slane %v1680, 1
  %v1724 = vrot.slane %v1681, 1
  %v1725 = vsel %vm1722, %v1723, %v1724
  %v1726 = vrot.slane %v1682, 1
  %v1727 = vsel %vm1722, %v1724, %v1726
  %v1728 = vrot.slane %v1683, 1
  %v1729 = vsel %vm1722, %v1726, %v1728
  %v1730 = vrot.slane %v1684, 1
  %v1731 = vsel %vm1722, %v1728, %v1730
  %v1732 = vrot.slane %v1685, 1
  %v1733 = vsel %vm1722, %v1730, %v1732
  %v1734 = vrot.slane %v1686, 1
  %v1735 = vsel %vm1722, %v1732, %v1734
  %v1736 = vrot.slane %v1687, 1
  %v1737 = vsel %vm1722, %v1734, %v1736
  %v1738 = vrot.slane %v1688, 1
  %v1739 = vsel %vm1722, %v1736, %v1738
  %v1740 = vrot.slane %v1689, 1
  %v1741 = vsel %vm1722, %v1738, %v1740
  %v1742 = vrot.slane %v1690, 1
  %v1743 = vsel %vm1722, %v1740, %v1742
  %v1744 = vrot.slane %v1691, 1
  %v1745 = vsel %vm1722, %v1742, %v1744
  %v1746 = vrot.slane %v1692, 1
  %v1747 = vsel %vm1722, %v1744, %v1746
  %v1748 = vrot.slane %v1693, 1
  %v1749 = vsel %vm1722, %v1746, %v1748
  %v1750 = vrot.slane %v1694, 1
  %v1751 = vsel %vm1722, %v1748, %v1750
  %v1752 = vrot.slane %v1695, 1
  %v1753 = vsel %vm1722, %v1750, %v1752
  %v1754 = vrot.slane %v1696, 1
  %v1755 = vsel %vm1722, %v1752, %v1754
  %v1756 = vrot.slane %v1697, 1
  %v1757 = vsel %vm1722, %v1754, %v1756
  %v1758 = vrot.slane %v1698, 1
  %v1759 = vsel %vm1722, %v1756, %v1758
  %v1760 = vrot.slane %v1699, 1
  %v1761 = vsel %vm1722, %v1758, %v1760
  %v1762 = vrot.slane %v1700, 1
  %v1763 = vsel %vm1722, %v1760, %v1762
  %v1785 = vmax.f32 %v1680, %v1725
  %v1786 = vmax.f32 %v1681, %v1727
  %v1787 = vmax.f32 %v1682, %v1729
  %v1788 = vmax.f32 %v1683, %v1731
  %v1789 = vmax.f32 %v1684, %v1733
  %v1790 = vmax.f32 %v1685, %v1735
  %v1791 = vmax.f32 %v1686, %v1737
  %v1792 = vmax.f32 %v1687, %v1739
  %v1793 = vmax.f32 %v1688, %v1741
  %v1794 = vmax.f32 %v1689, %v1743
  %v1795 = vmax.f32 %v1690, %v1745
  %v1796 = vmax.f32 %v1691, %v1747
  %v1797 = vmax.f32 %v1692, %v1749
  %v1798 = vmax.f32 %v1693, %v1751
  %v1799 = vmax.f32 %v1694, %v1753
  %v1800 = vmax.f32 %v1695, %v1755
  %v1801 = vmax.f32 %v1696, %v1757
  %v1802 = vmax.f32 %v1697, %v1759
  %v1803 = vmax.f32 %v1698, %v1761
  %v1804 = vmax.f32 %v1699, %v1763
  %v1805 = vmax.f32 %v1700, %v1762
  %v1806 = vlaneseq
  %v1807 = vand.u32 %v1806, 127
  %v1808 = vadd.s32 %v1807, 128
  %v1809 = vlaneseq
  %v1810 = vshrl.u32 %v1809, 7
  %v1811 = vadd.s32 %v1810, 8
  %v1812 = vadd.s32 %v1810, 16
  %v1813 = vadd.s32 %v1810, 24
  %v1814 = vadd.s32 %v1810, 32
  %v1815 = vadd.s32 %v1810, 40
  %v1816 = vadd.s32 %v1810, 48
  %v1817 = vadd.s32 %v1810, 56
  %v1818 = vadd.s32 %v1810, 64
  %v1819 = vadd.s32 %v1810, 72
  %v1820 = vadd.s32 %v1810, 80
  %v1821 = vmul.u32 %v1810, 2
  %v1822 = vmul.u32 %v1811, 2
  %v1823 = vmul.u32 %v1812, 2
  %v1824 = vmul.u32 %v1813, 2
  %v1825 = vmul.u32 %v1814, 2
  %v1826 = vmul.u32 %v1815, 2
  %v1827 = vmul.u32 %v1816, 2
  %v1828 = vmul.u32 %v1817, 2
  %v1829 = vmul.u32 %v1818, 2
  %v1830 = vmul.u32 %v1819, 2
  %v1831 = vmul.u32 %v1820, 2
  %vm1832 = vcmp.eq.s32.totalorder %v1807, %v1821
  %vm1833 = vcmp.eq.s32.totalorder %v1808, %v1821
  %vm1834 = vcmp.eq.s32.totalorder %v1807, %v1822
  %vm1835 = vcmp.eq.s32.totalorder %v1808, %v1822
  %vm1836 = vcmp.eq.s32.totalorder %v1807, %v1823
  %vm1837 = vcmp.eq.s32.totalorder %v1808, %v1823
  %vm1838 = vcmp.eq.s32.totalorder %v1807, %v1824
  %vm1839 = vcmp.eq.s32.totalorder %v1808, %v1824
  %vm1840 = vcmp.eq.s32.totalorder %v1807, %v1825
  %vm1841 = vcmp.eq.s32.totalorder %v1808, %v1825
  %vm1842 = vcmp.eq.s32.totalorder %v1807, %v1826
  %vm1843 = vcmp.eq.s32.totalorder %v1808, %v1826
  %vm1844 = vcmp.eq.s32.totalorder %v1807, %v1827
  %vm1845 = vcmp.eq.s32.totalorder %v1808, %v1827
  %vm1846 = vcmp.eq.s32.totalorder %v1807, %v1828
  %vm1847 = vcmp.eq.s32.totalorder %v1808, %v1828
  %vm1848 = vcmp.eq.s32.totalorder %v1807, %v1829
  %vm1849 = vcmp.eq.s32.totalorder %v1808, %v1829
  %vm1850 = vcmp.eq.s32.totalorder %v1807, %v1830
  %vm1851 = vcmp.eq.s32.totalorder %v1808, %v1830
  %vm1852 = vcmp.eq.s32.totalorder %v1807, %v1831
  %vm1853 = vcmp.eq.s32.totalorder %v1808, %v1831
  %v1854 = vsel %vm1832, 1, 0
  %v1855 = vsel %vm1833, 1, 0
  %v1856 = vsel %vm1834, 1, 0
  %v1857 = vsel %vm1835, 1, 0
  %v1858 = vsel %vm1836, 1, 0
  %v1859 = vsel %vm1837, 1, 0
  %v1860 = vsel %vm1838, 1, 0
  %v1861 = vsel %vm1839, 1, 0
  %v1862 = vsel %vm1840, 1, 0
  %v1863 = vsel %vm1841, 1, 0
  %v1864 = vsel %vm1842, 1, 0
  %v1865 = vsel %vm1843, 1, 0
  %v1866 = vsel %vm1844, 1, 0
  %v1867 = vsel %vm1845, 1, 0
  %v1868 = vsel %vm1846, 1, 0
  %v1869 = vsel %vm1847, 1, 0
  %v1870 = vsel %vm1848, 1, 0
  %v1871 = vsel %vm1849, 1, 0
  %v1872 = vsel %vm1850, 1, 0
  %v1873 = vsel %vm1851, 1, 0
  %v1874 = vsel %vm1852, 1, 0
  %v1875 = vsel %vm1853, 1, 0
  %v1876 = vcvt.s32.f32 %v1854
  %v1877 = vcvt.s32.f32 %v1855
  %v1878 = vcvt.s32.f32 %v1856
  %v1879 = vcvt.s32.f32 %v1857
  %v1880 = vcvt.s32.f32 %v1858
  %v1881 = vcvt.s32.f32 %v1859
  %v1882 = vcvt.s32.f32 %v1860
  %v1883 = vcvt.s32.f32 %v1861
  %v1884 = vcvt.s32.f32 %v1862
  %v1885 = vcvt.s32.f32 %v1863
  %v1886 = vcvt.s32.f32 %v1864
  %v1887 = vcvt.s32.f32 %v1865
  %v1888 = vcvt.s32.f32 %v1866
  %v1889 = vcvt.s32.f32 %v1867
  %v1890 = vcvt.s32.f32 %v1868
  %v1891 = vcvt.s32.f32 %v1869
  %v1892 = vcvt.s32.f32 %v1870
  %v1893 = vcvt.s32.f32 %v1871
  %v1894 = vcvt.s32.f32 %v1872
  %v1895 = vcvt.s32.f32 %v1873
  %v1896 = vcvt.s32.f32 %v1874
  %v1897 = vcvt.s32.f32 %v1875
  %v1898 = vmul.u32 %v1807, 2
  %vm1899 = vcmp.eq.s32.totalorder %v1810, %v1898
  %vm1900 = vcmp.eq.s32.totalorder %v1811, %v1898
  %vm1901 = vcmp.eq.s32.totalorder %v1812, %v1898
  %vm1902 = vcmp.eq.s32.totalorder %v1813, %v1898
  %v1903 = vsel %vm1899, 1, 0
  %v1904 = vsel %vm1900, 1, 0
  %v1905 = vsel %vm1901, 1, 0
  %v1906 = vsel %vm1902, 1, 0
  %v1907 = vcvt.s32.f32 %v1903
  %v1908 = vcvt.s32.f32 %v1904
  %v1909 = vcvt.s32.f32 %v1905
  %v1910 = vcvt.s32.f32 %v1906
  %vm1911 = vcmask 318464
  %v1913 = vsel %vm1911, %v1877, 0
  %v1916 = vsel %vm1911, %v1879, 0
  %v1919 = vsel %vm1911, %v1881, 0
  %v1922 = vsel %vm1911, %v1883, 0
  %v1925 = vsel %vm1911, %v1885, 0
  %v1928 = vsel %vm1911, %v1887, 0
  %v1931 = vsel %vm1911, %v1889, 0
  %v1934 = vsel %vm1911, %v1891, 0
  %v1937 = vsel %vm1911, %v1893, 0
  %v1940 = vsel %vm1911, %v1895, 0
  %v1943 = vsel %vm1911, %v1897, 0
  %v1946 = vsel %vm1722, %v1805, 0
  %1948 = vmatprep.subr.mxu0 0.0
  %1949 = vmatpush1.msra.mxu0 %v1800
  %1950 = vmatprep.subr.mxu0 0.0
  %1951 = vmatpush1.msra.mxu0 %v1799
  %1952 = vmatprep.subr.mxu0 0.0
  %1953 = vmatpush1.msra.mxu0 %v1798
  %1954 = vmatprep.subr.mxu0 0.0
  %1955 = vmatpush1.msra.mxu0 %v1797
  %1956 = vmatprep.subr.mxu0 0.0
  %1957 = vmatpush1.msra.mxu0 %v1796
  %1958 = vmatprep.subr.mxu0 0.0
  %1959 = vmatpush1.msra.mxu0 %v1795
  %1960 = vmatprep.subr.mxu0 0.0
  %1961 = vmatpush1.msra.mxu0 %v1794
  %1962 = vmatprep.subr.mxu0 0.0
  %1963 = vmatpush1.msra.mxu0 %v1793
  %1964 = vmatprep.subr.mxu0 0.0
  %1965 = vmatpush1.msra.mxu0 %v1792
  %1966 = vmatprep.subr.mxu0 0.0
  %1967 = vmatpush1.msra.mxu0 %v1791
  %1968 = vmatprep.subr.mxu0 0.0
  %1969 = vmatpush1.msra.mxu0 %v1790
  %1970 = vmatprep.subr.mxu0 0.0
  %1971 = vmatpush1.msra.mxu0 %v1789
  %1972 = vmatprep.subr.mxu0 0.0
  %1973 = vmatpush1.msra.mxu0 %v1788
  %1974 = vmatprep.subr.mxu0 0.0
  %1975 = vmatpush1.msra.mxu0 %v1787
  %1976 = vmatprep.subr.mxu0 0.0
  %1977 = vmatpush1.msra.mxu0 %v1786
  %1978 = vmatprep.subr.mxu0 0.0
  %1979 = vmatpush1.msra.mxu0 %v1785
  %1980 = vmatprep.subr.mxu0 0.0
  %1981 = vmatpush2.msra.mxu0 0.0
  %1982 = vmatprep.subr.mxu0 0.0
  %1983 = vmatpush2.msra.mxu0 0.0
  %1984 = vmatprep.subr.mxu0 0.0
  %1985 = vmatpush2.msra.mxu0 0.0
  %1986 = vmatprep.subr.mxu0 0.0
  %1987 = vmatpush2.msra.mxu0 0.0
  %1988 = vmatprep.subr.mxu0 0.0
  %1989 = vmatpush2.msra.mxu0 0.0
  %1990 = vmatprep.subr.mxu0 0.0
  %1991 = vmatpush2.msra.mxu0 0.0
  %1992 = vmatprep.subr.mxu0 0.0
  %1993 = vmatpush2.msra.mxu0 0.0
  %1994 = vmatprep.subr.mxu0 0.0
  %1995 = vmatpush2.msra.mxu0 0.0
  %1996 = vmatprep.subr.mxu0 0.0
  %1997 = vmatpush2.msra.mxu0 0.0
  %1998 = vmatprep.subr.mxu0 0.0
  %1999 = vmatpush2.msra.mxu0 0.0
  %2000 = vmatprep.subr.mxu0 0.0
  %2001 = vmatpush2.msra.mxu0 0.0
  %2002 = vmatprep.subr.mxu0 0.0
  %2003 = vmatpush2.msra.mxu0 %v1946
  %2004 = vmatprep.subr.mxu0 0.0
  %2005 = vmatpush2.msra.mxu0 %v1804
  %2006 = vmatprep.subr.mxu0 0.0
  %2007 = vmatpush2.msra.mxu0 %v1803
  %2008 = vmatprep.subr.mxu0 0.0
  %2009 = vmatpush2.msra.mxu0 %v1802
  %2010 = vmatprep.subr.mxu0 0.0
  %2011 = vmatpush2.msra.mxu0 %v1801
  %2012 = vmatprep.mubr.f32.mxu0 %v1913
  %2013 = vmatmul.mubr.f32.gmra.mxu0 %v1876
  %v2014 = vpop.f32.mrf.mxu0
  %v2015 = vadd.f32 0.0, %v2014
  %v2016 = vpop.f32.mrf.mxu0
  %2017 = vmatprep.mubr.f32.mxu0 %v1916
  %2018 = vmatmul.mubr.f32.gmra.mxu0 %v1878
  %v2019 = vpop.f32.mrf.mxu0
  %v2020 = vadd.f32 0.0, %v2019
  %v2021 = vpop.f32.mrf.mxu0
  %2022 = vmatprep.mubr.f32.mxu0 %v1919
  %2023 = vmatmul.mubr.f32.gmra.mxu0 %v1880
  %v2024 = vpop.f32.mrf.mxu0
  %v2025 = vadd.f32 0.0, %v2024
  %v2026 = vpop.f32.mrf.mxu0
  %2027 = vmatprep.mubr.f32.mxu0 %v1922
  %2028 = vmatmul.mubr.f32.gmra.mxu0 %v1882
  %v2029 = vpop.f32.mrf.mxu0
  %v2030 = vadd.f32 0.0, %v2029
  %v2031 = vpop.f32.mrf.mxu0
  %2032 = vmatprep.mubr.f32.mxu0 %v1925
  %2033 = vmatmul.mubr.f32.gmra.mxu0 %v1884
  %v2034 = vpop.f32.mrf.mxu0
  %v2035 = vadd.f32 0.0, %v2034
  %v2036 = vpop.f32.mrf.mxu0
  %2037 = vmatprep.mubr.f32.mxu0 %v1928
  %2038 = vmatmul.mubr.f32.gmra.mxu0 %v1886
  %v2039 = vpop.f32.mrf.mxu0
  %v2040 = vadd.f32 0.0, %v2039
  %v2041 = vpop.f32.mrf.mxu0
  %2042 = vmatprep.mubr.f32.mxu0 %v1931
  %2043 = vmatmul.mubr.f32.gmra.mxu0 %v1888
  %v2044 = vpop.f32.mrf.mxu0
  %v2045 = vadd.f32 0.0, %v2044
  %v2046 = vpop.f32.mrf.mxu0
  %2047 = vmatprep.mubr.f32.mxu0 %v1934
  %2048 = vmatmul.mubr.f32.gmra.mxu0 %v1890
  %v2049 = vpop.f32.mrf.mxu0
  %v2050 = vadd.f32 0.0, %v2049
  %v2051 = vpop.f32.mrf.mxu0
  %2052 = vmatprep.mubr.f32.mxu0 %v1937
  %2053 = vmatmul.mubr.f32.gmra.mxu0 %v1892
  %v2054 = vpop.f32.mrf.mxu0
  %v2055 = vadd.f32 0.0, %v2054
  %v2056 = vpop.f32.mrf.mxu0
  %2057 = vmatprep.mubr.f32.mxu0 %v1940
  %2058 = vmatmul.mubr.f32.gmra.mxu0 %v1894
  %v2059 = vpop.f32.mrf.mxu0
  %v2060 = vadd.f32 0.0, %v2059
  %v2061 = vpop.f32.mrf.mxu0
  %2062 = vmatprep.mubr.f32.mxu0 %v1943
  %2063 = vmatmul.mubr.f32.gmra.mxu0 %v1896
  %v2064 = vpop.f32.mrf.mxu0
  %v2065 = vadd.f32 0.0, %v2064
  %v2066 = vpop.f32.mrf.mxu0
  %2067 = vdwg.mxu0
  %vm2068 = vcmask 220160
  %v2070 = vsel %vm2068, %v2015, 0
  %v2073 = vsel %vm2068, %v2020, 0
  %v2076 = vsel %vm2068, %v2025, 0
  %v2079 = vsel %vm2068, %v2030, 0
  %v2082 = vsel %vm2068, %v2035, 0
  %v2085 = vsel %vm2068, %v2040, 0
  %v2088 = vsel %vm2068, %v2045, 0
  %v2091 = vsel %vm2068, %v2050, 0
  %v2094 = vsel %vm2068, %v2055, 0
  %v2097 = vsel %vm2068, %v2060, 0
  %v2100 = vsel %vm2068, %v2065, 0
  %vm2102 = vcmask 1042432
  %v2104 = vsel %vm2102, %v1910, 0
  %2106 = vmatprep.subr.mxu0 0.0
  %2107 = vmatpush1.msra.mxu0 0.0
  %2108 = vmatprep.subr.mxu0 0.0
  %2109 = vmatpush1.msra.mxu0 0.0
  %2110 = vmatprep.subr.mxu0 0.0
  %2111 = vmatpush1.msra.mxu0 0.0
  %2112 = vmatprep.subr.mxu0 0.0
  %2113 = vmatpush1.msra.mxu0 0.0
  %2114 = vmatprep.subr.mxu0 0.0
  %2115 = vmatpush1.msra.mxu0 0.0
  %2116 = vmatprep.subr.mxu0 0.0
  %2117 = vmatpush1.msra.mxu0 0.0
  %2118 = vmatprep.subr.mxu0 0.0
  %2119 = vmatpush1.msra.mxu0 0.0
  %2120 = vmatprep.subr.mxu0 0.0
  %2121 = vmatpush1.msra.mxu0 0.0
  %2122 = vmatprep.subr.mxu0 0.0
  %2123 = vmatpush1.msra.mxu0 0.0
  %2124 = vmatprep.subr.mxu0 0.0
  %2125 = vmatpush1.msra.mxu0 0.0
  %2126 = vmatprep.subr.mxu0 0.0
  %2127 = vmatpush1.msra.mxu0 0.0
  %2128 = vmatprep.subr.mxu0 0.0
  %2129 = vmatpush1.msra.mxu0 0.0
  %2130 = vmatprep.subr.mxu0 0.0
  %2131 = vmatpush1.msra.mxu0 %v2104
  %2132 = vmatprep.subr.mxu0 0.0
  %2133 = vmatpush1.msra.mxu0 %v1909
  %2134 = vmatprep.subr.mxu0 0.0
  %2135 = vmatpush1.msra.mxu0 %v1908
  %2136 = vmatprep.subr.mxu0 0.0
  %2137 = vmatpush1.msra.mxu0 %v1907
  %2138 = vmatprep.subr.mxu0 0.0
  %2139 = vmatpush2.msra.mxu0 0.0
  %2140 = vmatprep.subr.mxu0 0.0
  %2141 = vmatpush2.msra.mxu0 0.0
  %2142 = vmatprep.subr.mxu0 0.0
  %2143 = vmatpush2.msra.mxu0 0.0
  %2144 = vmatprep.subr.mxu0 0.0
  %2145 = vmatpush2.msra.mxu0 0.0
  %2146 = vmatprep.subr.mxu0 0.0
  %2147 = vmatpush2.msra.mxu0 0.0
  %2148 = vmatprep.subr.mxu0 0.0
  %2149 = vmatpush2.msra.mxu0 0.0
  %2150 = vmatprep.subr.mxu0 0.0
  %2151 = vmatpush2.msra.mxu0 0.0
  %2152 = vmatprep.subr.mxu0 0.0
  %2153 = vmatpush2.msra.mxu0 0.0
  %2154 = vmatprep.subr.mxu0 0.0
  %2155 = vmatpush2.msra.mxu0 0.0
  %2156 = vmatprep.subr.mxu0 0.0
  %2157 = vmatpush2.msra.mxu0 0.0
  %2158 = vmatprep.subr.mxu0 0.0
  %2159 = vmatpush2.msra.mxu0 0.0
  %2160 = vmatprep.subr.mxu0 0.0
  %2161 = vmatpush2.msra.mxu0 0.0
  %2162 = vmatprep.subr.mxu0 0.0
  %2163 = vmatpush2.msra.mxu0 0.0
  %2164 = vmatprep.subr.mxu0 0.0
  %2165 = vmatpush2.msra.mxu0 0.0
  %2166 = vmatprep.subr.mxu0 0.0
  %2167 = vmatpush2.msra.mxu0 0.0
  %2168 = vmatprep.subr.mxu0 0.0
  %2169 = vmatpush2.msra.mxu0 0.0
  %2170 = vmatprep.mubr.f32.mxu0 0.0
  %2171 = vmatmul.mubr.f32.gmra.mxu0 %v2070
  %v2172 = vpop.f32.mrf.mxu0
  %v2173 = vadd.f32 0.0, %v2172
  %v2174 = vpop.f32.mrf.mxu0
  %2175 = vmatprep.mubr.f32.mxu0 0.0
  %2176 = vmatmul.mubr.f32.gmra.mxu0 %v2073
  %v2177 = vpop.f32.mrf.mxu0
  %v2178 = vadd.f32 0.0, %v2177
  %v2179 = vpop.f32.mrf.mxu0
  %2180 = vmatprep.mubr.f32.mxu0 0.0
  %2181 = vmatmul.mubr.f32.gmra.mxu0 %v2076
  %v2182 = vpop.f32.mrf.mxu0
  %v2183 = vadd.f32 0.0, %v2182
  %v2184 = vpop.f32.mrf.mxu0
  %2185 = vmatprep.mubr.f32.mxu0 0.0
  %2186 = vmatmul.mubr.f32.gmra.mxu0 %v2079
  %v2187 = vpop.f32.mrf.mxu0
  %v2188 = vadd.f32 0.0, %v2187
  %v2189 = vpop.f32.mrf.mxu0
  %2190 = vmatprep.mubr.f32.mxu0 0.0
  %2191 = vmatmul.mubr.f32.gmra.mxu0 %v2082
  %v2192 = vpop.f32.mrf.mxu0
  %v2193 = vadd.f32 0.0, %v2192
  %v2194 = vpop.f32.mrf.mxu0
  %2195 = vmatprep.mubr.f32.mxu0 0.0
  %2196 = vmatmul.mubr.f32.gmra.mxu0 %v2085
  %v2197 = vpop.f32.mrf.mxu0
  %v2198 = vadd.f32 0.0, %v2197
  %v2199 = vpop.f32.mrf.mxu0
  %2200 = vmatprep.mubr.f32.mxu0 0.0
  %2201 = vmatmul.mubr.f32.gmra.mxu0 %v2088
  %v2202 = vpop.f32.mrf.mxu0
  %v2203 = vadd.f32 0.0, %v2202
  %v2204 = vpop.f32.mrf.mxu0
  %2205 = vmatprep.mubr.f32.mxu0 0.0
  %2206 = vmatmul.mubr.f32.gmra.mxu0 %v2091
  %v2207 = vpop.f32.mrf.mxu0
  %v2208 = vadd.f32 0.0, %v2207
  %v2209 = vpop.f32.mrf.mxu0
  %2210 = vmatprep.mubr.f32.mxu0 0.0
  %2211 = vmatmul.mubr.f32.gmra.mxu0 %v2094
  %v2212 = vpop.f32.mrf.mxu0
  %v2213 = vadd.f32 0.0, %v2212
  %v2214 = vpop.f32.mrf.mxu0
  %2215 = vmatprep.mubr.f32.mxu0 0.0
  %2216 = vmatmul.mubr.f32.gmra.mxu0 %v2097
  %v2217 = vpop.f32.mrf.mxu0
  %v2218 = vadd.f32 0.0, %v2217
  %v2219 = vpop.f32.mrf.mxu0
  %2220 = vmatprep.mubr.f32.mxu0 0.0
  %2221 = vmatmul.mubr.f32.gmra.mxu0 %v2100
  %v2222 = vpop.f32.mrf.mxu0
  %v2223 = vadd.f32 0.0, %v2222
  %v2224 = vpop.f32.mrf.mxu0
  %2225 = vdwg.mxu0
  %v2226 = vld [vmem:[%s3] sm:$0xff]
  %v2227 = vld [vmem:[%s3 + $0x20] sm:$0xff]
  %v2228 = vld [vmem:[%s3 + $0x40] sm:$0xff]
  %v2229 = vld [vmem:[%s3 + $0x60] sm:$0xff]
  %v2230 = vld [vmem:[%s3 + $0x80] sm:$0xff]
  %v2231 = vld [vmem:[%s3 + $0xa0] sm:$0xff]
  %v2232 = vld [vmem:[%s3 + $0xc0] sm:$0xff]
  %v2233 = vld [vmem:[%s3 + $0xe0] sm:$0xff]
  %v2234 = vld [vmem:[%s3 + $0x100] sm:$0xff]
  %v2235 = vld [vmem:[%s3 + $0x120] sm:$0xff]
  %v2236 = vld [vmem:[%s3 + $0x140] sm:$0xff]
  %v2237 = vld [vmem:[%s3 + $0x160] sm:$0xff]
  %v2238 = vld [vmem:[%s3 + $0x180] sm:$0xff]
  %v2239 = vld [vmem:[%s3 + $0x1a0] sm:$0xff]
  %v2240 = vld [vmem:[%s3 + $0x1c0] sm:$0xff]
  %v2241 = vld [vmem:[%s3 + $0x1e0] sm:$0xff]
  %v2242 = vld [vmem:[%s3 + $0x200] sm:$0xff]
  %v2243 = vld [vmem:[%s3 + $0x220] sm:$0xff]
  %v2244 = vld [vmem:[%s3 + $0x240] sm:$0xff]
  %v2245 = vld [vmem:[%s3 + $0x260] sm:$0xff]
  %v2246 = vld [vmem:[%s3 + $0x8] sm:$0xff]
  %v2247 = vld [vmem:[%s3 + $0x28] sm:$0xff]
  %v2248 = vld [vmem:[%s3 + $0x48] sm:$0xff]
  %v2249 = vld [vmem:[%s3 + $0x68] sm:$0xff]
  %v2250 = vld [vmem:[%s3 + $0x88] sm:$0xff]
  %v2251 = vld [vmem:[%s3 + $0xa8] sm:$0xff]
  %v2252 = vld [vmem:[%s3 + $0xc8] sm:$0xff]
  %v2253 = vld [vmem:[%s3 + $0xe8] sm:$0xff]
  %v2254 = vld [vmem:[%s3 + $0x108] sm:$0xff]
  %v2255 = vld [vmem:[%s3 + $0x128] sm:$0xff]
  %v2256 = vld [vmem:[%s3 + $0x148] sm:$0xff]
  %v2257 = vld [vmem:[%s3 + $0x168] sm:$0xff]
  %v2258 = vld [vmem:[%s3 + $0x188] sm:$0xff]
  %v2259 = vld [vmem:[%s3 + $0x1a8] sm:$0xff]
  %v2260 = vld [vmem:[%s3 + $0x1c8] sm:$0xff]
  %v2261 = vld [vmem:[%s3 + $0x1e8] sm:$0xff]
  %v2262 = vld [vmem:[%s3 + $0x208] sm:$0xff]
  %v2263 = vld [vmem:[%s3 + $0x228] sm:$0xff]
  %v2264 = vld [vmem:[%s3 + $0x248] sm:$0xff]
  %v2265 = vld [vmem:[%s3 + $0x268] sm:$0xff]
  %2306 = vrot.lane.b32.xlu0 %v2226, 40
  %v2307 = vpop.permute.xlu0 %2306
  %2308 = vrot.lane.b32.xlu0 %v2246, 40
  %v2309 = vpop.permute.xlu0 %2308
  %2310 = vrot.lane.b32.xlu0 %v2227, 40
  %v2311 = vpop.permute.xlu0 %2310
  %2312 = vrot.lane.b32.xlu0 %v2247, 40
  %v2313 = vpop.permute.xlu0 %2312
  %2314 = vrot.lane.b32.xlu0 %v2228, 40
  %v2315 = vpop.permute.xlu0 %2314
  %2316 = vrot.lane.b32.xlu0 %v2248, 40
  %v2317 = vpop.permute.xlu0 %2316
  %2318 = vrot.lane.b32.xlu0 %v2229, 40
  %v2319 = vpop.permute.xlu0 %2318
  %2320 = vrot.lane.b32.xlu0 %v2249, 40
  %v2321 = vpop.permute.xlu0 %2320
  %2322 = vrot.lane.b32.xlu0 %v2230, 40
  %v2323 = vpop.permute.xlu0 %2322
  %2324 = vrot.lane.b32.xlu0 %v2250, 40
  %v2325 = vpop.permute.xlu0 %2324
  %2326 = vrot.lane.b32.xlu0 %v2231, 40
  %v2327 = vpop.permute.xlu0 %2326
  %2328 = vrot.lane.b32.xlu0 %v2251, 40
  %v2329 = vpop.permute.xlu0 %2328
  %2330 = vrot.lane.b32.xlu0 %v2232, 40
  %v2331 = vpop.permute.xlu0 %2330
  %2332 = vrot.lane.b32.xlu0 %v2252, 40
  %v2333 = vpop.permute.xlu0 %2332
  %2334 = vrot.lane.b32.xlu0 %v2233, 40
  %v2335 = vpop.permute.xlu0 %2334
  %2336 = vrot.lane.b32.xlu0 %v2253, 40
  %v2337 = vpop.permute.xlu0 %2336
  %2338 = vrot.lane.b32.xlu0 %v2234, 40
  %v2339 = vpop.permute.xlu0 %2338
  %2340 = vrot.lane.b32.xlu0 %v2254, 40
  %v2341 = vpop.permute.xlu0 %2340
  %2342 = vrot.lane.b32.xlu0 %v2235, 40
  %v2343 = vpop.permute.xlu0 %2342
  %2344 = vrot.lane.b32.xlu0 %v2255, 40
  %v2345 = vpop.permute.xlu0 %2344
  %2346 = vrot.lane.b32.xlu0 %v2236, 40
  %v2347 = vpop.permute.xlu0 %2346
  %2348 = vrot.lane.b32.xlu0 %v2256, 40
  %v2349 = vpop.permute.xlu0 %2348
  %2350 = vrot.lane.b32.xlu0 %v2237, 40
  %v2351 = vpop.permute.xlu0 %2350
  %2352 = vrot.lane.b32.xlu0 %v2257, 40
  %v2353 = vpop.permute.xlu0 %2352
  %2354 = vrot.lane.b32.xlu0 %v2238, 40
  %v2355 = vpop.permute.xlu0 %2354
  %2356 = vrot.lane.b32.xlu0 %v2258, 40
  %v2357 = vpop.permute.xlu0 %2356
  %2358 = vrot.lane.b32.xlu0 %v2239, 40
  %v2359 = vpop.permute.xlu0 %2358
  %2360 = vrot.lane.b32.xlu0 %v2259, 40
  %v2361 = vpop.permute.xlu0 %2360
  %2362 = vrot.lane.b32.xlu0 %v2240, 40
  %v2363 = vpop.permute.xlu0 %2362
  %2364 = vrot.lane.b32.xlu0 %v2260, 40
  %v2365 = vpop.permute.xlu0 %2364
  %2366 = vrot.lane.b32.xlu0 %v2241, 40
  %v2367 = vpop.permute.xlu0 %2366
  %2368 = vrot.lane.b32.xlu0 %v2261, 40
  %v2369 = vpop.permute.xlu0 %2368
  %2370 = vrot.lane.b32.xlu0 %v2242, 40
  %v2371 = vpop.permute.xlu0 %2370
  %2372 = vrot.lane.b32.xlu0 %v2262, 40
  %v2373 = vpop.permute.xlu0 %2372
  %2374 = vrot.lane.b32.xlu0 %v2243, 40
  %v2375 = vpop.permute.xlu0 %2374
  %2376 = vrot.lane.b32.xlu0 %v2263, 40
  %v2377 = vpop.permute.xlu0 %2376
  %2378 = vrot.lane.b32.xlu0 %v2244, 40
  %v2379 = vpop.permute.xlu0 %2378
  %2380 = vrot.lane.b32.xlu0 %v2264, 40
  %v2381 = vpop.permute.xlu0 %2380
  %2382 = vrot.lane.b32.xlu0 %v2245, 40
  %v2383 = vpop.permute.xlu0 %2382
  %2384 = vrot.lane.b32.xlu0 %v2265, 40
  %v2385 = vpop.permute.xlu0 %2384
  %vm2386 = vcmask 326656
  %v2387 = vsel %vm2386, %v2307, %v2309
  %v2388 = vsel %vm2386, %v2311, %v2313
  %v2389 = vsel %vm2386, %v2315, %v2317
  %v2390 = vsel %vm2386, %v2319, %v2321
  %v2391 = vsel %vm2386, %v2323, %v2325
  %v2392 = vsel %vm2386, %v2327, %v2329
  %v2393 = vsel %vm2386, %v2331, %v2333
  %v2394 = vsel %vm2386, %v2335, %v2337
  %v2395 = vsel %vm2386, %v2339, %v2341
  %v2396 = vsel %vm2386, %v2343, %v2345
  %v2397 = vsel %vm2386, %v2347, %v2349
  %v2398 = vsel %vm2386, %v2351, %v2353
  %v2399 = vsel %vm2386, %v2355, %v2357
  %v2400 = vsel %vm2386, %v2359, %v2361
  %v2401 = vsel %vm2386, %v2363, %v2365
  %v2402 = vsel %vm2386, %v2367, %v2369
  %v2403 = vsel %vm2386, %v2371, %v2373
  %v2404 = vsel %vm2386, %v2375, %v2377
  %v2405 = vsel %vm2386, %v2379, %v2381
  %v2406 = vsel %vm2386, %v2383, %v2385
  %2418 = vrot.lane.b32.xlu0 %v2173, 127
  %v2419 = vpop.permute.xlu0 %2418
  %2420 = vrot.lane.b32.xlu0 %v2178, 127
  %v2421 = vpop.permute.xlu0 %2420
  %2422 = vrot.lane.b32.xlu0 %v2183, 127
  %v2423 = vpop.permute.xlu0 %2422
  %2424 = vrot.lane.b32.xlu0 %v2188, 127
  %v2425 = vpop.permute.xlu0 %2424
  %2426 = vrot.lane.b32.xlu0 %v2193, 127
  %v2427 = vpop.permute.xlu0 %2426
  %2428 = vrot.lane.b32.xlu0 %v2198, 127
  %v2429 = vpop.permute.xlu0 %2428
  %2430 = vrot.lane.b32.xlu0 %v2203, 127
  %v2431 = vpop.permute.xlu0 %2430
  %2432 = vrot.lane.b32.xlu0 %v2208, 127
  %v2433 = vpop.permute.xlu0 %2432
  %2434 = vrot.lane.b32.xlu0 %v2213, 127
  %v2435 = vpop.permute.xlu0 %2434
  %2436 = vrot.lane.b32.xlu0 %v2218, 127
  %v2437 = vpop.permute.xlu0 %2436
  %2438 = vrot.lane.b32.xlu0 %v2223, 127
  %v2439 = vpop.permute.xlu0 %2438
  %vm2451 = vcmask 719872
  %v2452 = vsel %vm2451, %v2387, 0
  %v2454 = vsel %vm2451, %v2388, 0
  %v2456 = vsel %vm2451, %v2389, 0
  %v2458 = vsel %vm2451, %v2390, 0
  %v2460 = vsel %vm2451, %v2391, 0
  %v2462 = vsel %vm2451, %v2392, 0
  %v2464 = vsel %vm2451, %v2393, 0
  %v2466 = vsel %vm2451, %v2394, 0
  %v2468 = vsel %vm2451, %v2395, 0
  %v2470 = vsel %vm2451, %v2396, 0
  %v2472 = vsel %vm2451, %v2397, 0
  %v2474 = vsel %vm2451, %v2398, 0
  %v2476 = vsel %vm2451, %v2399, 0
  %v2478 = vsel %vm2451, %v2400, 0
  %v2480 = vsel %vm2451, %v2401, 0
  %v2482 = vsel %vm2451, %v2402, 0
  %v2484 = vsel %vm2451, %v2403, 0
  %v2486 = vsel %vm2451, %v2404, 0
  %v2488 = vsel %vm2451, %v2405, 0
  %v2490 = vsel %vm2451, %v2406, 0
  %2492 = vmatprep.subr.mxu0 0.0
  %2493 = vmatpush1.msra.mxu0 0.0
  %2494 = vmatprep.subr.mxu0 0.0
  %2495 = vmatpush1.msra.mxu0 0.0
  %2496 = vmatprep.subr.mxu0 0.0
  %2497 = vmatpush1.msra.mxu0 0.0
  %2498 = vmatprep.subr.mxu0 0.0
  %2499 = vmatpush1.msra.mxu0 0.0
  %2500 = vmatprep.subr.mxu0 0.0
  %2501 = vmatpush1.msra.mxu0 0.0
  %2502 = vmatprep.subr.mxu0 0.0
  %2503 = vmatpush1.msra.mxu0 %v2439
  %2504 = vmatprep.subr.mxu0 0.0
  %2505 = vmatpush1.msra.mxu0 %v2437
  %2506 = vmatprep.subr.mxu0 0.0
  %2507 = vmatpush1.msra.mxu0 %v2435
  %2508 = vmatprep.subr.mxu0 0.0
  %2509 = vmatpush1.msra.mxu0 %v2433
  %2510 = vmatprep.subr.mxu0 0.0
  %2511 = vmatpush1.msra.mxu0 %v2431
  %2512 = vmatprep.subr.mxu0 0.0
  %2513 = vmatpush1.msra.mxu0 %v2429
  %2514 = vmatprep.subr.mxu0 0.0
  %2515 = vmatpush1.msra.mxu0 %v2427
  %2516 = vmatprep.subr.mxu0 0.0
  %2517 = vmatpush1.msra.mxu0 %v2425
  %2518 = vmatprep.subr.mxu0 0.0
  %2519 = vmatpush1.msra.mxu0 %v2423
  %2520 = vmatprep.subr.mxu0 0.0
  %2521 = vmatpush1.msra.mxu0 %v2421
  %2522 = vmatprep.subr.mxu0 0.0
  %2523 = vmatpush1.msra.mxu0 %v2419
  %2524 = vmatprep.subr.mxu0 0.0
  %2525 = vmatpush2.msra.mxu0 0.0
  %2526 = vmatprep.subr.mxu0 0.0
  %2527 = vmatpush2.msra.mxu0 0.0
  %2528 = vmatprep.subr.mxu0 0.0
  %2529 = vmatpush2.msra.mxu0 0.0
  %2530 = vmatprep.subr.mxu0 0.0
  %2531 = vmatpush2.msra.mxu0 0.0
  %2532 = vmatprep.subr.mxu0 0.0
  %2533 = vmatpush2.msra.mxu0 0.0
  %2534 = vmatprep.subr.mxu0 0.0
  %2535 = vmatpush2.msra.mxu0 0.0
  %2536 = vmatprep.subr.mxu0 0.0
  %2537 = vmatpush2.msra.mxu0 0.0
  %2538 = vmatprep.subr.mxu0 0.0
  %2539 = vmatpush2.msra.mxu0 0.0
  %2540 = vmatprep.subr.mxu0 0.0
  %2541 = vmatpush2.msra.mxu0 0.0
  %2542 = vmatprep.subr.mxu0 0.0
  %2543 = vmatpush2.msra.mxu0 0.0
  %2544 = vmatprep.subr.mxu0 0.0
  %2545 = vmatpush2.msra.mxu0 0.0
  %2546 = vmatprep.subr.mxu0 0.0
  %2547 = vmatpush2.msra.mxu0 0.0
  %2548 = vmatprep.subr.mxu0 0.0
  %2549 = vmatpush2.msra.mxu0 0.0
  %2550 = vmatprep.subr.mxu0 0.0
  %2551 = vmatpush2.msra.mxu0 0.0
  %2552 = vmatprep.subr.mxu0 0.0
  %2553 = vmatpush2.msra.mxu0 0.0
  %2554 = vmatprep.subr.mxu0 0.0
  %2555 = vmatpush2.msra.mxu0 0.0
  %2556 = vmatprep.mubr.f32.mxu0 0.0
  %2557 = vmatmul.mubr.f32.gmra.mxu0 %v2452
  %v2558 = vpop.f32.mrf.mxu0
  %v2559 = vadd.f32 0.0, %v2558
  %v2560 = vpop.f32.mrf.mxu0
  %2561 = vmatprep.mubr.f32.mxu0 0.0
  %2562 = vmatmul.mubr.f32.gmra.mxu0 %v2454
  %v2563 = vpop.f32.mrf.mxu0
  %v2564 = vadd.f32 0.0, %v2563
  %v2565 = vpop.f32.mrf.mxu0
  %2566 = vmatprep.mubr.f32.mxu0 0.0
  %2567 = vmatmul.mubr.f32.gmra.mxu0 %v2456
  %v2568 = vpop.f32.mrf.mxu0
  %v2569 = vadd.f32 0.0, %v2568
  %v2570 = vpop.f32.mrf.mxu0
  %2571 = vmatprep.mubr.f32.mxu0 0.0
  %2572 = vmatmul.mubr.f32.gmra.mxu0 %v2458
  %v2573 = vpop.f32.mrf.mxu0
  %v2574 = vadd.f32 0.0, %v2573
  %v2575 = vpop.f32.mrf.mxu0
  %2576 = vmatprep.mubr.f32.mxu0 0.0
  %2577 = vmatmul.mubr.f32.gmra.mxu0 %v2460
  %v2578 = vpop.f32.mrf.mxu0
  %v2579 = vadd.f32 0.0, %v2578
  %v2580 = vpop.f32.mrf.mxu0
  %2581 = vmatprep.mubr.f32.mxu0 0.0
  %2582 = vmatmul.mubr.f32.gmra.mxu0 %v2462
  %v2583 = vpop.f32.mrf.mxu0
  %v2584 = vadd.f32 0.0, %v2583
  %v2585 = vpop.f32.mrf.mxu0
  %2586 = vmatprep.mubr.f32.mxu0 0.0
  %2587 = vmatmul.mubr.f32.gmra.mxu0 %v2464
  %v2588 = vpop.f32.mrf.mxu0
  %v2589 = vadd.f32 0.0, %v2588
  %v2590 = vpop.f32.mrf.mxu0
  %2591 = vmatprep.mubr.f32.mxu0 0.0
  %2592 = vmatmul.mubr.f32.gmra.mxu0 %v2466
  %v2593 = vpop.f32.mrf.mxu0
  %v2594 = vadd.f32 0.0, %v2593
  %v2595 = vpop.f32.mrf.mxu0
  %2596 = vmatprep.mubr.f32.mxu0 0.0
  %2597 = vmatmul.mubr.f32.gmra.mxu0 %v2468
  %v2598 = vpop.f32.mrf.mxu0
  %v2599 = vadd.f32 0.0, %v2598
  %v2600 = vpop.f32.mrf.mxu0
  %2601 = vmatprep.mubr.f32.mxu0 0.0
  %2602 = vmatmul.mubr.f32.gmra.mxu0 %v2470
  %v2603 = vpop.f32.mrf.mxu0
  %v2604 = vadd.f32 0.0, %v2603
  %v2605 = vpop.f32.mrf.mxu0
  %2606 = vmatprep.mubr.f32.mxu0 0.0
  %2607 = vmatmul.mubr.f32.gmra.mxu0 %v2472
  %v2608 = vpop.f32.mrf.mxu0
  %v2609 = vadd.f32 0.0, %v2608
  %v2610 = vpop.f32.mrf.mxu0
  %2611 = vmatprep.mubr.f32.mxu0 0.0
  %2612 = vmatmul.mubr.f32.gmra.mxu0 %v2474
  %v2613 = vpop.f32.mrf.mxu0
  %v2614 = vadd.f32 0.0, %v2613
  %v2615 = vpop.f32.mrf.mxu0
  %2616 = vmatprep.mubr.f32.mxu0 0.0
  %2617 = vmatmul.mubr.f32.gmra.mxu0 %v2476
  %v2618 = vpop.f32.mrf.mxu0
  %v2619 = vadd.f32 0.0, %v2618
  %v2620 = vpop.f32.mrf.mxu0
  %2621 = vmatprep.mubr.f32.mxu0 0.0
  %2622 = vmatmul.mubr.f32.gmra.mxu0 %v2478
  %v2623 = vpop.f32.mrf.mxu0
  %v2624 = vadd.f32 0.0, %v2623
  %v2625 = vpop.f32.mrf.mxu0
  %2626 = vmatprep.mubr.f32.mxu0 0.0
  %2627 = vmatmul.mubr.f32.gmra.mxu0 %v2480
  %v2628 = vpop.f32.mrf.mxu0
  %v2629 = vadd.f32 0.0, %v2628
  %v2630 = vpop.f32.mrf.mxu0
  %2631 = vmatprep.mubr.f32.mxu0 0.0
  %2632 = vmatmul.mubr.f32.gmra.mxu0 %v2482
  %v2633 = vpop.f32.mrf.mxu0
  %v2634 = vadd.f32 0.0, %v2633
  %v2635 = vpop.f32.mrf.mxu0
  %2636 = vmatprep.mubr.f32.mxu0 0.0
  %2637 = vmatmul.mubr.f32.gmra.mxu0 %v2484
  %v2638 = vpop.f32.mrf.mxu0
  %v2639 = vadd.f32 0.0, %v2638
  %v2640 = vpop.f32.mrf.mxu0
  %2641 = vmatprep.mubr.f32.mxu0 0.0
  %2642 = vmatmul.mubr.f32.gmra.mxu0 %v2486
  %v2643 = vpop.f32.mrf.mxu0
  %v2644 = vadd.f32 0.0, %v2643
  %v2645 = vpop.f32.mrf.mxu0
  %2646 = vmatprep.mubr.f32.mxu0 0.0
  %2647 = vmatmul.mubr.f32.gmra.mxu0 %v2488
  %v2648 = vpop.f32.mrf.mxu0
  %v2649 = vadd.f32 0.0, %v2648
  %v2650 = vpop.f32.mrf.mxu0
  %2651 = vmatprep.mubr.f32.mxu0 0.0
  %2652 = vmatmul.mubr.f32.gmra.mxu0 %v2490
  %v2653 = vpop.f32.mrf.mxu0
  %v2654 = vadd.f32 0.0, %v2653
  %v2655 = vpop.f32.mrf.mxu0
  %2656 = vdwg.mxu0
  %v2657 = vsel %vm2451, %v2226, 0
  %v2659 = vsel %vm2451, %v2227, 0
  %v2661 = vsel %vm2451, %v2228, 0
  %v2663 = vsel %vm2451, %v2229, 0
  %v2665 = vsel %vm2451, %v2230, 0
  %v2667 = vsel %vm2451, %v2231, 0
  %v2669 = vsel %vm2451, %v2232, 0
  %v2671 = vsel %vm2451, %v2233, 0
  %v2673 = vsel %vm2451, %v2234, 0
  %v2675 = vsel %vm2451, %v2235, 0
  %v2677 = vsel %vm2451, %v2236, 0
  %v2679 = vsel %vm2451, %v2237, 0
  %v2681 = vsel %vm2451, %v2238, 0
  %v2683 = vsel %vm2451, %v2239, 0
  %v2685 = vsel %vm2451, %v2240, 0
  %v2687 = vsel %vm2451, %v2241, 0
  %v2689 = vsel %vm2451, %v2242, 0
  %v2691 = vsel %vm2451, %v2243, 0
  %v2693 = vsel %vm2451, %v2244, 0
  %v2695 = vsel %vm2451, %v2245, 0
  %2697 = vmatprep.subr.mxu0 0.0
  %2698 = vmatpush1.msra.mxu0 0.0
  %2699 = vmatprep.subr.mxu0 0.0
  %2700 = vmatpush1.msra.mxu0 0.0
  %2701 = vmatprep.subr.mxu0 0.0
  %2702 = vmatpush1.msra.mxu0 0.0
  %2703 = vmatprep.subr.mxu0 0.0
  %2704 = vmatpush1.msra.mxu0 0.0
  %2705 = vmatprep.subr.mxu0 0.0
  %2706 = vmatpush1.msra.mxu0 0.0
  %2707 = vmatprep.subr.mxu0 0.0
  %2708 = vmatpush1.msra.mxu0 %v2223
  %2709 = vmatprep.subr.mxu0 0.0
  %2710 = vmatpush1.msra.mxu0 %v2218
  %2711 = vmatprep.subr.mxu0 0.0
  %2712 = vmatpush1.msra.mxu0 %v2213
  %2713 = vmatprep.subr.mxu0 0.0
  %2714 = vmatpush1.msra.mxu0 %v2208
  %2715 = vmatprep.subr.mxu0 0.0
  %2716 = vmatpush1.msra.mxu0 %v2203
  %2717 = vmatprep.subr.mxu0 0.0
  %2718 = vmatpush1.msra.mxu0 %v2198
  %2719 = vmatprep.subr.mxu0 0.0
  %2720 = vmatpush1.msra.mxu0 %v2193
  %2721 = vmatprep.subr.mxu0 0.0
  %2722 = vmatpush1.msra.mxu0 %v2188
  %2723 = vmatprep.subr.mxu0 0.0
  %2724 = vmatpush1.msra.mxu0 %v2183
  %2725 = vmatprep.subr.mxu0 0.0
  %2726 = vmatpush1.msra.mxu0 %v2178
  %2727 = vmatprep.subr.mxu0 0.0
  %2728 = vmatpush1.msra.mxu0 %v2173
  %2729 = vmatprep.subr.mxu0 0.0
  %2730 = vmatpush2.msra.mxu0 0.0
  %2731 = vmatprep.subr.mxu0 0.0
  %2732 = vmatpush2.msra.mxu0 0.0
  %2733 = vmatprep.subr.mxu0 0.0
  %2734 = vmatpush2.msra.mxu0 0.0
  %2735 = vmatprep.subr.mxu0 0.0
  %2736 = vmatpush2.msra.mxu0 0.0
  %2737 = vmatprep.subr.mxu0 0.0
  %2738 = vmatpush2.msra.mxu0 0.0
  %2739 = vmatprep.subr.mxu0 0.0
  %2740 = vmatpush2.msra.mxu0 0.0
  %2741 = vmatprep.subr.mxu0 0.0
  %2742 = vmatpush2.msra.mxu0 0.0
  %2743 = vmatprep.subr.mxu0 0.0
  %2744 = vmatpush2.msra.mxu0 0.0
  %2745 = vmatprep.subr.mxu0 0.0
  %2746 = vmatpush2.msra.mxu0 0.0
  %2747 = vmatprep.subr.mxu0 0.0
  %2748 = vmatpush2.msra.mxu0 0.0
  %2749 = vmatprep.subr.mxu0 0.0
  %2750 = vmatpush2.msra.mxu0 0.0
  %2751 = vmatprep.subr.mxu0 0.0
  %2752 = vmatpush2.msra.mxu0 0.0
  %2753 = vmatprep.subr.mxu0 0.0
  %2754 = vmatpush2.msra.mxu0 0.0
  %2755 = vmatprep.subr.mxu0 0.0
  %2756 = vmatpush2.msra.mxu0 0.0
  %2757 = vmatprep.subr.mxu0 0.0
  %2758 = vmatpush2.msra.mxu0 0.0
  %2759 = vmatprep.subr.mxu0 0.0
  %2760 = vmatpush2.msra.mxu0 0.0
  %2761 = vmatprep.mubr.f32.mxu0 0.0
  %2762 = vmatmul.mubr.f32.gmra.mxu0 %v2657
  %v2763 = vpop.f32.mrf.mxu0
  %v2764 = vadd.f32 %v2559, %v2763
  %v2765 = vpop.f32.mrf.mxu0
  %2766 = vmatprep.mubr.f32.mxu0 0.0
  %2767 = vmatmul.mubr.f32.gmra.mxu0 %v2659
  %v2768 = vpop.f32.mrf.mxu0
  %v2769 = vadd.f32 %v2564, %v2768
  %v2770 = vpop.f32.mrf.mxu0
  %2771 = vmatprep.mubr.f32.mxu0 0.0
  %2772 = vmatmul.mubr.f32.gmra.mxu0 %v2661
  %v2773 = vpop.f32.mrf.mxu0
  %v2774 = vadd.f32 %v2569, %v2773
  %v2775 = vpop.f32.mrf.mxu0
  %2776 = vmatprep.mubr.f32.mxu0 0.0
  %2777 = vmatmul.mubr.f32.gmra.mxu0 %v2663
  %v2778 = vpop.f32.mrf.mxu0
  %v2779 = vadd.f32 %v2574, %v2778
  %v2780 = vpop.f32.mrf.mxu0
  %2781 = vmatprep.mubr.f32.mxu0 0.0
  %2782 = vmatmul.mubr.f32.gmra.mxu0 %v2665
  %v2783 = vpop.f32.mrf.mxu0
  %v2784 = vadd.f32 %v2579, %v2783
  %v2785 = vpop.f32.mrf.mxu0
  %2786 = vmatprep.mubr.f32.mxu0 0.0
  %2787 = vmatmul.mubr.f32.gmra.mxu0 %v2667
  %v2788 = vpop.f32.mrf.mxu0
  %v2789 = vadd.f32 %v2584, %v2788
  %v2790 = vpop.f32.mrf.mxu0
  %2791 = vmatprep.mubr.f32.mxu0 0.0
  %2792 = vmatmul.mubr.f32.gmra.mxu0 %v2669
  %v2793 = vpop.f32.mrf.mxu0
  %v2794 = vadd.f32 %v2589, %v2793
  %v2795 = vpop.f32.mrf.mxu0
  %2796 = vmatprep.mubr.f32.mxu0 0.0
  %2797 = vmatmul.mubr.f32.gmra.mxu0 %v2671
  %v2798 = vpop.f32.mrf.mxu0
  %v2799 = vadd.f32 %v2594, %v2798
  %v2800 = vpop.f32.mrf.mxu0
  %2801 = vmatprep.mubr.f32.mxu0 0.0
  %2802 = vmatmul.mubr.f32.gmra.mxu0 %v2673
  %v2803 = vpop.f32.mrf.mxu0
  %v2804 = vadd.f32 %v2599, %v2803
  %v2805 = vpop.f32.mrf.mxu0
  %2806 = vmatprep.mubr.f32.mxu0 0.0
  %2807 = vmatmul.mubr.f32.gmra.mxu0 %v2675
  %v2808 = vpop.f32.mrf.mxu0
  %v2809 = vadd.f32 %v2604, %v2808
  %v2810 = vpop.f32.mrf.mxu0
  %2811 = vmatprep.mubr.f32.mxu0 0.0
  %2812 = vmatmul.mubr.f32.gmra.mxu0 %v2677
  %v2813 = vpop.f32.mrf.mxu0
  %v2814 = vadd.f32 %v2609, %v2813
  %v2815 = vpop.f32.mrf.mxu0
  %2816 = vmatprep.mubr.f32.mxu0 0.0
  %2817 = vmatmul.mubr.f32.gmra.mxu0 %v2679
  %v2818 = vpop.f32.mrf.mxu0
  %v2819 = vadd.f32 %v2614, %v2818
  %v2820 = vpop.f32.mrf.mxu0
  %2821 = vmatprep.mubr.f32.mxu0 0.0
  %2822 = vmatmul.mubr.f32.gmra.mxu0 %v2681
  %v2823 = vpop.f32.mrf.mxu0
  %v2824 = vadd.f32 %v2619, %v2823
  %v2825 = vpop.f32.mrf.mxu0
  %2826 = vmatprep.mubr.f32.mxu0 0.0
  %2827 = vmatmul.mubr.f32.gmra.mxu0 %v2683
  %v2828 = vpop.f32.mrf.mxu0
  %v2829 = vadd.f32 %v2624, %v2828
  %v2830 = vpop.f32.mrf.mxu0
  %2831 = vmatprep.mubr.f32.mxu0 0.0
  %2832 = vmatmul.mubr.f32.gmra.mxu0 %v2685
  %v2833 = vpop.f32.mrf.mxu0
  %v2834 = vadd.f32 %v2629, %v2833
  %v2835 = vpop.f32.mrf.mxu0
  %2836 = vmatprep.mubr.f32.mxu0 0.0
  %2837 = vmatmul.mubr.f32.gmra.mxu0 %v2687
  %v2838 = vpop.f32.mrf.mxu0
  %v2839 = vadd.f32 %v2634, %v2838
  %v2840 = vpop.f32.mrf.mxu0
  %2841 = vmatprep.mubr.f32.mxu0 0.0
  %2842 = vmatmul.mubr.f32.gmra.mxu0 %v2689
  %v2843 = vpop.f32.mrf.mxu0
  %v2844 = vadd.f32 %v2639, %v2843
  %v2845 = vpop.f32.mrf.mxu0
  %2846 = vmatprep.mubr.f32.mxu0 0.0
  %2847 = vmatmul.mubr.f32.gmra.mxu0 %v2691
  %v2848 = vpop.f32.mrf.mxu0
  %v2849 = vadd.f32 %v2644, %v2848
  %v2850 = vpop.f32.mrf.mxu0
  %2851 = vmatprep.mubr.f32.mxu0 0.0
  %2852 = vmatmul.mubr.f32.gmra.mxu0 %v2693
  %v2853 = vpop.f32.mrf.mxu0
  %v2854 = vadd.f32 %v2649, %v2853
  %v2855 = vpop.f32.mrf.mxu0
  %2856 = vmatprep.mubr.f32.mxu0 0.0
  %2857 = vmatmul.mubr.f32.gmra.mxu0 %v2695
  %v2858 = vpop.f32.mrf.mxu0
  %v2859 = vadd.f32 %v2654, %v2858
  %v2860 = vpop.f32.mrf.mxu0
  %2861 = vdwg.mxu0
  %v2862 = vld [vmem:[%s3 + $0x8] sm:$0xff]
  %v2863 = vld [vmem:[%s3 + $0x10] sm:$0xff]
  %v2864 = vld [vmem:[%s3 + $0x28] sm:$0xff]
  %v2865 = vld [vmem:[%s3 + $0x30] sm:$0xff]
  %v2866 = vld [vmem:[%s3 + $0x48] sm:$0xff]
  %v2867 = vld [vmem:[%s3 + $0x50] sm:$0xff]
  %v2868 = vld [vmem:[%s3 + $0x68] sm:$0xff]
  %v2869 = vld [vmem:[%s3 + $0x70] sm:$0xff]
  %v2870 = vld [vmem:[%s3 + $0x88] sm:$0xff]
  %v2871 = vld [vmem:[%s3 + $0x90] sm:$0xff]
  %v2872 = vld [vmem:[%s3 + $0xa8] sm:$0xff]
  %v2873 = vld [vmem:[%s3 + $0xb0] sm:$0xff]
  %v2874 = vld [vmem:[%s3 + $0xc8] sm:$0xff]
  %v2875 = vld [vmem:[%s3 + $0xd0] sm:$0xff]
  %v2876 = vld [vmem:[%s3 + $0xe8] sm:$0xff]
  %v2877 = vld [vmem:[%s3 + $0xf0] sm:$0xff]
  %v2878 = vld [vmem:[%s3 + $0x108] sm:$0xff]
  %v2879 = vld [vmem:[%s3 + $0x110] sm:$0xff]
  %v2880 = vld [vmem:[%s3 + $0x128] sm:$0xff]
  %v2881 = vld [vmem:[%s3 + $0x130] sm:$0xff]
  %v2882 = vld [vmem:[%s3 + $0x148] sm:$0xff]
  %v2883 = vld [vmem:[%s3 + $0x150] sm:$0xff]
  %v2884 = vld [vmem:[%s3 + $0x168] sm:$0xff]
  %v2885 = vld [vmem:[%s3 + $0x170] sm:$0xff]
  %v2886 = vld [vmem:[%s3 + $0x188] sm:$0xff]
  %v2887 = vld [vmem:[%s3 + $0x190] sm:$0xff]
  %v2888 = vld [vmem:[%s3 + $0x1a8] sm:$0xff]
  %v2889 = vld [vmem:[%s3 + $0x1b0] sm:$0xff]
  %v2890 = vld [vmem:[%s3 + $0x1c8] sm:$0xff]
  %v2891 = vld [vmem:[%s3 + $0x1d0] sm:$0xff]
  %v2892 = vld [vmem:[%s3 + $0x1e8] sm:$0xff]
  %v2893 = vld [vmem:[%s3 + $0x1f0] sm:$0xff]
  %v2894 = vld [vmem:[%s3 + $0x208] sm:$0xff]
  %v2895 = vld [vmem:[%s3 + $0x210] sm:$0xff]
  %v2896 = vld [vmem:[%s3 + $0x228] sm:$0xff]
  %v2897 = vld [vmem:[%s3 + $0x230] sm:$0xff]
  %v2898 = vld [vmem:[%s3 + $0x248] sm:$0xff]
  %v2899 = vld [vmem:[%s3 + $0x250] sm:$0xff]
  %v2900 = vld [vmem:[%s3 + $0x268] sm:$0xff]
  %v2901 = vld [vmem:[%s3 + $0x270] sm:$0xff]
  %2942 = vrot.lane.b32.xlu0 %v2862, 80
  %v2943 = vpop.permute.xlu0 %2942
  %2944 = vrot.lane.b32.xlu0 %v2863, 80
  %v2945 = vpop.permute.xlu0 %2944
  %2946 = vrot.lane.b32.xlu0 %v2864, 80
  %v2947 = vpop.permute.xlu0 %2946
  %2948 = vrot.lane.b32.xlu0 %v2865, 80
  %v2949 = vpop.permute.xlu0 %2948
  %2950 = vrot.lane.b32.xlu0 %v2866, 80
  %v2951 = vpop.permute.xlu0 %2950
  %2952 = vrot.lane.b32.xlu0 %v2867, 80
  %v2953 = vpop.permute.xlu0 %2952
  %2954 = vrot.lane.b32.xlu0 %v2868, 80
  %v2955 = vpop.permute.xlu0 %2954
  %2956 = vrot.lane.b32.xlu0 %v2869, 80
  %v2957 = vpop.permute.xlu0 %2956
  %2958 = vrot.lane.b32.xlu0 %v2870, 80
  %v2959 = vpop.permute.xlu0 %2958
  %2960 = vrot.lane.b32.xlu0 %v2871, 80
  %v2961 = vpop.permute.xlu0 %2960
  %2962 = vrot.lane.b32.xlu0 %v2872, 80
  %v2963 = vpop.permute.xlu0 %2962
  %2964 = vrot.lane.b32.xlu0 %v2873, 80
  %v2965 = vpop.permute.xlu0 %2964
  %2966 = vrot.lane.b32.xlu0 %v2874, 80
  %v2967 = vpop.permute.xlu0 %2966
  %2968 = vrot.lane.b32.xlu0 %v2875, 80
  %v2969 = vpop.permute.xlu0 %2968
  %2970 = vrot.lane.b32.xlu0 %v2876, 80
  %v2971 = vpop.permute.xlu0 %2970
  %2972 = vrot.lane.b32.xlu0 %v2877, 80
  %v2973 = vpop.permute.xlu0 %2972
  %2974 = vrot.lane.b32.xlu0 %v2878, 80
  %v2975 = vpop.permute.xlu0 %2974
  %2976 = vrot.lane.b32.xlu0 %v2879, 80
  %v2977 = vpop.permute.xlu0 %2976
  %2978 = vrot.lane.b32.xlu0 %v2880, 80
  %v2979 = vpop.permute.xlu0 %2978
  %2980 = vrot.lane.b32.xlu0 %v2881, 80
  %v2981 = vpop.permute.xlu0 %2980
  %2982 = vrot.lane.b32.xlu0 %v2882, 80
  %v2983 = vpop.permute.xlu0 %2982
  %2984 = vrot.lane.b32.xlu0 %v2883, 80
  %v2985 = vpop.permute.xlu0 %2984
  %2986 = vrot.lane.b32.xlu0 %v2884, 80
  %v2987 = vpop.permute.xlu0 %2986
  %2988 = vrot.lane.b32.xlu0 %v2885, 80
  %v2989 = vpop.permute.xlu0 %2988
  %2990 = vrot.lane.b32.xlu0 %v2886, 80
  %v2991 = vpop.permute.xlu0 %2990
  %2992 = vrot.lane.b32.xlu0 %v2887, 80
  %v2993 = vpop.permute.xlu0 %2992
  %2994 = vrot.lane.b32.xlu0 %v2888, 80
  %v2995 = vpop.permute.xlu0 %2994
  %2996 = vrot.lane.b32.xlu0 %v2889, 80
  %v2997 = vpop.permute.xlu0 %2996
  %2998 = vrot.lane.b32.xlu0 %v2890, 80
  %v2999 = vpop.permute.xlu0 %2998
  %3000 = vrot.lane.b32.xlu0 %v2891, 80
  %v3001 = vpop.permute.xlu0 %3000
  %3002 = vrot.lane.b32.xlu0 %v2892, 80
  %v3003 = vpop.permute.xlu0 %3002
  %3004 = vrot.lane.b32.xlu0 %v2893, 80
  %v3005 = vpop.permute.xlu0 %3004
  %3006 = vrot.lane.b32.xlu0 %v2894, 80
  %v3007 = vpop.permute.xlu0 %3006
  %3008 = vrot.lane.b32.xlu0 %v2895, 80
  %v3009 = vpop.permute.xlu0 %3008
  %3010 = vrot.lane.b32.xlu0 %v2896, 80
  %v3011 = vpop.permute.xlu0 %3010
  %3012 = vrot.lane.b32.xlu0 %v2897, 80
  %v3013 = vpop.permute.xlu0 %3012
  %3014 = vrot.lane.b32.xlu0 %v2898, 80
  %v3015 = vpop.permute.xlu0 %3014
  %3016 = vrot.lane.b32.xlu0 %v2899, 80
  %v3017 = vpop.permute.xlu0 %3016
  %3018 = vrot.lane.b32.xlu0 %v2900, 80
  %v3019 = vpop.permute.xlu0 %3018
  %3020 = vrot.lane.b32.xlu0 %v2901, 80
  %v3021 = vpop.permute.xlu0 %3020
  %vm3022 = vcmask 654336
  %v3023 = vsel %vm3022, %v2943, %v2945
  %v3024 = vsel %vm3022, %v2947, %v2949
  %v3025 = vsel %vm3022, %v2951, %v2953
  %v3026 = vsel %vm3022, %v2955, %v2957
  %v3027 = vsel %vm3022, %v2959, %v2961
  %v3028 = vsel %vm3022, %v2963, %v2965
  %v3029 = vsel %vm3022, %v2967, %v2969
  %v3030 = vsel %vm3022, %v2971, %v2973
  %v3031 = vsel %vm3022, %v2975, %v2977
  %v3032 = vsel %vm3022, %v2979, %v2981
  %v3033 = vsel %vm3022, %v2983, %v2985
  %v3034 = vsel %vm3022, %v2987, %v2989
  %v3035 = vsel %vm3022, %v2991, %v2993
  %v3036 = vsel %vm3022, %v2995, %v2997
  %v3037 = vsel %vm3022, %v2999, %v3001
  %v3038 = vsel %vm3022, %v3003, %v3005
  %v3039 = vsel %vm3022, %v3007, %v3009
  %v3040 = vsel %vm3022, %v3011, %v3013
  %v3041 = vsel %vm3022, %v3015, %v3017
  %v3042 = vsel %vm3022, %v3019, %v3021
  %3043 = vrot.lane.b32.xlu0 %v2173, 126
  %v3044 = vpop.permute.xlu0 %3043
  %3045 = vrot.lane.b32.xlu0 %v2178, 126
  %v3046 = vpop.permute.xlu0 %3045
  %3047 = vrot.lane.b32.xlu0 %v2183, 126
  %v3048 = vpop.permute.xlu0 %3047
  %3049 = vrot.lane.b32.xlu0 %v2188, 126
  %v3050 = vpop.permute.xlu0 %3049
  %3051 = vrot.lane.b32.xlu0 %v2193, 126
  %v3052 = vpop.permute.xlu0 %3051
  %3053 = vrot.lane.b32.xlu0 %v2198, 126
  %v3054 = vpop.permute.xlu0 %3053
  %3055 = vrot.lane.b32.xlu0 %v2203, 126
  %v3056 = vpop.permute.xlu0 %3055
  %3057 = vrot.lane.b32.xlu0 %v2208, 126
  %v3058 = vpop.permute.xlu0 %3057
  %3059 = vrot.lane.b32.xlu0 %v2213, 126
  %v3060 = vpop.permute.xlu0 %3059
  %3061 = vrot.lane.b32.xlu0 %v2218, 126
  %v3062 = vpop.permute.xlu0 %3061
  %3063 = vrot.lane.b32.xlu0 %v2223, 126
  %v3064 = vpop.permute.xlu0 %3063
  %v3076 = vsel %vm2451, %v3023, 0
  %v3078 = vsel %vm2451, %v3024, 0
  %v3080 = vsel %vm2451, %v3025, 0
  %v3082 = vsel %vm2451, %v3026, 0
  %v3084 = vsel %vm2451, %v3027, 0
  %v3086 = vsel %vm2451, %v3028, 0
  %v3088 = vsel %vm2451, %v3029, 0
  %v3090 = vsel %vm2451, %v3030, 0
  %v3092 = vsel %vm2451, %v3031, 0
  %v3094 = vsel %vm2451, %v3032, 0
  %v3096 = vsel %vm2451, %v3033, 0
  %v3098 = vsel %vm2451, %v3034, 0
  %v3100 = vsel %vm2451, %v3035, 0
  %v3102 = vsel %vm2451, %v3036, 0
  %v3104 = vsel %vm2451, %v3037, 0
  %v3106 = vsel %vm2451, %v3038, 0
  %v3108 = vsel %vm2451, %v3039, 0
  %v3110 = vsel %vm2451, %v3040, 0
  %v3112 = vsel %vm2451, %v3041, 0
  %v3114 = vsel %vm2451, %v3042, 0
  %3116 = vmatprep.subr.mxu0 0.0
  %3117 = vmatpush1.msra.mxu0 0.0
  %3118 = vmatprep.subr.mxu0 0.0
  %3119 = vmatpush1.msra.mxu0 0.0
  %3120 = vmatprep.subr.mxu0 0.0
  %3121 = vmatpush1.msra.mxu0 0.0
  %3122 = vmatprep.subr.mxu0 0.0
  %3123 = vmatpush1.msra.mxu0 0.0
  %3124 = vmatprep.subr.mxu0 0.0
  %3125 = vmatpush1.msra.mxu0 0.0
  %3126 = vmatprep.subr.mxu0 0.0
  %3127 = vmatpush1.msra.mxu0 %v3064
  %3128 = vmatprep.subr.mxu0 0.0
  %3129 = vmatpush1.msra.mxu0 %v3062
  %3130 = vmatprep.subr.mxu0 0.0
  %3131 = vmatpush1.msra.mxu0 %v3060
  %3132 = vmatprep.subr.mxu0 0.0
  %3133 = vmatpush1.msra.mxu0 %v3058
  %3134 = vmatprep.subr.mxu0 0.0
  %3135 = vmatpush1.msra.mxu0 %v3056
  %3136 = vmatprep.subr.mxu0 0.0
  %3137 = vmatpush1.msra.mxu0 %v3054
  %3138 = vmatprep.subr.mxu0 0.0
  %3139 = vmatpush1.msra.mxu0 %v3052
  %3140 = vmatprep.subr.mxu0 0.0
  %3141 = vmatpush1.msra.mxu0 %v3050
  %3142 = vmatprep.subr.mxu0 0.0
  %3143 = vmatpush1.msra.mxu0 %v3048
  %3144 = vmatprep.subr.mxu0 0.0
  %3145 = vmatpush1.msra.mxu0 %v3046
  %3146 = vmatprep.subr.mxu0 0.0
  %3147 = vmatpush1.msra.mxu0 %v3044
  %3148 = vmatprep.subr.mxu0 0.0
  %3149 = vmatpush2.msra.mxu0 0.0
  %3150 = vmatprep.subr.mxu0 0.0
  %3151 = vmatpush2.msra.mxu0 0.0
  %3152 = vmatprep.subr.mxu0 0.0
  %3153 = vmatpush2.msra.mxu0 0.0
  %3154 = vmatprep.subr.mxu0 0.0
  %3155 = vmatpush2.msra.mxu0 0.0
  %3156 = vmatprep.subr.mxu0 0.0
  %3157 = vmatpush2.msra.mxu0 0.0
  %3158 = vmatprep.subr.mxu0 0.0
  %3159 = vmatpush2.msra.mxu0 0.0
  %3160 = vmatprep.subr.mxu0 0.0
  %3161 = vmatpush2.msra.mxu0 0.0
  %3162 = vmatprep.subr.mxu0 0.0
  %3163 = vmatpush2.msra.mxu0 0.0
  %3164 = vmatprep.subr.mxu0 0.0
  %3165 = vmatpush2.msra.mxu0 0.0
  %3166 = vmatprep.subr.mxu0 0.0
  %3167 = vmatpush2.msra.mxu0 0.0
  %3168 = vmatprep.subr.mxu0 0.0
  %3169 = vmatpush2.msra.mxu0 0.0
  %3170 = vmatprep.subr.mxu0 0.0
  %3171 = vmatpush2.msra.mxu0 0.0
  %3172 = vmatprep.subr.mxu0 0.0
  %3173 = vmatpush2.msra.mxu0 0.0
  %3174 = vmatprep.subr.mxu0 0.0
  %3175 = vmatpush2.msra.mxu0 0.0
  %3176 = vmatprep.subr.mxu0 0.0
  %3177 = vmatpush2.msra.mxu0 0.0
  %3178 = vmatprep.subr.mxu0 0.0
  %3179 = vmatpush2.msra.mxu0 0.0
  %3180 = vmatprep.mubr.f32.mxu0 0.0
  %3181 = vmatmul.mubr.f32.gmra.mxu0 %v3076
  %v3182 = vpop.f32.mrf.mxu0
  %v3183 = vadd.f32 0.0, %v3182
  %v3184 = vpop.f32.mrf.mxu0
  %3185 = vmatprep.mubr.f32.mxu0 0.0
  %3186 = vmatmul.mubr.f32.gmra.mxu0 %v3078
  %v3187 = vpop.f32.mrf.mxu0
  %v3188 = vadd.f32 0.0, %v3187
  %v3189 = vpop.f32.mrf.mxu0
  %3190 = vmatprep.mubr.f32.mxu0 0.0
  %3191 = vmatmul.mubr.f32.gmra.mxu0 %v3080
  %v3192 = vpop.f32.mrf.mxu0
  %v3193 = vadd.f32 0.0, %v3192
  %v3194 = vpop.f32.mrf.mxu0
  %3195 = vmatprep.mubr.f32.mxu0 0.0
  %3196 = vmatmul.mubr.f32.gmra.mxu0 %v3082
  %v3197 = vpop.f32.mrf.mxu0
  %v3198 = vadd.f32 0.0, %v3197
  %v3199 = vpop.f32.mrf.mxu0
  %3200 = vmatprep.mubr.f32.mxu0 0.0
  %3201 = vmatmul.mubr.f32.gmra.mxu0 %v3084
  %v3202 = vpop.f32.mrf.mxu0
  %v3203 = vadd.f32 0.0, %v3202
  %v3204 = vpop.f32.mrf.mxu0
  %3205 = vmatprep.mubr.f32.mxu0 0.0
  %3206 = vmatmul.mubr.f32.gmra.mxu0 %v3086
  %v3207 = vpop.f32.mrf.mxu0
  %v3208 = vadd.f32 0.0, %v3207
  %v3209 = vpop.f32.mrf.mxu0
  %3210 = vmatprep.mubr.f32.mxu0 0.0
  %3211 = vmatmul.mubr.f32.gmra.mxu0 %v3088
  %v3212 = vpop.f32.mrf.mxu0
  %v3213 = vadd.f32 0.0, %v3212
  %v3214 = vpop.f32.mrf.mxu0
  %3215 = vmatprep.mubr.f32.mxu0 0.0
  %3216 = vmatmul.mubr.f32.gmra.mxu0 %v3090
  %v3217 = vpop.f32.mrf.mxu0
  %v3218 = vadd.f32 0.0, %v3217
  %v3219 = vpop.f32.mrf.mxu0
  %3220 = vmatprep.mubr.f32.mxu0 0.0
  %3221 = vmatmul.mubr.f32.gmra.mxu0 %v3092
  %v3222 = vpop.f32.mrf.mxu0
  %v3223 = vadd.f32 0.0, %v3222
  %v3224 = vpop.f32.mrf.mxu0
  %3225 = vmatprep.mubr.f32.mxu0 0.0
  %3226 = vmatmul.mubr.f32.gmra.mxu0 %v3094
  %v3227 = vpop.f32.mrf.mxu0
  %v3228 = vadd.f32 0.0, %v3227
  %v3229 = vpop.f32.mrf.mxu0
  %3230 = vmatprep.mubr.f32.mxu0 0.0
  %3231 = vmatmul.mubr.f32.gmra.mxu0 %v3096
  %v3232 = vpop.f32.mrf.mxu0
  %v3233 = vadd.f32 0.0, %v3232
  %v3234 = vpop.f32.mrf.mxu0
  %3235 = vmatprep.mubr.f32.mxu0 0.0
  %3236 = vmatmul.mubr.f32.gmra.mxu0 %v3098
  %v3237 = vpop.f32.mrf.mxu0
  %v3238 = vadd.f32 0.0, %v3237
  %v3239 = vpop.f32.mrf.mxu0
  %3240 = vmatprep.mubr.f32.mxu0 0.0
  %3241 = vmatmul.mubr.f32.gmra.mxu0 %v3100
  %v3242 = vpop.f32.mrf.mxu0
  %v3243 = vadd.f32 0.0, %v3242
  %v3244 = vpop.f32.mrf.mxu0
  %3245 = vmatprep.mubr.f32.mxu0 0.0
  %3246 = vmatmul.mubr.f32.gmra.mxu0 %v3102
  %v3247 = vpop.f32.mrf.mxu0
  %v3248 = vadd.f32 0.0, %v3247
  %v3249 = vpop.f32.mrf.mxu0
  %3250 = vmatprep.mubr.f32.mxu0 0.0
  %3251 = vmatmul.mubr.f32.gmra.mxu0 %v3104
  %v3252 = vpop.f32.mrf.mxu0
  %v3253 = vadd.f32 0.0, %v3252
  %v3254 = vpop.f32.mrf.mxu0
  %3255 = vmatprep.mubr.f32.mxu0 0.0
  %3256 = vmatmul.mubr.f32.gmra.mxu0 %v3106
  %v3257 = vpop.f32.mrf.mxu0
  %v3258 = vadd.f32 0.0, %v3257
  %v3259 = vpop.f32.mrf.mxu0
  %3260 = vmatprep.mubr.f32.mxu0 0.0
  %3261 = vmatmul.mubr.f32.gmra.mxu0 %v3108
  %v3262 = vpop.f32.mrf.mxu0
  %v3263 = vadd.f32 0.0, %v3262
  %v3264 = vpop.f32.mrf.mxu0
  %3265 = vmatprep.mubr.f32.mxu0 0.0
  %3266 = vmatmul.mubr.f32.gmra.mxu0 %v3110
  %v3267 = vpop.f32.mrf.mxu0
  %v3268 = vadd.f32 0.0, %v3267
  %v3269 = vpop.f32.mrf.mxu0
  %3270 = vmatprep.mubr.f32.mxu0 0.0
  %3271 = vmatmul.mubr.f32.gmra.mxu0 %v3112
  %v3272 = vpop.f32.mrf.mxu0
  %v3273 = vadd.f32 0.0, %v3272
  %v3274 = vpop.f32.mrf.mxu0
  %3275 = vmatprep.mubr.f32.mxu0 0.0
  %3276 = vmatmul.mubr.f32.gmra.mxu0 %v3114
  %v3277 = vpop.f32.mrf.mxu0
  %v3278 = vadd.f32 0.0, %v3277
  %v3279 = vpop.f32.mrf.mxu0
  %3280 = vdwg.mxu0
  %v3281 = vadd.f32 %v2764, %v3183
  %v3282 = vadd.f32 %v2769, %v3188
  %v3283 = vadd.f32 %v2774, %v3193
  %v3284 = vadd.f32 %v2779, %v3198
  %v3285 = vadd.f32 %v2784, %v3203
  %v3286 = vadd.f32 %v2789, %v3208
  %v3287 = vadd.f32 %v2794, %v3213
  %v3288 = vadd.f32 %v2799, %v3218
  %v3289 = vadd.f32 %v2804, %v3223
  %v3290 = vadd.f32 %v2809, %v3228
  %v3291 = vadd.f32 %v2814, %v3233
  %v3292 = vadd.f32 %v2819, %v3238
  %v3293 = vadd.f32 %v2824, %v3243
  %v3294 = vadd.f32 %v2829, %v3248
  %v3295 = vadd.f32 %v2834, %v3253
  %v3296 = vadd.f32 %v2839, %v3258
  %v3297 = vadd.f32 %v2844, %v3263
  %v3298 = vadd.f32 %v2849, %v3268
  %v3299 = vadd.f32 %v2854, %v3273
  %v3300 = vadd.f32 %v2859, %v3278
  %3301 = vrot.lane.b32.xlu0 %v2863, 120
  %v3302 = vpop.permute.xlu0 %3301
  %3303 = vrot.lane.b32.xlu0 %v2865, 120
  %v3304 = vpop.permute.xlu0 %3303
  %3305 = vrot.lane.b32.xlu0 %v2867, 120
  %v3306 = vpop.permute.xlu0 %3305
  %3307 = vrot.lane.b32.xlu0 %v2869, 120
  %v3308 = vpop.permute.xlu0 %3307
  %3309 = vrot.lane.b32.xlu0 %v2871, 120
  %v3310 = vpop.permute.xlu0 %3309
  %3311 = vrot.lane.b32.xlu0 %v2873, 120
  %v3312 = vpop.permute.xlu0 %3311
  %3313 = vrot.lane.b32.xlu0 %v2875, 120
  %v3314 = vpop.permute.xlu0 %3313
  %3315 = vrot.lane.b32.xlu0 %v2877, 120
  %v3316 = vpop.permute.xlu0 %3315
  %3317 = vrot.lane.b32.xlu0 %v2879, 120
  %v3318 = vpop.permute.xlu0 %3317
  %3319 = vrot.lane.b32.xlu0 %v2881, 120
  %v3320 = vpop.permute.xlu0 %3319
  %3321 = vrot.lane.b32.xlu0 %v2883, 120
  %v3322 = vpop.permute.xlu0 %3321
  %3323 = vrot.lane.b32.xlu0 %v2885, 120
  %v3324 = vpop.permute.xlu0 %3323
  %3325 = vrot.lane.b32.xlu0 %v2887, 120
  %v3326 = vpop.permute.xlu0 %3325
  %3327 = vrot.lane.b32.xlu0 %v2889, 120
  %v3328 = vpop.permute.xlu0 %3327
  %3329 = vrot.lane.b32.xlu0 %v2891, 120
  %v3330 = vpop.permute.xlu0 %3329
  %3331 = vrot.lane.b32.xlu0 %v2893, 120
  %v3332 = vpop.permute.xlu0 %3331
  %3333 = vrot.lane.b32.xlu0 %v2895, 120
  %v3334 = vpop.permute.xlu0 %3333
  %3335 = vrot.lane.b32.xlu0 %v2897, 120
  %v3336 = vpop.permute.xlu0 %3335
  %3337 = vrot.lane.b32.xlu0 %v2899, 120
  %v3338 = vpop.permute.xlu0 %3337
  %3339 = vrot.lane.b32.xlu0 %v2901, 120
  %v3340 = vpop.permute.xlu0 %3339
  %3341 = vrot.lane.b32.xlu0 %v2173, 125
  %v3342 = vpop.permute.xlu0 %3341
  %3343 = vrot.lane.b32.xlu0 %v2178, 125
  %v3344 = vpop.permute.xlu0 %3343
  %3345 = vrot.lane.b32.xlu0 %v2183, 125
  %v3346 = vpop.permute.xlu0 %3345
  %3347 = vrot.lane.b32.xlu0 %v2188, 125
  %v3348 = vpop.permute.xlu0 %3347
  %3349 = vrot.lane.b32.xlu0 %v2193, 125
  %v3350 = vpop.permute.xlu0 %3349
  %3351 = vrot.lane.b32.xlu0 %v2198, 125
  %v3352 = vpop.permute.xlu0 %3351
  %3353 = vrot.lane.b32.xlu0 %v2203, 125
  %v3354 = vpop.permute.xlu0 %3353
  %3355 = vrot.lane.b32.xlu0 %v2208, 125
  %v3356 = vpop.permute.xlu0 %3355
  %3357 = vrot.lane.b32.xlu0 %v2213, 125
  %v3358 = vpop.permute.xlu0 %3357
  %3359 = vrot.lane.b32.xlu0 %v2218, 125
  %v3360 = vpop.permute.xlu0 %3359
  %3361 = vrot.lane.b32.xlu0 %v2223, 125
  %v3362 = vpop.permute.xlu0 %3361
  %v3374 = vsel %vm2451, %v3302, 0
  %v3376 = vsel %vm2451, %v3304, 0
  %v3378 = vsel %vm2451, %v3306, 0
  %v3380 = vsel %vm2451, %v3308, 0
  %v3382 = vsel %vm2451, %v3310, 0
  %v3384 = vsel %vm2451, %v3312, 0
  %v3386 = vsel %vm2451, %v3314, 0
  %v3388 = vsel %vm2451, %v3316, 0
  %v3390 = vsel %vm2451, %v3318, 0
  %v3392 = vsel %vm2451, %v3320, 0
  %v3394 = vsel %vm2451, %v3322, 0
  %v3396 = vsel %vm2451, %v3324, 0
  %v3398 = vsel %vm2451, %v3326, 0
  %v3400 = vsel %vm2451, %v3328, 0
  %v3402 = vsel %vm2451, %v3330, 0
  %v3404 = vsel %vm2451, %v3332, 0
  %v3406 = vsel %vm2451, %v3334, 0
  %v3408 = vsel %vm2451, %v3336, 0
  %v3410 = vsel %vm2451, %v3338, 0
  %v3412 = vsel %vm2451, %v3340, 0
  %3414 = vmatprep.subr.mxu0 0.0
  %3415 = vmatpush1.msra.mxu0 0.0
  %3416 = vmatprep.subr.mxu0 0.0
  %3417 = vmatpush1.msra.mxu0 0.0
  %3418 = vmatprep.subr.mxu0 0.0
  %3419 = vmatpush1.msra.mxu0 0.0
  %3420 = vmatprep.subr.mxu0 0.0
  %3421 = vmatpush1.msra.mxu0 0.0
  %3422 = vmatprep.subr.mxu0 0.0
  %3423 = vmatpush1.msra.mxu0 0.0
  %3424 = vmatprep.subr.mxu0 0.0
  %3425 = vmatpush1.msra.mxu0 %v3362
  %3426 = vmatprep.subr.mxu0 0.0
  %3427 = vmatpush1.msra.mxu0 %v3360
  %3428 = vmatprep.subr.mxu0 0.0
  %3429 = vmatpush1.msra.mxu0 %v3358
  %3430 = vmatprep.subr.mxu0 0.0
  %3431 = vmatpush1.msra.mxu0 %v3356
  %3432 = vmatprep.subr.mxu0 0.0
  %3433 = vmatpush1.msra.mxu0 %v3354
  %3434 = vmatprep.subr.mxu0 0.0
  %3435 = vmatpush1.msra.mxu0 %v3352
  %3436 = vmatprep.subr.mxu0 0.0
  %3437 = vmatpush1.msra.mxu0 %v3350
  %3438 = vmatprep.subr.mxu0 0.0
  %3439 = vmatpush1.msra.mxu0 %v3348
  %3440 = vmatprep.subr.mxu0 0.0
  %3441 = vmatpush1.msra.mxu0 %v3346
  %3442 = vmatprep.subr.mxu0 0.0
  %3443 = vmatpush1.msra.mxu0 %v3344
  %3444 = vmatprep.subr.mxu0 0.0
  %3445 = vmatpush1.msra.mxu0 %v3342
  %3446 = vmatprep.subr.mxu0 0.0
  %3447 = vmatpush2.msra.mxu0 0.0
  %3448 = vmatprep.subr.mxu0 0.0
  %3449 = vmatpush2.msra.mxu0 0.0
  %3450 = vmatprep.subr.mxu0 0.0
  %3451 = vmatpush2.msra.mxu0 0.0
  %3452 = vmatprep.subr.mxu0 0.0
  %3453 = vmatpush2.msra.mxu0 0.0
  %3454 = vmatprep.subr.mxu0 0.0
  %3455 = vmatpush2.msra.mxu0 0.0
  %3456 = vmatprep.subr.mxu0 0.0
  %3457 = vmatpush2.msra.mxu0 0.0
  %3458 = vmatprep.subr.mxu0 0.0
  %3459 = vmatpush2.msra.mxu0 0.0
  %3460 = vmatprep.subr.mxu0 0.0
  %3461 = vmatpush2.msra.mxu0 0.0
  %3462 = vmatprep.subr.mxu0 0.0
  %3463 = vmatpush2.msra.mxu0 0.0
  %3464 = vmatprep.subr.mxu0 0.0
  %3465 = vmatpush2.msra.mxu0 0.0
  %3466 = vmatprep.subr.mxu0 0.0
  %3467 = vmatpush2.msra.mxu0 0.0
  %3468 = vmatprep.subr.mxu0 0.0
  %3469 = vmatpush2.msra.mxu0 0.0
  %3470 = vmatprep.subr.mxu0 0.0
  %3471 = vmatpush2.msra.mxu0 0.0
  %3472 = vmatprep.subr.mxu0 0.0
  %3473 = vmatpush2.msra.mxu0 0.0
  %3474 = vmatprep.subr.mxu0 0.0
  %3475 = vmatpush2.msra.mxu0 0.0
  %3476 = vmatprep.subr.mxu0 0.0
  %3477 = vmatpush2.msra.mxu0 0.0
  %3478 = vmatprep.mubr.f32.mxu0 0.0
  %3479 = vmatmul.mubr.f32.gmra.mxu0 %v3374
  %v3480 = vpop.f32.mrf.mxu0
  %v3481 = vadd.f32 0.0, %v3480
  %v3482 = vpop.f32.mrf.mxu0
  %3483 = vmatprep.mubr.f32.mxu0 0.0
  %3484 = vmatmul.mubr.f32.gmra.mxu0 %v3376
  %v3485 = vpop.f32.mrf.mxu0
  %v3486 = vadd.f32 0.0, %v3485
  %v3487 = vpop.f32.mrf.mxu0
  %3488 = vmatprep.mubr.f32.mxu0 0.0
  %3489 = vmatmul.mubr.f32.gmra.mxu0 %v3378
  %v3490 = vpop.f32.mrf.mxu0
  %v3491 = vadd.f32 0.0, %v3490
  %v3492 = vpop.f32.mrf.mxu0
  %3493 = vmatprep.mubr.f32.mxu0 0.0
  %3494 = vmatmul.mubr.f32.gmra.mxu0 %v3380
  %v3495 = vpop.f32.mrf.mxu0
  %v3496 = vadd.f32 0.0, %v3495
  %v3497 = vpop.f32.mrf.mxu0
  %3498 = vmatprep.mubr.f32.mxu0 0.0
  %3499 = vmatmul.mubr.f32.gmra.mxu0 %v3382
  %v3500 = vpop.f32.mrf.mxu0
  %v3501 = vadd.f32 0.0, %v3500
  %v3502 = vpop.f32.mrf.mxu0
  %3503 = vmatprep.mubr.f32.mxu0 0.0
  %3504 = vmatmul.mubr.f32.gmra.mxu0 %v3384
  %v3505 = vpop.f32.mrf.mxu0
  %v3506 = vadd.f32 0.0, %v3505
  %v3507 = vpop.f32.mrf.mxu0
  %3508 = vmatprep.mubr.f32.mxu0 0.0
  %3509 = vmatmul.mubr.f32.gmra.mxu0 %v3386
  %v3510 = vpop.f32.mrf.mxu0
  %v3511 = vadd.f32 0.0, %v3510
  %v3512 = vpop.f32.mrf.mxu0
  %3513 = vmatprep.mubr.f32.mxu0 0.0
  %3514 = vmatmul.mubr.f32.gmra.mxu0 %v3388
  %v3515 = vpop.f32.mrf.mxu0
  %v3516 = vadd.f32 0.0, %v3515
  %v3517 = vpop.f32.mrf.mxu0
  %3518 = vmatprep.mubr.f32.mxu0 0.0
  %3519 = vmatmul.mubr.f32.gmra.mxu0 %v3390
  %v3520 = vpop.f32.mrf.mxu0
  %v3521 = vadd.f32 0.0, %v3520
  %v3522 = vpop.f32.mrf.mxu0
  %3523 = vmatprep.mubr.f32.mxu0 0.0
  %3524 = vmatmul.mubr.f32.gmra.mxu0 %v3392
  %v3525 = vpop.f32.mrf.mxu0
  %v3526 = vadd.f32 0.0, %v3525
  %v3527 = vpop.f32.mrf.mxu0
  %3528 = vmatprep.mubr.f32.mxu0 0.0
  %3529 = vmatmul.mubr.f32.gmra.mxu0 %v3394
  %v3530 = vpop.f32.mrf.mxu0
  %v3531 = vadd.f32 0.0, %v3530
  %v3532 = vpop.f32.mrf.mxu0
  %3533 = vmatprep.mubr.f32.mxu0 0.0
  %3534 = vmatmul.mubr.f32.gmra.mxu0 %v3396
  %v3535 = vpop.f32.mrf.mxu0
  %v3536 = vadd.f32 0.0, %v3535
  %v3537 = vpop.f32.mrf.mxu0
  %3538 = vmatprep.mubr.f32.mxu0 0.0
  %3539 = vmatmul.mubr.f32.gmra.mxu0 %v3398
  %v3540 = vpop.f32.mrf.mxu0
  %v3541 = vadd.f32 0.0, %v3540
  %v3542 = vpop.f32.mrf.mxu0
  %3543 = vmatprep.mubr.f32.mxu0 0.0
  %3544 = vmatmul.mubr.f32.gmra.mxu0 %v3400
  %v3545 = vpop.f32.mrf.mxu0
  %v3546 = vadd.f32 0.0, %v3545
  %v3547 = vpop.f32.mrf.mxu0
  %3548 = vmatprep.mubr.f32.mxu0 0.0
  %3549 = vmatmul.mubr.f32.gmra.mxu0 %v3402
  %v3550 = vpop.f32.mrf.mxu0
  %v3551 = vadd.f32 0.0, %v3550
  %v3552 = vpop.f32.mrf.mxu0
  %3553 = vmatprep.mubr.f32.mxu0 0.0
  %3554 = vmatmul.mubr.f32.gmra.mxu0 %v3404
  %v3555 = vpop.f32.mrf.mxu0
  %v3556 = vadd.f32 0.0, %v3555
  %v3557 = vpop.f32.mrf.mxu0
  %3558 = vmatprep.mubr.f32.mxu0 0.0
  %3559 = vmatmul.mubr.f32.gmra.mxu0 %v3406
  %v3560 = vpop.f32.mrf.mxu0
  %v3561 = vadd.f32 0.0, %v3560
  %v3562 = vpop.f32.mrf.mxu0
  %3563 = vmatprep.mubr.f32.mxu0 0.0
  %3564 = vmatmul.mubr.f32.gmra.mxu0 %v3408
  %v3565 = vpop.f32.mrf.mxu0
  %v3566 = vadd.f32 0.0, %v3565
  %v3567 = vpop.f32.mrf.mxu0
  %3568 = vmatprep.mubr.f32.mxu0 0.0
  %3569 = vmatmul.mubr.f32.gmra.mxu0 %v3410
  %v3570 = vpop.f32.mrf.mxu0
  %v3571 = vadd.f32 0.0, %v3570
  %v3572 = vpop.f32.mrf.mxu0
  %3573 = vmatprep.mubr.f32.mxu0 0.0
  %3574 = vmatmul.mubr.f32.gmra.mxu0 %v3412
  %v3575 = vpop.f32.mrf.mxu0
  %v3576 = vadd.f32 0.0, %v3575
  %v3577 = vpop.f32.mrf.mxu0
  %3578 = vdwg.mxu0
  %v3579 = vadd.f32 %v3281, %v3481
  %v3580 = vadd.f32 %v3282, %v3486
  %v3581 = vadd.f32 %v3283, %v3491
  %v3582 = vadd.f32 %v3284, %v3496
  %v3583 = vadd.f32 %v3285, %v3501
  %v3584 = vadd.f32 %v3286, %v3506
  %v3585 = vadd.f32 %v3287, %v3511
  %v3586 = vadd.f32 %v3288, %v3516
  %v3587 = vadd.f32 %v3289, %v3521
  %v3588 = vadd.f32 %v3290, %v3526
  %v3589 = vadd.f32 %v3291, %v3531
  %v3590 = vadd.f32 %v3292, %v3536
  %v3591 = vadd.f32 %v3293, %v3541
  %v3592 = vadd.f32 %v3294, %v3546
  %v3593 = vadd.f32 %v3295, %v3551
  %v3594 = vadd.f32 %v3296, %v3556
  %v3595 = vadd.f32 %v3297, %v3561
  %v3596 = vadd.f32 %v3298, %v3566
  %v3597 = vadd.f32 %v3299, %v3571
  %v3598 = vadd.f32 %v3300, %v3576
  %v3599 = vld [vmem:[%s3 + $0x10] sm:$0xff]
  %v3600 = vld [vmem:[%s3 + $0x18] sm:$0xff]
  %v3601 = vld [vmem:[%s3 + $0x30] sm:$0xff]
  %v3602 = vld [vmem:[%s3 + $0x38] sm:$0xff]
  %v3603 = vld [vmem:[%s3 + $0x50] sm:$0xff]
  %v3604 = vld [vmem:[%s3 + $0x58] sm:$0xff]
  %v3605 = vld [vmem:[%s3 + $0x70] sm:$0xff]
  %v3606 = vld [vmem:[%s3 + $0x78] sm:$0xff]
  %v3607 = vld [vmem:[%s3 + $0x90] sm:$0xff]
  %v3608 = vld [vmem:[%s3 + $0x98] sm:$0xff]
  %v3609 = vld [vmem:[%s3 + $0xb0] sm:$0xff]
  %v3610 = vld [vmem:[%s3 + $0xb8] sm:$0xff]
  %v3611 = vld [vmem:[%s3 + $0xd0] sm:$0xff]
  %v3612 = vld [vmem:[%s3 + $0xd8] sm:$0xff]
  %v3613 = vld [vmem:[%s3 + $0xf0] sm:$0xff]
  %v3614 = vld [vmem:[%s3 + $0xf8] sm:$0xff]
  %v3615 = vld [vmem:[%s3 + $0x110] sm:$0xff]
  %v3616 = vld [vmem:[%s3 + $0x118] sm:$0xff]
  %v3617 = vld [vmem:[%s3 + $0x130] sm:$0xff]
  %v3618 = vld [vmem:[%s3 + $0x138] sm:$0xff]
  %v3619 = vld [vmem:[%s3 + $0x150] sm:$0xff]
  %v3620 = vld [vmem:[%s3 + $0x158] sm:$0xff]
  %v3621 = vld [vmem:[%s3 + $0x170] sm:$0xff]
  %v3622 = vld [vmem:[%s3 + $0x178] sm:$0xff]
  %v3623 = vld [vmem:[%s3 + $0x190] sm:$0xff]
  %v3624 = vld [vmem:[%s3 + $0x198] sm:$0xff]
  %v3625 = vld [vmem:[%s3 + $0x1b0] sm:$0xff]
  %v3626 = vld [vmem:[%s3 + $0x1b8] sm:$0xff]
  %v3627 = vld [vmem:[%s3 + $0x1d0] sm:$0xff]
  %v3628 = vld [vmem:[%s3 + $0x1d8] sm:$0xff]
  %v3629 = vld [vmem:[%s3 + $0x1f0] sm:$0xff]
  %v3630 = vld [vmem:[%s3 + $0x1f8] sm:$0xff]
  %v3631 = vld [vmem:[%s3 + $0x210] sm:$0xff]
  %v3632 = vld [vmem:[%s3 + $0x218] sm:$0xff]
  %v3633 = vld [vmem:[%s3 + $0x230] sm:$0xff]
  %v3634 = vld [vmem:[%s3 + $0x238] sm:$0xff]
  %v3635 = vld [vmem:[%s3 + $0x250] sm:$0xff]
  %v3636 = vld [vmem:[%s3 + $0x258] sm:$0xff]
  %v3637 = vld [vmem:[%s3 + $0x270] sm:$0xff]
  %v3638 = vld [vmem:[%s3 + $0x278] sm:$0xff]
  %3679 = vrot.lane.b32.xlu0 %v3599, 32
  %v3680 = vpop.permute.xlu0 %3679
  %3681 = vrot.lane.b32.xlu0 %v3600, 32
  %v3682 = vpop.permute.xlu0 %3681
  %3683 = vrot.lane.b32.xlu0 %v3601, 32
  %v3684 = vpop.permute.xlu0 %3683
  %3685 = vrot.lane.b32.xlu0 %v3602, 32
  %v3686 = vpop.permute.xlu0 %3685
  %3687 = vrot.lane.b32.xlu0 %v3603, 32
  %v3688 = vpop.permute.xlu0 %3687
  %3689 = vrot.lane.b32.xlu0 %v3604, 32
  %v3690 = vpop.permute.xlu0 %3689
  %3691 = vrot.lane.b32.xlu0 %v3605, 32
  %v3692 = vpop.permute.xlu0 %3691
  %3693 = vrot.lane.b32.xlu0 %v3606, 32
  %v3694 = vpop.permute.xlu0 %3693
  %3695 = vrot.lane.b32.xlu0 %v3607, 32
  %v3696 = vpop.permute.xlu0 %3695
  %3697 = vrot.lane.b32.xlu0 %v3608, 32
  %v3698 = vpop.permute.xlu0 %3697
  %3699 = vrot.lane.b32.xlu0 %v3609, 32
  %v3700 = vpop.permute.xlu0 %3699
  %3701 = vrot.lane.b32.xlu0 %v3610, 32
  %v3702 = vpop.permute.xlu0 %3701
  %3703 = vrot.lane.b32.xlu0 %v3611, 32
  %v3704 = vpop.permute.xlu0 %3703
  %3705 = vrot.lane.b32.xlu0 %v3612, 32
  %v3706 = vpop.permute.xlu0 %3705
  %3707 = vrot.lane.b32.xlu0 %v3613, 32
  %v3708 = vpop.permute.xlu0 %3707
  %3709 = vrot.lane.b32.xlu0 %v3614, 32
  %v3710 = vpop.permute.xlu0 %3709
  %3711 = vrot.lane.b32.xlu0 %v3615, 32
  %v3712 = vpop.permute.xlu0 %3711
  %3713 = vrot.lane.b32.xlu0 %v3616, 32
  %v3714 = vpop.permute.xlu0 %3713
  %3715 = vrot.lane.b32.xlu0 %v3617, 32
  %v3716 = vpop.permute.xlu0 %3715
  %3717 = vrot.lane.b32.xlu0 %v3618, 32
  %v3718 = vpop.permute.xlu0 %3717
  %3719 = vrot.lane.b32.xlu0 %v3619, 32
  %v3720 = vpop.permute.xlu0 %3719
  %3721 = vrot.lane.b32.xlu0 %v3620, 32
  %v3722 = vpop.permute.xlu0 %3721
  %3723 = vrot.lane.b32.xlu0 %v3621, 32
  %v3724 = vpop.permute.xlu0 %3723
  %3725 = vrot.lane.b32.xlu0 %v3622, 32
  %v3726 = vpop.permute.xlu0 %3725
  %3727 = vrot.lane.b32.xlu0 %v3623, 32
  %v3728 = vpop.permute.xlu0 %3727
  %3729 = vrot.lane.b32.xlu0 %v3624, 32
  %v3730 = vpop.permute.xlu0 %3729
  %3731 = vrot.lane.b32.xlu0 %v3625, 32
  %v3732 = vpop.permute.xlu0 %3731
  %3733 = vrot.lane.b32.xlu0 %v3626, 32
  %v3734 = vpop.permute.xlu0 %3733
  %3735 = vrot.lane.b32.xlu0 %v3627, 32
  %v3736 = vpop.permute.xlu0 %3735
  %3737 = vrot.lane.b32.xlu0 %v3628, 32
  %v3738 = vpop.permute.xlu0 %3737
  %3739 = vrot.lane.b32.xlu0 %v3629, 32
  %v3740 = vpop.permute.xlu0 %3739
  %3741 = vrot.lane.b32.xlu0 %v3630, 32
  %v3742 = vpop.permute.xlu0 %3741
  %3743 = vrot.lane.b32.xlu0 %v3631, 32
  %v3744 = vpop.permute.xlu0 %3743
  %3745 = vrot.lane.b32.xlu0 %v3632, 32
  %v3746 = vpop.permute.xlu0 %3745
  %3747 = vrot.lane.b32.xlu0 %v3633, 32
  %v3748 = vpop.permute.xlu0 %3747
  %3749 = vrot.lane.b32.xlu0 %v3634, 32
  %v3750 = vpop.permute.xlu0 %3749
  %3751 = vrot.lane.b32.xlu0 %v3635, 32
  %v3752 = vpop.permute.xlu0 %3751
  %3753 = vrot.lane.b32.xlu0 %v3636, 32
  %v3754 = vpop.permute.xlu0 %3753
  %3755 = vrot.lane.b32.xlu0 %v3637, 32
  %v3756 = vpop.permute.xlu0 %3755
  %3757 = vrot.lane.b32.xlu0 %v3638, 32
  %v3758 = vpop.permute.xlu0 %3757
  %v3759 = vsel %vm142, %v3680, %v3682
  %v3760 = vsel %vm142, %v3684, %v3686
  %v3761 = vsel %vm142, %v3688, %v3690
  %v3762 = vsel %vm142, %v3692, %v3694
  %v3763 = vsel %vm142, %v3696, %v3698
  %v3764 = vsel %vm142, %v3700, %v3702
  %v3765 = vsel %vm142, %v3704, %v3706
  %v3766 = vsel %vm142, %v3708, %v3710
  %v3767 = vsel %vm142, %v3712, %v3714
  %v3768 = vsel %vm142, %v3716, %v3718
  %v3769 = vsel %vm142, %v3720, %v3722
  %v3770 = vsel %vm142, %v3724, %v3726
  %v3771 = vsel %vm142, %v3728, %v3730
  %v3772 = vsel %vm142, %v3732, %v3734
  %v3773 = vsel %vm142, %v3736, %v3738
  %v3774 = vsel %vm142, %v3740, %v3742
  %v3775 = vsel %vm142, %v3744, %v3746
  %v3776 = vsel %vm142, %v3748, %v3750
  %v3777 = vsel %vm142, %v3752, %v3754
  %v3778 = vsel %vm142, %v3756, %v3758
  %3779 = vrot.lane.b32.xlu0 %v2173, 124
  %v3780 = vpop.permute.xlu0 %3779
  %3781 = vrot.lane.b32.xlu0 %v2178, 124
  %v3782 = vpop.permute.xlu0 %3781
  %3783 = vrot.lane.b32.xlu0 %v2183, 124
  %v3784 = vpop.permute.xlu0 %3783
  %3785 = vrot.lane.b32.xlu0 %v2188, 124
  %v3786 = vpop.permute.xlu0 %3785
  %3787 = vrot.lane.b32.xlu0 %v2193, 124
  %v3788 = vpop.permute.xlu0 %3787
  %3789 = vrot.lane.b32.xlu0 %v2198, 124
  %v3790 = vpop.permute.xlu0 %3789
  %3791 = vrot.lane.b32.xlu0 %v2203, 124
  %v3792 = vpop.permute.xlu0 %3791
  %3793 = vrot.lane.b32.xlu0 %v2208, 124
  %v3794 = vpop.permute.xlu0 %3793
  %3795 = vrot.lane.b32.xlu0 %v2213, 124
  %v3796 = vpop.permute.xlu0 %3795
  %3797 = vrot.lane.b32.xlu0 %v2218, 124
  %v3798 = vpop.permute.xlu0 %3797
  %3799 = vrot.lane.b32.xlu0 %v2223, 124
  %v3800 = vpop.permute.xlu0 %3799
  %v3812 = vsel %vm2451, %v3759, 0
  %v3814 = vsel %vm2451, %v3760, 0
  %v3816 = vsel %vm2451, %v3761, 0
  %v3818 = vsel %vm2451, %v3762, 0
  %v3820 = vsel %vm2451, %v3763, 0
  %v3822 = vsel %vm2451, %v3764, 0
  %v3824 = vsel %vm2451, %v3765, 0
  %v3826 = vsel %vm2451, %v3766, 0
  %v3828 = vsel %vm2451, %v3767, 0
  %v3830 = vsel %vm2451, %v3768, 0
  %v3832 = vsel %vm2451, %v3769, 0
  %v3834 = vsel %vm2451, %v3770, 0
  %v3836 = vsel %vm2451, %v3771, 0
  %v3838 = vsel %vm2451, %v3772, 0
  %v3840 = vsel %vm2451, %v3773, 0
  %v3842 = vsel %vm2451, %v3774, 0
  %v3844 = vsel %vm2451, %v3775, 0
  %v3846 = vsel %vm2451, %v3776, 0
  %v3848 = vsel %vm2451, %v3777, 0
  %v3850 = vsel %vm2451, %v3778, 0
  %3852 = vmatprep.subr.mxu0 0.0
  %3853 = vmatpush1.msra.mxu0 0.0
  %3854 = vmatprep.subr.mxu0 0.0
  %3855 = vmatpush1.msra.mxu0 0.0
  %3856 = vmatprep.subr.mxu0 0.0
  %3857 = vmatpush1.msra.mxu0 0.0
  %3858 = vmatprep.subr.mxu0 0.0
  %3859 = vmatpush1.msra.mxu0 0.0
  %3860 = vmatprep.subr.mxu0 0.0
  %3861 = vmatpush1.msra.mxu0 0.0
  %3862 = vmatprep.subr.mxu0 0.0
  %3863 = vmatpush1.msra.mxu0 %v3800
  %3864 = vmatprep.subr.mxu0 0.0
  %3865 = vmatpush1.msra.mxu0 %v3798
  %3866 = vmatprep.subr.mxu0 0.0
  %3867 = vmatpush1.msra.mxu0 %v3796
  %3868 = vmatprep.subr.mxu0 0.0
  %3869 = vmatpush1.msra.mxu0 %v3794
  %3870 = vmatprep.subr.mxu0 0.0
  %3871 = vmatpush1.msra.mxu0 %v3792
  %3872 = vmatprep.subr.mxu0 0.0
  %3873 = vmatpush1.msra.mxu0 %v3790
  %3874 = vmatprep.subr.mxu0 0.0
  %3875 = vmatpush1.msra.mxu0 %v3788
  %3876 = vmatprep.subr.mxu0 0.0
  %3877 = vmatpush1.msra.mxu0 %v3786
  %3878 = vmatprep.subr.mxu0 0.0
  %3879 = vmatpush1.msra.mxu0 %v3784
  %3880 = vmatprep.subr.mxu0 0.0
  %3881 = vmatpush1.msra.mxu0 %v3782
  %3882 = vmatprep.subr.mxu0 0.0
  %3883 = vmatpush1.msra.mxu0 %v3780
  %3884 = vmatprep.subr.mxu0 0.0
  %3885 = vmatpush2.msra.mxu0 0.0
  %3886 = vmatprep.subr.mxu0 0.0
  %3887 = vmatpush2.msra.mxu0 0.0
  %3888 = vmatprep.subr.mxu0 0.0
  %3889 = vmatpush2.msra.mxu0 0.0
  %3890 = vmatprep.subr.mxu0 0.0
  %3891 = vmatpush2.msra.mxu0 0.0
  %3892 = vmatprep.subr.mxu0 0.0
  %3893 = vmatpush2.msra.mxu0 0.0
  %3894 = vmatprep.subr.mxu0 0.0
  %3895 = vmatpush2.msra.mxu0 0.0
  %3896 = vmatprep.subr.mxu0 0.0
  %3897 = vmatpush2.msra.mxu0 0.0
  %3898 = vmatprep.subr.mxu0 0.0
  %3899 = vmatpush2.msra.mxu0 0.0
  %3900 = vmatprep.subr.mxu0 0.0
  %3901 = vmatpush2.msra.mxu0 0.0
  %3902 = vmatprep.subr.mxu0 0.0
  %3903 = vmatpush2.msra.mxu0 0.0
  %3904 = vmatprep.subr.mxu0 0.0
  %3905 = vmatpush2.msra.mxu0 0.0
  %3906 = vmatprep.subr.mxu0 0.0
  %3907 = vmatpush2.msra.mxu0 0.0
  %3908 = vmatprep.subr.mxu0 0.0
  %3909 = vmatpush2.msra.mxu0 0.0
  %3910 = vmatprep.subr.mxu0 0.0
  %3911 = vmatpush2.msra.mxu0 0.0
  %3912 = vmatprep.subr.mxu0 0.0
  %3913 = vmatpush2.msra.mxu0 0.0
  %3914 = vmatprep.subr.mxu0 0.0
  %3915 = vmatpush2.msra.mxu0 0.0
  %3916 = vmatprep.mubr.f32.mxu0 0.0
  %3917 = vmatmul.mubr.f32.gmra.mxu0 %v3812
  %v3918 = vpop.f32.mrf.mxu0
  %v3919 = vadd.f32 0.0, %v3918
  %v3920 = vpop.f32.mrf.mxu0
  %3921 = vmatprep.mubr.f32.mxu0 0.0
  %3922 = vmatmul.mubr.f32.gmra.mxu0 %v3814
  %v3923 = vpop.f32.mrf.mxu0
  %v3924 = vadd.f32 0.0, %v3923
  %v3925 = vpop.f32.mrf.mxu0
  %3926 = vmatprep.mubr.f32.mxu0 0.0
  %3927 = vmatmul.mubr.f32.gmra.mxu0 %v3816
  %v3928 = vpop.f32.mrf.mxu0
  %v3929 = vadd.f32 0.0, %v3928
  %v3930 = vpop.f32.mrf.mxu0
  %3931 = vmatprep.mubr.f32.mxu0 0.0
  %3932 = vmatmul.mubr.f32.gmra.mxu0 %v3818
  %v3933 = vpop.f32.mrf.mxu0
  %v3934 = vadd.f32 0.0, %v3933
  %v3935 = vpop.f32.mrf.mxu0
  %3936 = vmatprep.mubr.f32.mxu0 0.0
  %3937 = vmatmul.mubr.f32.gmra.mxu0 %v3820
  %v3938 = vpop.f32.mrf.mxu0
  %v3939 = vadd.f32 0.0, %v3938
  %v3940 = vpop.f32.mrf.mxu0
  %3941 = vmatprep.mubr.f32.mxu0 0.0
  %3942 = vmatmul.mubr.f32.gmra.mxu0 %v3822
  %v3943 = vpop.f32.mrf.mxu0
  %v3944 = vadd.f32 0.0, %v3943
  %v3945 = vpop.f32.mrf.mxu0
  %3946 = vmatprep.mubr.f32.mxu0 0.0
  %3947 = vmatmul.mubr.f32.gmra.mxu0 %v3824
  %v3948 = vpop.f32.mrf.mxu0
  %v3949 = vadd.f32 0.0, %v3948
  %v3950 = vpop.f32.mrf.mxu0
  %3951 = vmatprep.mubr.f32.mxu0 0.0
  %3952 = vmatmul.mubr.f32.gmra.mxu0 %v3826
  %v3953 = vpop.f32.mrf.mxu0
  %v3954 = vadd.f32 0.0, %v3953
  %v3955 = vpop.f32.mrf.mxu0
  %3956 = vmatprep.mubr.f32.mxu0 0.0
  %3957 = vmatmul.mubr.f32.gmra.mxu0 %v3828
  %v3958 = vpop.f32.mrf.mxu0
  %v3959 = vadd.f32 0.0, %v3958
  %v3960 = vpop.f32.mrf.mxu0
  %3961 = vmatprep.mubr.f32.mxu0 0.0
  %3962 = vmatmul.mubr.f32.gmra.mxu0 %v3830
  %v3963 = vpop.f32.mrf.mxu0
  %v3964 = vadd.f32 0.0, %v3963
  %v3965 = vpop.f32.mrf.mxu0
  %3966 = vmatprep.mubr.f32.mxu0 0.0
  %3967 = vmatmul.mubr.f32.gmra.mxu0 %v3832
  %v3968 = vpop.f32.mrf.mxu0
  %v3969 = vadd.f32 0.0, %v3968
  %v3970 = vpop.f32.mrf.mxu0
  %3971 = vmatprep.mubr.f32.mxu0 0.0
  %3972 = vmatmul.mubr.f32.gmra.mxu0 %v3834
  %v3973 = vpop.f32.mrf.mxu0
  %v3974 = vadd.f32 0.0, %v3973
  %v3975 = vpop.f32.mrf.mxu0
  %3976 = vmatprep.mubr.f32.mxu0 0.0
  %3977 = vmatmul.mubr.f32.gmra.mxu0 %v3836
  %v3978 = vpop.f32.mrf.mxu0
  %v3979 = vadd.f32 0.0, %v3978
  %v3980 = vpop.f32.mrf.mxu0
  %3981 = vmatprep.mubr.f32.mxu0 0.0
  %3982 = vmatmul.mubr.f32.gmra.mxu0 %v3838
  %v3983 = vpop.f32.mrf.mxu0
  %v3984 = vadd.f32 0.0, %v3983
  %v3985 = vpop.f32.mrf.mxu0
  %3986 = vmatprep.mubr.f32.mxu0 0.0
  %3987 = vmatmul.mubr.f32.gmra.mxu0 %v3840
  %v3988 = vpop.f32.mrf.mxu0
  %v3989 = vadd.f32 0.0, %v3988
  %v3990 = vpop.f32.mrf.mxu0
  %3991 = vmatprep.mubr.f32.mxu0 0.0
  %3992 = vmatmul.mubr.f32.gmra.mxu0 %v3842
  %v3993 = vpop.f32.mrf.mxu0
  %v3994 = vadd.f32 0.0, %v3993
  %v3995 = vpop.f32.mrf.mxu0
  %3996 = vmatprep.mubr.f32.mxu0 0.0
  %3997 = vmatmul.mubr.f32.gmra.mxu0 %v3844
  %v3998 = vpop.f32.mrf.mxu0
  %v3999 = vadd.f32 0.0, %v3998
  %v4000 = vpop.f32.mrf.mxu0
  %4001 = vmatprep.mubr.f32.mxu0 0.0
  %4002 = vmatmul.mubr.f32.gmra.mxu0 %v3846
  %v4003 = vpop.f32.mrf.mxu0
  %v4004 = vadd.f32 0.0, %v4003
  %v4005 = vpop.f32.mrf.mxu0
  %4006 = vmatprep.mubr.f32.mxu0 0.0
  %4007 = vmatmul.mubr.f32.gmra.mxu0 %v3848
  %v4008 = vpop.f32.mrf.mxu0
  %v4009 = vadd.f32 0.0, %v4008
  %v4010 = vpop.f32.mrf.mxu0
  %4011 = vmatprep.mubr.f32.mxu0 0.0
  %4012 = vmatmul.mubr.f32.gmra.mxu0 %v3850
  %v4013 = vpop.f32.mrf.mxu0
  %v4014 = vadd.f32 0.0, %v4013
  %v4015 = vpop.f32.mrf.mxu0
  %4016 = vdwg.mxu0
  %v4017 = vadd.f32 %v3579, %v3919
  %v4018 = vadd.f32 %v3580, %v3924
  %v4019 = vadd.f32 %v3581, %v3929
  %v4020 = vadd.f32 %v3582, %v3934
  %v4021 = vadd.f32 %v3583, %v3939
  %v4022 = vadd.f32 %v3584, %v3944
  %v4023 = vadd.f32 %v3585, %v3949
  %v4024 = vadd.f32 %v3586, %v3954
  %v4025 = vadd.f32 %v3587, %v3959
  %v4026 = vadd.f32 %v3588, %v3964
  %v4027 = vadd.f32 %v3589, %v3969
  %v4028 = vadd.f32 %v3590, %v3974
  %v4029 = vadd.f32 %v3591, %v3979
  %v4030 = vadd.f32 %v3592, %v3984
  %v4031 = vadd.f32 %v3593, %v3989
  %v4032 = vadd.f32 %v3594, %v3994
  %v4033 = vadd.f32 %v3595, %v3999
  %v4034 = vadd.f32 %v3596, %v4004
  %v4035 = vadd.f32 %v3597, %v4009
  %v4036 = vadd.f32 %v3598, %v4014
  %v4037 = vld [vmem:[%s4] sm:$0xff]
  %v4038 = vld [vmem:[%s4 + $0x8] sm:$0xff]
  %v4039 = vld [vmem:[%s4 + $0x10] sm:$0xff]
  %v4040 = vld [vmem:[%s4 + $0x18] sm:$0xff]
  %v4041 = vld [vmem:[%s4 + $0x20] sm:$0xff]
  %v4042 = vld [vmem:[%s4 + $0x28] sm:$0xff]
  %v4043 = vld [vmem:[%s4 + $0x30] sm:$0xff]
  %v4044 = vld [vmem:[%s4 + $0x38] sm:$0xff]
  %v4045 = vld [vmem:[%s4 + $0x40] sm:$0xff]
  %v4046 = vld [vmem:[%s4 + $0x48] sm:$0xff]
  %v4047 = vld [vmem:[%s4 + $0x50] sm:$0xff]
  %v4048 = vld [vmem:[%s4 + $0x58] sm:$0xff]
  %v4049 = vld [vmem:[%s4 + $0x60] sm:$0xff]
  %v4050 = vld [vmem:[%s4 + $0x68] sm:$0xff]
  %v4051 = vld [vmem:[%s4 + $0x70] sm:$0xff]
  %v4052 = vld [vmem:[%s4 + $0x78] sm:$0xff]
  %v4053 = vld [vmem:[%s4 + $0x80] sm:$0xff]
  %v4054 = vld [vmem:[%s4 + $0x88] sm:$0xff]
  %v4055 = vld [vmem:[%s4 + $0x90] sm:$0xff]
  %v4056 = vld [vmem:[%s4 + $0x98] sm:$0xff]
  %4058 = vset.pattern.permute.xlu0 0
  %4059 = vperm.xlu0 %4058, %v4037
  %v4060 = vpop.permute.xlu0 %4059
  %4063 = vset.pattern.permute.xlu0 0
  %4064 = vperm.xlu0 %4063, %v4038
  %v4065 = vpop.permute.xlu0 %4064
  %4068 = vset.pattern.permute.xlu0 0
  %4069 = vperm.xlu0 %4068, %v4039
  %v4070 = vpop.permute.xlu0 %4069
  %4073 = vset.pattern.permute.xlu0 0
  %4074 = vperm.xlu0 %4073, %v4040
  %v4075 = vpop.permute.xlu0 %4074
  %4078 = vset.pattern.permute.xlu0 0
  %4079 = vperm.xlu0 %4078, %v4041
  %v4080 = vpop.permute.xlu0 %4079
  %4083 = vset.pattern.permute.xlu0 0
  %4084 = vperm.xlu0 %4083, %v4042
  %v4085 = vpop.permute.xlu0 %4084
  %4088 = vset.pattern.permute.xlu0 0
  %4089 = vperm.xlu0 %4088, %v4043
  %v4090 = vpop.permute.xlu0 %4089
  %4093 = vset.pattern.permute.xlu0 0
  %4094 = vperm.xlu0 %4093, %v4044
  %v4095 = vpop.permute.xlu0 %4094
  %4098 = vset.pattern.permute.xlu0 0
  %4099 = vperm.xlu0 %4098, %v4045
  %v4100 = vpop.permute.xlu0 %4099
  %4103 = vset.pattern.permute.xlu0 0
  %4104 = vperm.xlu0 %4103, %v4046
  %v4105 = vpop.permute.xlu0 %4104
  %4108 = vset.pattern.permute.xlu0 0
  %4109 = vperm.xlu0 %4108, %v4047
  %v4110 = vpop.permute.xlu0 %4109
  %4113 = vset.pattern.permute.xlu0 0
  %4114 = vperm.xlu0 %4113, %v4048
  %v4115 = vpop.permute.xlu0 %4114
  %4118 = vset.pattern.permute.xlu0 0
  %4119 = vperm.xlu0 %4118, %v4049
  %v4120 = vpop.permute.xlu0 %4119
  %4123 = vset.pattern.permute.xlu0 0
  %4124 = vperm.xlu0 %4123, %v4050
  %v4125 = vpop.permute.xlu0 %4124
  %4128 = vset.pattern.permute.xlu0 0
  %4129 = vperm.xlu0 %4128, %v4051
  %v4130 = vpop.permute.xlu0 %4129
  %4133 = vset.pattern.permute.xlu0 0
  %4134 = vperm.xlu0 %4133, %v4052
  %v4135 = vpop.permute.xlu0 %4134
  %4138 = vset.pattern.permute.xlu0 0
  %4139 = vperm.xlu0 %4138, %v4053
  %v4140 = vpop.permute.xlu0 %4139
  %4143 = vset.pattern.permute.xlu0 0
  %4144 = vperm.xlu0 %4143, %v4054
  %v4145 = vpop.permute.xlu0 %4144
  %4148 = vset.pattern.permute.xlu0 0
  %4149 = vperm.xlu0 %4148, %v4055
  %v4150 = vpop.permute.xlu0 %4149
  %4153 = vset.pattern.permute.xlu0 0
  %4154 = vperm.xlu0 %4153, %v4056
  %v4155 = vpop.permute.xlu0 %4154
  %v4157 = vadd.f32 %v4017, %v4060
  %v4158 = vadd.f32 %v4018, %v4065
  %v4159 = vadd.f32 %v4019, %v4070
  %v4160 = vadd.f32 %v4020, %v4075
  %v4161 = vadd.f32 %v4021, %v4080
  %v4162 = vadd.f32 %v4022, %v4085
  %v4163 = vadd.f32 %v4023, %v4090
  %v4164 = vadd.f32 %v4024, %v4095
  %v4165 = vadd.f32 %v4025, %v4100
  %v4166 = vadd.f32 %v4026, %v4105
  %v4167 = vadd.f32 %v4027, %v4110
  %v4168 = vadd.f32 %v4028, %v4115
  %v4169 = vadd.f32 %v4029, %v4120
  %v4170 = vadd.f32 %v4030, %v4125
  %v4171 = vadd.f32 %v4031, %v4130
  %v4172 = vadd.f32 %v4032, %v4135
  %v4173 = vadd.f32 %v4033, %v4140
  %v4174 = vadd.f32 %v4034, %v4145
  %v4175 = vadd.f32 %v4035, %v4150
  %v4176 = vadd.f32 %v4036, %v4155
  %v4177 = vmax.f32 %v4157, 0.0
  %v4178 = vmax.f32 %v4158, 0.0
  %v4179 = vmax.f32 %v4159, 0.0
  %v4180 = vmax.f32 %v4160, 0.0
  %v4181 = vmax.f32 %v4161, 0.0
  %v4182 = vmax.f32 %v4162, 0.0
  %v4183 = vmax.f32 %v4163, 0.0
  %v4184 = vmax.f32 %v4164, 0.0
  %v4185 = vmax.f32 %v4165, 0.0
  %v4186 = vmax.f32 %v4166, 0.0
  %v4187 = vmax.f32 %v4167, 0.0
  %v4188 = vmax.f32 %v4168, 0.0
  %v4189 = vmax.f32 %v4169, 0.0
  %v4190 = vmax.f32 %v4170, 0.0
  %v4191 = vmax.f32 %v4171, 0.0
  %v4192 = vmax.f32 %v4172, 0.0
  %v4193 = vmax.f32 %v4173, 0.0
  %v4194 = vmax.f32 %v4174, 0.0
  %v4195 = vmax.f32 %v4175, 0.0
  %v4196 = vmax.f32 %v4176, 0.0
  %4217 = vrot.lane.b32.xlu0 %v4177, 127
  %v4218 = vpop.permute.xlu0 %4217
  %4219 = vrot.lane.b32.xlu0 %v4178, 127
  %v4220 = vpop.permute.xlu0 %4219
  %4221 = vrot.lane.b32.xlu0 %v4179, 127
  %v4222 = vpop.permute.xlu0 %4221
  %4223 = vrot.lane.b32.xlu0 %v4180, 127
  %v4224 = vpop.permute.xlu0 %4223
  %4225 = vrot.lane.b32.xlu0 %v4181, 127
  %v4226 = vpop.permute.xlu0 %4225
  %4227 = vrot.lane.b32.xlu0 %v4182, 127
  %v4228 = vpop.permute.xlu0 %4227
  %4229 = vrot.lane.b32.xlu0 %v4183, 127
  %v4230 = vpop.permute.xlu0 %4229
  %4231 = vrot.lane.b32.xlu0 %v4184, 127
  %v4232 = vpop.permute.xlu0 %4231
  %4233 = vrot.lane.b32.xlu0 %v4185, 127
  %v4234 = vpop.permute.xlu0 %4233
  %4235 = vrot.lane.b32.xlu0 %v4186, 127
  %v4236 = vpop.permute.xlu0 %4235
  %4237 = vrot.lane.b32.xlu0 %v4187, 127
  %v4238 = vpop.permute.xlu0 %4237
  %4239 = vrot.lane.b32.xlu0 %v4188, 127
  %v4240 = vpop.permute.xlu0 %4239
  %4241 = vrot.lane.b32.xlu0 %v4189, 127
  %v4242 = vpop.permute.xlu0 %4241
  %4243 = vrot.lane.b32.xlu0 %v4190, 127
  %v4244 = vpop.permute.xlu0 %4243
  %4245 = vrot.lane.b32.xlu0 %v4191, 127
  %v4246 = vpop.permute.xlu0 %4245
  %4247 = vrot.lane.b32.xlu0 %v4192, 127
  %v4248 = vpop.permute.xlu0 %4247
  %4249 = vrot.lane.b32.xlu0 %v4193, 127
  %v4250 = vpop.permute.xlu0 %4249
  %4251 = vrot.lane.b32.xlu0 %v4194, 127
  %v4252 = vpop.permute.xlu0 %4251
  %4253 = vrot.lane.b32.xlu0 %v4195, 127
  %v4254 = vpop.permute.xlu0 %4253
  %4255 = vrot.lane.b32.xlu0 %v4196, 127
  %v4256 = vpop.permute.xlu0 %4255
  %v4277 = vmax.f32 %v4177, %v4218
  %v4278 = vmax.f32 %v4178, %v4220
  %v4279 = vmax.f32 %v4179, %v4222
  %v4280 = vmax.f32 %v4180, %v4224
  %v4281 = vmax.f32 %v4181, %v4226
  %v4282 = vmax.f32 %v4182, %v4228
  %v4283 = vmax.f32 %v4183, %v4230
  %v4284 = vmax.f32 %v4184, %v4232
  %v4285 = vmax.f32 %v4185, %v4234
  %v4286 = vmax.f32 %v4186, %v4236
  %v4287 = vmax.f32 %v4187, %v4238
  %v4288 = vmax.f32 %v4188, %v4240
  %v4289 = vmax.f32 %v4189, %v4242
  %v4290 = vmax.f32 %v4190, %v4244
  %v4291 = vmax.f32 %v4191, %v4246
  %v4292 = vmax.f32 %v4192, %v4248
  %v4293 = vmax.f32 %v4193, %v4250
  %v4294 = vmax.f32 %v4194, %v4252
  %v4295 = vmax.f32 %v4195, %v4254
  %v4296 = vmax.f32 %v4196, %v4256
  %v4317 = vrot.slane %v4277, 1
  %v4318 = vrot.slane %v4278, 1
  %v4319 = vsel %vm1722, %v4317, %v4318
  %v4320 = vrot.slane %v4279, 1
  %v4321 = vsel %vm1722, %v4318, %v4320
  %v4322 = vrot.slane %v4280, 1
  %v4323 = vsel %vm1722, %v4320, %v4322
  %v4324 = vrot.slane %v4281, 1
  %v4325 = vsel %vm1722, %v4322, %v4324
  %v4326 = vrot.slane %v4282, 1
  %v4327 = vsel %vm1722, %v4324, %v4326
  %v4328 = vrot.slane %v4283, 1
  %v4329 = vsel %vm1722, %v4326, %v4328
  %v4330 = vrot.slane %v4284, 1
  %v4331 = vsel %vm1722, %v4328, %v4330
  %v4332 = vrot.slane %v4285, 1
  %v4333 = vsel %vm1722, %v4330, %v4332
  %v4334 = vrot.slane %v4286, 1
  %v4335 = vsel %vm1722, %v4332, %v4334
  %v4336 = vrot.slane %v4287, 1
  %v4337 = vsel %vm1722, %v4334, %v4336
  %v4338 = vrot.slane %v4288, 1
  %v4339 = vsel %vm1722, %v4336, %v4338
  %v4340 = vrot.slane %v4289, 1
  %v4341 = vsel %vm1722, %v4338, %v4340
  %v4342 = vrot.slane %v4290, 1
  %v4343 = vsel %vm1722, %v4340, %v4342
  %v4344 = vrot.slane %v4291, 1
  %v4345 = vsel %vm1722, %v4342, %v4344
  %v4346 = vrot.slane %v4292, 1
  %v4347 = vsel %vm1722, %v4344, %v4346
  %v4348 = vrot.slane %v4293, 1
  %v4349 = vsel %vm1722, %v4346, %v4348
  %v4350 = vrot.slane %v4294, 1
  %v4351 = vsel %vm1722, %v4348, %v4350
  %v4352 = vrot.slane %v4295, 1
  %v4353 = vsel %vm1722, %v4350, %v4352
  %v4354 = vrot.slane %v4296, 1
  %v4355 = vsel %vm1722, %v4352, %v4354
  %v4376 = vmax.f32 %v4277, %v4319
  %v4377 = vmax.f32 %v4278, %v4321
  %v4378 = vmax.f32 %v4279, %v4323
  %v4379 = vmax.f32 %v4280, %v4325
  %v4380 = vmax.f32 %v4281, %v4327
  %v4381 = vmax.f32 %v4282, %v4329
  %v4382 = vmax.f32 %v4283, %v4331
  %v4383 = vmax.f32 %v4284, %v4333
  %v4384 = vmax.f32 %v4285, %v4335
  %v4385 = vmax.f32 %v4286, %v4337
  %v4386 = vmax.f32 %v4287, %v4339
  %v4387 = vmax.f32 %v4288, %v4341
  %v4388 = vmax.f32 %v4289, %v4343
  %v4389 = vmax.f32 %v4290, %v4345
  %v4390 = vmax.f32 %v4291, %v4347
  %v4391 = vmax.f32 %v4292, %v4349
  %v4392 = vmax.f32 %v4293, %v4351
  %v4393 = vmax.f32 %v4294, %v4353
  %v4394 = vmax.f32 %v4295, %v4355
  %v4395 = vmax.f32 %v4296, %v4354
  %vm4396 = vcmask 252928
  %v4397 = vsel %vm4396, %v1877, 0
  %v4399 = vsel %vm4396, %v1879, 0
  %v4401 = vsel %vm4396, %v1881, 0
  %v4403 = vsel %vm4396, %v1883, 0
  %v4405 = vsel %vm4396, %v1885, 0
  %v4407 = vsel %vm4396, %v1887, 0
  %v4409 = vsel %vm4396, %v1889, 0
  %v4411 = vsel %vm4396, %v1891, 0
  %v4413 = vsel %vm4396, %v1893, 0
  %v4415 = vsel %vm4396, %v1895, 0
  %v4418 = vsel %vm1722, %v4395, 0
  %4420 = vmatprep.subr.mxu0 0.0
  %4421 = vmatpush1.msra.mxu0 %v4391
  %4422 = vmatprep.subr.mxu0 0.0
  %4423 = vmatpush1.msra.mxu0 %v4390
  %4424 = vmatprep.subr.mxu0 0.0
  %4425 = vmatpush1.msra.mxu0 %v4389
  %4426 = vmatprep.subr.mxu0 0.0
  %4427 = vmatpush1.msra.mxu0 %v4388
  %4428 = vmatprep.subr.mxu0 0.0
  %4429 = vmatpush1.msra.mxu0 %v4387
  %4430 = vmatprep.subr.mxu0 0.0
  %4431 = vmatpush1.msra.mxu0 %v4386
  %4432 = vmatprep.subr.mxu0 0.0
  %4433 = vmatpush1.msra.mxu0 %v4385
  %4434 = vmatprep.subr.mxu0 0.0
  %4435 = vmatpush1.msra.mxu0 %v4384
  %4436 = vmatprep.subr.mxu0 0.0
  %4437 = vmatpush1.msra.mxu0 %v4383
  %4438 = vmatprep.subr.mxu0 0.0
  %4439 = vmatpush1.msra.mxu0 %v4382
  %4440 = vmatprep.subr.mxu0 0.0
  %4441 = vmatpush1.msra.mxu0 %v4381
  %4442 = vmatprep.subr.mxu0 0.0
  %4443 = vmatpush1.msra.mxu0 %v4380
  %4444 = vmatprep.subr.mxu0 0.0
  %4445 = vmatpush1.msra.mxu0 %v4379
  %4446 = vmatprep.subr.mxu0 0.0
  %4447 = vmatpush1.msra.mxu0 %v4378
  %4448 = vmatprep.subr.mxu0 0.0
  %4449 = vmatpush1.msra.mxu0 %v4377
  %4450 = vmatprep.subr.mxu0 0.0
  %4451 = vmatpush1.msra.mxu0 %v4376
  %4452 = vmatprep.subr.mxu0 0.0
  %4453 = vmatpush2.msra.mxu0 0.0
  %4454 = vmatprep.subr.mxu0 0.0
  %4455 = vmatpush2.msra.mxu0 0.0
  %4456 = vmatprep.subr.mxu0 0.0
  %4457 = vmatpush2.msra.mxu0 0.0
  %4458 = vmatprep.subr.mxu0 0.0
  %4459 = vmatpush2.msra.mxu0 0.0
  %4460 = vmatprep.subr.mxu0 0.0
  %4461 = vmatpush2.msra.mxu0 0.0
  %4462 = vmatprep.subr.mxu0 0.0
  %4463 = vmatpush2.msra.mxu0 0.0
  %4464 = vmatprep.subr.mxu0 0.0
  %4465 = vmatpush2.msra.mxu0 0.0
  %4466 = vmatprep.subr.mxu0 0.0
  %4467 = vmatpush2.msra.mxu0 0.0
  %4468 = vmatprep.subr.mxu0 0.0
  %4469 = vmatpush2.msra.mxu0 0.0
  %4470 = vmatprep.subr.mxu0 0.0
  %4471 = vmatpush2.msra.mxu0 0.0
  %4472 = vmatprep.subr.mxu0 0.0
  %4473 = vmatpush2.msra.mxu0 0.0
  %4474 = vmatprep.subr.mxu0 0.0
  %4475 = vmatpush2.msra.mxu0 0.0
  %4476 = vmatprep.subr.mxu0 0.0
  %4477 = vmatpush2.msra.mxu0 %v4418
  %4478 = vmatprep.subr.mxu0 0.0
  %4479 = vmatpush2.msra.mxu0 %v4394
  %4480 = vmatprep.subr.mxu0 0.0
  %4481 = vmatpush2.msra.mxu0 %v4393
  %4482 = vmatprep.subr.mxu0 0.0
  %4483 = vmatpush2.msra.mxu0 %v4392
  %4484 = vmatprep.mubr.f32.mxu0 %v4397
  %4485 = vmatmul.mubr.f32.gmra.mxu0 %v1876
  %v4486 = vpop.f32.mrf.mxu0
  %v4487 = vadd.f32 0.0, %v4486
  %v4488 = vpop.f32.mrf.mxu0
  %4489 = vmatprep.mubr.f32.mxu0 %v4399
  %4490 = vmatmul.mubr.f32.gmra.mxu0 %v1878
  %v4491 = vpop.f32.mrf.mxu0
  %v4492 = vadd.f32 0.0, %v4491
  %v4493 = vpop.f32.mrf.mxu0
  %4494 = vmatprep.mubr.f32.mxu0 %v4401
  %4495 = vmatmul.mubr.f32.gmra.mxu0 %v1880
  %v4496 = vpop.f32.mrf.mxu0
  %v4497 = vadd.f32 0.0, %v4496
  %v4498 = vpop.f32.mrf.mxu0
  %4499 = vmatprep.mubr.f32.mxu0 %v4403
  %4500 = vmatmul.mubr.f32.gmra.mxu0 %v1882
  %v4501 = vpop.f32.mrf.mxu0
  %v4502 = vadd.f32 0.0, %v4501
  %v4503 = vpop.f32.mrf.mxu0
  %4504 = vmatprep.mubr.f32.mxu0 %v4405
  %4505 = vmatmul.mubr.f32.gmra.mxu0 %v1884
  %v4506 = vpop.f32.mrf.mxu0
  %v4507 = vadd.f32 0.0, %v4506
  %v4508 = vpop.f32.mrf.mxu0
  %4509 = vmatprep.mubr.f32.mxu0 %v4407
  %4510 = vmatmul.mubr.f32.gmra.mxu0 %v1886
  %v4511 = vpop.f32.mrf.mxu0
  %v4512 = vadd.f32 0.0, %v4511
  %v4513 = vpop.f32.mrf.mxu0
  %4514 = vmatprep.mubr.f32.mxu0 %v4409
  %4515 = vmatmul.mubr.f32.gmra.mxu0 %v1888
  %v4516 = vpop.f32.mrf.mxu0
  %v4517 = vadd.f32 0.0, %v4516
  %v4518 = vpop.f32.mrf.mxu0
  %4519 = vmatprep.mubr.f32.mxu0 %v4411
  %4520 = vmatmul.mubr.f32.gmra.mxu0 %v1890
  %v4521 = vpop.f32.mrf.mxu0
  %v4522 = vadd.f32 0.0, %v4521
  %v4523 = vpop.f32.mrf.mxu0
  %4524 = vmatprep.mubr.f32.mxu0 %v4413
  %4525 = vmatmul.mubr.f32.gmra.mxu0 %v1892
  %v4526 = vpop.f32.mrf.mxu0
  %v4527 = vadd.f32 0.0, %v4526
  %v4528 = vpop.f32.mrf.mxu0
  %4529 = vmatprep.mubr.f32.mxu0 %v4415
  %4530 = vmatmul.mubr.f32.gmra.mxu0 %v1894
  %v4531 = vpop.f32.mrf.mxu0
  %v4532 = vadd.f32 0.0, %v4531
  %v4533 = vpop.f32.mrf.mxu0
  %4534 = vdwg.mxu0
  %vm4535 = vcmask 72704
  %v4537 = vsel %vm4535, %v4487, 0
  %v4540 = vsel %vm4535, %v4492, 0
  %v4543 = vsel %vm4535, %v4497, 0
  %v4546 = vsel %vm4535, %v4502, 0
  %v4549 = vsel %vm4535, %v4507, 0
  %v4552 = vsel %vm4535, %v4512, 0
  %v4555 = vsel %vm4535, %v4517, 0
  %v4558 = vsel %vm4535, %v4522, 0
  %v4561 = vsel %vm4535, %v4527, 0
  %v4564 = vsel %vm4535, %v4532, 0
  %vm4566 = vcmask 1040384
  %v4568 = vsel %vm4566, %v1908, 0
  %4570 = vmatprep.subr.mxu0 0.0
  %4571 = vmatpush1.msra.mxu0 0.0
  %4572 = vmatprep.subr.mxu0 0.0
  %4573 = vmatpush1.msra.mxu0 0.0
  %4574 = vmatprep.subr.mxu0 0.0
  %4575 = vmatpush1.msra.mxu0 0.0
  %4576 = vmatprep.subr.mxu0 0.0
  %4577 = vmatpush1.msra.mxu0 0.0
  %4578 = vmatprep.subr.mxu0 0.0
  %4579 = vmatpush1.msra.mxu0 0.0
  %4580 = vmatprep.subr.mxu0 0.0
  %4581 = vmatpush1.msra.mxu0 0.0
  %4582 = vmatprep.subr.mxu0 0.0
  %4583 = vmatpush1.msra.mxu0 0.0
  %4584 = vmatprep.subr.mxu0 0.0
  %4585 = vmatpush1.msra.mxu0 0.0
  %4586 = vmatprep.subr.mxu0 0.0
  %4587 = vmatpush1.msra.mxu0 0.0
  %4588 = vmatprep.subr.mxu0 0.0
  %4589 = vmatpush1.msra.mxu0 0.0
  %4590 = vmatprep.subr.mxu0 0.0
  %4591 = vmatpush1.msra.mxu0 0.0
  %4592 = vmatprep.subr.mxu0 0.0
  %4593 = vmatpush1.msra.mxu0 0.0
  %4594 = vmatprep.subr.mxu0 0.0
  %4595 = vmatpush1.msra.mxu0 0.0
  %4596 = vmatprep.subr.mxu0 0.0
  %4597 = vmatpush1.msra.mxu0 0.0
  %4598 = vmatprep.subr.mxu0 0.0
  %4599 = vmatpush1.msra.mxu0 %v4568
  %4600 = vmatprep.subr.mxu0 0.0
  %4601 = vmatpush1.msra.mxu0 %v1907
  %4602 = vmatprep.subr.mxu0 0.0
  %4603 = vmatpush2.msra.mxu0 0.0
  %4604 = vmatprep.subr.mxu0 0.0
  %4605 = vmatpush2.msra.mxu0 0.0
  %4606 = vmatprep.subr.mxu0 0.0
  %4607 = vmatpush2.msra.mxu0 0.0
  %4608 = vmatprep.subr.mxu0 0.0
  %4609 = vmatpush2.msra.mxu0 0.0
  %4610 = vmatprep.subr.mxu0 0.0
  %4611 = vmatpush2.msra.mxu0 0.0
  %4612 = vmatprep.subr.mxu0 0.0
  %4613 = vmatpush2.msra.mxu0 0.0
  %4614 = vmatprep.subr.mxu0 0.0
  %4615 = vmatpush2.msra.mxu0 0.0
  %4616 = vmatprep.subr.mxu0 0.0
  %4617 = vmatpush2.msra.mxu0 0.0
  %4618 = vmatprep.subr.mxu0 0.0
  %4619 = vmatpush2.msra.mxu0 0.0
  %4620 = vmatprep.subr.mxu0 0.0
  %4621 = vmatpush2.msra.mxu0 0.0
  %4622 = vmatprep.subr.mxu0 0.0
  %4623 = vmatpush2.msra.mxu0 0.0
  %4624 = vmatprep.subr.mxu0 0.0
  %4625 = vmatpush2.msra.mxu0 0.0
  %4626 = vmatprep.subr.mxu0 0.0
  %4627 = vmatpush2.msra.mxu0 0.0
  %4628 = vmatprep.subr.mxu0 0.0
  %4629 = vmatpush2.msra.mxu0 0.0
  %4630 = vmatprep.subr.mxu0 0.0
  %4631 = vmatpush2.msra.mxu0 0.0
  %4632 = vmatprep.subr.mxu0 0.0
  %4633 = vmatpush2.msra.mxu0 0.0
  %4634 = vmatprep.mubr.f32.mxu0 0.0
  %4635 = vmatmul.mubr.f32.gmra.mxu0 %v4537
  %v4636 = vpop.f32.mrf.mxu0
  %v4637 = vadd.f32 0.0, %v4636
  %v4638 = vpop.f32.mrf.mxu0
  %4639 = vmatprep.mubr.f32.mxu0 0.0
  %4640 = vmatmul.mubr.f32.gmra.mxu0 %v4540
  %v4641 = vpop.f32.mrf.mxu0
  %v4642 = vadd.f32 0.0, %v4641
  %v4643 = vpop.f32.mrf.mxu0
  %4644 = vmatprep.mubr.f32.mxu0 0.0
  %4645 = vmatmul.mubr.f32.gmra.mxu0 %v4543
  %v4646 = vpop.f32.mrf.mxu0
  %v4647 = vadd.f32 0.0, %v4646
  %v4648 = vpop.f32.mrf.mxu0
  %4649 = vmatprep.mubr.f32.mxu0 0.0
  %4650 = vmatmul.mubr.f32.gmra.mxu0 %v4546
  %v4651 = vpop.f32.mrf.mxu0
  %v4652 = vadd.f32 0.0, %v4651
  %v4653 = vpop.f32.mrf.mxu0
  %4654 = vmatprep.mubr.f32.mxu0 0.0
  %4655 = vmatmul.mubr.f32.gmra.mxu0 %v4549
  %v4656 = vpop.f32.mrf.mxu0
  %v4657 = vadd.f32 0.0, %v4656
  %v4658 = vpop.f32.mrf.mxu0
  %4659 = vmatprep.mubr.f32.mxu0 0.0
  %4660 = vmatmul.mubr.f32.gmra.mxu0 %v4552
  %v4661 = vpop.f32.mrf.mxu0
  %v4662 = vadd.f32 0.0, %v4661
  %v4663 = vpop.f32.mrf.mxu0
  %4664 = vmatprep.mubr.f32.mxu0 0.0
  %4665 = vmatmul.mubr.f32.gmra.mxu0 %v4555
  %v4666 = vpop.f32.mrf.mxu0
  %v4667 = vadd.f32 0.0, %v4666
  %v4668 = vpop.f32.mrf.mxu0
  %4669 = vmatprep.mubr.f32.mxu0 0.0
  %4670 = vmatmul.mubr.f32.gmra.mxu0 %v4558
  %v4671 = vpop.f32.mrf.mxu0
  %v4672 = vadd.f32 0.0, %v4671
  %v4673 = vpop.f32.mrf.mxu0
  %4674 = vmatprep.mubr.f32.mxu0 0.0
  %4675 = vmatmul.mubr.f32.gmra.mxu0 %v4561
  %v4676 = vpop.f32.mrf.mxu0
  %v4677 = vadd.f32 0.0, %v4676
  %v4678 = vpop.f32.mrf.mxu0
  %4679 = vmatprep.mubr.f32.mxu0 0.0
  %4680 = vmatmul.mubr.f32.gmra.mxu0 %v4564
  %v4681 = vpop.f32.mrf.mxu0
  %v4682 = vadd.f32 0.0, %v4681
  %v4683 = vpop.f32.mrf.mxu0
  %4684 = vdwg.mxu0
  %v4685 = vld [vmem:[%s5] sm:$0xff]
  %v4686 = vld [vmem:[%s5 + $0x20] sm:$0xff]
  %v4687 = vld [vmem:[%s5 + $0x40] sm:$0xff]
  %v4688 = vld [vmem:[%s5 + $0x60] sm:$0xff]
  %v4689 = vld [vmem:[%s5 + $0x80] sm:$0xff]
  %v4690 = vld [vmem:[%s5 + $0xa0] sm:$0xff]
  %v4691 = vld [vmem:[%s5 + $0xc0] sm:$0xff]
  %v4692 = vld [vmem:[%s5 + $0xe0] sm:$0xff]
  %v4693 = vld [vmem:[%s5 + $0x100] sm:$0xff]
  %v4694 = vld [vmem:[%s5 + $0x120] sm:$0xff]
  %v4695 = vld [vmem:[%s5 + $0x140] sm:$0xff]
  %v4696 = vld [vmem:[%s5 + $0x160] sm:$0xff]
  %v4697 = vld [vmem:[%s5 + $0x180] sm:$0xff]
  %v4698 = vld [vmem:[%s5 + $0x1a0] sm:$0xff]
  %v4699 = vld [vmem:[%s5 + $0x1c0] sm:$0xff]
  %v4700 = vld [vmem:[%s5 + $0x8] sm:$0xff]
  %v4701 = vld [vmem:[%s5 + $0x28] sm:$0xff]
  %v4702 = vld [vmem:[%s5 + $0x48] sm:$0xff]
  %v4703 = vld [vmem:[%s5 + $0x68] sm:$0xff]
  %v4704 = vld [vmem:[%s5 + $0x88] sm:$0xff]
  %v4705 = vld [vmem:[%s5 + $0xa8] sm:$0xff]
  %v4706 = vld [vmem:[%s5 + $0xc8] sm:$0xff]
  %v4707 = vld [vmem:[%s5 + $0xe8] sm:$0xff]
  %v4708 = vld [vmem:[%s5 + $0x108] sm:$0xff]
  %v4709 = vld [vmem:[%s5 + $0x128] sm:$0xff]
  %v4710 = vld [vmem:[%s5 + $0x148] sm:$0xff]
  %v4711 = vld [vmem:[%s5 + $0x168] sm:$0xff]
  %v4712 = vld [vmem:[%s5 + $0x188] sm:$0xff]
  %v4713 = vld [vmem:[%s5 + $0x1a8] sm:$0xff]
  %v4714 = vld [vmem:[%s5 + $0x1c8] sm:$0xff]
  %4745 = vrot.lane.b32.xlu0 %v4685, 48
  %v4746 = vpop.permute.xlu0 %4745
  %4747 = vrot.lane.b32.xlu0 %v4700, 48
  %v4748 = vpop.permute.xlu0 %4747
  %4749 = vrot.lane.b32.xlu0 %v4686, 48
  %v4750 = vpop.permute.xlu0 %4749
  %4751 = vrot.lane.b32.xlu0 %v4701, 48
  %v4752 = vpop.permute.xlu0 %4751
  %4753 = vrot.lane.b32.xlu0 %v4687, 48
  %v4754 = vpop.permute.xlu0 %4753
  %4755 = vrot.lane.b32.xlu0 %v4702, 48
  %v4756 = vpop.permute.xlu0 %4755
  %4757 = vrot.lane.b32.xlu0 %v4688, 48
  %v4758 = vpop.permute.xlu0 %4757
  %4759 = vrot.lane.b32.xlu0 %v4703, 48
  %v4760 = vpop.permute.xlu0 %4759
  %4761 = vrot.lane.b32.xlu0 %v4689, 48
  %v4762 = vpop.permute.xlu0 %4761
  %4763 = vrot.lane.b32.xlu0 %v4704, 48
  %v4764 = vpop.permute.xlu0 %4763
  %4765 = vrot.lane.b32.xlu0 %v4690, 48
  %v4766 = vpop.permute.xlu0 %4765
  %4767 = vrot.lane.b32.xlu0 %v4705, 48
  %v4768 = vpop.permute.xlu0 %4767
  %4769 = vrot.lane.b32.xlu0 %v4691, 48
  %v4770 = vpop.permute.xlu0 %4769
  %4771 = vrot.lane.b32.xlu0 %v4706, 48
  %v4772 = vpop.permute.xlu0 %4771
  %4773 = vrot.lane.b32.xlu0 %v4692, 48
  %v4774 = vpop.permute.xlu0 %4773
  %4775 = vrot.lane.b32.xlu0 %v4707, 48
  %v4776 = vpop.permute.xlu0 %4775
  %4777 = vrot.lane.b32.xlu0 %v4693, 48
  %v4778 = vpop.permute.xlu0 %4777
  %4779 = vrot.lane.b32.xlu0 %v4708, 48
  %v4780 = vpop.permute.xlu0 %4779
  %4781 = vrot.lane.b32.xlu0 %v4694, 48
  %v4782 = vpop.permute.xlu0 %4781
  %4783 = vrot.lane.b32.xlu0 %v4709, 48
  %v4784 = vpop.permute.xlu0 %4783
  %4785 = vrot.lane.b32.xlu0 %v4695, 48
  %v4786 = vpop.permute.xlu0 %4785
  %4787 = vrot.lane.b32.xlu0 %v4710, 48
  %v4788 = vpop.permute.xlu0 %4787
  %4789 = vrot.lane.b32.xlu0 %v4696, 48
  %v4790 = vpop.permute.xlu0 %4789
  %4791 = vrot.lane.b32.xlu0 %v4711, 48
  %v4792 = vpop.permute.xlu0 %4791
  %4793 = vrot.lane.b32.xlu0 %v4697, 48
  %v4794 = vpop.permute.xlu0 %4793
  %4795 = vrot.lane.b32.xlu0 %v4712, 48
  %v4796 = vpop.permute.xlu0 %4795
  %4797 = vrot.lane.b32.xlu0 %v4698, 48
  %v4798 = vpop.permute.xlu0 %4797
  %4799 = vrot.lane.b32.xlu0 %v4713, 48
  %v4800 = vpop.permute.xlu0 %4799
  %4801 = vrot.lane.b32.xlu0 %v4699, 48
  %v4802 = vpop.permute.xlu0 %4801
  %4803 = vrot.lane.b32.xlu0 %v4714, 48
  %v4804 = vpop.permute.xlu0 %4803
  %vm4805 = vcmask 392192
  %v4806 = vsel %vm4805, %v4746, %v4748
  %v4807 = vsel %vm4805, %v4750, %v4752
  %v4808 = vsel %vm4805, %v4754, %v4756
  %v4809 = vsel %vm4805, %v4758, %v4760
  %v4810 = vsel %vm4805, %v4762, %v4764
  %v4811 = vsel %vm4805, %v4766, %v4768
  %v4812 = vsel %vm4805, %v4770, %v4772
  %v4813 = vsel %vm4805, %v4774, %v4776
  %v4814 = vsel %vm4805, %v4778, %v4780
  %v4815 = vsel %vm4805, %v4782, %v4784
  %v4816 = vsel %vm4805, %v4786, %v4788
  %v4817 = vsel %vm4805, %v4790, %v4792
  %v4818 = vsel %vm4805, %v4794, %v4796
  %v4819 = vsel %vm4805, %v4798, %v4800
  %v4820 = vsel %vm4805, %v4802, %v4804
  %4831 = vrot.lane.b32.xlu0 %v4637, 127
  %v4832 = vpop.permute.xlu0 %4831
  %4833 = vrot.lane.b32.xlu0 %v4642, 127
  %v4834 = vpop.permute.xlu0 %4833
  %4835 = vrot.lane.b32.xlu0 %v4647, 127
  %v4836 = vpop.permute.xlu0 %4835
  %4837 = vrot.lane.b32.xlu0 %v4652, 127
  %v4838 = vpop.permute.xlu0 %4837
  %4839 = vrot.lane.b32.xlu0 %v4657, 127
  %v4840 = vpop.permute.xlu0 %4839
  %4841 = vrot.lane.b32.xlu0 %v4662, 127
  %v4842 = vpop.permute.xlu0 %4841
  %4843 = vrot.lane.b32.xlu0 %v4667, 127
  %v4844 = vpop.permute.xlu0 %4843
  %4845 = vrot.lane.b32.xlu0 %v4672, 127
  %v4846 = vpop.permute.xlu0 %4845
  %4847 = vrot.lane.b32.xlu0 %v4677, 127
  %v4848 = vpop.permute.xlu0 %4847
  %4849 = vrot.lane.b32.xlu0 %v4682, 127
  %v4850 = vpop.permute.xlu0 %4849
  %v4861 = vsel %vm3022, %v4806, 0
  %v4863 = vsel %vm3022, %v4807, 0
  %v4865 = vsel %vm3022, %v4808, 0
  %v4867 = vsel %vm3022, %v4809, 0
  %v4869 = vsel %vm3022, %v4810, 0
  %v4871 = vsel %vm3022, %v4811, 0
  %v4873 = vsel %vm3022, %v4812, 0
  %v4875 = vsel %vm3022, %v4813, 0
  %v4877 = vsel %vm3022, %v4814, 0
  %v4879 = vsel %vm3022, %v4815, 0
  %v4881 = vsel %vm3022, %v4816, 0
  %v4883 = vsel %vm3022, %v4817, 0
  %v4885 = vsel %vm3022, %v4818, 0
  %v4887 = vsel %vm3022, %v4819, 0
  %v4889 = vsel %vm3022, %v4820, 0
  %4891 = vmatprep.subr.mxu0 0.0
  %4892 = vmatpush1.msra.mxu0 0.0
  %4893 = vmatprep.subr.mxu0 0.0
  %4894 = vmatpush1.msra.mxu0 0.0
  %4895 = vmatprep.subr.mxu0 0.0
  %4896 = vmatpush1.msra.mxu0 0.0
  %4897 = vmatprep.subr.mxu0 0.0
  %4898 = vmatpush1.msra.mxu0 0.0
  %4899 = vmatprep.subr.mxu0 0.0
  %4900 = vmatpush1.msra.mxu0 0.0
  %4901 = vmatprep.subr.mxu0 0.0
  %4902 = vmatpush1.msra.mxu0 0.0
  %4903 = vmatprep.subr.mxu0 0.0
  %4904 = vmatpush1.msra.mxu0 %v4850
  %4905 = vmatprep.subr.mxu0 0.0
  %4906 = vmatpush1.msra.mxu0 %v4848
  %4907 = vmatprep.subr.mxu0 0.0
  %4908 = vmatpush1.msra.mxu0 %v4846
  %4909 = vmatprep.subr.mxu0 0.0
  %4910 = vmatpush1.msra.mxu0 %v4844
  %4911 = vmatprep.subr.mxu0 0.0
  %4912 = vmatpush1.msra.mxu0 %v4842
  %4913 = vmatprep.subr.mxu0 0.0
  %4914 = vmatpush1.msra.mxu0 %v4840
  %4915 = vmatprep.subr.mxu0 0.0
  %4916 = vmatpush1.msra.mxu0 %v4838
  %4917 = vmatprep.subr.mxu0 0.0
  %4918 = vmatpush1.msra.mxu0 %v4836
  %4919 = vmatprep.subr.mxu0 0.0
  %4920 = vmatpush1.msra.mxu0 %v4834
  %4921 = vmatprep.subr.mxu0 0.0
  %4922 = vmatpush1.msra.mxu0 %v4832
  %4923 = vmatprep.subr.mxu0 0.0
  %4924 = vmatpush2.msra.mxu0 0.0
  %4925 = vmatprep.subr.mxu0 0.0
  %4926 = vmatpush2.msra.mxu0 0.0
  %4927 = vmatprep.subr.mxu0 0.0
  %4928 = vmatpush2.msra.mxu0 0.0
  %4929 = vmatprep.subr.mxu0 0.0
  %4930 = vmatpush2.msra.mxu0 0.0
  %4931 = vmatprep.subr.mxu0 0.0
  %4932 = vmatpush2.msra.mxu0 0.0
  %4933 = vmatprep.subr.mxu0 0.0
  %4934 = vmatpush2.msra.mxu0 0.0
  %4935 = vmatprep.subr.mxu0 0.0
  %4936 = vmatpush2.msra.mxu0 0.0
  %4937 = vmatprep.subr.mxu0 0.0
  %4938 = vmatpush2.msra.mxu0 0.0
  %4939 = vmatprep.subr.mxu0 0.0
  %4940 = vmatpush2.msra.mxu0 0.0
  %4941 = vmatprep.subr.mxu0 0.0
  %4942 = vmatpush2.msra.mxu0 0.0
  %4943 = vmatprep.subr.mxu0 0.0
  %4944 = vmatpush2.msra.mxu0 0.0
  %4945 = vmatprep.subr.mxu0 0.0
  %4946 = vmatpush2.msra.mxu0 0.0
  %4947 = vmatprep.subr.mxu0 0.0
  %4948 = vmatpush2.msra.mxu0 0.0
  %4949 = vmatprep.subr.mxu0 0.0
  %4950 = vmatpush2.msra.mxu0 0.0
  %4951 = vmatprep.subr.mxu0 0.0
  %4952 = vmatpush2.msra.mxu0 0.0
  %4953 = vmatprep.subr.mxu0 0.0
  %4954 = vmatpush2.msra.mxu0 0.0
  %4955 = vmatprep.mubr.f32.mxu0 0.0
  %4956 = vmatmul.mubr.f32.gmra.mxu0 %v4861
  %v4957 = vpop.f32.mrf.mxu0
  %v4958 = vadd.f32 0.0, %v4957
  %v4959 = vpop.f32.mrf.mxu0
  %4960 = vmatprep.mubr.f32.mxu0 0.0
  %4961 = vmatmul.mubr.f32.gmra.mxu0 %v4863
  %v4962 = vpop.f32.mrf.mxu0
  %v4963 = vadd.f32 0.0, %v4962
  %v4964 = vpop.f32.mrf.mxu0
  %4965 = vmatprep.mubr.f32.mxu0 0.0
  %4966 = vmatmul.mubr.f32.gmra.mxu0 %v4865
  %v4967 = vpop.f32.mrf.mxu0
  %v4968 = vadd.f32 0.0, %v4967
  %v4969 = vpop.f32.mrf.mxu0
  %4970 = vmatprep.mubr.f32.mxu0 0.0
  %4971 = vmatmul.mubr.f32.gmra.mxu0 %v4867
  %v4972 = vpop.f32.mrf.mxu0
  %v4973 = vadd.f32 0.0, %v4972
  %v4974 = vpop.f32.mrf.mxu0
  %4975 = vmatprep.mubr.f32.mxu0 0.0
  %4976 = vmatmul.mubr.f32.gmra.mxu0 %v4869
  %v4977 = vpop.f32.mrf.mxu0
  %v4978 = vadd.f32 0.0, %v4977
  %v4979 = vpop.f32.mrf.mxu0
  %4980 = vmatprep.mubr.f32.mxu0 0.0
  %4981 = vmatmul.mubr.f32.gmra.mxu0 %v4871
  %v4982 = vpop.f32.mrf.mxu0
  %v4983 = vadd.f32 0.0, %v4982
  %v4984 = vpop.f32.mrf.mxu0
  %4985 = vmatprep.mubr.f32.mxu0 0.0
  %4986 = vmatmul.mubr.f32.gmra.mxu0 %v4873
  %v4987 = vpop.f32.mrf.mxu0
  %v4988 = vadd.f32 0.0, %v4987
  %v4989 = vpop.f32.mrf.mxu0
  %4990 = vmatprep.mubr.f32.mxu0 0.0
  %4991 = vmatmul.mubr.f32.gmra.mxu0 %v4875
  %v4992 = vpop.f32.mrf.mxu0
  %v4993 = vadd.f32 0.0, %v4992
  %v4994 = vpop.f32.mrf.mxu0
  %4995 = vmatprep.mubr.f32.mxu0 0.0
  %4996 = vmatmul.mubr.f32.gmra.mxu0 %v4877
  %v4997 = vpop.f32.mrf.mxu0
  %v4998 = vadd.f32 0.0, %v4997
  %v4999 = vpop.f32.mrf.mxu0
  %5000 = vmatprep.mubr.f32.mxu0 0.0
  %5001 = vmatmul.mubr.f32.gmra.mxu0 %v4879
  %v5002 = vpop.f32.mrf.mxu0
  %v5003 = vadd.f32 0.0, %v5002
  %v5004 = vpop.f32.mrf.mxu0
  %5005 = vmatprep.mubr.f32.mxu0 0.0
  %5006 = vmatmul.mubr.f32.gmra.mxu0 %v4881
  %v5007 = vpop.f32.mrf.mxu0
  %v5008 = vadd.f32 0.0, %v5007
  %v5009 = vpop.f32.mrf.mxu0
  %5010 = vmatprep.mubr.f32.mxu0 0.0
  %5011 = vmatmul.mubr.f32.gmra.mxu0 %v4883
  %v5012 = vpop.f32.mrf.mxu0
  %v5013 = vadd.f32 0.0, %v5012
  %v5014 = vpop.f32.mrf.mxu0
  %5015 = vmatprep.mubr.f32.mxu0 0.0
  %5016 = vmatmul.mubr.f32.gmra.mxu0 %v4885
  %v5017 = vpop.f32.mrf.mxu0
  %v5018 = vadd.f32 0.0, %v5017
  %v5019 = vpop.f32.mrf.mxu0
  %5020 = vmatprep.mubr.f32.mxu0 0.0
  %5021 = vmatmul.mubr.f32.gmra.mxu0 %v4887
  %v5022 = vpop.f32.mrf.mxu0
  %v5023 = vadd.f32 0.0, %v5022
  %v5024 = vpop.f32.mrf.mxu0
  %5025 = vmatprep.mubr.f32.mxu0 0.0
  %5026 = vmatmul.mubr.f32.gmra.mxu0 %v4889
  %v5027 = vpop.f32.mrf.mxu0
  %v5028 = vadd.f32 0.0, %v5027
  %v5029 = vpop.f32.mrf.mxu0
  %5030 = vdwg.mxu0
  %v5031 = vsel %vm3022, %v4685, 0
  %v5033 = vsel %vm3022, %v4686, 0
  %v5035 = vsel %vm3022, %v4687, 0
  %v5037 = vsel %vm3022, %v4688, 0
  %v5039 = vsel %vm3022, %v4689, 0
  %v5041 = vsel %vm3022, %v4690, 0
  %v5043 = vsel %vm3022, %v4691, 0
  %v5045 = vsel %vm3022, %v4692, 0
  %v5047 = vsel %vm3022, %v4693, 0
  %v5049 = vsel %vm3022, %v4694, 0
  %v5051 = vsel %vm3022, %v4695, 0
  %v5053 = vsel %vm3022, %v4696, 0
  %v5055 = vsel %vm3022, %v4697, 0
  %v5057 = vsel %vm3022, %v4698, 0
  %v5059 = vsel %vm3022, %v4699, 0
  %5061 = vmatprep.subr.mxu0 0.0
  %5062 = vmatpush1.msra.mxu0 0.0
  %5063 = vmatprep.subr.mxu0 0.0
  %5064 = vmatpush1.msra.mxu0 0.0
  %5065 = vmatprep.subr.mxu0 0.0
  %5066 = vmatpush1.msra.mxu0 0.0
  %5067 = vmatprep.subr.mxu0 0.0
  %5068 = vmatpush1.msra.mxu0 0.0
  %5069 = vmatprep.subr.mxu0 0.0
  %5070 = vmatpush1.msra.mxu0 0.0
  %5071 = vmatprep.subr.mxu0 0.0
  %5072 = vmatpush1.msra.mxu0 0.0
  %5073 = vmatprep.subr.mxu0 0.0
  %5074 = vmatpush1.msra.mxu0 %v4682
  %5075 = vmatprep.subr.mxu0 0.0
  %5076 = vmatpush1.msra.mxu0 %v4677
  %5077 = vmatprep.subr.mxu0 0.0
  %5078 = vmatpush1.msra.mxu0 %v4672
  %5079 = vmatprep.subr.mxu0 0.0
  %5080 = vmatpush1.msra.mxu0 %v4667
  %5081 = vmatprep.subr.mxu0 0.0
  %5082 = vmatpush1.msra.mxu0 %v4662
  %5083 = vmatprep.subr.mxu0 0.0
  %5084 = vmatpush1.msra.mxu0 %v4657
  %5085 = vmatprep.subr.mxu0 0.0
  %5086 = vmatpush1.msra.mxu0 %v4652
  %5087 = vmatprep.subr.mxu0 0.0
  %5088 = vmatpush1.msra.mxu0 %v4647
  %5089 = vmatprep.subr.mxu0 0.0
  %5090 = vmatpush1.msra.mxu0 %v4642
  %5091 = vmatprep.subr.mxu0 0.0
  %5092 = vmatpush1.msra.mxu0 %v4637
  %5093 = vmatprep.subr.mxu0 0.0
  %5094 = vmatpush2.msra.mxu0 0.0
  %5095 = vmatprep.subr.mxu0 0.0
  %5096 = vmatpush2.msra.mxu0 0.0
  %5097 = vmatprep.subr.mxu0 0.0
  %5098 = vmatpush2.msra.mxu0 0.0
  %5099 = vmatprep.subr.mxu0 0.0
  %5100 = vmatpush2.msra.mxu0 0.0
  %5101 = vmatprep.subr.mxu0 0.0
  %5102 = vmatpush2.msra.mxu0 0.0
  %5103 = vmatprep.subr.mxu0 0.0
  %5104 = vmatpush2.msra.mxu0 0.0
  %5105 = vmatprep.subr.mxu0 0.0
  %5106 = vmatpush2.msra.mxu0 0.0
  %5107 = vmatprep.subr.mxu0 0.0
  %5108 = vmatpush2.msra.mxu0 0.0
  %5109 = vmatprep.subr.mxu0 0.0
  %5110 = vmatpush2.msra.mxu0 0.0
  %5111 = vmatprep.subr.mxu0 0.0
  %5112 = vmatpush2.msra.mxu0 0.0
  %5113 = vmatprep.subr.mxu0 0.0
  %5114 = vmatpush2.msra.mxu0 0.0
  %5115 = vmatprep.subr.mxu0 0.0
  %5116 = vmatpush2.msra.mxu0 0.0
  %5117 = vmatprep.subr.mxu0 0.0
  %5118 = vmatpush2.msra.mxu0 0.0
  %5119 = vmatprep.subr.mxu0 0.0
  %5120 = vmatpush2.msra.mxu0 0.0
  %5121 = vmatprep.subr.mxu0 0.0
  %5122 = vmatpush2.msra.mxu0 0.0
  %5123 = vmatprep.subr.mxu0 0.0
  %5124 = vmatpush2.msra.mxu0 0.0
  %5125 = vmatprep.mubr.f32.mxu0 0.0
  %5126 = vmatmul.mubr.f32.gmra.mxu0 %v5031
  %v5127 = vpop.f32.mrf.mxu0
  %v5128 = vadd.f32 %v4958, %v5127
  %v5129 = vpop.f32.mrf.mxu0
  %5130 = vmatprep.mubr.f32.mxu0 0.0
  %5131 = vmatmul.mubr.f32.gmra.mxu0 %v5033
  %v5132 = vpop.f32.mrf.mxu0
  %v5133 = vadd.f32 %v4963, %v5132
  %v5134 = vpop.f32.mrf.mxu0
  %5135 = vmatprep.mubr.f32.mxu0 0.0
  %5136 = vmatmul.mubr.f32.gmra.mxu0 %v5035
  %v5137 = vpop.f32.mrf.mxu0
  %v5138 = vadd.f32 %v4968, %v5137
  %v5139 = vpop.f32.mrf.mxu0
  %5140 = vmatprep.mubr.f32.mxu0 0.0
  %5141 = vmatmul.mubr.f32.gmra.mxu0 %v5037
  %v5142 = vpop.f32.mrf.mxu0
  %v5143 = vadd.f32 %v4973, %v5142
  %v5144 = vpop.f32.mrf.mxu0
  %5145 = vmatprep.mubr.f32.mxu0 0.0
  %5146 = vmatmul.mubr.f32.gmra.mxu0 %v5039
  %v5147 = vpop.f32.mrf.mxu0
  %v5148 = vadd.f32 %v4978, %v5147
  %v5149 = vpop.f32.mrf.mxu0
  %5150 = vmatprep.mubr.f32.mxu0 0.0
  %5151 = vmatmul.mubr.f32.gmra.mxu0 %v5041
  %v5152 = vpop.f32.mrf.mxu0
  %v5153 = vadd.f32 %v4983, %v5152
  %v5154 = vpop.f32.mrf.mxu0
  %5155 = vmatprep.mubr.f32.mxu0 0.0
  %5156 = vmatmul.mubr.f32.gmra.mxu0 %v5043
  %v5157 = vpop.f32.mrf.mxu0
  %v5158 = vadd.f32 %v4988, %v5157
  %v5159 = vpop.f32.mrf.mxu0
  %5160 = vmatprep.mubr.f32.mxu0 0.0
  %5161 = vmatmul.mubr.f32.gmra.mxu0 %v5045
  %v5162 = vpop.f32.mrf.mxu0
  %v5163 = vadd.f32 %v4993, %v5162
  %v5164 = vpop.f32.mrf.mxu0
  %5165 = vmatprep.mubr.f32.mxu0 0.0
  %5166 = vmatmul.mubr.f32.gmra.mxu0 %v5047
  %v5167 = vpop.f32.mrf.mxu0
  %v5168 = vadd.f32 %v4998, %v5167
  %v5169 = vpop.f32.mrf.mxu0
  %5170 = vmatprep.mubr.f32.mxu0 0.0
  %5171 = vmatmul.mubr.f32.gmra.mxu0 %v5049
  %v5172 = vpop.f32.mrf.mxu0
  %v5173 = vadd.f32 %v5003, %v5172
  %v5174 = vpop.f32.mrf.mxu0
  %5175 = vmatprep.mubr.f32.mxu0 0.0
  %5176 = vmatmul.mubr.f32.gmra.mxu0 %v5051
  %v5177 = vpop.f32.mrf.mxu0
  %v5178 = vadd.f32 %v5008, %v5177
  %v5179 = vpop.f32.mrf.mxu0
  %5180 = vmatprep.mubr.f32.mxu0 0.0
  %5181 = vmatmul.mubr.f32.gmra.mxu0 %v5053
  %v5182 = vpop.f32.mrf.mxu0
  %v5183 = vadd.f32 %v5013, %v5182
  %v5184 = vpop.f32.mrf.mxu0
  %5185 = vmatprep.mubr.f32.mxu0 0.0
  %5186 = vmatmul.mubr.f32.gmra.mxu0 %v5055
  %v5187 = vpop.f32.mrf.mxu0
  %v5188 = vadd.f32 %v5018, %v5187
  %v5189 = vpop.f32.mrf.mxu0
  %5190 = vmatprep.mubr.f32.mxu0 0.0
  %5191 = vmatmul.mubr.f32.gmra.mxu0 %v5057
  %v5192 = vpop.f32.mrf.mxu0
  %v5193 = vadd.f32 %v5023, %v5192
  %v5194 = vpop.f32.mrf.mxu0
  %5195 = vmatprep.mubr.f32.mxu0 0.0
  %5196 = vmatmul.mubr.f32.gmra.mxu0 %v5059
  %v5197 = vpop.f32.mrf.mxu0
  %v5198 = vadd.f32 %v5028, %v5197
  %v5199 = vpop.f32.mrf.mxu0
  %5200 = vdwg.mxu0
  %5201 = vrot.lane.b32.xlu0 %v4700, 96
  %v5202 = vpop.permute.xlu0 %5201
  %5203 = vrot.lane.b32.xlu0 %v4701, 96
  %v5204 = vpop.permute.xlu0 %5203
  %5205 = vrot.lane.b32.xlu0 %v4702, 96
  %v5206 = vpop.permute.xlu0 %5205
  %5207 = vrot.lane.b32.xlu0 %v4703, 96
  %v5208 = vpop.permute.xlu0 %5207
  %5209 = vrot.lane.b32.xlu0 %v4704, 96
  %v5210 = vpop.permute.xlu0 %5209
  %5211 = vrot.lane.b32.xlu0 %v4705, 96
  %v5212 = vpop.permute.xlu0 %5211
  %5213 = vrot.lane.b32.xlu0 %v4706, 96
  %v5214 = vpop.permute.xlu0 %5213
  %5215 = vrot.lane.b32.xlu0 %v4707, 96
  %v5216 = vpop.permute.xlu0 %5215
  %5217 = vrot.lane.b32.xlu0 %v4708, 96
  %v5218 = vpop.permute.xlu0 %5217
  %5219 = vrot.lane.b32.xlu0 %v4709, 96
  %v5220 = vpop.permute.xlu0 %5219
  %5221 = vrot.lane.b32.xlu0 %v4710, 96
  %v5222 = vpop.permute.xlu0 %5221
  %5223 = vrot.lane.b32.xlu0 %v4711, 96
  %v5224 = vpop.permute.xlu0 %5223
  %5225 = vrot.lane.b32.xlu0 %v4712, 96
  %v5226 = vpop.permute.xlu0 %5225
  %5227 = vrot.lane.b32.xlu0 %v4713, 96
  %v5228 = vpop.permute.xlu0 %5227
  %5229 = vrot.lane.b32.xlu0 %v4714, 96
  %v5230 = vpop.permute.xlu0 %5229
  %5231 = vrot.lane.b32.xlu0 %v4637, 126
  %v5232 = vpop.permute.xlu0 %5231
  %5233 = vrot.lane.b32.xlu0 %v4642, 126
  %v5234 = vpop.permute.xlu0 %5233
  %5235 = vrot.lane.b32.xlu0 %v4647, 126
  %v5236 = vpop.permute.xlu0 %5235
  %5237 = vrot.lane.b32.xlu0 %v4652, 126
  %v5238 = vpop.permute.xlu0 %5237
  %5239 = vrot.lane.b32.xlu0 %v4657, 126
  %v5240 = vpop.permute.xlu0 %5239
  %5241 = vrot.lane.b32.xlu0 %v4662, 126
  %v5242 = vpop.permute.xlu0 %5241
  %5243 = vrot.lane.b32.xlu0 %v4667, 126
  %v5244 = vpop.permute.xlu0 %5243
  %5245 = vrot.lane.b32.xlu0 %v4672, 126
  %v5246 = vpop.permute.xlu0 %5245
  %5247 = vrot.lane.b32.xlu0 %v4677, 126
  %v5248 = vpop.permute.xlu0 %5247
  %5249 = vrot.lane.b32.xlu0 %v4682, 126
  %v5250 = vpop.permute.xlu0 %5249
  %v5261 = vsel %vm3022, %v5202, 0
  %v5263 = vsel %vm3022, %v5204, 0
  %v5265 = vsel %vm3022, %v5206, 0
  %v5267 = vsel %vm3022, %v5208, 0
  %v5269 = vsel %vm3022, %v5210, 0
  %v5271 = vsel %vm3022, %v5212, 0
  %v5273 = vsel %vm3022, %v5214, 0
  %v5275 = vsel %vm3022, %v5216, 0
  %v5277 = vsel %vm3022, %v5218, 0
  %v5279 = vsel %vm3022, %v5220, 0
  %v5281 = vsel %vm3022, %v5222, 0
  %v5283 = vsel %vm3022, %v5224, 0
  %v5285 = vsel %vm3022, %v5226, 0
  %v5287 = vsel %vm3022, %v5228, 0
  %v5289 = vsel %vm3022, %v5230, 0
  %5291 = vmatprep.subr.mxu0 0.0
  %5292 = vmatpush1.msra.mxu0 0.0
  %5293 = vmatprep.subr.mxu0 0.0
  %5294 = vmatpush1.msra.mxu0 0.0
  %5295 = vmatprep.subr.mxu0 0.0
  %5296 = vmatpush1.msra.mxu0 0.0
  %5297 = vmatprep.subr.mxu0 0.0
  %5298 = vmatpush1.msra.mxu0 0.0
  %5299 = vmatprep.subr.mxu0 0.0
  %5300 = vmatpush1.msra.mxu0 0.0
  %5301 = vmatprep.subr.mxu0 0.0
  %5302 = vmatpush1.msra.mxu0 0.0
  %5303 = vmatprep.subr.mxu0 0.0
  %5304 = vmatpush1.msra.mxu0 %v5250
  %5305 = vmatprep.subr.mxu0 0.0
  %5306 = vmatpush1.msra.mxu0 %v5248
  %5307 = vmatprep.subr.mxu0 0.0
  %5308 = vmatpush1.msra.mxu0 %v5246
  %5309 = vmatprep.subr.mxu0 0.0
  %5310 = vmatpush1.msra.mxu0 %v5244
  %5311 = vmatprep.subr.mxu0 0.0
  %5312 = vmatpush1.msra.mxu0 %v5242
  %5313 = vmatprep.subr.mxu0 0.0
  %5314 = vmatpush1.msra.mxu0 %v5240
  %5315 = vmatprep.subr.mxu0 0.0
  %5316 = vmatpush1.msra.mxu0 %v5238
  %5317 = vmatprep.subr.mxu0 0.0
  %5318 = vmatpush1.msra.mxu0 %v5236
  %5319 = vmatprep.subr.mxu0 0.0
  %5320 = vmatpush1.msra.mxu0 %v5234
  %5321 = vmatprep.subr.mxu0 0.0
  %5322 = vmatpush1.msra.mxu0 %v5232
  %5323 = vmatprep.subr.mxu0 0.0
  %5324 = vmatpush2.msra.mxu0 0.0
  %5325 = vmatprep.subr.mxu0 0.0
  %5326 = vmatpush2.msra.mxu0 0.0
  %5327 = vmatprep.subr.mxu0 0.0
  %5328 = vmatpush2.msra.mxu0 0.0
  %5329 = vmatprep.subr.mxu0 0.0
  %5330 = vmatpush2.msra.mxu0 0.0
  %5331 = vmatprep.subr.mxu0 0.0
  %5332 = vmatpush2.msra.mxu0 0.0
  %5333 = vmatprep.subr.mxu0 0.0
  %5334 = vmatpush2.msra.mxu0 0.0
  %5335 = vmatprep.subr.mxu0 0.0
  %5336 = vmatpush2.msra.mxu0 0.0
  %5337 = vmatprep.subr.mxu0 0.0
  %5338 = vmatpush2.msra.mxu0 0.0
  %5339 = vmatprep.subr.mxu0 0.0
  %5340 = vmatpush2.msra.mxu0 0.0
  %5341 = vmatprep.subr.mxu0 0.0
  %5342 = vmatpush2.msra.mxu0 0.0
  %5343 = vmatprep.subr.mxu0 0.0
  %5344 = vmatpush2.msra.mxu0 0.0
  %5345 = vmatprep.subr.mxu0 0.0
  %5346 = vmatpush2.msra.mxu0 0.0
  %5347 = vmatprep.subr.mxu0 0.0
  %5348 = vmatpush2.msra.mxu0 0.0
  %5349 = vmatprep.subr.mxu0 0.0
  %5350 = vmatpush2.msra.mxu0 0.0
  %5351 = vmatprep.subr.mxu0 0.0
  %5352 = vmatpush2.msra.mxu0 0.0
  %5353 = vmatprep.subr.mxu0 0.0
  %5354 = vmatpush2.msra.mxu0 0.0
  %5355 = vmatprep.mubr.f32.mxu0 0.0
  %5356 = vmatmul.mubr.f32.gmra.mxu0 %v5261
  %v5357 = vpop.f32.mrf.mxu0
  %v5358 = vadd.f32 0.0, %v5357
  %v5359 = vpop.f32.mrf.mxu0
  %5360 = vmatprep.mubr.f32.mxu0 0.0
  %5361 = vmatmul.mubr.f32.gmra.mxu0 %v5263
  %v5362 = vpop.f32.mrf.mxu0
  %v5363 = vadd.f32 0.0, %v5362
  %v5364 = vpop.f32.mrf.mxu0
  %5365 = vmatprep.mubr.f32.mxu0 0.0
  %5366 = vmatmul.mubr.f32.gmra.mxu0 %v5265
  %v5367 = vpop.f32.mrf.mxu0
  %v5368 = vadd.f32 0.0, %v5367
  %v5369 = vpop.f32.mrf.mxu0
  %5370 = vmatprep.mubr.f32.mxu0 0.0
  %5371 = vmatmul.mubr.f32.gmra.mxu0 %v5267
  %v5372 = vpop.f32.mrf.mxu0
  %v5373 = vadd.f32 0.0, %v5372
  %v5374 = vpop.f32.mrf.mxu0
  %5375 = vmatprep.mubr.f32.mxu0 0.0
  %5376 = vmatmul.mubr.f32.gmra.mxu0 %v5269
  %v5377 = vpop.f32.mrf.mxu0
  %v5378 = vadd.f32 0.0, %v5377
  %v5379 = vpop.f32.mrf.mxu0
  %5380 = vmatprep.mubr.f32.mxu0 0.0
  %5381 = vmatmul.mubr.f32.gmra.mxu0 %v5271
  %v5382 = vpop.f32.mrf.mxu0
  %v5383 = vadd.f32 0.0, %v5382
  %v5384 = vpop.f32.mrf.mxu0
  %5385 = vmatprep.mubr.f32.mxu0 0.0
  %5386 = vmatmul.mubr.f32.gmra.mxu0 %v5273
  %v5387 = vpop.f32.mrf.mxu0
  %v5388 = vadd.f32 0.0, %v5387
  %v5389 = vpop.f32.mrf.mxu0
  %5390 = vmatprep.mubr.f32.mxu0 0.0
  %5391 = vmatmul.mubr.f32.gmra.mxu0 %v5275
  %v5392 = vpop.f32.mrf.mxu0
  %v5393 = vadd.f32 0.0, %v5392
  %v5394 = vpop.f32.mrf.mxu0
  %5395 = vmatprep.mubr.f32.mxu0 0.0
  %5396 = vmatmul.mubr.f32.gmra.mxu0 %v5277
  %v5397 = vpop.f32.mrf.mxu0
  %v5398 = vadd.f32 0.0, %v5397
  %v5399 = vpop.f32.mrf.mxu0
  %5400 = vmatprep.mubr.f32.mxu0 0.0
  %5401 = vmatmul.mubr.f32.gmra.mxu0 %v5279
  %v5402 = vpop.f32.mrf.mxu0
  %v5403 = vadd.f32 0.0, %v5402
  %v5404 = vpop.f32.mrf.mxu0
  %5405 = vmatprep.mubr.f32.mxu0 0.0
  %5406 = vmatmul.mubr.f32.gmra.mxu0 %v5281
  %v5407 = vpop.f32.mrf.mxu0
  %v5408 = vadd.f32 0.0, %v5407
  %v5409 = vpop.f32.mrf.mxu0
  %5410 = vmatprep.mubr.f32.mxu0 0.0
  %5411 = vmatmul.mubr.f32.gmra.mxu0 %v5283
  %v5412 = vpop.f32.mrf.mxu0
  %v5413 = vadd.f32 0.0, %v5412
  %v5414 = vpop.f32.mrf.mxu0
  %5415 = vmatprep.mubr.f32.mxu0 0.0
  %5416 = vmatmul.mubr.f32.gmra.mxu0 %v5285
  %v5417 = vpop.f32.mrf.mxu0
  %v5418 = vadd.f32 0.0, %v5417
  %v5419 = vpop.f32.mrf.mxu0
  %5420 = vmatprep.mubr.f32.mxu0 0.0
  %5421 = vmatmul.mubr.f32.gmra.mxu0 %v5287
  %v5422 = vpop.f32.mrf.mxu0
  %v5423 = vadd.f32 0.0, %v5422
  %v5424 = vpop.f32.mrf.mxu0
  %5425 = vmatprep.mubr.f32.mxu0 0.0
  %5426 = vmatmul.mubr.f32.gmra.mxu0 %v5289
  %v5427 = vpop.f32.mrf.mxu0
  %v5428 = vadd.f32 0.0, %v5427
  %v5429 = vpop.f32.mrf.mxu0
  %5430 = vdwg.mxu0
  %v5431 = vadd.f32 %v5128, %v5358
  %v5432 = vadd.f32 %v5133, %v5363
  %v5433 = vadd.f32 %v5138, %v5368
  %v5434 = vadd.f32 %v5143, %v5373
  %v5435 = vadd.f32 %v5148, %v5378
  %v5436 = vadd.f32 %v5153, %v5383
  %v5437 = vadd.f32 %v5158, %v5388
  %v5438 = vadd.f32 %v5163, %v5393
  %v5439 = vadd.f32 %v5168, %v5398
  %v5440 = vadd.f32 %v5173, %v5403
  %v5441 = vadd.f32 %v5178, %v5408
  %v5442 = vadd.f32 %v5183, %v5413
  %v5443 = vadd.f32 %v5188, %v5418
  %v5444 = vadd.f32 %v5193, %v5423
  %v5445 = vadd.f32 %v5198, %v5428
  %v5446 = vld [vmem:[%s5 + $0x8] sm:$0xff]
  %v5447 = vld [vmem:[%s5 + $0x10] sm:$0xff]
  %v5448 = vld [vmem:[%s5 + $0x28] sm:$0xff]
  %v5449 = vld [vmem:[%s5 + $0x30] sm:$0xff]
  %v5450 = vld [vmem:[%s5 + $0x48] sm:$0xff]
  %v5451 = vld [vmem:[%s5 + $0x50] sm:$0xff]
  %v5452 = vld [vmem:[%s5 + $0x68] sm:$0xff]
  %v5453 = vld [vmem:[%s5 + $0x70] sm:$0xff]
  %v5454 = vld [vmem:[%s5 + $0x88] sm:$0xff]
  %v5455 = vld [vmem:[%s5 + $0x90] sm:$0xff]
  %v5456 = vld [vmem:[%s5 + $0xa8] sm:$0xff]
  %v5457 = vld [vmem:[%s5 + $0xb0] sm:$0xff]
  %v5458 = vld [vmem:[%s5 + $0xc8] sm:$0xff]
  %v5459 = vld [vmem:[%s5 + $0xd0] sm:$0xff]
  %v5460 = vld [vmem:[%s5 + $0xe8] sm:$0xff]
  %v5461 = vld [vmem:[%s5 + $0xf0] sm:$0xff]
  %v5462 = vld [vmem:[%s5 + $0x108] sm:$0xff]
  %v5463 = vld [vmem:[%s5 + $0x110] sm:$0xff]
  %v5464 = vld [vmem:[%s5 + $0x128] sm:$0xff]
  %v5465 = vld [vmem:[%s5 + $0x130] sm:$0xff]
  %v5466 = vld [vmem:[%s5 + $0x148] sm:$0xff]
  %v5467 = vld [vmem:[%s5 + $0x150] sm:$0xff]
  %v5468 = vld [vmem:[%s5 + $0x168] sm:$0xff]
  %v5469 = vld [vmem:[%s5 + $0x170] sm:$0xff]
  %v5470 = vld [vmem:[%s5 + $0x188] sm:$0xff]
  %v5471 = vld [vmem:[%s5 + $0x190] sm:$0xff]
  %v5472 = vld [vmem:[%s5 + $0x1a8] sm:$0xff]
  %v5473 = vld [vmem:[%s5 + $0x1b0] sm:$0xff]
  %v5474 = vld [vmem:[%s5 + $0x1c8] sm:$0xff]
  %v5475 = vld [vmem:[%s5 + $0x1d0] sm:$0xff]
  %5506 = vrot.lane.b32.xlu0 %v5446, 16
  %v5507 = vpop.permute.xlu0 %5506
  %5508 = vrot.lane.b32.xlu0 %v5447, 16
  %v5509 = vpop.permute.xlu0 %5508
  %5510 = vrot.lane.b32.xlu0 %v5448, 16
  %v5511 = vpop.permute.xlu0 %5510
  %5512 = vrot.lane.b32.xlu0 %v5449, 16
  %v5513 = vpop.permute.xlu0 %5512
  %5514 = vrot.lane.b32.xlu0 %v5450, 16
  %v5515 = vpop.permute.xlu0 %5514
  %5516 = vrot.lane.b32.xlu0 %v5451, 16
  %v5517 = vpop.permute.xlu0 %5516
  %5518 = vrot.lane.b32.xlu0 %v5452, 16
  %v5519 = vpop.permute.xlu0 %5518
  %5520 = vrot.lane.b32.xlu0 %v5453, 16
  %v5521 = vpop.permute.xlu0 %5520
  %5522 = vrot.lane.b32.xlu0 %v5454, 16
  %v5523 = vpop.permute.xlu0 %5522
  %5524 = vrot.lane.b32.xlu0 %v5455, 16
  %v5525 = vpop.permute.xlu0 %5524
  %5526 = vrot.lane.b32.xlu0 %v5456, 16
  %v5527 = vpop.permute.xlu0 %5526
  %5528 = vrot.lane.b32.xlu0 %v5457, 16
  %v5529 = vpop.permute.xlu0 %5528
  %5530 = vrot.lane.b32.xlu0 %v5458, 16
  %v5531 = vpop.permute.xlu0 %5530
  %5532 = vrot.lane.b32.xlu0 %v5459, 16
  %v5533 = vpop.permute.xlu0 %5532
  %5534 = vrot.lane.b32.xlu0 %v5460, 16
  %v5535 = vpop.permute.xlu0 %5534
  %5536 = vrot.lane.b32.xlu0 %v5461, 16
  %v5537 = vpop.permute.xlu0 %5536
  %5538 = vrot.lane.b32.xlu0 %v5462, 16
  %v5539 = vpop.permute.xlu0 %5538
  %5540 = vrot.lane.b32.xlu0 %v5463, 16
  %v5541 = vpop.permute.xlu0 %5540
  %5542 = vrot.lane.b32.xlu0 %v5464, 16
  %v5543 = vpop.permute.xlu0 %5542
  %5544 = vrot.lane.b32.xlu0 %v5465, 16
  %v5545 = vpop.permute.xlu0 %5544
  %5546 = vrot.lane.b32.xlu0 %v5466, 16
  %v5547 = vpop.permute.xlu0 %5546
  %5548 = vrot.lane.b32.xlu0 %v5467, 16
  %v5549 = vpop.permute.xlu0 %5548
  %5550 = vrot.lane.b32.xlu0 %v5468, 16
  %v5551 = vpop.permute.xlu0 %5550
  %5552 = vrot.lane.b32.xlu0 %v5469, 16
  %v5553 = vpop.permute.xlu0 %5552
  %5554 = vrot.lane.b32.xlu0 %v5470, 16
  %v5555 = vpop.permute.xlu0 %5554
  %5556 = vrot.lane.b32.xlu0 %v5471, 16
  %v5557 = vpop.permute.xlu0 %5556
  %5558 = vrot.lane.b32.xlu0 %v5472, 16
  %v5559 = vpop.permute.xlu0 %5558
  %5560 = vrot.lane.b32.xlu0 %v5473, 16
  %v5561 = vpop.permute.xlu0 %5560
  %5562 = vrot.lane.b32.xlu0 %v5474, 16
  %v5563 = vpop.permute.xlu0 %5562
  %5564 = vrot.lane.b32.xlu0 %v5475, 16
  %v5565 = vpop.permute.xlu0 %5564
  %vm5566 = vcmask 130048
  %v5567 = vsel %vm5566, %v5507, %v5509
  %v5568 = vsel %vm5566, %v5511, %v5513
  %v5569 = vsel %vm5566, %v5515, %v5517
  %v5570 = vsel %vm5566, %v5519, %v5521
  %v5571 = vsel %vm5566, %v5523, %v5525
  %v5572 = vsel %vm5566, %v5527, %v5529
  %v5573 = vsel %vm5566, %v5531, %v5533
  %v5574 = vsel %vm5566, %v5535, %v5537
  %v5575 = vsel %vm5566, %v5539, %v5541
  %v5576 = vsel %vm5566, %v5543, %v5545
  %v5577 = vsel %vm5566, %v5547, %v5549
  %v5578 = vsel %vm5566, %v5551, %v5553
  %v5579 = vsel %vm5566, %v5555, %v5557
  %v5580 = vsel %vm5566, %v5559, %v5561
  %v5581 = vsel %vm5566, %v5563, %v5565
  %5582 = vrot.lane.b32.xlu0 %v4637, 125
  %v5583 = vpop.permute.xlu0 %5582
  %5584 = vrot.lane.b32.xlu0 %v4642, 125
  %v5585 = vpop.permute.xlu0 %5584
  %5586 = vrot.lane.b32.xlu0 %v4647, 125
  %v5587 = vpop.permute.xlu0 %5586
  %5588 = vrot.lane.b32.xlu0 %v4652, 125
  %v5589 = vpop.permute.xlu0 %5588
  %5590 = vrot.lane.b32.xlu0 %v4657, 125
  %v5591 = vpop.permute.xlu0 %5590
  %5592 = vrot.lane.b32.xlu0 %v4662, 125
  %v5593 = vpop.permute.xlu0 %5592
  %5594 = vrot.lane.b32.xlu0 %v4667, 125
  %v5595 = vpop.permute.xlu0 %5594
  %5596 = vrot.lane.b32.xlu0 %v4672, 125
  %v5597 = vpop.permute.xlu0 %5596
  %5598 = vrot.lane.b32.xlu0 %v4677, 125
  %v5599 = vpop.permute.xlu0 %5598
  %5600 = vrot.lane.b32.xlu0 %v4682, 125
  %v5601 = vpop.permute.xlu0 %5600
  %v5612 = vsel %vm3022, %v5567, 0
  %v5614 = vsel %vm3022, %v5568, 0
  %v5616 = vsel %vm3022, %v5569, 0
  %v5618 = vsel %vm3022, %v5570, 0
  %v5620 = vsel %vm3022, %v5571, 0
  %v5622 = vsel %vm3022, %v5572, 0
  %v5624 = vsel %vm3022, %v5573, 0
  %v5626 = vsel %vm3022, %v5574, 0
  %v5628 = vsel %vm3022, %v5575, 0
  %v5630 = vsel %vm3022, %v5576, 0
  %v5632 = vsel %vm3022, %v5577, 0
  %v5634 = vsel %vm3022, %v5578, 0
  %v5636 = vsel %vm3022, %v5579, 0
  %v5638 = vsel %vm3022, %v5580, 0
  %v5640 = vsel %vm3022, %v5581, 0
  %5642 = vmatprep.subr.mxu0 0.0
  %5643 = vmatpush1.msra.mxu0 0.0
  %5644 = vmatprep.subr.mxu0 0.0
  %5645 = vmatpush1.msra.mxu0 0.0
  %5646 = vmatprep.subr.mxu0 0.0
  %5647 = vmatpush1.msra.mxu0 0.0
  %5648 = vmatprep.subr.mxu0 0.0
  %5649 = vmatpush1.msra.mxu0 0.0
  %5650 = vmatprep.subr.mxu0 0.0
  %5651 = vmatpush1.msra.mxu0 0.0
  %5652 = vmatprep.subr.mxu0 0.0
  %5653 = vmatpush1.msra.mxu0 0.0
  %5654 = vmatprep.subr.mxu0 0.0
  %5655 = vmatpush1.msra.mxu0 %v5601
  %5656 = vmatprep.subr.mxu0 0.0
  %5657 = vmatpush1.msra.mxu0 %v5599
  %5658 = vmatprep.subr.mxu0 0.0
  %5659 = vmatpush1.msra.mxu0 %v5597
  %5660 = vmatprep.subr.mxu0 0.0
  %5661 = vmatpush1.msra.mxu0 %v5595
  %5662 = vmatprep.subr.mxu0 0.0
  %5663 = vmatpush1.msra.mxu0 %v5593
  %5664 = vmatprep.subr.mxu0 0.0
  %5665 = vmatpush1.msra.mxu0 %v5591
  %5666 = vmatprep.subr.mxu0 0.0
  %5667 = vmatpush1.msra.mxu0 %v5589
  %5668 = vmatprep.subr.mxu0 0.0
  %5669 = vmatpush1.msra.mxu0 %v5587
  %5670 = vmatprep.subr.mxu0 0.0
  %5671 = vmatpush1.msra.mxu0 %v5585
  %5672 = vmatprep.subr.mxu0 0.0
  %5673 = vmatpush1.msra.mxu0 %v5583
  %5674 = vmatprep.subr.mxu0 0.0
  %5675 = vmatpush2.msra.mxu0 0.0
  %5676 = vmatprep.subr.mxu0 0.0
  %5677 = vmatpush2.msra.mxu0 0.0
  %5678 = vmatprep.subr.mxu0 0.0
  %5679 = vmatpush2.msra.mxu0 0.0
  %5680 = vmatprep.subr.mxu0 0.0
  %5681 = vmatpush2.msra.mxu0 0.0
  %5682 = vmatprep.subr.mxu0 0.0
  %5683 = vmatpush2.msra.mxu0 0.0
  %5684 = vmatprep.subr.mxu0 0.0
  %5685 = vmatpush2.msra.mxu0 0.0
  %5686 = vmatprep.subr.mxu0 0.0
  %5687 = vmatpush2.msra.mxu0 0.0
  %5688 = vmatprep.subr.mxu0 0.0
  %5689 = vmatpush2.msra.mxu0 0.0
  %5690 = vmatprep.subr.mxu0 0.0
  %5691 = vmatpush2.msra.mxu0 0.0
  %5692 = vmatprep.subr.mxu0 0.0
  %5693 = vmatpush2.msra.mxu0 0.0
  %5694 = vmatprep.subr.mxu0 0.0
  %5695 = vmatpush2.msra.mxu0 0.0
  %5696 = vmatprep.subr.mxu0 0.0
  %5697 = vmatpush2.msra.mxu0 0.0
  %5698 = vmatprep.subr.mxu0 0.0
  %5699 = vmatpush2.msra.mxu0 0.0
  %5700 = vmatprep.subr.mxu0 0.0
  %5701 = vmatpush2.msra.mxu0 0.0
  %5702 = vmatprep.subr.mxu0 0.0
  %5703 = vmatpush2.msra.mxu0 0.0
  %5704 = vmatprep.subr.mxu0 0.0
  %5705 = vmatpush2.msra.mxu0 0.0
  %5706 = vmatprep.mubr.f32.mxu0 0.0
  %5707 = vmatmul.mubr.f32.gmra.mxu0 %v5612
  %v5708 = vpop.f32.mrf.mxu0
  %v5709 = vadd.f32 0.0, %v5708
  %v5710 = vpop.f32.mrf.mxu0
  %5711 = vmatprep.mubr.f32.mxu0 0.0
  %5712 = vmatmul.mubr.f32.gmra.mxu0 %v5614
  %v5713 = vpop.f32.mrf.mxu0
  %v5714 = vadd.f32 0.0, %v5713
  %v5715 = vpop.f32.mrf.mxu0
  %5716 = vmatprep.mubr.f32.mxu0 0.0
  %5717 = vmatmul.mubr.f32.gmra.mxu0 %v5616
  %v5718 = vpop.f32.mrf.mxu0
  %v5719 = vadd.f32 0.0, %v5718
  %v5720 = vpop.f32.mrf.mxu0
  %5721 = vmatprep.mubr.f32.mxu0 0.0
  %5722 = vmatmul.mubr.f32.gmra.mxu0 %v5618
  %v5723 = vpop.f32.mrf.mxu0
  %v5724 = vadd.f32 0.0, %v5723
  %v5725 = vpop.f32.mrf.mxu0
  %5726 = vmatprep.mubr.f32.mxu0 0.0
  %5727 = vmatmul.mubr.f32.gmra.mxu0 %v5620
  %v5728 = vpop.f32.mrf.mxu0
  %v5729 = vadd.f32 0.0, %v5728
  %v5730 = vpop.f32.mrf.mxu0
  %5731 = vmatprep.mubr.f32.mxu0 0.0
  %5732 = vmatmul.mubr.f32.gmra.mxu0 %v5622
  %v5733 = vpop.f32.mrf.mxu0
  %v5734 = vadd.f32 0.0, %v5733
  %v5735 = vpop.f32.mrf.mxu0
  %5736 = vmatprep.mubr.f32.mxu0 0.0
  %5737 = vmatmul.mubr.f32.gmra.mxu0 %v5624
  %v5738 = vpop.f32.mrf.mxu0
  %v5739 = vadd.f32 0.0, %v5738
  %v5740 = vpop.f32.mrf.mxu0
  %5741 = vmatprep.mubr.f32.mxu0 0.0
  %5742 = vmatmul.mubr.f32.gmra.mxu0 %v5626
  %v5743 = vpop.f32.mrf.mxu0
  %v5744 = vadd.f32 0.0, %v5743
  %v5745 = vpop.f32.mrf.mxu0
  %5746 = vmatprep.mubr.f32.mxu0 0.0
  %5747 = vmatmul.mubr.f32.gmra.mxu0 %v5628
  %v5748 = vpop.f32.mrf.mxu0
  %v5749 = vadd.f32 0.0, %v5748
  %v5750 = vpop.f32.mrf.mxu0
  %5751 = vmatprep.mubr.f32.mxu0 0.0
  %5752 = vmatmul.mubr.f32.gmra.mxu0 %v5630
  %v5753 = vpop.f32.mrf.mxu0
  %v5754 = vadd.f32 0.0, %v5753
  %v5755 = vpop.f32.mrf.mxu0
  %5756 = vmatprep.mubr.f32.mxu0 0.0
  %5757 = vmatmul.mubr.f32.gmra.mxu0 %v5632
  %v5758 = vpop.f32.mrf.mxu0
  %v5759 = vadd.f32 0.0, %v5758
  %v5760 = vpop.f32.mrf.mxu0
  %5761 = vmatprep.mubr.f32.mxu0 0.0
  %5762 = vmatmul.mubr.f32.gmra.mxu0 %v5634
  %v5763 = vpop.f32.mrf.mxu0
  %v5764 = vadd.f32 0.0, %v5763
  %v5765 = vpop.f32.mrf.mxu0
  %5766 = vmatprep.mubr.f32.mxu0 0.0
  %5767 = vmatmul.mubr.f32.gmra.mxu0 %v5636
  %v5768 = vpop.f32.mrf.mxu0
  %v5769 = vadd.f32 0.0, %v5768
  %v5770 = vpop.f32.mrf.mxu0
  %5771 = vmatprep.mubr.f32.mxu0 0.0
  %5772 = vmatmul.mubr.f32.gmra.mxu0 %v5638
  %v5773 = vpop.f32.mrf.mxu0
  %v5774 = vadd.f32 0.0, %v5773
  %v5775 = vpop.f32.mrf.mxu0
  %5776 = vmatprep.mubr.f32.mxu0 0.0
  %5777 = vmatmul.mubr.f32.gmra.mxu0 %v5640
  %v5778 = vpop.f32.mrf.mxu0
  %v5779 = vadd.f32 0.0, %v5778
  %v5780 = vpop.f32.mrf.mxu0
  %5781 = vdwg.mxu0
  %v5782 = vadd.f32 %v5431, %v5709
  %v5783 = vadd.f32 %v5432, %v5714
  %v5784 = vadd.f32 %v5433, %v5719
  %v5785 = vadd.f32 %v5434, %v5724
  %v5786 = vadd.f32 %v5435, %v5729
  %v5787 = vadd.f32 %v5436, %v5734
  %v5788 = vadd.f32 %v5437, %v5739
  %v5789 = vadd.f32 %v5438, %v5744
  %v5790 = vadd.f32 %v5439, %v5749
  %v5791 = vadd.f32 %v5440, %v5754
  %v5792 = vadd.f32 %v5441, %v5759
  %v5793 = vadd.f32 %v5442, %v5764
  %v5794 = vadd.f32 %v5443, %v5769
  %v5795 = vadd.f32 %v5444, %v5774
  %v5796 = vadd.f32 %v5445, %v5779
  %v5797 = vld [vmem:[%s5 + $0x10] sm:$0xff]
  %v5798 = vld [vmem:[%s5 + $0x18] sm:$0xff]
  %v5799 = vld [vmem:[%s5 + $0x30] sm:$0xff]
  %v5800 = vld [vmem:[%s5 + $0x38] sm:$0xff]
  %v5801 = vld [vmem:[%s5 + $0x50] sm:$0xff]
  %v5802 = vld [vmem:[%s5 + $0x58] sm:$0xff]
  %v5803 = vld [vmem:[%s5 + $0x70] sm:$0xff]
  %v5804 = vld [vmem:[%s5 + $0x78] sm:$0xff]
  %v5805 = vld [vmem:[%s5 + $0x90] sm:$0xff]
  %v5806 = vld [vmem:[%s5 + $0x98] sm:$0xff]
  %v5807 = vld [vmem:[%s5 + $0xb0] sm:$0xff]
  %v5808 = vld [vmem:[%s5 + $0xb8] sm:$0xff]
  %v5809 = vld [vmem:[%s5 + $0xd0] sm:$0xff]
  %v5810 = vld [vmem:[%s5 + $0xd8] sm:$0xff]
  %v5811 = vld [vmem:[%s5 + $0xf0] sm:$0xff]
  %v5812 = vld [vmem:[%s5 + $0xf8] sm:$0xff]
  %v5813 = vld [vmem:[%s5 + $0x110] sm:$0xff]
  %v5814 = vld [vmem:[%s5 + $0x118] sm:$0xff]
  %v5815 = vld [vmem:[%s5 + $0x130] sm:$0xff]
  %v5816 = vld [vmem:[%s5 + $0x138] sm:$0xff]
  %v5817 = vld [vmem:[%s5 + $0x150] sm:$0xff]
  %v5818 = vld [vmem:[%s5 + $0x158] sm:$0xff]
  %v5819 = vld [vmem:[%s5 + $0x170] sm:$0xff]
  %v5820 = vld [vmem:[%s5 + $0x178] sm:$0xff]
  %v5821 = vld [vmem:[%s5 + $0x190] sm:$0xff]
  %v5822 = vld [vmem:[%s5 + $0x198] sm:$0xff]
  %v5823 = vld [vmem:[%s5 + $0x1b0] sm:$0xff]
  %v5824 = vld [vmem:[%s5 + $0x1b8] sm:$0xff]
  %v5825 = vld [vmem:[%s5 + $0x1d0] sm:$0xff]
  %v5826 = vld [vmem:[%s5 + $0x1d8] sm:$0xff]
  %5857 = vrot.lane.b32.xlu0 %v5797, 64
  %v5858 = vpop.permute.xlu0 %5857
  %5859 = vrot.lane.b32.xlu0 %v5798, 64
  %v5860 = vpop.permute.xlu0 %5859
  %5861 = vrot.lane.b32.xlu0 %v5799, 64
  %v5862 = vpop.permute.xlu0 %5861
  %5863 = vrot.lane.b32.xlu0 %v5800, 64
  %v5864 = vpop.permute.xlu0 %5863
  %5865 = vrot.lane.b32.xlu0 %v5801, 64
  %v5866 = vpop.permute.xlu0 %5865
  %5867 = vrot.lane.b32.xlu0 %v5802, 64
  %v5868 = vpop.permute.xlu0 %5867
  %5869 = vrot.lane.b32.xlu0 %v5803, 64
  %v5870 = vpop.permute.xlu0 %5869
  %5871 = vrot.lane.b32.xlu0 %v5804, 64
  %v5872 = vpop.permute.xlu0 %5871
  %5873 = vrot.lane.b32.xlu0 %v5805, 64
  %v5874 = vpop.permute.xlu0 %5873
  %5875 = vrot.lane.b32.xlu0 %v5806, 64
  %v5876 = vpop.permute.xlu0 %5875
  %5877 = vrot.lane.b32.xlu0 %v5807, 64
  %v5878 = vpop.permute.xlu0 %5877
  %5879 = vrot.lane.b32.xlu0 %v5808, 64
  %v5880 = vpop.permute.xlu0 %5879
  %5881 = vrot.lane.b32.xlu0 %v5809, 64
  %v5882 = vpop.permute.xlu0 %5881
  %5883 = vrot.lane.b32.xlu0 %v5810, 64
  %v5884 = vpop.permute.xlu0 %5883
  %5885 = vrot.lane.b32.xlu0 %v5811, 64
  %v5886 = vpop.permute.xlu0 %5885
  %5887 = vrot.lane.b32.xlu0 %v5812, 64
  %v5888 = vpop.permute.xlu0 %5887
  %5889 = vrot.lane.b32.xlu0 %v5813, 64
  %v5890 = vpop.permute.xlu0 %5889
  %5891 = vrot.lane.b32.xlu0 %v5814, 64
  %v5892 = vpop.permute.xlu0 %5891
  %5893 = vrot.lane.b32.xlu0 %v5815, 64
  %v5894 = vpop.permute.xlu0 %5893
  %5895 = vrot.lane.b32.xlu0 %v5816, 64
  %v5896 = vpop.permute.xlu0 %5895
  %5897 = vrot.lane.b32.xlu0 %v5817, 64
  %v5898 = vpop.permute.xlu0 %5897
  %5899 = vrot.lane.b32.xlu0 %v5818, 64
  %v5900 = vpop.permute.xlu0 %5899
  %5901 = vrot.lane.b32.xlu0 %v5819, 64
  %v5902 = vpop.permute.xlu0 %5901
  %5903 = vrot.lane.b32.xlu0 %v5820, 64
  %v5904 = vpop.permute.xlu0 %5903
  %5905 = vrot.lane.b32.xlu0 %v5821, 64
  %v5906 = vpop.permute.xlu0 %5905
  %5907 = vrot.lane.b32.xlu0 %v5822, 64
  %v5908 = vpop.permute.xlu0 %5907
  %5909 = vrot.lane.b32.xlu0 %v5823, 64
  %v5910 = vpop.permute.xlu0 %5909
  %5911 = vrot.lane.b32.xlu0 %v5824, 64
  %v5912 = vpop.permute.xlu0 %5911
  %5913 = vrot.lane.b32.xlu0 %v5825, 64
  %v5914 = vpop.permute.xlu0 %5913
  %5915 = vrot.lane.b32.xlu0 %v5826, 64
  %v5916 = vpop.permute.xlu0 %5915
  %vm5917 = vcmask 523264
  %v5918 = vsel %vm5917, %v5858, %v5860
  %v5919 = vsel %vm5917, %v5862, %v5864
  %v5920 = vsel %vm5917, %v5866, %v5868
  %v5921 = vsel %vm5917, %v5870, %v5872
  %v5922 = vsel %vm5917, %v5874, %v5876
  %v5923 = vsel %vm5917, %v5878, %v5880
  %v5924 = vsel %vm5917, %v5882, %v5884
  %v5925 = vsel %vm5917, %v5886, %v5888
  %v5926 = vsel %vm5917, %v5890, %v5892
  %v5927 = vsel %vm5917, %v5894, %v5896
  %v5928 = vsel %vm5917, %v5898, %v5900
  %v5929 = vsel %vm5917, %v5902, %v5904
  %v5930 = vsel %vm5917, %v5906, %v5908
  %v5931 = vsel %vm5917, %v5910, %v5912
  %v5932 = vsel %vm5917, %v5914, %v5916
  %5933 = vrot.lane.b32.xlu0 %v4637, 124
  %v5934 = vpop.permute.xlu0 %5933
  %5935 = vrot.lane.b32.xlu0 %v4642, 124
  %v5936 = vpop.permute.xlu0 %5935
  %5937 = vrot.lane.b32.xlu0 %v4647, 124
  %v5938 = vpop.permute.xlu0 %5937
  %5939 = vrot.lane.b32.xlu0 %v4652, 124
  %v5940 = vpop.permute.xlu0 %5939
  %5941 = vrot.lane.b32.xlu0 %v4657, 124
  %v5942 = vpop.permute.xlu0 %5941
  %5943 = vrot.lane.b32.xlu0 %v4662, 124
  %v5944 = vpop.permute.xlu0 %5943
  %5945 = vrot.lane.b32.xlu0 %v4667, 124
  %v5946 = vpop.permute.xlu0 %5945
  %5947 = vrot.lane.b32.xlu0 %v4672, 124
  %v5948 = vpop.permute.xlu0 %5947
  %5949 = vrot.lane.b32.xlu0 %v4677, 124
  %v5950 = vpop.permute.xlu0 %5949
  %5951 = vrot.lane.b32.xlu0 %v4682, 124
  %v5952 = vpop.permute.xlu0 %5951
  %v5963 = vsel %vm3022, %v5918, 0
  %v5965 = vsel %vm3022, %v5919, 0
  %v5967 = vsel %vm3022, %v5920, 0
  %v5969 = vsel %vm3022, %v5921, 0
  %v5971 = vsel %vm3022, %v5922, 0
  %v5973 = vsel %vm3022, %v5923, 0
  %v5975 = vsel %vm3022, %v5924, 0
  %v5977 = vsel %vm3022, %v5925, 0
  %v5979 = vsel %vm3022, %v5926, 0
  %v5981 = vsel %vm3022, %v5927, 0
  %v5983 = vsel %vm3022, %v5928, 0
  %v5985 = vsel %vm3022, %v5929, 0
  %v5987 = vsel %vm3022, %v5930, 0
  %v5989 = vsel %vm3022, %v5931, 0
  %v5991 = vsel %vm3022, %v5932, 0
  %5993 = vmatprep.subr.mxu0 0.0
  %5994 = vmatpush1.msra.mxu0 0.0
  %5995 = vmatprep.subr.mxu0 0.0
  %5996 = vmatpush1.msra.mxu0 0.0
  %5997 = vmatprep.subr.mxu0 0.0
  %5998 = vmatpush1.msra.mxu0 0.0
  %5999 = vmatprep.subr.mxu0 0.0
  %6000 = vmatpush1.msra.mxu0 0.0
  %6001 = vmatprep.subr.mxu0 0.0
  %6002 = vmatpush1.msra.mxu0 0.0
  %6003 = vmatprep.subr.mxu0 0.0
  %6004 = vmatpush1.msra.mxu0 0.0
  %6005 = vmatprep.subr.mxu0 0.0
  %6006 = vmatpush1.msra.mxu0 %v5952
  %6007 = vmatprep.subr.mxu0 0.0
  %6008 = vmatpush1.msra.mxu0 %v5950
  %6009 = vmatprep.subr.mxu0 0.0
  %6010 = vmatpush1.msra.mxu0 %v5948
  %6011 = vmatprep.subr.mxu0 0.0
  %6012 = vmatpush1.msra.mxu0 %v5946
  %6013 = vmatprep.subr.mxu0 0.0
  %6014 = vmatpush1.msra.mxu0 %v5944
  %6015 = vmatprep.subr.mxu0 0.0
  %6016 = vmatpush1.msra.mxu0 %v5942
  %6017 = vmatprep.subr.mxu0 0.0
  %6018 = vmatpush1.msra.mxu0 %v5940
  %6019 = vmatprep.subr.mxu0 0.0
  %6020 = vmatpush1.msra.mxu0 %v5938
  %6021 = vmatprep.subr.mxu0 0.0
  %6022 = vmatpush1.msra.mxu0 %v5936
  %6023 = vmatprep.subr.mxu0 0.0
  %6024 = vmatpush1.msra.mxu0 %v5934
  %6025 = vmatprep.subr.mxu0 0.0
  %6026 = vmatpush2.msra.mxu0 0.0
  %6027 = vmatprep.subr.mxu0 0.0
  %6028 = vmatpush2.msra.mxu0 0.0
  %6029 = vmatprep.subr.mxu0 0.0
  %6030 = vmatpush2.msra.mxu0 0.0
  %6031 = vmatprep.subr.mxu0 0.0
  %6032 = vmatpush2.msra.mxu0 0.0
  %6033 = vmatprep.subr.mxu0 0.0
  %6034 = vmatpush2.msra.mxu0 0.0
  %6035 = vmatprep.subr.mxu0 0.0
  %6036 = vmatpush2.msra.mxu0 0.0
  %6037 = vmatprep.subr.mxu0 0.0
  %6038 = vmatpush2.msra.mxu0 0.0
  %6039 = vmatprep.subr.mxu0 0.0
  %6040 = vmatpush2.msra.mxu0 0.0
  %6041 = vmatprep.subr.mxu0 0.0
  %6042 = vmatpush2.msra.mxu0 0.0
  %6043 = vmatprep.subr.mxu0 0.0
  %6044 = vmatpush2.msra.mxu0 0.0
  %6045 = vmatprep.subr.mxu0 0.0
  %6046 = vmatpush2.msra.mxu0 0.0
  %6047 = vmatprep.subr.mxu0 0.0
  %6048 = vmatpush2.msra.mxu0 0.0
  %6049 = vmatprep.subr.mxu0 0.0
  %6050 = vmatpush2.msra.mxu0 0.0
  %6051 = vmatprep.subr.mxu0 0.0
  %6052 = vmatpush2.msra.mxu0 0.0
  %6053 = vmatprep.subr.mxu0 0.0
  %6054 = vmatpush2.msra.mxu0 0.0
  %6055 = vmatprep.subr.mxu0 0.0
  %6056 = vmatpush2.msra.mxu0 0.0
  %6057 = vmatprep.mubr.f32.mxu0 0.0
  %6058 = vmatmul.mubr.f32.gmra.mxu0 %v5963
  %v6059 = vpop.f32.mrf.mxu0
  %v6060 = vadd.f32 0.0, %v6059
  %v6061 = vpop.f32.mrf.mxu0
  %6062 = vmatprep.mubr.f32.mxu0 0.0
  %6063 = vmatmul.mubr.f32.gmra.mxu0 %v5965
  %v6064 = vpop.f32.mrf.mxu0
  %v6065 = vadd.f32 0.0, %v6064
  %v6066 = vpop.f32.mrf.mxu0
  %6067 = vmatprep.mubr.f32.mxu0 0.0
  %6068 = vmatmul.mubr.f32.gmra.mxu0 %v5967
  %v6069 = vpop.f32.mrf.mxu0
  %v6070 = vadd.f32 0.0, %v6069
  %v6071 = vpop.f32.mrf.mxu0
  %6072 = vmatprep.mubr.f32.mxu0 0.0
  %6073 = vmatmul.mubr.f32.gmra.mxu0 %v5969
  %v6074 = vpop.f32.mrf.mxu0
  %v6075 = vadd.f32 0.0, %v6074
  %v6076 = vpop.f32.mrf.mxu0
  %6077 = vmatprep.mubr.f32.mxu0 0.0
  %6078 = vmatmul.mubr.f32.gmra.mxu0 %v5971
  %v6079 = vpop.f32.mrf.mxu0
  %v6080 = vadd.f32 0.0, %v6079
  %v6081 = vpop.f32.mrf.mxu0
  %6082 = vmatprep.mubr.f32.mxu0 0.0
  %6083 = vmatmul.mubr.f32.gmra.mxu0 %v5973
  %v6084 = vpop.f32.mrf.mxu0
  %v6085 = vadd.f32 0.0, %v6084
  %v6086 = vpop.f32.mrf.mxu0
  %6087 = vmatprep.mubr.f32.mxu0 0.0
  %6088 = vmatmul.mubr.f32.gmra.mxu0 %v5975
  %v6089 = vpop.f32.mrf.mxu0
  %v6090 = vadd.f32 0.0, %v6089
  %v6091 = vpop.f32.mrf.mxu0
  %6092 = vmatprep.mubr.f32.mxu0 0.0
  %6093 = vmatmul.mubr.f32.gmra.mxu0 %v5977
  %v6094 = vpop.f32.mrf.mxu0
  %v6095 = vadd.f32 0.0, %v6094
  %v6096 = vpop.f32.mrf.mxu0
  %6097 = vmatprep.mubr.f32.mxu0 0.0
  %6098 = vmatmul.mubr.f32.gmra.mxu0 %v5979
  %v6099 = vpop.f32.mrf.mxu0
  %v6100 = vadd.f32 0.0, %v6099
  %v6101 = vpop.f32.mrf.mxu0
  %6102 = vmatprep.mubr.f32.mxu0 0.0
  %6103 = vmatmul.mubr.f32.gmra.mxu0 %v5981
  %v6104 = vpop.f32.mrf.mxu0
  %v6105 = vadd.f32 0.0, %v6104
  %v6106 = vpop.f32.mrf.mxu0
  %6107 = vmatprep.mubr.f32.mxu0 0.0
  %6108 = vmatmul.mubr.f32.gmra.mxu0 %v5983
  %v6109 = vpop.f32.mrf.mxu0
  %v6110 = vadd.f32 0.0, %v6109
  %v6111 = vpop.f32.mrf.mxu0
  %6112 = vmatprep.mubr.f32.mxu0 0.0
  %6113 = vmatmul.mubr.f32.gmra.mxu0 %v5985
  %v6114 = vpop.f32.mrf.mxu0
  %v6115 = vadd.f32 0.0, %v6114
  %v6116 = vpop.f32.mrf.mxu0
  %6117 = vmatprep.mubr.f32.mxu0 0.0
  %6118 = vmatmul.mubr.f32.gmra.mxu0 %v5987
  %v6119 = vpop.f32.mrf.mxu0
  %v6120 = vadd.f32 0.0, %v6119
  %v6121 = vpop.f32.mrf.mxu0
  %6122 = vmatprep.mubr.f32.mxu0 0.0
  %6123 = vmatmul.mubr.f32.gmra.mxu0 %v5989
  %v6124 = vpop.f32.mrf.mxu0
  %v6125 = vadd.f32 0.0, %v6124
  %v6126 = vpop.f32.mrf.mxu0
  %6127 = vmatprep.mubr.f32.mxu0 0.0
  %6128 = vmatmul.mubr.f32.gmra.mxu0 %v5991
  %v6129 = vpop.f32.mrf.mxu0
  %v6130 = vadd.f32 0.0, %v6129
  %v6131 = vpop.f32.mrf.mxu0
  %6132 = vdwg.mxu0
  %v6133 = vadd.f32 %v5782, %v6060
  %v6134 = vadd.f32 %v5783, %v6065
  %v6135 = vadd.f32 %v5784, %v6070
  %v6136 = vadd.f32 %v5785, %v6075
  %v6137 = vadd.f32 %v5786, %v6080
  %v6138 = vadd.f32 %v5787, %v6085
  %v6139 = vadd.f32 %v5788, %v6090
  %v6140 = vadd.f32 %v5789, %v6095
  %v6141 = vadd.f32 %v5790, %v6100
  %v6142 = vadd.f32 %v5791, %v6105
  %v6143 = vadd.f32 %v5792, %v6110
  %v6144 = vadd.f32 %v5793, %v6115
  %v6145 = vadd.f32 %v5794, %v6120
  %v6146 = vadd.f32 %v5795, %v6125
  %v6147 = vadd.f32 %v5796, %v6130
  %v6148 = vld [vmem:[%s6] sm:$0xff]
  %v6149 = vld [vmem:[%s6 + $0x8] sm:$0xff]
  %v6150 = vld [vmem:[%s6 + $0x10] sm:$0xff]
  %v6151 = vld [vmem:[%s6 + $0x18] sm:$0xff]
  %v6152 = vld [vmem:[%s6 + $0x20] sm:$0xff]
  %v6153 = vld [vmem:[%s6 + $0x28] sm:$0xff]
  %v6154 = vld [vmem:[%s6 + $0x30] sm:$0xff]
  %v6155 = vld [vmem:[%s6 + $0x38] sm:$0xff]
  %v6156 = vld [vmem:[%s6 + $0x40] sm:$0xff]
  %v6157 = vld [vmem:[%s6 + $0x48] sm:$0xff]
  %v6158 = vld [vmem:[%s6 + $0x50] sm:$0xff]
  %v6159 = vld [vmem:[%s6 + $0x58] sm:$0xff]
  %v6160 = vld [vmem:[%s6 + $0x60] sm:$0xff]
  %v6161 = vld [vmem:[%s6 + $0x68] sm:$0xff]
  %v6162 = vld [vmem:[%s6 + $0x70] sm:$0xff]
  %v6163 = vadd.f32 %v6133, %v6148
  %v6164 = vadd.f32 %v6134, %v6149
  %v6165 = vadd.f32 %v6135, %v6150
  %v6166 = vadd.f32 %v6136, %v6151
  %v6167 = vadd.f32 %v6137, %v6152
  %v6168 = vadd.f32 %v6138, %v6153
  %v6169 = vadd.f32 %v6139, %v6154
  %v6170 = vadd.f32 %v6140, %v6155
  %v6171 = vadd.f32 %v6141, %v6156
  %v6172 = vadd.f32 %v6142, %v6157
  %v6173 = vadd.f32 %v6143, %v6158
  %v6174 = vadd.f32 %v6144, %v6159
  %v6175 = vadd.f32 %v6145, %v6160
  %v6176 = vadd.f32 %v6146, %v6161
  %v6177 = vadd.f32 %v6147, %v6162
  %v6178 = vmax.f32 %v6163, 0.0
  %v6179 = vmax.f32 %v6164, 0.0
  %v6180 = vmax.f32 %v6165, 0.0
  %v6181 = vmax.f32 %v6166, 0.0
  %v6182 = vmax.f32 %v6167, 0.0
  %v6183 = vmax.f32 %v6168, 0.0
  %v6184 = vmax.f32 %v6169, 0.0
  %v6185 = vmax.f32 %v6170, 0.0
  %v6186 = vmax.f32 %v6171, 0.0
  %v6187 = vmax.f32 %v6172, 0.0
  %v6188 = vmax.f32 %v6173, 0.0
  %v6189 = vmax.f32 %v6174, 0.0
  %v6190 = vmax.f32 %v6175, 0.0
  %v6191 = vmax.f32 %v6176, 0.0
  %v6192 = vmax.f32 %v6177, 0.0
  %v6193 = vld [vmem:[%s7] sm:$0xff]
  %v6194 = vld [vmem:[%s7 + $0x8] sm:$0xff]
  %v6195 = vld [vmem:[%s7 + $0x10] sm:$0xff]
  %v6196 = vld [vmem:[%s7 + $0x18] sm:$0xff]
  %v6197 = vld [vmem:[%s7 + $0x20] sm:$0xff]
  %v6198 = vld [vmem:[%s7 + $0x28] sm:$0xff]
  %v6199 = vld [vmem:[%s7 + $0x30] sm:$0xff]
  %v6200 = vld [vmem:[%s7 + $0x38] sm:$0xff]
  %v6201 = vld [vmem:[%s7 + $0x40] sm:$0xff]
  %v6202 = vld [vmem:[%s7 + $0x48] sm:$0xff]
  %v6203 = vld [vmem:[%s7 + $0x50] sm:$0xf]
  %v6204 = vld [vmem:[%s8] sm:$0xff]
  %v6205 = vld [vmem:[%s8 + $0x8] sm:$0xff]
  %v6206 = vld [vmem:[%s8 + $0x10] sm:$0xff]
  %v6207 = vld [vmem:[%s8 + $0x18] sm:$0xff]
  %v6208 = vld [vmem:[%s8 + $0x20] sm:$0xff]
  %v6209 = vld [vmem:[%s8 + $0x28] sm:$0xff]
  %v6210 = vld [vmem:[%s8 + $0x30] sm:$0xff]
  %v6211 = vld [vmem:[%s8 + $0x38] sm:$0xff]
  %v6212 = vld [vmem:[%s8 + $0x40] sm:$0xff]
  %v6213 = vld [vmem:[%s8 + $0x48] sm:$0xff]
  %v6214 = vld [vmem:[%s8 + $0x50] sm:$0xf]
  %vm6215 = vcmask 982016
  %v6217 = vsel %vm6215, %v6193, 0
  %v6220 = vsel %vm6215, %v6194, 0
  %v6223 = vsel %vm6215, %v6195, 0
  %v6226 = vsel %vm6215, %v6196, 0
  %v6229 = vsel %vm6215, %v6197, 0
  %v6232 = vsel %vm6215, %v6198, 0
  %v6235 = vsel %vm6215, %v6199, 0
  %v6238 = vsel %vm6215, %v6200, 0
  %v6241 = vsel %vm6215, %v6201, 0
  %v6244 = vsel %vm6215, %v6202, 0
  %v6247 = vsel %vm6215, %v6203, 0
  %6249 = vmatprep.subr.mxu0 0.0
  %6250 = vmatpush1.msra.mxu0 0.0
  %6251 = vmatprep.subr.mxu0 0.0
  %6252 = vmatpush1.msra.mxu0 %v6192
  %6253 = vmatprep.subr.mxu0 0.0
  %6254 = vmatpush1.msra.mxu0 %v6191
  %6255 = vmatprep.subr.mxu0 0.0
  %6256 = vmatpush1.msra.mxu0 %v6190
  %6257 = vmatprep.subr.mxu0 0.0
  %6258 = vmatpush1.msra.mxu0 %v6189
  %6259 = vmatprep.subr.mxu0 0.0
  %6260 = vmatpush1.msra.mxu0 %v6188
  %6261 = vmatprep.subr.mxu0 0.0
  %6262 = vmatpush1.msra.mxu0 %v6187
  %6263 = vmatprep.subr.mxu0 0.0
  %6264 = vmatpush1.msra.mxu0 %v6186
  %6265 = vmatprep.subr.mxu0 0.0
  %6266 = vmatpush1.msra.mxu0 %v6185
  %6267 = vmatprep.subr.mxu0 0.0
  %6268 = vmatpush1.msra.mxu0 %v6184
  %6269 = vmatprep.subr.mxu0 0.0
  %6270 = vmatpush1.msra.mxu0 %v6183
  %6271 = vmatprep.subr.mxu0 0.0
  %6272 = vmatpush1.msra.mxu0 %v6182
  %6273 = vmatprep.subr.mxu0 0.0
  %6274 = vmatpush1.msra.mxu0 %v6181
  %6275 = vmatprep.subr.mxu0 0.0
  %6276 = vmatpush1.msra.mxu0 %v6180
  %6277 = vmatprep.subr.mxu0 0.0
  %6278 = vmatpush1.msra.mxu0 %v6179
  %6279 = vmatprep.subr.mxu0 0.0
  %6280 = vmatpush1.msra.mxu0 %v6178
  %6281 = vmatprep.subr.mxu0 0.0
  %6282 = vmatpush2.msra.mxu0 0.0
  %6283 = vmatprep.subr.mxu0 0.0
  %6284 = vmatpush2.msra.mxu0 0.0
  %6285 = vmatprep.subr.mxu0 0.0
  %6286 = vmatpush2.msra.mxu0 0.0
  %6287 = vmatprep.subr.mxu0 0.0
  %6288 = vmatpush2.msra.mxu0 0.0
  %6289 = vmatprep.subr.mxu0 0.0
  %6290 = vmatpush2.msra.mxu0 0.0
  %6291 = vmatprep.subr.mxu0 0.0
  %6292 = vmatpush2.msra.mxu0 0.0
  %6293 = vmatprep.subr.mxu0 0.0
  %6294 = vmatpush2.msra.mxu0 0.0
  %6295 = vmatprep.subr.mxu0 0.0
  %6296 = vmatpush2.msra.mxu0 0.0
  %6297 = vmatprep.subr.mxu0 0.0
  %6298 = vmatpush2.msra.mxu0 0.0
  %6299 = vmatprep.subr.mxu0 0.0
  %6300 = vmatpush2.msra.mxu0 0.0
  %6301 = vmatprep.subr.mxu0 0.0
  %6302 = vmatpush2.msra.mxu0 0.0
  %6303 = vmatprep.subr.mxu0 0.0
  %6304 = vmatpush2.msra.mxu0 0.0
  %6305 = vmatprep.subr.mxu0 0.0
  %6306 = vmatpush2.msra.mxu0 0.0
  %6307 = vmatprep.subr.mxu0 0.0
  %6308 = vmatpush2.msra.mxu0 0.0
  %6309 = vmatprep.subr.mxu0 0.0
  %6310 = vmatpush2.msra.mxu0 0.0
  %6311 = vmatprep.subr.mxu0 0.0
  %6312 = vmatpush2.msra.mxu0 0.0
  %6313 = vmatprep.mubr.f32.mxu0 0.0
  %6314 = vmatmul.mubr.f32.gmra.mxu0 %v6217
  %v6315 = vpop.f32.mrf.mxu0
  %v6316 = vadd.f32 %v6204, %v6315
  %v6317 = vpop.f32.mrf.mxu0
  %6318 = vmatprep.mubr.f32.mxu0 0.0
  %6319 = vmatmul.mubr.f32.gmra.mxu0 %v6220
  %v6320 = vpop.f32.mrf.mxu0
  %v6321 = vadd.f32 %v6205, %v6320
  %v6322 = vpop.f32.mrf.mxu0
  %6323 = vmatprep.mubr.f32.mxu0 0.0
  %6324 = vmatmul.mubr.f32.gmra.mxu0 %v6223
  %v6325 = vpop.f32.mrf.mxu0
  %v6326 = vadd.f32 %v6206, %v6325
  %v6327 = vpop.f32.mrf.mxu0
  %6328 = vmatprep.mubr.f32.mxu0 0.0
  %6329 = vmatmul.mubr.f32.gmra.mxu0 %v6226
  %v6330 = vpop.f32.mrf.mxu0
  %v6331 = vadd.f32 %v6207, %v6330
  %v6332 = vpop.f32.mrf.mxu0
  %6333 = vmatprep.mubr.f32.mxu0 0.0
  %6334 = vmatmul.mubr.f32.gmra.mxu0 %v6229
  %v6335 = vpop.f32.mrf.mxu0
  %v6336 = vadd.f32 %v6208, %v6335
  %v6337 = vpop.f32.mrf.mxu0
  %6338 = vmatprep.mubr.f32.mxu0 0.0
  %6339 = vmatmul.mubr.f32.gmra.mxu0 %v6232
  %v6340 = vpop.f32.mrf.mxu0
  %v6341 = vadd.f32 %v6209, %v6340
  %v6342 = vpop.f32.mrf.mxu0
  %6343 = vmatprep.mubr.f32.mxu0 0.0
  %6344 = vmatmul.mubr.f32.gmra.mxu0 %v6235
  %v6345 = vpop.f32.mrf.mxu0
  %v6346 = vadd.f32 %v6210, %v6345
  %v6347 = vpop.f32.mrf.mxu0
  %6348 = vmatprep.mubr.f32.mxu0 0.0
  %6349 = vmatmul.mubr.f32.gmra.mxu0 %v6238
  %v6350 = vpop.f32.mrf.mxu0
  %v6351 = vadd.f32 %v6211, %v6350
  %v6352 = vpop.f32.mrf.mxu0
  %6353 = vmatprep.mubr.f32.mxu0 0.0
  %6354 = vmatmul.mubr.f32.gmra.mxu0 %v6241
  %v6355 = vpop.f32.mrf.mxu0
  %v6356 = vadd.f32 %v6212, %v6355
  %v6357 = vpop.f32.mrf.mxu0
  %6358 = vmatprep.mubr.f32.mxu0 0.0
  %6359 = vmatmul.mubr.f32.gmra.mxu0 %v6244
  %v6360 = vpop.f32.mrf.mxu0
  %v6361 = vadd.f32 %v6213, %v6360
  %v6362 = vpop.f32.mrf.mxu0
  %6363 = vmatprep.mubr.f32.mxu0 0.0
  %6364 = vmatmul.mubr.f32.gmra.mxu0 %v6247
  %v6365 = vpop.f32.mrf.mxu0
  %v6366 = vadd.f32 %v6214, %v6365
  %v6367 = vpop.f32.mrf.mxu0
  %6368 = vdwg.mxu0
  %v6369 = vmax.f32 %v6316, 0.0
  %v6370 = vmax.f32 %v6321, 0.0
  %v6371 = vmax.f32 %v6326, 0.0
  %v6372 = vmax.f32 %v6331, 0.0
  %v6373 = vmax.f32 %v6336, 0.0
  %v6374 = vmax.f32 %v6341, 0.0
  %v6375 = vmax.f32 %v6346, 0.0
  %v6376 = vmax.f32 %v6351, 0.0
  %v6377 = vmax.f32 %v6356, 0.0
  %v6378 = vmax.f32 %v6361, 0.0
  %v6379 = vmax.f32 %v6366, 0.0
  %v6380 = vld [vmem:[%s9] sm:$0xff]
  %v6381 = vld [vmem:[%s9 + $0x8] sm:$0x3]
  %v6382 = vld [vmem:[%s10] sm:$0xff]
  %v6383 = vld [vmem:[%s10 + $0x8] sm:$0x3]
  %vm6384 = vcmask 687104
  %v6386 = vsel %vm6384, %v6380, 0
  %v6389 = vsel %vm6384, %v6381, 0
  %vm6391 = vcmask 1043456
  %v6393 = vsel %vm6391, %v6379, 0
  %6395 = vmatprep.subr.mxu0 0.0
  %6396 = vmatpush1.msra.mxu0 0.0
  %6397 = vmatprep.subr.mxu0 0.0
  %6398 = vmatpush1.msra.mxu0 0.0
  %6399 = vmatprep.subr.mxu0 0.0
  %6400 = vmatpush1.msra.mxu0 0.0
  %6401 = vmatprep.subr.mxu0 0.0
  %6402 = vmatpush1.msra.mxu0 0.0
  %6403 = vmatprep.subr.mxu0 0.0
  %6404 = vmatpush1.msra.mxu0 0.0
  %6405 = vmatprep.subr.mxu0 0.0
  %6406 = vmatpush1.msra.mxu0 %v6393
  %6407 = vmatprep.subr.mxu0 0.0
  %6408 = vmatpush1.msra.mxu0 %v6378
  %6409 = vmatprep.subr.mxu0 0.0
  %6410 = vmatpush1.msra.mxu0 %v6377
  %6411 = vmatprep.subr.mxu0 0.0
  %6412 = vmatpush1.msra.mxu0 %v6376
  %6413 = vmatprep.subr.mxu0 0.0
  %6414 = vmatpush1.msra.mxu0 %v6375
  %6415 = vmatprep.subr.mxu0 0.0
  %6416 = vmatpush1.msra.mxu0 %v6374
  %6417 = vmatprep.subr.mxu0 0.0
  %6418 = vmatpush1.msra.mxu0 %v6373
  %6419 = vmatprep.subr.mxu0 0.0
  %6420 = vmatpush1.msra.mxu0 %v6372
  %6421 = vmatprep.subr.mxu0 0.0
  %6422 = vmatpush1.msra.mxu0 %v6371
  %6423 = vmatprep.subr.mxu0 0.0
  %6424 = vmatpush1.msra.mxu0 %v6370
  %6425 = vmatprep.subr.mxu0 0.0
  %6426 = vmatpush1.msra.mxu0 %v6369
  %6427 = vmatprep.subr.mxu0 0.0
  %6428 = vmatpush2.msra.mxu0 0.0
  %6429 = vmatprep.subr.mxu0 0.0
  %6430 = vmatpush2.msra.mxu0 0.0
  %6431 = vmatprep.subr.mxu0 0.0
  %6432 = vmatpush2.msra.mxu0 0.0
  %6433 = vmatprep.subr.mxu0 0.0
  %6434 = vmatpush2.msra.mxu0 0.0
  %6435 = vmatprep.subr.mxu0 0.0
  %6436 = vmatpush2.msra.mxu0 0.0
  %6437 = vmatprep.subr.mxu0 0.0
  %6438 = vmatpush2.msra.mxu0 0.0
  %6439 = vmatprep.subr.mxu0 0.0
  %6440 = vmatpush2.msra.mxu0 0.0
  %6441 = vmatprep.subr.mxu0 0.0
  %6442 = vmatpush2.msra.mxu0 0.0
  %6443 = vmatprep.subr.mxu0 0.0
  %6444 = vmatpush2.msra.mxu0 0.0
  %6445 = vmatprep.subr.mxu0 0.0
  %6446 = vmatpush2.msra.mxu0 0.0
  %6447 = vmatprep.subr.mxu0 0.0
  %6448 = vmatpush2.msra.mxu0 0.0
  %6449 = vmatprep.subr.mxu0 0.0
  %6450 = vmatpush2.msra.mxu0 0.0
  %6451 = vmatprep.subr.mxu0 0.0
  %6452 = vmatpush2.msra.mxu0 0.0
  %6453 = vmatprep.subr.mxu0 0.0
  %6454 = vmatpush2.msra.mxu0 0.0
  %6455 = vmatprep.subr.mxu0 0.0
  %6456 = vmatpush2.msra.mxu0 0.0
  %6457 = vmatprep.subr.mxu0 0.0
  %6458 = vmatpush2.msra.mxu0 0.0
  %6459 = vmatprep.mubr.f32.mxu0 0.0
  %6460 = vmatmul.mubr.f32.gmra.mxu0 %v6386
  %v6461 = vpop.f32.mrf.mxu0
  %v6462 = vadd.f32 %v6382, %v6461
  %v6463 = vpop.f32.mrf.mxu0
  %6464 = vmatprep.mubr.f32.mxu0 0.0
  %6465 = vmatmul.mubr.f32.gmra.mxu0 %v6389
  %v6466 = vpop.f32.mrf.mxu0
  %v6467 = vadd.f32 %v6383, %v6466
  %v6468 = vpop.f32.mrf.mxu0
  %6469 = vdwg.mxu0
  %vm6470 = vcmask 7168
  %6471 = vst.msk [vmem:[%s11] sm:$0xff] %vm6470, %v6462
  %vm6472 = vcmask 1024
  %6473 = vst.msk [vmem:[%s11 + $0x8] sm:$0x3] %vm6472, %v6467
  %s6474 = scalar_lea.vmem %s0, 32
  %v6475 = vld [vmem:[%s6474] sm:$0xff]
  %v6476 = vld [vmem:[%s6474 + $0x8] sm:$0xff]
  %v6477 = vld [vmem:[%s6474 + $0x10] sm:$0xff]
  %v6478 = vld [vmem:[%s6474 + $0x18] sm:$0xff]
  %v6479 = vld [vmem:[%s1] sm:$0xff]
  %v6480 = vld [vmem:[%s1 + $0x10] sm:$0xff]
  %v6481 = vld [vmem:[%s1 + $0x20] sm:$0xff]
  %v6482 = vld [vmem:[%s1 + $0x30] sm:$0xff]
  %v6483 = vld [vmem:[%s1 + $0x40] sm:$0xff]
  %v6484 = vld [vmem:[%s1 + $0x50] sm:$0xff]
  %v6485 = vld [vmem:[%s1 + $0x60] sm:$0xff]
  %v6486 = vld [vmem:[%s1 + $0x70] sm:$0xff]
  %v6487 = vld [vmem:[%s1 + $0x80] sm:$0xff]
  %v6488 = vld [vmem:[%s1 + $0x90] sm:$0xff]
  %v6489 = vld [vmem:[%s1 + $0xa0] sm:$0xff]
  %v6490 = vld [vmem:[%s1 + $0xb0] sm:$0xff]
  %v6491 = vld [vmem:[%s1 + $0xc0] sm:$0xff]
  %v6492 = vld [vmem:[%s1 + $0xd0] sm:$0xff]
  %v6493 = vld [vmem:[%s1 + $0xe0] sm:$0xff]
  %v6494 = vld [vmem:[%s1 + $0xf0] sm:$0xff]
  %v6495 = vld [vmem:[%s1 + $0x100] sm:$0xff]
  %v6496 = vld [vmem:[%s1 + $0x110] sm:$0xff]
  %v6497 = vld [vmem:[%s1 + $0x120] sm:$0xff]
  %v6498 = vld [vmem:[%s1 + $0x130] sm:$0xff]
  %v6499 = vld [vmem:[%s1 + $0x140] sm:$0xff]
  %6521 = vrot.lane.b32.xlu0 %v6479, 96
  %v6522 = vpop.permute.xlu0 %6521
  %6523 = vrot.lane.b32.xlu0 %v6480, 96
  %v6524 = vpop.permute.xlu0 %6523
  %6525 = vrot.lane.b32.xlu0 %v6481, 96
  %v6526 = vpop.permute.xlu0 %6525
  %6527 = vrot.lane.b32.xlu0 %v6482, 96
  %v6528 = vpop.permute.xlu0 %6527
  %6529 = vrot.lane.b32.xlu0 %v6483, 96
  %v6530 = vpop.permute.xlu0 %6529
  %6531 = vrot.lane.b32.xlu0 %v6484, 96
  %v6532 = vpop.permute.xlu0 %6531
  %6533 = vrot.lane.b32.xlu0 %v6485, 96
  %v6534 = vpop.permute.xlu0 %6533
  %6535 = vrot.lane.b32.xlu0 %v6486, 96
  %v6536 = vpop.permute.xlu0 %6535
  %6537 = vrot.lane.b32.xlu0 %v6487, 96
  %v6538 = vpop.permute.xlu0 %6537
  %6539 = vrot.lane.b32.xlu0 %v6488, 96
  %v6540 = vpop.permute.xlu0 %6539
  %6541 = vrot.lane.b32.xlu0 %v6489, 96
  %v6542 = vpop.permute.xlu0 %6541
  %6543 = vrot.lane.b32.xlu0 %v6490, 96
  %v6544 = vpop.permute.xlu0 %6543
  %6545 = vrot.lane.b32.xlu0 %v6491, 96
  %v6546 = vpop.permute.xlu0 %6545
  %6547 = vrot.lane.b32.xlu0 %v6492, 96
  %v6548 = vpop.permute.xlu0 %6547
  %6549 = vrot.lane.b32.xlu0 %v6493, 96
  %v6550 = vpop.permute.xlu0 %6549
  %6551 = vrot.lane.b32.xlu0 %v6494, 96
  %v6552 = vpop.permute.xlu0 %6551
  %6553 = vrot.lane.b32.xlu0 %v6495, 96
  %v6554 = vpop.permute.xlu0 %6553
  %6555 = vrot.lane.b32.xlu0 %v6496, 96
  %v6556 = vpop.permute.xlu0 %6555
  %6557 = vrot.lane.b32.xlu0 %v6497, 96
  %v6558 = vpop.permute.xlu0 %6557
  %6559 = vrot.lane.b32.xlu0 %v6498, 96
  %v6560 = vpop.permute.xlu0 %6559
  %6561 = vrot.lane.b32.xlu0 %v6499, 96
  %v6562 = vpop.permute.xlu0 %6561
  %6567 = vrot.lane.b32.xlu0 %v6475, 127
  %v6568 = vpop.permute.xlu0 %6567
  %6569 = vrot.lane.b32.xlu0 %v6476, 127
  %v6570 = vpop.permute.xlu0 %6569
  %6571 = vrot.lane.b32.xlu0 %v6477, 127
  %v6572 = vpop.permute.xlu0 %6571
  %6573 = vrot.lane.b32.xlu0 %v6478, 127
  %v6574 = vpop.permute.xlu0 %6573
  %v6579 = vsel %vm142, %v6522, 0
  %v6581 = vsel %vm142, %v6524, 0
  %v6583 = vsel %vm142, %v6526, 0
  %v6585 = vsel %vm142, %v6528, 0
  %v6587 = vsel %vm142, %v6530, 0
  %v6589 = vsel %vm142, %v6532, 0
  %v6591 = vsel %vm142, %v6534, 0
  %v6593 = vsel %vm142, %v6536, 0
  %v6595 = vsel %vm142, %v6538, 0
  %v6597 = vsel %vm142, %v6540, 0
  %v6599 = vsel %vm142, %v6542, 0
  %v6601 = vsel %vm142, %v6544, 0
  %v6603 = vsel %vm142, %v6546, 0
  %v6605 = vsel %vm142, %v6548, 0
  %v6607 = vsel %vm142, %v6550, 0
  %v6609 = vsel %vm142, %v6552, 0
  %v6611 = vsel %vm142, %v6554, 0
  %v6613 = vsel %vm142, %v6556, 0
  %v6615 = vsel %vm142, %v6558, 0
  %v6617 = vsel %vm142, %v6560, 0
  %v6619 = vsel %vm142, %v6562, 0
  %6621 = vmatprep.subr.mxu0 0.0
  %6622 = vmatpush1.msra.mxu0 0.0
  %6623 = vmatprep.subr.mxu0 0.0
  %6624 = vmatpush1.msra.mxu0 0.0
  %6625 = vmatprep.subr.mxu0 0.0
  %6626 = vmatpush1.msra.mxu0 0.0
  %6627 = vmatprep.subr.mxu0 0.0
  %6628 = vmatpush1.msra.mxu0 0.0
  %6629 = vmatprep.subr.mxu0 0.0
  %6630 = vmatpush1.msra.mxu0 0.0
  %6631 = vmatprep.subr.mxu0 0.0
  %6632 = vmatpush1.msra.mxu0 0.0
  %6633 = vmatprep.subr.mxu0 0.0
  %6634 = vmatpush1.msra.mxu0 0.0
  %6635 = vmatprep.subr.mxu0 0.0
  %6636 = vmatpush1.msra.mxu0 0.0
  %6637 = vmatprep.subr.mxu0 0.0
  %6638 = vmatpush1.msra.mxu0 0.0
  %6639 = vmatprep.subr.mxu0 0.0
  %6640 = vmatpush1.msra.mxu0 0.0
  %6641 = vmatprep.subr.mxu0 0.0
  %6642 = vmatpush1.msra.mxu0 0.0
  %6643 = vmatprep.subr.mxu0 0.0
  %6644 = vmatpush1.msra.mxu0 0.0
  %6645 = vmatprep.subr.mxu0 0.0
  %6646 = vmatpush1.msra.mxu0 %v6574
  %6647 = vmatprep.subr.mxu0 0.0
  %6648 = vmatpush1.msra.mxu0 %v6572
  %6649 = vmatprep.subr.mxu0 0.0
  %6650 = vmatpush1.msra.mxu0 %v6570
  %6651 = vmatprep.subr.mxu0 0.0
  %6652 = vmatpush1.msra.mxu0 %v6568
  %6653 = vmatprep.subr.mxu0 0.0
  %6654 = vmatpush2.msra.mxu0 0.0
  %6655 = vmatprep.subr.mxu0 0.0
  %6656 = vmatpush2.msra.mxu0 0.0
  %6657 = vmatprep.subr.mxu0 0.0
  %6658 = vmatpush2.msra.mxu0 0.0
  %6659 = vmatprep.subr.mxu0 0.0
  %6660 = vmatpush2.msra.mxu0 0.0
  %6661 = vmatprep.subr.mxu0 0.0
  %6662 = vmatpush2.msra.mxu0 0.0
  %6663 = vmatprep.subr.mxu0 0.0
  %6664 = vmatpush2.msra.mxu0 0.0
  %6665 = vmatprep.subr.mxu0 0.0
  %6666 = vmatpush2.msra.mxu0 0.0
  %6667 = vmatprep.subr.mxu0 0.0
  %6668 = vmatpush2.msra.mxu0 0.0
  %6669 = vmatprep.subr.mxu0 0.0
  %6670 = vmatpush2.msra.mxu0 0.0
  %6671 = vmatprep.subr.mxu0 0.0
  %6672 = vmatpush2.msra.mxu0 0.0
  %6673 = vmatprep.subr.mxu0 0.0
  %6674 = vmatpush2.msra.mxu0 0.0
  %6675 = vmatprep.subr.mxu0 0.0
  %6676 = vmatpush2.msra.mxu0 0.0
  %6677 = vmatprep.subr.mxu0 0.0
  %6678 = vmatpush2.msra.mxu0 0.0
  %6679 = vmatprep.subr.mxu0 0.0
  %6680 = vmatpush2.msra.mxu0 0.0
  %6681 = vmatprep.subr.mxu0 0.0
  %6682 = vmatpush2.msra.mxu0 0.0
  %6683 = vmatprep.subr.mxu0 0.0
  %6684 = vmatpush2.msra.mxu0 0.0
  %6685 = vmatprep.mubr.f32.mxu0 0.0
  %6686 = vmatmul.mubr.f32.gmra.mxu0 %v6579
  %v6687 = vpop.f32.mrf.mxu0
  %v6688 = vadd.f32 0.0, %v6687
  %v6689 = vpop.f32.mrf.mxu0
  %6690 = vmatprep.mubr.f32.mxu0 0.0
  %6691 = vmatmul.mubr.f32.gmra.mxu0 %v6581
  %v6692 = vpop.f32.mrf.mxu0
  %v6693 = vadd.f32 0.0, %v6692
  %v6694 = vpop.f32.mrf.mxu0
  %6695 = vmatprep.mubr.f32.mxu0 0.0
  %6696 = vmatmul.mubr.f32.gmra.mxu0 %v6583
  %v6697 = vpop.f32.mrf.mxu0
  %v6698 = vadd.f32 0.0, %v6697
  %v6699 = vpop.f32.mrf.mxu0
  %6700 = vmatprep.mubr.f32.mxu0 0.0
  %6701 = vmatmul.mubr.f32.gmra.mxu0 %v6585
  %v6702 = vpop.f32.mrf.mxu0
  %v6703 = vadd.f32 0.0, %v6702
  %v6704 = vpop.f32.mrf.mxu0
  %6705 = vmatprep.mubr.f32.mxu0 0.0
  %6706 = vmatmul.mubr.f32.gmra.mxu0 %v6587
  %v6707 = vpop.f32.mrf.mxu0
  %v6708 = vadd.f32 0.0, %v6707
  %v6709 = vpop.f32.mrf.mxu0
  %6710 = vmatprep.mubr.f32.mxu0 0.0
  %6711 = vmatmul.mubr.f32.gmra.mxu0 %v6589
  %v6712 = vpop.f32.mrf.mxu0
  %v6713 = vadd.f32 0.0, %v6712
  %v6714 = vpop.f32.mrf.mxu0
  %6715 = vmatprep.mubr.f32.mxu0 0.0
  %6716 = vmatmul.mubr.f32.gmra.mxu0 %v6591
  %v6717 = vpop.f32.mrf.mxu0
  %v6718 = vadd.f32 0.0, %v6717
  %v6719 = vpop.f32.mrf.mxu0
  %6720 = vmatprep.mubr.f32.mxu0 0.0
  %6721 = vmatmul.mubr.f32.gmra.mxu0 %v6593
  %v6722 = vpop.f32.mrf.mxu0
  %v6723 = vadd.f32 0.0, %v6722
  %v6724 = vpop.f32.mrf.mxu0
  %6725 = vmatprep.mubr.f32.mxu0 0.0
  %6726 = vmatmul.mubr.f32.gmra.mxu0 %v6595
  %v6727 = vpop.f32.mrf.mxu0
  %v6728 = vadd.f32 0.0, %v6727
  %v6729 = vpop.f32.mrf.mxu0
  %6730 = vmatprep.mubr.f32.mxu0 0.0
  %6731 = vmatmul.mubr.f32.gmra.mxu0 %v6597
  %v6732 = vpop.f32.mrf.mxu0
  %v6733 = vadd.f32 0.0, %v6732
  %v6734 = vpop.f32.mrf.mxu0
  %6735 = vmatprep.mubr.f32.mxu0 0.0
  %6736 = vmatmul.mubr.f32.gmra.mxu0 %v6599
  %v6737 = vpop.f32.mrf.mxu0
  %v6738 = vadd.f32 0.0, %v6737
  %v6739 = vpop.f32.mrf.mxu0
  %6740 = vmatprep.mubr.f32.mxu0 0.0
  %6741 = vmatmul.mubr.f32.gmra.mxu0 %v6601
  %v6742 = vpop.f32.mrf.mxu0
  %v6743 = vadd.f32 0.0, %v6742
  %v6744 = vpop.f32.mrf.mxu0
  %6745 = vmatprep.mubr.f32.mxu0 0.0
  %6746 = vmatmul.mubr.f32.gmra.mxu0 %v6603
  %v6747 = vpop.f32.mrf.mxu0
  %v6748 = vadd.f32 0.0, %v6747
  %v6749 = vpop.f32.mrf.mxu0
  %6750 = vmatprep.mubr.f32.mxu0 0.0
  %6751 = vmatmul.mubr.f32.gmra.mxu0 %v6605
  %v6752 = vpop.f32.mrf.mxu0
  %v6753 = vadd.f32 0.0, %v6752
  %v6754 = vpop.f32.mrf.mxu0
  %6755 = vmatprep.mubr.f32.mxu0 0.0
  %6756 = vmatmul.mubr.f32.gmra.mxu0 %v6607
  %v6757 = vpop.f32.mrf.mxu0
  %v6758 = vadd.f32 0.0, %v6757
  %v6759 = vpop.f32.mrf.mxu0
  %6760 = vmatprep.mubr.f32.mxu0 0.0
  %6761 = vmatmul.mubr.f32.gmra.mxu0 %v6609
  %v6762 = vpop.f32.mrf.mxu0
  %v6763 = vadd.f32 0.0, %v6762
  %v6764 = vpop.f32.mrf.mxu0
  %6765 = vmatprep.mubr.f32.mxu0 0.0
  %6766 = vmatmul.mubr.f32.gmra.mxu0 %v6611
  %v6767 = vpop.f32.mrf.mxu0
  %v6768 = vadd.f32 0.0, %v6767
  %v6769 = vpop.f32.mrf.mxu0
  %6770 = vmatprep.mubr.f32.mxu0 0.0
  %6771 = vmatmul.mubr.f32.gmra.mxu0 %v6613
  %v6772 = vpop.f32.mrf.mxu0
  %v6773 = vadd.f32 0.0, %v6772
  %v6774 = vpop.f32.mrf.mxu0
  %6775 = vmatprep.mubr.f32.mxu0 0.0
  %6776 = vmatmul.mubr.f32.gmra.mxu0 %v6615
  %v6777 = vpop.f32.mrf.mxu0
  %v6778 = vadd.f32 0.0, %v6777
  %v6779 = vpop.f32.mrf.mxu0
  %6780 = vmatprep.mubr.f32.mxu0 0.0
  %6781 = vmatmul.mubr.f32.gmra.mxu0 %v6617
  %v6782 = vpop.f32.mrf.mxu0
  %v6783 = vadd.f32 0.0, %v6782
  %v6784 = vpop.f32.mrf.mxu0
  %6785 = vmatprep.mubr.f32.mxu0 0.0
  %6786 = vmatmul.mubr.f32.gmra.mxu0 %v6619
  %v6787 = vpop.f32.mrf.mxu0
  %v6788 = vadd.f32 0.0, %v6787
  %v6789 = vpop.f32.mrf.mxu0
  %6790 = vdwg.mxu0
  %v6791 = vsel %vm142, %v6479, 0
  %v6793 = vsel %vm142, %v6480, 0
  %v6795 = vsel %vm142, %v6481, 0
  %v6797 = vsel %vm142, %v6482, 0
  %v6799 = vsel %vm142, %v6483, 0
  %v6801 = vsel %vm142, %v6484, 0
  %v6803 = vsel %vm142, %v6485, 0
  %v6805 = vsel %vm142, %v6486, 0
  %v6807 = vsel %vm142, %v6487, 0
  %v6809 = vsel %vm142, %v6488, 0
  %v6811 = vsel %vm142, %v6489, 0
  %v6813 = vsel %vm142, %v6490, 0
  %v6815 = vsel %vm142, %v6491, 0
  %v6817 = vsel %vm142, %v6492, 0
  %v6819 = vsel %vm142, %v6493, 0
  %v6821 = vsel %vm142, %v6494, 0
  %v6823 = vsel %vm142, %v6495, 0
  %v6825 = vsel %vm142, %v6496, 0
  %v6827 = vsel %vm142, %v6497, 0
  %v6829 = vsel %vm142, %v6498, 0
  %v6831 = vsel %vm142, %v6499, 0
  %6833 = vmatprep.subr.mxu0 0.0
  %6834 = vmatpush1.msra.mxu0 0.0
  %6835 = vmatprep.subr.mxu0 0.0
  %6836 = vmatpush1.msra.mxu0 0.0
  %6837 = vmatprep.subr.mxu0 0.0
  %6838 = vmatpush1.msra.mxu0 0.0
  %6839 = vmatprep.subr.mxu0 0.0
  %6840 = vmatpush1.msra.mxu0 0.0
  %6841 = vmatprep.subr.mxu0 0.0
  %6842 = vmatpush1.msra.mxu0 0.0
  %6843 = vmatprep.subr.mxu0 0.0
  %6844 = vmatpush1.msra.mxu0 0.0
  %6845 = vmatprep.subr.mxu0 0.0
  %6846 = vmatpush1.msra.mxu0 0.0
  %6847 = vmatprep.subr.mxu0 0.0
  %6848 = vmatpush1.msra.mxu0 0.0
  %6849 = vmatprep.subr.mxu0 0.0
  %6850 = vmatpush1.msra.mxu0 0.0
  %6851 = vmatprep.subr.mxu0 0.0
  %6852 = vmatpush1.msra.mxu0 0.0
  %6853 = vmatprep.subr.mxu0 0.0
  %6854 = vmatpush1.msra.mxu0 0.0
  %6855 = vmatprep.subr.mxu0 0.0
  %6856 = vmatpush1.msra.mxu0 0.0
  %6857 = vmatprep.subr.mxu0 0.0
  %6858 = vmatpush1.msra.mxu0 %v6478
  %6859 = vmatprep.subr.mxu0 0.0
  %6860 = vmatpush1.msra.mxu0 %v6477
  %6861 = vmatprep.subr.mxu0 0.0
  %6862 = vmatpush1.msra.mxu0 %v6476
  %6863 = vmatprep.subr.mxu0 0.0
  %6864 = vmatpush1.msra.mxu0 %v6475
  %6865 = vmatprep.subr.mxu0 0.0
  %6866 = vmatpush2.msra.mxu0 0.0
  %6867 = vmatprep.subr.mxu0 0.0
  %6868 = vmatpush2.msra.mxu0 0.0
  %6869 = vmatprep.subr.mxu0 0.0
  %6870 = vmatpush2.msra.mxu0 0.0
  %6871 = vmatprep.subr.mxu0 0.0
  %6872 = vmatpush2.msra.mxu0 0.0
  %6873 = vmatprep.subr.mxu0 0.0
  %6874 = vmatpush2.msra.mxu0 0.0
  %6875 = vmatprep.subr.mxu0 0.0
  %6876 = vmatpush2.msra.mxu0 0.0
  %6877 = vmatprep.subr.mxu0 0.0
  %6878 = vmatpush2.msra.mxu0 0.0
  %6879 = vmatprep.subr.mxu0 0.0
  %6880 = vmatpush2.msra.mxu0 0.0
  %6881 = vmatprep.subr.mxu0 0.0
  %6882 = vmatpush2.msra.mxu0 0.0
  %6883 = vmatprep.subr.mxu0 0.0
  %6884 = vmatpush2.msra.mxu0 0.0
  %6885 = vmatprep.subr.mxu0 0.0
  %6886 = vmatpush2.msra.mxu0 0.0
  %6887 = vmatprep.subr.mxu0 0.0
  %6888 = vmatpush2.msra.mxu0 0.0
  %6889 = vmatprep.subr.mxu0 0.0
  %6890 = vmatpush2.msra.mxu0 0.0
  %6891 = vmatprep.subr.mxu0 0.0
  %6892 = vmatpush2.msra.mxu0 0.0
  %6893 = vmatprep.subr.mxu0 0.0
  %6894 = vmatpush2.msra.mxu0 0.0
  %6895 = vmatprep.subr.mxu0 0.0
  %6896 = vmatpush2.msra.mxu0 0.0
  %6897 = vmatprep.mubr.f32.mxu0 0.0
  %6898 = vmatmul.mubr.f32.gmra.mxu0 %v6791
  %v6899 = vpop.f32.mrf.mxu0
  %v6900 = vadd.f32 %v6688, %v6899
  %v6901 = vpop.f32.mrf.mxu0
  %6902 = vmatprep.mubr.f32.mxu0 0.0
  %6903 = vmatmul.mubr.f32.gmra.mxu0 %v6793
  %v6904 = vpop.f32.mrf.mxu0
  %v6905 = vadd.f32 %v6693, %v6904
  %v6906 = vpop.f32.mrf.mxu0
  %6907 = vmatprep.mubr.f32.mxu0 0.0
  %6908 = vmatmul.mubr.f32.gmra.mxu0 %v6795
  %v6909 = vpop.f32.mrf.mxu0
  %v6910 = vadd.f32 %v6698, %v6909
  %v6911 = vpop.f32.mrf.mxu0
  %6912 = vmatprep.mubr.f32.mxu0 0.0
  %6913 = vmatmul.mubr.f32.gmra.mxu0 %v6797
  %v6914 = vpop.f32.mrf.mxu0
  %v6915 = vadd.f32 %v6703, %v6914
  %v6916 = vpop.f32.mrf.mxu0
  %6917 = vmatprep.mubr.f32.mxu0 0.0
  %6918 = vmatmul.mubr.f32.gmra.mxu0 %v6799
  %v6919 = vpop.f32.mrf.mxu0
  %v6920 = vadd.f32 %v6708, %v6919
  %v6921 = vpop.f32.mrf.mxu0
  %6922 = vmatprep.mubr.f32.mxu0 0.0
  %6923 = vmatmul.mubr.f32.gmra.mxu0 %v6801
  %v6924 = vpop.f32.mrf.mxu0
  %v6925 = vadd.f32 %v6713, %v6924
  %v6926 = vpop.f32.mrf.mxu0
  %6927 = vmatprep.mubr.f32.mxu0 0.0
  %6928 = vmatmul.mubr.f32.gmra.mxu0 %v6803
  %v6929 = vpop.f32.mrf.mxu0
  %v6930 = vadd.f32 %v6718, %v6929
  %v6931 = vpop.f32.mrf.mxu0
  %6932 = vmatprep.mubr.f32.mxu0 0.0
  %6933 = vmatmul.mubr.f32.gmra.mxu0 %v6805
  %v6934 = vpop.f32.mrf.mxu0
  %v6935 = vadd.f32 %v6723, %v6934
  %v6936 = vpop.f32.mrf.mxu0
  %6937 = vmatprep.mubr.f32.mxu0 0.0
  %6938 = vmatmul.mubr.f32.gmra.mxu0 %v6807
  %v6939 = vpop.f32.mrf.mxu0
  %v6940 = vadd.f32 %v6728, %v6939
  %v6941 = vpop.f32.mrf.mxu0
  %6942 = vmatprep.mubr.f32.mxu0 0.0
  %6943 = vmatmul.mubr.f32.gmra.mxu0 %v6809
  %v6944 = vpop.f32.mrf.mxu0
  %v6945 = vadd.f32 %v6733, %v6944
  %v6946 = vpop.f32.mrf.mxu0
  %6947 = vmatprep.mubr.f32.mxu0 0.0
  %6948 = vmatmul.mubr.f32.gmra.mxu0 %v6811
  %v6949 = vpop.f32.mrf.mxu0
  %v6950 = vadd.f32 %v6738, %v6949
  %v6951 = vpop.f32.mrf.mxu0
  %6952 = vmatprep.mubr.f32.mxu0 0.0
  %6953 = vmatmul.mubr.f32.gmra.mxu0 %v6813
  %v6954 = vpop.f32.mrf.mxu0
  %v6955 = vadd.f32 %v6743, %v6954
  %v6956 = vpop.f32.mrf.mxu0
  %6957 = vmatprep.mubr.f32.mxu0 0.0
  %6958 = vmatmul.mubr.f32.gmra.mxu0 %v6815
  %v6959 = vpop.f32.mrf.mxu0
  %v6960 = vadd.f32 %v6748, %v6959
  %v6961 = vpop.f32.mrf.mxu0
  %6962 = vmatprep.mubr.f32.mxu0 0.0
  %6963 = vmatmul.mubr.f32.gmra.mxu0 %v6817
  %v6964 = vpop.f32.mrf.mxu0
  %v6965 = vadd.f32 %v6753, %v6964
  %v6966 = vpop.f32.mrf.mxu0
  %6967 = vmatprep.mubr.f32.mxu0 0.0
  %6968 = vmatmul.mubr.f32.gmra.mxu0 %v6819
  %v6969 = vpop.f32.mrf.mxu0
  %v6970 = vadd.f32 %v6758, %v6969
  %v6971 = vpop.f32.mrf.mxu0
  %6972 = vmatprep.mubr.f32.mxu0 0.0
  %6973 = vmatmul.mubr.f32.gmra.mxu0 %v6821
  %v6974 = vpop.f32.mrf.mxu0
  %v6975 = vadd.f32 %v6763, %v6974
  %v6976 = vpop.f32.mrf.mxu0
  %6977 = vmatprep.mubr.f32.mxu0 0.0
  %6978 = vmatmul.mubr.f32.gmra.mxu0 %v6823
  %v6979 = vpop.f32.mrf.mxu0
  %v6980 = vadd.f32 %v6768, %v6979
  %v6981 = vpop.f32.mrf.mxu0
  %6982 = vmatprep.mubr.f32.mxu0 0.0
  %6983 = vmatmul.mubr.f32.gmra.mxu0 %v6825
  %v6984 = vpop.f32.mrf.mxu0
  %v6985 = vadd.f32 %v6773, %v6984
  %v6986 = vpop.f32.mrf.mxu0
  %6987 = vmatprep.mubr.f32.mxu0 0.0
  %6988 = vmatmul.mubr.f32.gmra.mxu0 %v6827
  %v6989 = vpop.f32.mrf.mxu0
  %v6990 = vadd.f32 %v6778, %v6989
  %v6991 = vpop.f32.mrf.mxu0
  %6992 = vmatprep.mubr.f32.mxu0 0.0
  %6993 = vmatmul.mubr.f32.gmra.mxu0 %v6829
  %v6994 = vpop.f32.mrf.mxu0
  %v6995 = vadd.f32 %v6783, %v6994
  %v6996 = vpop.f32.mrf.mxu0
  %6997 = vmatprep.mubr.f32.mxu0 0.0
  %6998 = vmatmul.mubr.f32.gmra.mxu0 %v6831
  %v6999 = vpop.f32.mrf.mxu0
  %v7000 = vadd.f32 %v6788, %v6999
  %v7001 = vpop.f32.mrf.mxu0
  %7002 = vdwg.mxu0
  %7003 = vrot.lane.b32.xlu0 %v6479, 64
  %v7004 = vpop.permute.xlu0 %7003
  %7005 = vrot.lane.b32.xlu0 %v6480, 64
  %v7006 = vpop.permute.xlu0 %7005
  %7007 = vrot.lane.b32.xlu0 %v6481, 64
  %v7008 = vpop.permute.xlu0 %7007
  %7009 = vrot.lane.b32.xlu0 %v6482, 64
  %v7010 = vpop.permute.xlu0 %7009
  %7011 = vrot.lane.b32.xlu0 %v6483, 64
  %v7012 = vpop.permute.xlu0 %7011
  %7013 = vrot.lane.b32.xlu0 %v6484, 64
  %v7014 = vpop.permute.xlu0 %7013
  %7015 = vrot.lane.b32.xlu0 %v6485, 64
  %v7016 = vpop.permute.xlu0 %7015
  %7017 = vrot.lane.b32.xlu0 %v6486, 64
  %v7018 = vpop.permute.xlu0 %7017
  %7019 = vrot.lane.b32.xlu0 %v6487, 64
  %v7020 = vpop.permute.xlu0 %7019
  %7021 = vrot.lane.b32.xlu0 %v6488, 64
  %v7022 = vpop.permute.xlu0 %7021
  %7023 = vrot.lane.b32.xlu0 %v6489, 64
  %v7024 = vpop.permute.xlu0 %7023
  %7025 = vrot.lane.b32.xlu0 %v6490, 64
  %v7026 = vpop.permute.xlu0 %7025
  %7027 = vrot.lane.b32.xlu0 %v6491, 64
  %v7028 = vpop.permute.xlu0 %7027
  %7029 = vrot.lane.b32.xlu0 %v6492, 64
  %v7030 = vpop.permute.xlu0 %7029
  %7031 = vrot.lane.b32.xlu0 %v6493, 64
  %v7032 = vpop.permute.xlu0 %7031
  %7033 = vrot.lane.b32.xlu0 %v6494, 64
  %v7034 = vpop.permute.xlu0 %7033
  %7035 = vrot.lane.b32.xlu0 %v6495, 64
  %v7036 = vpop.permute.xlu0 %7035
  %7037 = vrot.lane.b32.xlu0 %v6496, 64
  %v7038 = vpop.permute.xlu0 %7037
  %7039 = vrot.lane.b32.xlu0 %v6497, 64
  %v7040 = vpop.permute.xlu0 %7039
  %7041 = vrot.lane.b32.xlu0 %v6498, 64
  %v7042 = vpop.permute.xlu0 %7041
  %7043 = vrot.lane.b32.xlu0 %v6499, 64
  %v7044 = vpop.permute.xlu0 %7043
  %7045 = vrot.lane.b32.xlu0 %v6475, 126
  %v7046 = vpop.permute.xlu0 %7045
  %7047 = vrot.lane.b32.xlu0 %v6476, 126
  %v7048 = vpop.permute.xlu0 %7047
  %7049 = vrot.lane.b32.xlu0 %v6477, 126
  %v7050 = vpop.permute.xlu0 %7049
  %7051 = vrot.lane.b32.xlu0 %v6478, 126
  %v7052 = vpop.permute.xlu0 %7051
  %v7057 = vsel %vm142, %v7004, 0
  %v7059 = vsel %vm142, %v7006, 0
  %v7061 = vsel %vm142, %v7008, 0
  %v7063 = vsel %vm142, %v7010, 0
  %v7065 = vsel %vm142, %v7012, 0
  %v7067 = vsel %vm142, %v7014, 0
  %v7069 = vsel %vm142, %v7016, 0
  %v7071 = vsel %vm142, %v7018, 0
  %v7073 = vsel %vm142, %v7020, 0
  %v7075 = vsel %vm142, %v7022, 0
  %v7077 = vsel %vm142, %v7024, 0
  %v7079 = vsel %vm142, %v7026, 0
  %v7081 = vsel %vm142, %v7028, 0
  %v7083 = vsel %vm142, %v7030, 0
  %v7085 = vsel %vm142, %v7032, 0
  %v7087 = vsel %vm142, %v7034, 0
  %v7089 = vsel %vm142, %v7036, 0
  %v7091 = vsel %vm142, %v7038, 0
  %v7093 = vsel %vm142, %v7040, 0
  %v7095 = vsel %vm142, %v7042, 0
  %v7097 = vsel %vm142, %v7044, 0
  %7099 = vmatprep.subr.mxu0 0.0
  %7100 = vmatpush1.msra.mxu0 0.0
  %7101 = vmatprep.subr.mxu0 0.0
  %7102 = vmatpush1.msra.mxu0 0.0
  %7103 = vmatprep.subr.mxu0 0.0
  %7104 = vmatpush1.msra.mxu0 0.0
  %7105 = vmatprep.subr.mxu0 0.0
  %7106 = vmatpush1.msra.mxu0 0.0
  %7107 = vmatprep.subr.mxu0 0.0
  %7108 = vmatpush1.msra.mxu0 0.0
  %7109 = vmatprep.subr.mxu0 0.0
  %7110 = vmatpush1.msra.mxu0 0.0
  %7111 = vmatprep.subr.mxu0 0.0
  %7112 = vmatpush1.msra.mxu0 0.0
  %7113 = vmatprep.subr.mxu0 0.0
  %7114 = vmatpush1.msra.mxu0 0.0
  %7115 = vmatprep.subr.mxu0 0.0
  %7116 = vmatpush1.msra.mxu0 0.0
  %7117 = vmatprep.subr.mxu0 0.0
  %7118 = vmatpush1.msra.mxu0 0.0
  %7119 = vmatprep.subr.mxu0 0.0
  %7120 = vmatpush1.msra.mxu0 0.0
  %7121 = vmatprep.subr.mxu0 0.0
  %7122 = vmatpush1.msra.mxu0 0.0
  %7123 = vmatprep.subr.mxu0 0.0
  %7124 = vmatpush1.msra.mxu0 %v7052
  %7125 = vmatprep.subr.mxu0 0.0
  %7126 = vmatpush1.msra.mxu0 %v7050
  %7127 = vmatprep.subr.mxu0 0.0
  %7128 = vmatpush1.msra.mxu0 %v7048
  %7129 = vmatprep.subr.mxu0 0.0
  %7130 = vmatpush1.msra.mxu0 %v7046
  %7131 = vmatprep.subr.mxu0 0.0
  %7132 = vmatpush2.msra.mxu0 0.0
  %7133 = vmatprep.subr.mxu0 0.0
  %7134 = vmatpush2.msra.mxu0 0.0
  %7135 = vmatprep.subr.mxu0 0.0
  %7136 = vmatpush2.msra.mxu0 0.0
  %7137 = vmatprep.subr.mxu0 0.0
  %7138 = vmatpush2.msra.mxu0 0.0
  %7139 = vmatprep.subr.mxu0 0.0
  %7140 = vmatpush2.msra.mxu0 0.0
  %7141 = vmatprep.subr.mxu0 0.0
  %7142 = vmatpush2.msra.mxu0 0.0
  %7143 = vmatprep.subr.mxu0 0.0
  %7144 = vmatpush2.msra.mxu0 0.0
  %7145 = vmatprep.subr.mxu0 0.0
  %7146 = vmatpush2.msra.mxu0 0.0
  %7147 = vmatprep.subr.mxu0 0.0
  %7148 = vmatpush2.msra.mxu0 0.0
  %7149 = vmatprep.subr.mxu0 0.0
  %7150 = vmatpush2.msra.mxu0 0.0
  %7151 = vmatprep.subr.mxu0 0.0
  %7152 = vmatpush2.msra.mxu0 0.0
  %7153 = vmatprep.subr.mxu0 0.0
  %7154 = vmatpush2.msra.mxu0 0.0
  %7155 = vmatprep.subr.mxu0 0.0
  %7156 = vmatpush2.msra.mxu0 0.0
  %7157 = vmatprep.subr.mxu0 0.0
  %7158 = vmatpush2.msra.mxu0 0.0
  %7159 = vmatprep.subr.mxu0 0.0
  %7160 = vmatpush2.msra.mxu0 0.0
  %7161 = vmatprep.subr.mxu0 0.0
  %7162 = vmatpush2.msra.mxu0 0.0
  %7163 = vmatprep.mubr.f32.mxu0 0.0
  %7164 = vmatmul.mubr.f32.gmra.mxu0 %v7057
  %v7165 = vpop.f32.mrf.mxu0
  %v7166 = vadd.f32 0.0, %v7165
  %v7167 = vpop.f32.mrf.mxu0
  %7168 = vmatprep.mubr.f32.mxu0 0.0
  %7169 = vmatmul.mubr.f32.gmra.mxu0 %v7059
  %v7170 = vpop.f32.mrf.mxu0
  %v7171 = vadd.f32 0.0, %v7170
  %v7172 = vpop.f32.mrf.mxu0
  %7173 = vmatprep.mubr.f32.mxu0 0.0
  %7174 = vmatmul.mubr.f32.gmra.mxu0 %v7061
  %v7175 = vpop.f32.mrf.mxu0
  %v7176 = vadd.f32 0.0, %v7175
  %v7177 = vpop.f32.mrf.mxu0
  %7178 = vmatprep.mubr.f32.mxu0 0.0
  %7179 = vmatmul.mubr.f32.gmra.mxu0 %v7063
  %v7180 = vpop.f32.mrf.mxu0
  %v7181 = vadd.f32 0.0, %v7180
  %v7182 = vpop.f32.mrf.mxu0
  %7183 = vmatprep.mubr.f32.mxu0 0.0
  %7184 = vmatmul.mubr.f32.gmra.mxu0 %v7065
  %v7185 = vpop.f32.mrf.mxu0
  %v7186 = vadd.f32 0.0, %v7185
  %v7187 = vpop.f32.mrf.mxu0
  %7188 = vmatprep.mubr.f32.mxu0 0.0
  %7189 = vmatmul.mubr.f32.gmra.mxu0 %v7067
  %v7190 = vpop.f32.mrf.mxu0
  %v7191 = vadd.f32 0.0, %v7190
  %v7192 = vpop.f32.mrf.mxu0
  %7193 = vmatprep.mubr.f32.mxu0 0.0
  %7194 = vmatmul.mubr.f32.gmra.mxu0 %v7069
  %v7195 = vpop.f32.mrf.mxu0
  %v7196 = vadd.f32 0.0, %v7195
  %v7197 = vpop.f32.mrf.mxu0
  %7198 = vmatprep.mubr.f32.mxu0 0.0
  %7199 = vmatmul.mubr.f32.gmra.mxu0 %v7071
  %v7200 = vpop.f32.mrf.mxu0
  %v7201 = vadd.f32 0.0, %v7200
  %v7202 = vpop.f32.mrf.mxu0
  %7203 = vmatprep.mubr.f32.mxu0 0.0
  %7204 = vmatmul.mubr.f32.gmra.mxu0 %v7073
  %v7205 = vpop.f32.mrf.mxu0
  %v7206 = vadd.f32 0.0, %v7205
  %v7207 = vpop.f32.mrf.mxu0
  %7208 = vmatprep.mubr.f32.mxu0 0.0
  %7209 = vmatmul.mubr.f32.gmra.mxu0 %v7075
  %v7210 = vpop.f32.mrf.mxu0
  %v7211 = vadd.f32 0.0, %v7210
  %v7212 = vpop.f32.mrf.mxu0
  %7213 = vmatprep.mubr.f32.mxu0 0.0
  %7214 = vmatmul.mubr.f32.gmra.mxu0 %v7077
  %v7215 = vpop.f32.mrf.mxu0
  %v7216 = vadd.f32 0.0, %v7215
  %v7217 = vpop.f32.mrf.mxu0
  %7218 = vmatprep.mubr.f32.mxu0 0.0
  %7219 = vmatmul.mubr.f32.gmra.mxu0 %v7079
  %v7220 = vpop.f32.mrf.mxu0
  %v7221 = vadd.f32 0.0, %v7220
  %v7222 = vpop.f32.mrf.mxu0
  %7223 = vmatprep.mubr.f32.mxu0 0.0
  %7224 = vmatmul.mubr.f32.gmra.mxu0 %v7081
  %v7225 = vpop.f32.mrf.mxu0
  %v7226 = vadd.f32 0.0, %v7225
  %v7227 = vpop.f32.mrf.mxu0
  %7228 = vmatprep.mubr.f32.mxu0 0.0
  %7229 = vmatmul.mubr.f32.gmra.mxu0 %v7083
  %v7230 = vpop.f32.mrf.mxu0
  %v7231 = vadd.f32 0.0, %v7230
  %v7232 = vpop.f32.mrf.mxu0
  %7233 = vmatprep.mubr.f32.mxu0 0.0
  %7234 = vmatmul.mubr.f32.gmra.mxu0 %v7085
  %v7235 = vpop.f32.mrf.mxu0
  %v7236 = vadd.f32 0.0, %v7235
  %v7237 = vpop.f32.mrf.mxu0
  %7238 = vmatprep.mubr.f32.mxu0 0.0
  %7239 = vmatmul.mubr.f32.gmra.mxu0 %v7087
  %v7240 = vpop.f32.mrf.mxu0
  %v7241 = vadd.f32 0.0, %v7240
  %v7242 = vpop.f32.mrf.mxu0
  %7243 = vmatprep.mubr.f32.mxu0 0.0
  %7244 = vmatmul.mubr.f32.gmra.mxu0 %v7089
  %v7245 = vpop.f32.mrf.mxu0
  %v7246 = vadd.f32 0.0, %v7245
  %v7247 = vpop.f32.mrf.mxu0
  %7248 = vmatprep.mubr.f32.mxu0 0.0
  %7249 = vmatmul.mubr.f32.gmra.mxu0 %v7091
  %v7250 = vpop.f32.mrf.mxu0
  %v7251 = vadd.f32 0.0, %v7250
  %v7252 = vpop.f32.mrf.mxu0
  %7253 = vmatprep.mubr.f32.mxu0 0.0
  %7254 = vmatmul.mubr.f32.gmra.mxu0 %v7093
  %v7255 = vpop.f32.mrf.mxu0
  %v7256 = vadd.f32 0.0, %v7255
  %v7257 = vpop.f32.mrf.mxu0
  %7258 = vmatprep.mubr.f32.mxu0 0.0
  %7259 = vmatmul.mubr.f32.gmra.mxu0 %v7095
  %v7260 = vpop.f32.mrf.mxu0
  %v7261 = vadd.f32 0.0, %v7260
  %v7262 = vpop.f32.mrf.mxu0
  %7263 = vmatprep.mubr.f32.mxu0 0.0
  %7264 = vmatmul.mubr.f32.gmra.mxu0 %v7097
  %v7265 = vpop.f32.mrf.mxu0
  %v7266 = vadd.f32 0.0, %v7265
  %v7267 = vpop.f32.mrf.mxu0
  %7268 = vdwg.mxu0
  %v7269 = vadd.f32 %v6900, %v7166
  %v7270 = vadd.f32 %v6905, %v7171
  %v7271 = vadd.f32 %v6910, %v7176
  %v7272 = vadd.f32 %v6915, %v7181
  %v7273 = vadd.f32 %v6920, %v7186
  %v7274 = vadd.f32 %v6925, %v7191
  %v7275 = vadd.f32 %v6930, %v7196
  %v7276 = vadd.f32 %v6935, %v7201
  %v7277 = vadd.f32 %v6940, %v7206
  %v7278 = vadd.f32 %v6945, %v7211
  %v7279 = vadd.f32 %v6950, %v7216
  %v7280 = vadd.f32 %v6955, %v7221
  %v7281 = vadd.f32 %v6960, %v7226
  %v7282 = vadd.f32 %v6965, %v7231
  %v7283 = vadd.f32 %v6970, %v7236
  %v7284 = vadd.f32 %v6975, %v7241
  %v7285 = vadd.f32 %v6980, %v7246
  %v7286 = vadd.f32 %v6985, %v7251
  %v7287 = vadd.f32 %v6990, %v7256
  %v7288 = vadd.f32 %v6995, %v7261
  %v7289 = vadd.f32 %v7000, %v7266
  %7290 = vrot.lane.b32.xlu0 %v6479, 32
  %v7291 = vpop.permute.xlu0 %7290
  %7292 = vrot.lane.b32.xlu0 %v6480, 32
  %v7293 = vpop.permute.xlu0 %7292
  %7294 = vrot.lane.b32.xlu0 %v6481, 32
  %v7295 = vpop.permute.xlu0 %7294
  %7296 = vrot.lane.b32.xlu0 %v6482, 32
  %v7297 = vpop.permute.xlu0 %7296
  %7298 = vrot.lane.b32.xlu0 %v6483, 32
  %v7299 = vpop.permute.xlu0 %7298
  %7300 = vrot.lane.b32.xlu0 %v6484, 32
  %v7301 = vpop.permute.xlu0 %7300
  %7302 = vrot.lane.b32.xlu0 %v6485, 32
  %v7303 = vpop.permute.xlu0 %7302
  %7304 = vrot.lane.b32.xlu0 %v6486, 32
  %v7305 = vpop.permute.xlu0 %7304
  %7306 = vrot.lane.b32.xlu0 %v6487, 32
  %v7307 = vpop.permute.xlu0 %7306
  %7308 = vrot.lane.b32.xlu0 %v6488, 32
  %v7309 = vpop.permute.xlu0 %7308
  %7310 = vrot.lane.b32.xlu0 %v6489, 32
  %v7311 = vpop.permute.xlu0 %7310
  %7312 = vrot.lane.b32.xlu0 %v6490, 32
  %v7313 = vpop.permute.xlu0 %7312
  %7314 = vrot.lane.b32.xlu0 %v6491, 32
  %v7315 = vpop.permute.xlu0 %7314
  %7316 = vrot.lane.b32.xlu0 %v6492, 32
  %v7317 = vpop.permute.xlu0 %7316
  %7318 = vrot.lane.b32.xlu0 %v6493, 32
  %v7319 = vpop.permute.xlu0 %7318
  %7320 = vrot.lane.b32.xlu0 %v6494, 32
  %v7321 = vpop.permute.xlu0 %7320
  %7322 = vrot.lane.b32.xlu0 %v6495, 32
  %v7323 = vpop.permute.xlu0 %7322
  %7324 = vrot.lane.b32.xlu0 %v6496, 32
  %v7325 = vpop.permute.xlu0 %7324
  %7326 = vrot.lane.b32.xlu0 %v6497, 32
  %v7327 = vpop.permute.xlu0 %7326
  %7328 = vrot.lane.b32.xlu0 %v6498, 32
  %v7329 = vpop.permute.xlu0 %7328
  %7330 = vrot.lane.b32.xlu0 %v6499, 32
  %v7331 = vpop.permute.xlu0 %7330
  %7332 = vrot.lane.b32.xlu0 %v6475, 125
  %v7333 = vpop.permute.xlu0 %7332
  %7334 = vrot.lane.b32.xlu0 %v6476, 125
  %v7335 = vpop.permute.xlu0 %7334
  %7336 = vrot.lane.b32.xlu0 %v6477, 125
  %v7337 = vpop.permute.xlu0 %7336
  %7338 = vrot.lane.b32.xlu0 %v6478, 125
  %v7339 = vpop.permute.xlu0 %7338
  %v7344 = vsel %vm142, %v7291, 0
  %v7346 = vsel %vm142, %v7293, 0
  %v7348 = vsel %vm142, %v7295, 0
  %v7350 = vsel %vm142, %v7297, 0
  %v7352 = vsel %vm142, %v7299, 0
  %v7354 = vsel %vm142, %v7301, 0
  %v7356 = vsel %vm142, %v7303, 0
  %v7358 = vsel %vm142, %v7305, 0
  %v7360 = vsel %vm142, %v7307, 0
  %v7362 = vsel %vm142, %v7309, 0
  %v7364 = vsel %vm142, %v7311, 0
  %v7366 = vsel %vm142, %v7313, 0
  %v7368 = vsel %vm142, %v7315, 0
  %v7370 = vsel %vm142, %v7317, 0
  %v7372 = vsel %vm142, %v7319, 0
  %v7374 = vsel %vm142, %v7321, 0
  %v7376 = vsel %vm142, %v7323, 0
  %v7378 = vsel %vm142, %v7325, 0
  %v7380 = vsel %vm142, %v7327, 0
  %v7382 = vsel %vm142, %v7329, 0
  %v7384 = vsel %vm142, %v7331, 0
  %7386 = vmatprep.subr.mxu0 0.0
  %7387 = vmatpush1.msra.mxu0 0.0
  %7388 = vmatprep.subr.mxu0 0.0
  %7389 = vmatpush1.msra.mxu0 0.0
  %7390 = vmatprep.subr.mxu0 0.0
  %7391 = vmatpush1.msra.mxu0 0.0
  %7392 = vmatprep.subr.mxu0 0.0
  %7393 = vmatpush1.msra.mxu0 0.0
  %7394 = vmatprep.subr.mxu0 0.0
  %7395 = vmatpush1.msra.mxu0 0.0
  %7396 = vmatprep.subr.mxu0 0.0
  %7397 = vmatpush1.msra.mxu0 0.0
  %7398 = vmatprep.subr.mxu0 0.0
  %7399 = vmatpush1.msra.mxu0 0.0
  %7400 = vmatprep.subr.mxu0 0.0
  %7401 = vmatpush1.msra.mxu0 0.0
  %7402 = vmatprep.subr.mxu0 0.0
  %7403 = vmatpush1.msra.mxu0 0.0
  %7404 = vmatprep.subr.mxu0 0.0
  %7405 = vmatpush1.msra.mxu0 0.0
  %7406 = vmatprep.subr.mxu0 0.0
  %7407 = vmatpush1.msra.mxu0 0.0
  %7408 = vmatprep.subr.mxu0 0.0
  %7409 = vmatpush1.msra.mxu0 0.0
  %7410 = vmatprep.subr.mxu0 0.0
  %7411 = vmatpush1.msra.mxu0 %v7339
  %7412 = vmatprep.subr.mxu0 0.0
  %7413 = vmatpush1.msra.mxu0 %v7337
  %7414 = vmatprep.subr.mxu0 0.0
  %7415 = vmatpush1.msra.mxu0 %v7335
  %7416 = vmatprep.subr.mxu0 0.0
  %7417 = vmatpush1.msra.mxu0 %v7333
  %7418 = vmatprep.subr.mxu0 0.0
  %7419 = vmatpush2.msra.mxu0 0.0
  %7420 = vmatprep.subr.mxu0 0.0
  %7421 = vmatpush2.msra.mxu0 0.0
  %7422 = vmatprep.subr.mxu0 0.0
  %7423 = vmatpush2.msra.mxu0 0.0
  %7424 = vmatprep.subr.mxu0 0.0
  %7425 = vmatpush2.msra.mxu0 0.0
  %7426 = vmatprep.subr.mxu0 0.0
  %7427 = vmatpush2.msra.mxu0 0.0
  %7428 = vmatprep.subr.mxu0 0.0
  %7429 = vmatpush2.msra.mxu0 0.0
  %7430 = vmatprep.subr.mxu0 0.0
  %7431 = vmatpush2.msra.mxu0 0.0
  %7432 = vmatprep.subr.mxu0 0.0
  %7433 = vmatpush2.msra.mxu0 0.0
  %7434 = vmatprep.subr.mxu0 0.0
  %7435 = vmatpush2.msra.mxu0 0.0
  %7436 = vmatprep.subr.mxu0 0.0
  %7437 = vmatpush2.msra.mxu0 0.0
  %7438 = vmatprep.subr.mxu0 0.0
  %7439 = vmatpush2.msra.mxu0 0.0
  %7440 = vmatprep.subr.mxu0 0.0
  %7441 = vmatpush2.msra.mxu0 0.0
  %7442 = vmatprep.subr.mxu0 0.0
  %7443 = vmatpush2.msra.mxu0 0.0
  %7444 = vmatprep.subr.mxu0 0.0
  %7445 = vmatpush2.msra.mxu0 0.0
  %7446 = vmatprep.subr.mxu0 0.0
  %7447 = vmatpush2.msra.mxu0 0.0
  %7448 = vmatprep.subr.mxu0 0.0
  %7449 = vmatpush2.msra.mxu0 0.0
  %7450 = vmatprep.mubr.f32.mxu0 0.0
  %7451 = vmatmul.mubr.f32.gmra.mxu0 %v7344
  %v7452 = vpop.f32.mrf.mxu0
  %v7453 = vadd.f32 0.0, %v7452
  %v7454 = vpop.f32.mrf.mxu0
  %7455 = vmatprep.mubr.f32.mxu0 0.0
  %7456 = vmatmul.mubr.f32.gmra.mxu0 %v7346
  %v7457 = vpop.f32.mrf.mxu0
  %v7458 = vadd.f32 0.0, %v7457
  %v7459 = vpop.f32.mrf.mxu0
  %7460 = vmatprep.mubr.f32.mxu0 0.0
  %7461 = vmatmul.mubr.f32.gmra.mxu0 %v7348
  %v7462 = vpop.f32.mrf.mxu0
  %v7463 = vadd.f32 0.0, %v7462
  %v7464 = vpop.f32.mrf.mxu0
  %7465 = vmatprep.mubr.f32.mxu0 0.0
  %7466 = vmatmul.mubr.f32.gmra.mxu0 %v7350
  %v7467 = vpop.f32.mrf.mxu0
  %v7468 = vadd.f32 0.0, %v7467
  %v7469 = vpop.f32.mrf.mxu0
  %7470 = vmatprep.mubr.f32.mxu0 0.0
  %7471 = vmatmul.mubr.f32.gmra.mxu0 %v7352
  %v7472 = vpop.f32.mrf.mxu0
  %v7473 = vadd.f32 0.0, %v7472
  %v7474 = vpop.f32.mrf.mxu0
  %7475 = vmatprep.mubr.f32.mxu0 0.0
  %7476 = vmatmul.mubr.f32.gmra.mxu0 %v7354
  %v7477 = vpop.f32.mrf.mxu0
  %v7478 = vadd.f32 0.0, %v7477
  %v7479 = vpop.f32.mrf.mxu0
  %7480 = vmatprep.mubr.f32.mxu0 0.0
  %7481 = vmatmul.mubr.f32.gmra.mxu0 %v7356
  %v7482 = vpop.f32.mrf.mxu0
  %v7483 = vadd.f32 0.0, %v7482
  %v7484 = vpop.f32.mrf.mxu0
  %7485 = vmatprep.mubr.f32.mxu0 0.0
  %7486 = vmatmul.mubr.f32.gmra.mxu0 %v7358
  %v7487 = vpop.f32.mrf.mxu0
  %v7488 = vadd.f32 0.0, %v7487
  %v7489 = vpop.f32.mrf.mxu0
  %7490 = vmatprep.mubr.f32.mxu0 0.0
  %7491 = vmatmul.mubr.f32.gmra.mxu0 %v7360
  %v7492 = vpop.f32.mrf.mxu0
  %v7493 = vadd.f32 0.0, %v7492
  %v7494 = vpop.f32.mrf.mxu0
  %7495 = vmatprep.mubr.f32.mxu0 0.0
  %7496 = vmatmul.mubr.f32.gmra.mxu0 %v7362
  %v7497 = vpop.f32.mrf.mxu0
  %v7498 = vadd.f32 0.0, %v7497
  %v7499 = vpop.f32.mrf.mxu0
  %7500 = vmatprep.mubr.f32.mxu0 0.0
  %7501 = vmatmul.mubr.f32.gmra.mxu0 %v7364
  %v7502 = vpop.f32.mrf.mxu0
  %v7503 = vadd.f32 0.0, %v7502
  %v7504 = vpop.f32.mrf.mxu0
  %7505 = vmatprep.mubr.f32.mxu0 0.0
  %7506 = vmatmul.mubr.f32.gmra.mxu0 %v7366
  %v7507 = vpop.f32.mrf.mxu0
  %v7508 = vadd.f32 0.0, %v7507
  %v7509 = vpop.f32.mrf.mxu0
  %7510 = vmatprep.mubr.f32.mxu0 0.0
  %7511 = vmatmul.mubr.f32.gmra.mxu0 %v7368
  %v7512 = vpop.f32.mrf.mxu0
  %v7513 = vadd.f32 0.0, %v7512
  %v7514 = vpop.f32.mrf.mxu0
  %7515 = vmatprep.mubr.f32.mxu0 0.0
  %7516 = vmatmul.mubr.f32.gmra.mxu0 %v7370
  %v7517 = vpop.f32.mrf.mxu0
  %v7518 = vadd.f32 0.0, %v7517
  %v7519 = vpop.f32.mrf.mxu0
  %7520 = vmatprep.mubr.f32.mxu0 0.0
  %7521 = vmatmul.mubr.f32.gmra.mxu0 %v7372
  %v7522 = vpop.f32.mrf.mxu0
  %v7523 = vadd.f32 0.0, %v7522
  %v7524 = vpop.f32.mrf.mxu0
  %7525 = vmatprep.mubr.f32.mxu0 0.0
  %7526 = vmatmul.mubr.f32.gmra.mxu0 %v7374
  %v7527 = vpop.f32.mrf.mxu0
  %v7528 = vadd.f32 0.0, %v7527
  %v7529 = vpop.f32.mrf.mxu0
  %7530 = vmatprep.mubr.f32.mxu0 0.0
  %7531 = vmatmul.mubr.f32.gmra.mxu0 %v7376
  %v7532 = vpop.f32.mrf.mxu0
  %v7533 = vadd.f32 0.0, %v7532
  %v7534 = vpop.f32.mrf.mxu0
  %7535 = vmatprep.mubr.f32.mxu0 0.0
  %7536 = vmatmul.mubr.f32.gmra.mxu0 %v7378
  %v7537 = vpop.f32.mrf.mxu0
  %v7538 = vadd.f32 0.0, %v7537
  %v7539 = vpop.f32.mrf.mxu0
  %7540 = vmatprep.mubr.f32.mxu0 0.0
  %7541 = vmatmul.mubr.f32.gmra.mxu0 %v7380
  %v7542 = vpop.f32.mrf.mxu0
  %v7543 = vadd.f32 0.0, %v7542
  %v7544 = vpop.f32.mrf.mxu0
  %7545 = vmatprep.mubr.f32.mxu0 0.0
  %7546 = vmatmul.mubr.f32.gmra.mxu0 %v7382
  %v7547 = vpop.f32.mrf.mxu0
  %v7548 = vadd.f32 0.0, %v7547
  %v7549 = vpop.f32.mrf.mxu0
  %7550 = vmatprep.mubr.f32.mxu0 0.0
  %7551 = vmatmul.mubr.f32.gmra.mxu0 %v7384
  %v7552 = vpop.f32.mrf.mxu0
  %v7553 = vadd.f32 0.0, %v7552
  %v7554 = vpop.f32.mrf.mxu0
  %7555 = vdwg.mxu0
  %v7556 = vadd.f32 %v7269, %v7453
  %v7557 = vadd.f32 %v7270, %v7458
  %v7558 = vadd.f32 %v7271, %v7463
  %v7559 = vadd.f32 %v7272, %v7468
  %v7560 = vadd.f32 %v7273, %v7473
  %v7561 = vadd.f32 %v7274, %v7478
  %v7562 = vadd.f32 %v7275, %v7483
  %v7563 = vadd.f32 %v7276, %v7488
  %v7564 = vadd.f32 %v7277, %v7493
  %v7565 = vadd.f32 %v7278, %v7498
  %v7566 = vadd.f32 %v7279, %v7503
  %v7567 = vadd.f32 %v7280, %v7508
  %v7568 = vadd.f32 %v7281, %v7513
  %v7569 = vadd.f32 %v7282, %v7518
  %v7570 = vadd.f32 %v7283, %v7523
  %v7571 = vadd.f32 %v7284, %v7528
  %v7572 = vadd.f32 %v7285, %v7533
  %v7573 = vadd.f32 %v7286, %v7538
  %v7574 = vadd.f32 %v7287, %v7543
  %v7575 = vadd.f32 %v7288, %v7548
  %v7576 = vadd.f32 %v7289, %v7553
  %v7577 = vld [vmem:[%s1 + $0x8] sm:$0xff]
  %v7578 = vld [vmem:[%s1 + $0x18] sm:$0xff]
  %v7579 = vld [vmem:[%s1 + $0x28] sm:$0xff]
  %v7580 = vld [vmem:[%s1 + $0x38] sm:$0xff]
  %v7581 = vld [vmem:[%s1 + $0x48] sm:$0xff]
  %v7582 = vld [vmem:[%s1 + $0x58] sm:$0xff]
  %v7583 = vld [vmem:[%s1 + $0x68] sm:$0xff]
  %v7584 = vld [vmem:[%s1 + $0x78] sm:$0xff]
  %v7585 = vld [vmem:[%s1 + $0x88] sm:$0xff]
  %v7586 = vld [vmem:[%s1 + $0x98] sm:$0xff]
  %v7587 = vld [vmem:[%s1 + $0xa8] sm:$0xff]
  %v7588 = vld [vmem:[%s1 + $0xb8] sm:$0xff]
  %v7589 = vld [vmem:[%s1 + $0xc8] sm:$0xff]
  %v7590 = vld [vmem:[%s1 + $0xd8] sm:$0xff]
  %v7591 = vld [vmem:[%s1 + $0xe8] sm:$0xff]
  %v7592 = vld [vmem:[%s1 + $0xf8] sm:$0xff]
  %v7593 = vld [vmem:[%s1 + $0x108] sm:$0xff]
  %v7594 = vld [vmem:[%s1 + $0x118] sm:$0xff]
  %v7595 = vld [vmem:[%s1 + $0x128] sm:$0xff]
  %v7596 = vld [vmem:[%s1 + $0x138] sm:$0xff]
  %v7597 = vld [vmem:[%s1 + $0x148] sm:$0xff]
  %7598 = vrot.lane.b32.xlu0 %v6475, 124
  %v7599 = vpop.permute.xlu0 %7598
  %7600 = vrot.lane.b32.xlu0 %v6476, 124
  %v7601 = vpop.permute.xlu0 %7600
  %7602 = vrot.lane.b32.xlu0 %v6477, 124
  %v7603 = vpop.permute.xlu0 %7602
  %7604 = vrot.lane.b32.xlu0 %v6478, 124
  %v7605 = vpop.permute.xlu0 %7604
  %v7611 = vsel %vm142, %v7577, 0
  %v7614 = vsel %vm142, %v7578, 0
  %v7617 = vsel %vm142, %v7579, 0
  %v7620 = vsel %vm142, %v7580, 0
  %v7623 = vsel %vm142, %v7581, 0
  %v7626 = vsel %vm142, %v7582, 0
  %v7629 = vsel %vm142, %v7583, 0
  %v7632 = vsel %vm142, %v7584, 0
  %v7635 = vsel %vm142, %v7585, 0
  %v7638 = vsel %vm142, %v7586, 0
  %v7641 = vsel %vm142, %v7587, 0
  %v7644 = vsel %vm142, %v7588, 0
  %v7647 = vsel %vm142, %v7589, 0
  %v7650 = vsel %vm142, %v7590, 0
  %v7653 = vsel %vm142, %v7591, 0
  %v7656 = vsel %vm142, %v7592, 0
  %v7659 = vsel %vm142, %v7593, 0
  %v7662 = vsel %vm142, %v7594, 0
  %v7665 = vsel %vm142, %v7595, 0
  %v7668 = vsel %vm142, %v7596, 0
  %v7671 = vsel %vm142, %v7597, 0
  %7673 = vmatprep.subr.mxu0 0.0
  %7674 = vmatpush1.msra.mxu0 0.0
  %7675 = vmatprep.subr.mxu0 0.0
  %7676 = vmatpush1.msra.mxu0 0.0
  %7677 = vmatprep.subr.mxu0 0.0
  %7678 = vmatpush1.msra.mxu0 0.0
  %7679 = vmatprep.subr.mxu0 0.0
  %7680 = vmatpush1.msra.mxu0 0.0
  %7681 = vmatprep.subr.mxu0 0.0
  %7682 = vmatpush1.msra.mxu0 0.0
  %7683 = vmatprep.subr.mxu0 0.0
  %7684 = vmatpush1.msra.mxu0 0.0
  %7685 = vmatprep.subr.mxu0 0.0
  %7686 = vmatpush1.msra.mxu0 0.0
  %7687 = vmatprep.subr.mxu0 0.0
  %7688 = vmatpush1.msra.mxu0 0.0
  %7689 = vmatprep.subr.mxu0 0.0
  %7690 = vmatpush1.msra.mxu0 0.0
  %7691 = vmatprep.subr.mxu0 0.0
  %7692 = vmatpush1.msra.mxu0 0.0
  %7693 = vmatprep.subr.mxu0 0.0
  %7694 = vmatpush1.msra.mxu0 0.0
  %7695 = vmatprep.subr.mxu0 0.0
  %7696 = vmatpush1.msra.mxu0 0.0
  %7697 = vmatprep.subr.mxu0 0.0
  %7698 = vmatpush1.msra.mxu0 %v7605
  %7699 = vmatprep.subr.mxu0 0.0
  %7700 = vmatpush1.msra.mxu0 %v7603
  %7701 = vmatprep.subr.mxu0 0.0
  %7702 = vmatpush1.msra.mxu0 %v7601
  %7703 = vmatprep.subr.mxu0 0.0
  %7704 = vmatpush1.msra.mxu0 %v7599
  %7705 = vmatprep.subr.mxu0 0.0
  %7706 = vmatpush2.msra.mxu0 0.0
  %7707 = vmatprep.subr.mxu0 0.0
  %7708 = vmatpush2.msra.mxu0 0.0
  %7709 = vmatprep.subr.mxu0 0.0
  %7710 = vmatpush2.msra.mxu0 0.0
  %7711 = vmatprep.subr.mxu0 0.0
  %7712 = vmatpush2.msra.mxu0 0.0
  %7713 = vmatprep.subr.mxu0 0.0
  %7714 = vmatpush2.msra.mxu0 0.0
  %7715 = vmatprep.subr.mxu0 0.0
  %7716 = vmatpush2.msra.mxu0 0.0
  %7717 = vmatprep.subr.mxu0 0.0
  %7718 = vmatpush2.msra.mxu0 0.0
  %7719 = vmatprep.subr.mxu0 0.0
  %7720 = vmatpush2.msra.mxu0 0.0
  %7721 = vmatprep.subr.mxu0 0.0
  %7722 = vmatpush2.msra.mxu0 0.0
  %7723 = vmatprep.subr.mxu0 0.0
  %7724 = vmatpush2.msra.mxu0 0.0
  %7725 = vmatprep.subr.mxu0 0.0
  %7726 = vmatpush2.msra.mxu0 0.0
  %7727 = vmatprep.subr.mxu0 0.0
  %7728 = vmatpush2.msra.mxu0 0.0
  %7729 = vmatprep.subr.mxu0 0.0
  %7730 = vmatpush2.msra.mxu0 0.0
  %7731 = vmatprep.subr.mxu0 0.0
  %7732 = vmatpush2.msra.mxu0 0.0
  %7733 = vmatprep.subr.mxu0 0.0
  %7734 = vmatpush2.msra.mxu0 0.0
  %7735 = vmatprep.subr.mxu0 0.0
  %7736 = vmatpush2.msra.mxu0 0.0
  %7737 = vmatprep.mubr.f32.mxu0 0.0
  %7738 = vmatmul.mubr.f32.gmra.mxu0 %v7611
  %v7739 = vpop.f32.mrf.mxu0
  %v7740 = vadd.f32 0.0, %v7739
  %v7741 = vpop.f32.mrf.mxu0
  %7742 = vmatprep.mubr.f32.mxu0 0.0
  %7743 = vmatmul.mubr.f32.gmra.mxu0 %v7614
  %v7744 = vpop.f32.mrf.mxu0
  %v7745 = vadd.f32 0.0, %v7744
  %v7746 = vpop.f32.mrf.mxu0
  %7747 = vmatprep.mubr.f32.mxu0 0.0
  %7748 = vmatmul.mubr.f32.gmra.mxu0 %v7617
  %v7749 = vpop.f32.mrf.mxu0
  %v7750 = vadd.f32 0.0, %v7749
  %v7751 = vpop.f32.mrf.mxu0
  %7752 = vmatprep.mubr.f32.mxu0 0.0
  %7753 = vmatmul.mubr.f32.gmra.mxu0 %v7620
  %v7754 = vpop.f32.mrf.mxu0
  %v7755 = vadd.f32 0.0, %v7754
  %v7756 = vpop.f32.mrf.mxu0
  %7757 = vmatprep.mubr.f32.mxu0 0.0
  %7758 = vmatmul.mubr.f32.gmra.mxu0 %v7623
  %v7759 = vpop.f32.mrf.mxu0
  %v7760 = vadd.f32 0.0, %v7759
  %v7761 = vpop.f32.mrf.mxu0
  %7762 = vmatprep.mubr.f32.mxu0 0.0
  %7763 = vmatmul.mubr.f32.gmra.mxu0 %v7626
  %v7764 = vpop.f32.mrf.mxu0
  %v7765 = vadd.f32 0.0, %v7764
  %v7766 = vpop.f32.mrf.mxu0
  %7767 = vmatprep.mubr.f32.mxu0 0.0
  %7768 = vmatmul.mubr.f32.gmra.mxu0 %v7629
  %v7769 = vpop.f32.mrf.mxu0
  %v7770 = vadd.f32 0.0, %v7769
  %v7771 = vpop.f32.mrf.mxu0
  %7772 = vmatprep.mubr.f32.mxu0 0.0
  %7773 = vmatmul.mubr.f32.gmra.mxu0 %v7632
  %v7774 = vpop.f32.mrf.mxu0
  %v7775 = vadd.f32 0.0, %v7774
  %v7776 = vpop.f32.mrf.mxu0
  %7777 = vmatprep.mubr.f32.mxu0 0.0
  %7778 = vmatmul.mubr.f32.gmra.mxu0 %v7635
  %v7779 = vpop.f32.mrf.mxu0
  %v7780 = vadd.f32 0.0, %v7779
  %v7781 = vpop.f32.mrf.mxu0
  %7782 = vmatprep.mubr.f32.mxu0 0.0
  %7783 = vmatmul.mubr.f32.gmra.mxu0 %v7638
  %v7784 = vpop.f32.mrf.mxu0
  %v7785 = vadd.f32 0.0, %v7784
  %v7786 = vpop.f32.mrf.mxu0
  %7787 = vmatprep.mubr.f32.mxu0 0.0
  %7788 = vmatmul.mubr.f32.gmra.mxu0 %v7641
  %v7789 = vpop.f32.mrf.mxu0
  %v7790 = vadd.f32 0.0, %v7789
  %v7791 = vpop.f32.mrf.mxu0
  %7792 = vmatprep.mubr.f32.mxu0 0.0
  %7793 = vmatmul.mubr.f32.gmra.mxu0 %v7644
  %v7794 = vpop.f32.mrf.mxu0
  %v7795 = vadd.f32 0.0, %v7794
  %v7796 = vpop.f32.mrf.mxu0
  %7797 = vmatprep.mubr.f32.mxu0 0.0
  %7798 = vmatmul.mubr.f32.gmra.mxu0 %v7647
  %v7799 = vpop.f32.mrf.mxu0
  %v7800 = vadd.f32 0.0, %v7799
  %v7801 = vpop.f32.mrf.mxu0
  %7802 = vmatprep.mubr.f32.mxu0 0.0
  %7803 = vmatmul.mubr.f32.gmra.mxu0 %v7650
  %v7804 = vpop.f32.mrf.mxu0
  %v7805 = vadd.f32 0.0, %v7804
  %v7806 = vpop.f32.mrf.mxu0
  %7807 = vmatprep.mubr.f32.mxu0 0.0
  %7808 = vmatmul.mubr.f32.gmra.mxu0 %v7653
  %v7809 = vpop.f32.mrf.mxu0
  %v7810 = vadd.f32 0.0, %v7809
  %v7811 = vpop.f32.mrf.mxu0
  %7812 = vmatprep.mubr.f32.mxu0 0.0
  %7813 = vmatmul.mubr.f32.gmra.mxu0 %v7656
  %v7814 = vpop.f32.mrf.mxu0
  %v7815 = vadd.f32 0.0, %v7814
  %v7816 = vpop.f32.mrf.mxu0
  %7817 = vmatprep.mubr.f32.mxu0 0.0
  %7818 = vmatmul.mubr.f32.gmra.mxu0 %v7659
  %v7819 = vpop.f32.mrf.mxu0
  %v7820 = vadd.f32 0.0, %v7819
  %v7821 = vpop.f32.mrf.mxu0
  %7822 = vmatprep.mubr.f32.mxu0 0.0
  %7823 = vmatmul.mubr.f32.gmra.mxu0 %v7662
  %v7824 = vpop.f32.mrf.mxu0
  %v7825 = vadd.f32 0.0, %v7824
  %v7826 = vpop.f32.mrf.mxu0
  %7827 = vmatprep.mubr.f32.mxu0 0.0
  %7828 = vmatmul.mubr.f32.gmra.mxu0 %v7665
  %v7829 = vpop.f32.mrf.mxu0
  %v7830 = vadd.f32 0.0, %v7829
  %v7831 = vpop.f32.mrf.mxu0
  %7832 = vmatprep.mubr.f32.mxu0 0.0
  %7833 = vmatmul.mubr.f32.gmra.mxu0 %v7668
  %v7834 = vpop.f32.mrf.mxu0
  %v7835 = vadd.f32 0.0, %v7834
  %v7836 = vpop.f32.mrf.mxu0
  %7837 = vmatprep.mubr.f32.mxu0 0.0
  %7838 = vmatmul.mubr.f32.gmra.mxu0 %v7671
  %v7839 = vpop.f32.mrf.mxu0
  %v7840 = vadd.f32 0.0, %v7839
  %v7841 = vpop.f32.mrf.mxu0
  %7842 = vdwg.mxu0
  %v7843 = vadd.f32 %v7556, %v7740
  %v7844 = vadd.f32 %v7557, %v7745
  %v7845 = vadd.f32 %v7558, %v7750
  %v7846 = vadd.f32 %v7559, %v7755
  %v7847 = vadd.f32 %v7560, %v7760
  %v7848 = vadd.f32 %v7561, %v7765
  %v7849 = vadd.f32 %v7562, %v7770
  %v7850 = vadd.f32 %v7563, %v7775
  %v7851 = vadd.f32 %v7564, %v7780
  %v7852 = vadd.f32 %v7565, %v7785
  %v7853 = vadd.f32 %v7566, %v7790
  %v7854 = vadd.f32 %v7567, %v7795
  %v7855 = vadd.f32 %v7568, %v7800
  %v7856 = vadd.f32 %v7569, %v7805
  %v7857 = vadd.f32 %v7570, %v7810
  %v7858 = vadd.f32 %v7571, %v7815
  %v7859 = vadd.f32 %v7572, %v7820
  %v7860 = vadd.f32 %v7573, %v7825
  %v7861 = vadd.f32 %v7574, %v7830
  %v7862 = vadd.f32 %v7575, %v7835
  %v7863 = vadd.f32 %v7576, %v7840
  %v7864 = vld [vmem:[%s2] sm:$0xff]
  %v7865 = vld [vmem:[%s2 + $0x8] sm:$0xff]
  %v7866 = vld [vmem:[%s2 + $0x10] sm:$0xff]
  %v7867 = vld [vmem:[%s2 + $0x18] sm:$0xff]
  %v7868 = vld [vmem:[%s2 + $0x20] sm:$0xff]
  %v7869 = vld [vmem:[%s2 + $0x28] sm:$0xff]
  %v7870 = vld [vmem:[%s2 + $0x30] sm:$0xff]
  %v7871 = vld [vmem:[%s2 + $0x38] sm:$0xff]
  %v7872 = vld [vmem:[%s2 + $0x40] sm:$0xff]
  %v7873 = vld [vmem:[%s2 + $0x48] sm:$0xff]
  %v7874 = vld [vmem:[%s2 + $0x50] sm:$0xff]
  %v7875 = vld [vmem:[%s2 + $0x58] sm:$0xff]
  %v7876 = vld [vmem:[%s2 + $0x60] sm:$0xff]
  %v7877 = vld [vmem:[%s2 + $0x68] sm:$0xff]
  %v7878 = vld [vmem:[%s2 + $0x70] sm:$0xff]
  %v7879 = vld [vmem:[%s2 + $0x78] sm:$0xff]
  %v7880 = vld [vmem:[%s2 + $0x80] sm:$0xff]
  %v7881 = vld [vmem:[%s2 + $0x88] sm:$0xff]
  %v7882 = vld [vmem:[%s2 + $0x90] sm:$0xff]
  %v7883 = vld [vmem:[%s2 + $0x98] sm:$0xff]
  %v7884 = vld [vmem:[%s2 + $0xa0] sm:$0xff]
  %7886 = vset.pattern.permute.xlu0 0
  %7887 = vperm.xlu0 %7886, %v7864
  %v7888 = vpop.permute.xlu0 %7887
  %7891 = vset.pattern.permute.xlu0 0
  %7892 = vperm.xlu0 %7891, %v7865
  %v7893 = vpop.permute.xlu0 %7892
  %7896 = vset.pattern.permute.xlu0 0
  %7897 = vperm.xlu0 %7896, %v7866
  %v7898 = vpop.permute.xlu0 %7897
  %7901 = vset.pattern.permute.xlu0 0
  %7902 = vperm.xlu0 %7901, %v7867
  %v7903 = vpop.permute.xlu0 %7902
  %7906 = vset.pattern.permute.xlu0 0
  %7907 = vperm.xlu0 %7906, %v7868
  %v7908 = vpop.permute.xlu0 %7907
  %7911 = vset.pattern.permute.xlu0 0
  %7912 = vperm.xlu0 %7911, %v7869
  %v7913 = vpop.permute.xlu0 %7912
  %7916 = vset.pattern.permute.xlu0 0
  %7917 = vperm.xlu0 %7916, %v7870
  %v7918 = vpop.permute.xlu0 %7917
  %7921 = vset.pattern.permute.xlu0 0
  %7922 = vperm.xlu0 %7921, %v7871
  %v7923 = vpop.permute.xlu0 %7922
  %7926 = vset.pattern.permute.xlu0 0
  %7927 = vperm.xlu0 %7926, %v7872
  %v7928 = vpop.permute.xlu0 %7927
  %7931 = vset.pattern.permute.xlu0 0
  %7932 = vperm.xlu0 %7931, %v7873
  %v7933 = vpop.permute.xlu0 %7932
  %7936 = vset.pattern.permute.xlu0 0
  %7937 = vperm.xlu0 %7936, %v7874
  %v7938 = vpop.permute.xlu0 %7937
  %7941 = vset.pattern.permute.xlu0 0
  %7942 = vperm.xlu0 %7941, %v7875
  %v7943 = vpop.permute.xlu0 %7942
  %7946 = vset.pattern.permute.xlu0 0
  %7947 = vperm.xlu0 %7946, %v7876
  %v7948 = vpop.permute.xlu0 %7947
  %7951 = vset.pattern.permute.xlu0 0
  %7952 = vperm.xlu0 %7951, %v7877
  %v7953 = vpop.permute.xlu0 %7952
  %7956 = vset.pattern.permute.xlu0 0
  %7957 = vperm.xlu0 %7956, %v7878
  %v7958 = vpop.permute.xlu0 %7957
  %7961 = vset.pattern.permute.xlu0 0
  %7962 = vperm.xlu0 %7961, %v7879
  %v7963 = vpop.permute.xlu0 %7962
  %7966 = vset.pattern.permute.xlu0 0
  %7967 = vperm.xlu0 %7966, %v7880
  %v7968 = vpop.permute.xlu0 %7967
  %7971 = vset.pattern.permute.xlu0 0
  %7972 = vperm.xlu0 %7971, %v7881
  %v7973 = vpop.permute.xlu0 %7972
  %7976 = vset.pattern.permute.xlu0 0
  %7977 = vperm.xlu0 %7976, %v7882
  %v7978 = vpop.permute.xlu0 %7977
  %7981 = vset.pattern.permute.xlu0 0
  %7982 = vperm.xlu0 %7981, %v7883
  %v7983 = vpop.permute.xlu0 %7982
  %7986 = vset.pattern.permute.xlu0 0
  %7987 = vperm.xlu0 %7986, %v7884
  %v7988 = vpop.permute.xlu0 %7987
  %v7990 = vadd.f32 %v7843, %v7888
  %v7991 = vadd.f32 %v7844, %v7893
  %v7992 = vadd.f32 %v7845, %v7898
  %v7993 = vadd.f32 %v7846, %v7903
  %v7994 = vadd.f32 %v7847, %v7908
  %v7995 = vadd.f32 %v7848, %v7913
  %v7996 = vadd.f32 %v7849, %v7918
  %v7997 = vadd.f32 %v7850, %v7923
  %v7998 = vadd.f32 %v7851, %v7928
  %v7999 = vadd.f32 %v7852, %v7933
  %v8000 = vadd.f32 %v7853, %v7938
  %v8001 = vadd.f32 %v7854, %v7943
  %v8002 = vadd.f32 %v7855, %v7948
  %v8003 = vadd.f32 %v7856, %v7953
  %v8004 = vadd.f32 %v7857, %v7958
  %v8005 = vadd.f32 %v7858, %v7963
  %v8006 = vadd.f32 %v7859, %v7968
  %v8007 = vadd.f32 %v7860, %v7973
  %v8008 = vadd.f32 %v7861, %v7978
  %v8009 = vadd.f32 %v7862, %v7983
  %v8010 = vadd.f32 %v7863, %v7988
  %v8011 = vmax.f32 %v7990, 0.0
  %v8012 = vmax.f32 %v7991, 0.0
  %v8013 = vmax.f32 %v7992, 0.0
  %v8014 = vmax.f32 %v7993, 0.0
  %v8015 = vmax.f32 %v7994, 0.0
  %v8016 = vmax.f32 %v7995, 0.0
  %v8017 = vmax.f32 %v7996, 0.0
  %v8018 = vmax.f32 %v7997, 0.0
  %v8019 = vmax.f32 %v7998, 0.0
  %v8020 = vmax.f32 %v7999, 0.0
  %v8021 = vmax.f32 %v8000, 0.0
  %v8022 = vmax.f32 %v8001, 0.0
  %v8023 = vmax.f32 %v8002, 0.0
  %v8024 = vmax.f32 %v8003, 0.0
  %v8025 = vmax.f32 %v8004, 0.0
  %v8026 = vmax.f32 %v8005, 0.0
  %v8027 = vmax.f32 %v8006, 0.0
  %v8028 = vmax.f32 %v8007, 0.0
  %v8029 = vmax.f32 %v8008, 0.0
  %v8030 = vmax.f32 %v8009, 0.0
  %v8031 = vmax.f32 %v8010, 0.0
  %8053 = vrot.lane.b32.xlu0 %v8011, 127
  %v8054 = vpop.permute.xlu0 %8053
  %8055 = vrot.lane.b32.xlu0 %v8012, 127
  %v8056 = vpop.permute.xlu0 %8055
  %8057 = vrot.lane.b32.xlu0 %v8013, 127
  %v8058 = vpop.permute.xlu0 %8057
  %8059 = vrot.lane.b32.xlu0 %v8014, 127
  %v8060 = vpop.permute.xlu0 %8059
  %8061 = vrot.lane.b32.xlu0 %v8015, 127
  %v8062 = vpop.permute.xlu0 %8061
  %8063 = vrot.lane.b32.xlu0 %v8016, 127
  %v8064 = vpop.permute.xlu0 %8063
  %8065 = vrot.lane.b32.xlu0 %v8017, 127
  %v8066 = vpop.permute.xlu0 %8065
  %8067 = vrot.lane.b32.xlu0 %v8018, 127
  %v8068 = vpop.permute.xlu0 %8067
  %8069 = vrot.lane.b32.xlu0 %v8019, 127
  %v8070 = vpop.permute.xlu0 %8069
  %8071 = vrot.lane.b32.xlu0 %v8020, 127
  %v8072 = vpop.permute.xlu0 %8071
  %8073 = vrot.lane.b32.xlu0 %v8021, 127
  %v8074 = vpop.permute.xlu0 %8073
  %8075 = vrot.lane.b32.xlu0 %v8022, 127
  %v8076 = vpop.permute.xlu0 %8075
  %8077 = vrot.lane.b32.xlu0 %v8023, 127
  %v8078 = vpop.permute.xlu0 %8077
  %8079 = vrot.lane.b32.xlu0 %v8024, 127
  %v8080 = vpop.permute.xlu0 %8079
  %8081 = vrot.lane.b32.xlu0 %v8025, 127
  %v8082 = vpop.permute.xlu0 %8081
  %8083 = vrot.lane.b32.xlu0 %v8026, 127
  %v8084 = vpop.permute.xlu0 %8083
  %8085 = vrot.lane.b32.xlu0 %v8027, 127
  %v8086 = vpop.permute.xlu0 %8085
  %8087 = vrot.lane.b32.xlu0 %v8028, 127
  %v8088 = vpop.permute.xlu0 %8087
  %8089 = vrot.lane.b32.xlu0 %v8029, 127
  %v8090 = vpop.permute.xlu0 %8089
  %8091 = vrot.lane.b32.xlu0 %v8030, 127
  %v8092 = vpop.permute.xlu0 %8091
  %8093 = vrot.lane.b32.xlu0 %v8031, 127
  %v8094 = vpop.permute.xlu0 %8093
  %v8116 = vmax.f32 %v8011, %v8054
  %v8117 = vmax.f32 %v8012, %v8056
  %v8118 = vmax.f32 %v8013, %v8058
  %v8119 = vmax.f32 %v8014, %v8060
  %v8120 = vmax.f32 %v8015, %v8062
  %v8121 = vmax.f32 %v8016, %v8064
  %v8122 = vmax.f32 %v8017, %v8066
  %v8123 = vmax.f32 %v8018, %v8068
  %v8124 = vmax.f32 %v8019, %v8070
  %v8125 = vmax.f32 %v8020, %v8072
  %v8126 = vmax.f32 %v8021, %v8074
  %v8127 = vmax.f32 %v8022, %v8076
  %v8128 = vmax.f32 %v8023, %v8078
  %v8129 = vmax.f32 %v8024, %v8080
  %v8130 = vmax.f32 %v8025, %v8082
  %v8131 = vmax.f32 %v8026, %v8084
  %v8132 = vmax.f32 %v8027, %v8086
  %v8133 = vmax.f32 %v8028, %v8088
  %v8134 = vmax.f32 %v8029, %v8090
  %v8135 = vmax.f32 %v8030, %v8092
  %v8136 = vmax.f32 %v8031, %v8094
  %v8158 = vrot.slane %v8116, 1
  %v8159 = vrot.slane %v8117, 1
  %v8160 = vsel %vm1722, %v8158, %v8159
  %v8161 = vrot.slane %v8118, 1
  %v8162 = vsel %vm1722, %v8159, %v8161
  %v8163 = vrot.slane %v8119, 1
  %v8164 = vsel %vm1722, %v8161, %v8163
  %v8165 = vrot.slane %v8120, 1
  %v8166 = vsel %vm1722, %v8163, %v8165
  %v8167 = vrot.slane %v8121, 1
  %v8168 = vsel %vm1722, %v8165, %v8167
  %v8169 = vrot.slane %v8122, 1
  %v8170 = vsel %vm1722, %v8167, %v8169
  %v8171 = vrot.slane %v8123, 1
  %v8172 = vsel %vm1722, %v8169, %v8171
  %v8173 = vrot.slane %v8124, 1
  %v8174 = vsel %vm1722, %v8171, %v8173
  %v8175 = vrot.slane %v8125, 1
  %v8176 = vsel %vm1722, %v8173, %v8175
  %v8177 = vrot.slane %v8126, 1
  %v8178 = vsel %vm1722, %v8175, %v8177
  %v8179 = vrot.slane %v8127, 1
  %v8180 = vsel %vm1722, %v8177, %v8179
  %v8181 = vrot.slane %v8128, 1
  %v8182 = vsel %vm1722, %v8179, %v8181
  %v8183 = vrot.slane %v8129, 1
  %v8184 = vsel %vm1722, %v8181, %v8183
  %v8185 = vrot.slane %v8130, 1
  %v8186 = vsel %vm1722, %v8183, %v8185
  %v8187 = vrot.slane %v8131, 1
  %v8188 = vsel %vm1722, %v8185, %v8187
  %v8189 = vrot.slane %v8132, 1
  %v8190 = vsel %vm1722, %v8187, %v8189
  %v8191 = vrot.slane %v8133, 1
  %v8192 = vsel %vm1722, %v8189, %v8191
  %v8193 = vrot.slane %v8134, 1
  %v8194 = vsel %vm1722, %v8191, %v8193
  %v8195 = vrot.slane %v8135, 1
  %v8196 = vsel %vm1722, %v8193, %v8195
  %v8197 = vrot.slane %v8136, 1
  %v8198 = vsel %vm1722, %v8195, %v8197
  %v8220 = vmax.f32 %v8116, %v8160
  %v8221 = vmax.f32 %v8117, %v8162
  %v8222 = vmax.f32 %v8118, %v8164
  %v8223 = vmax.f32 %v8119, %v8166
  %v8224 = vmax.f32 %v8120, %v8168
  %v8225 = vmax.f32 %v8121, %v8170
  %v8226 = vmax.f32 %v8122, %v8172
  %v8227 = vmax.f32 %v8123, %v8174
  %v8228 = vmax.f32 %v8124, %v8176
  %v8229 = vmax.f32 %v8125, %v8178
  %v8230 = vmax.f32 %v8126, %v8180
  %v8231 = vmax.f32 %v8127, %v8182
  %v8232 = vmax.f32 %v8128, %v8184
  %v8233 = vmax.f32 %v8129, %v8186
  %v8234 = vmax.f32 %v8130, %v8188
  %v8235 = vmax.f32 %v8131, %v8190
  %v8236 = vmax.f32 %v8132, %v8192
  %v8237 = vmax.f32 %v8133, %v8194
  %v8238 = vmax.f32 %v8134, %v8196
  %v8239 = vmax.f32 %v8135, %v8198
  %v8240 = vmax.f32 %v8136, %v8197
  %v8242 = vsel %vm1722, %v8240, 0
  %8244 = vmatprep.subr.mxu0 0.0
  %8245 = vmatpush1.msra.mxu0 %v8235
  %8246 = vmatprep.subr.mxu0 0.0
  %8247 = vmatpush1.msra.mxu0 %v8234
  %8248 = vmatprep.subr.mxu0 0.0
  %8249 = vmatpush1.msra.mxu0 %v8233
  %8250 = vmatprep.subr.mxu0 0.0
  %8251 = vmatpush1.msra.mxu0 %v8232
  %8252 = vmatprep.subr.mxu0 0.0
  %8253 = vmatpush1.msra.mxu0 %v8231
  %8254 = vmatprep.subr.mxu0 0.0
  %8255 = vmatpush1.msra.mxu0 %v8230
  %8256 = vmatprep.subr.mxu0 0.0
  %8257 = vmatpush1.msra.mxu0 %v8229
  %8258 = vmatprep.subr.mxu0 0.0
  %8259 = vmatpush1.msra.mxu0 %v8228
  %8260 = vmatprep.subr.mxu0 0.0
  %8261 = vmatpush1.msra.mxu0 %v8227
  %8262 = vmatprep.subr.mxu0 0.0
  %8263 = vmatpush1.msra.mxu0 %v8226
  %8264 = vmatprep.subr.mxu0 0.0
  %8265 = vmatpush1.msra.mxu0 %v8225
  %8266 = vmatprep.subr.mxu0 0.0
  %8267 = vmatpush1.msra.mxu0 %v8224
  %8268 = vmatprep.subr.mxu0 0.0
  %8269 = vmatpush1.msra.mxu0 %v8223
  %8270 = vmatprep.subr.mxu0 0.0
  %8271 = vmatpush1.msra.mxu0 %v8222
  %8272 = vmatprep.subr.mxu0 0.0
  %8273 = vmatpush1.msra.mxu0 %v8221
  %8274 = vmatprep.subr.mxu0 0.0
  %8275 = vmatpush1.msra.mxu0 %v8220
  %8276 = vmatprep.subr.mxu0 0.0
  %8277 = vmatpush2.msra.mxu0 0.0
  %8278 = vmatprep.subr.mxu0 0.0
  %8279 = vmatpush2.msra.mxu0 0.0
  %8280 = vmatprep.subr.mxu0 0.0
  %8281 = vmatpush2.msra.mxu0 0.0
  %8282 = vmatprep.subr.mxu0 0.0
  %8283 = vmatpush2.msra.mxu0 0.0
  %8284 = vmatprep.subr.mxu0 0.0
  %8285 = vmatpush2.msra.mxu0 0.0
  %8286 = vmatprep.subr.mxu0 0.0
  %8287 = vmatpush2.msra.mxu0 0.0
  %8288 = vmatprep.subr.mxu0 0.0
  %8289 = vmatpush2.msra.mxu0 0.0
  %8290 = vmatprep.subr.mxu0 0.0
  %8291 = vmatpush2.msra.mxu0 0.0
  %8292 = vmatprep.subr.mxu0 0.0
  %8293 = vmatpush2.msra.mxu0 0.0
  %8294 = vmatprep.subr.mxu0 0.0
  %8295 = vmatpush2.msra.mxu0 0.0
  %8296 = vmatprep.subr.mxu0 0.0
  %8297 = vmatpush2.msra.mxu0 0.0
  %8298 = vmatprep.subr.mxu0 0.0
  %8299 = vmatpush2.msra.mxu0 %v8242
  %8300 = vmatprep.subr.mxu0 0.0
  %8301 = vmatpush2.msra.mxu0 %v8239
  %8302 = vmatprep.subr.mxu0 0.0
  %8303 = vmatpush2.msra.mxu0 %v8238
  %8304 = vmatprep.subr.mxu0 0.0
  %8305 = vmatpush2.msra.mxu0 %v8237
  %8306 = vmatprep.subr.mxu0 0.0
  %8307 = vmatpush2.msra.mxu0 %v8236
  %8308 = vmatprep.mubr.f32.mxu0 %v1913
  %8309 = vmatmul.mubr.f32.gmra.mxu0 %v1876
  %v8310 = vpop.f32.mrf.mxu0
  %v8311 = vadd.f32 0.0, %v8310
  %v8312 = vpop.f32.mrf.mxu0
  %8313 = vmatprep.mubr.f32.mxu0 %v1916
  %8314 = vmatmul.mubr.f32.gmra.mxu0 %v1878
  %v8315 = vpop.f32.mrf.mxu0
  %v8316 = vadd.f32 0.0, %v8315
  %v8317 = vpop.f32.mrf.mxu0
  %8318 = vmatprep.mubr.f32.mxu0 %v1919
  %8319 = vmatmul.mubr.f32.gmra.mxu0 %v1880
  %v8320 = vpop.f32.mrf.mxu0
  %v8321 = vadd.f32 0.0, %v8320
  %v8322 = vpop.f32.mrf.mxu0
  %8323 = vmatprep.mubr.f32.mxu0 %v1922
  %8324 = vmatmul.mubr.f32.gmra.mxu0 %v1882
  %v8325 = vpop.f32.mrf.mxu0
  %v8326 = vadd.f32 0.0, %v8325
  %v8327 = vpop.f32.mrf.mxu0
  %8328 = vmatprep.mubr.f32.mxu0 %v1925
  %8329 = vmatmul.mubr.f32.gmra.mxu0 %v1884
  %v8330 = vpop.f32.mrf.mxu0
  %v8331 = vadd.f32 0.0, %v8330
  %v8332 = vpop.f32.mrf.mxu0
  %8333 = vmatprep.mubr.f32.mxu0 %v1928
  %8334 = vmatmul.mubr.f32.gmra.mxu0 %v1886
  %v8335 = vpop.f32.mrf.mxu0
  %v8336 = vadd.f32 0.0, %v8335
  %v8337 = vpop.f32.mrf.mxu0
  %8338 = vmatprep.mubr.f32.mxu0 %v1931
  %8339 = vmatmul.mubr.f32.gmra.mxu0 %v1888
  %v8340 = vpop.f32.mrf.mxu0
  %v8341 = vadd.f32 0.0, %v8340
  %v8342 = vpop.f32.mrf.mxu0
  %8343 = vmatprep.mubr.f32.mxu0 %v1934
  %8344 = vmatmul.mubr.f32.gmra.mxu0 %v1890
  %v8345 = vpop.f32.mrf.mxu0
  %v8346 = vadd.f32 0.0, %v8345
  %v8347 = vpop.f32.mrf.mxu0
  %8348 = vmatprep.mubr.f32.mxu0 %v1937
  %8349 = vmatmul.mubr.f32.gmra.mxu0 %v1892
  %v8350 = vpop.f32.mrf.mxu0
  %v8351 = vadd.f32 0.0, %v8350
  %v8352 = vpop.f32.mrf.mxu0
  %8353 = vmatprep.mubr.f32.mxu0 %v1940
  %8354 = vmatmul.mubr.f32.gmra.mxu0 %v1894
  %v8355 = vpop.f32.mrf.mxu0
  %v8356 = vadd.f32 0.0, %v8355
  %v8357 = vpop.f32.mrf.mxu0
  %8358 = vmatprep.mubr.f32.mxu0 %v1943
  %8359 = vmatmul.mubr.f32.gmra.mxu0 %v1896
  %v8360 = vpop.f32.mrf.mxu0
  %v8361 = vadd.f32 0.0, %v8360
  %v8362 = vpop.f32.mrf.mxu0
  %8363 = vdwg.mxu0
  %v8365 = vsel %vm2068, %v8311, 0
  %v8368 = vsel %vm2068, %v8316, 0
  %v8371 = vsel %vm2068, %v8321, 0
  %v8374 = vsel %vm2068, %v8326, 0
  %v8377 = vsel %vm2068, %v8331, 0
  %v8380 = vsel %vm2068, %v8336, 0
  %v8383 = vsel %vm2068, %v8341, 0
  %v8386 = vsel %vm2068, %v8346, 0
  %v8389 = vsel %vm2068, %v8351, 0
  %v8392 = vsel %vm2068, %v8356, 0
  %v8395 = vsel %vm2068, %v8361, 0
  %8397 = vmatprep.subr.mxu0 0.0
  %8398 = vmatpush1.msra.mxu0 0.0
  %8399 = vmatprep.subr.mxu0 0.0
  %8400 = vmatpush1.msra.mxu0 0.0
  %8401 = vmatprep.subr.mxu0 0.0
  %8402 = vmatpush1.msra.mxu0 0.0
  %8403 = vmatprep.subr.mxu0 0.0
  %8404 = vmatpush1.msra.mxu0 0.0
  %8405 = vmatprep.subr.mxu0 0.0
  %8406 = vmatpush1.msra.mxu0 0.0
  %8407 = vmatprep.subr.mxu0 0.0
  %8408 = vmatpush1.msra.mxu0 0.0
  %8409 = vmatprep.subr.mxu0 0.0
  %8410 = vmatpush1.msra.mxu0 0.0
  %8411 = vmatprep.subr.mxu0 0.0
  %8412 = vmatpush1.msra.mxu0 0.0
  %8413 = vmatprep.subr.mxu0 0.0
  %8414 = vmatpush1.msra.mxu0 0.0
  %8415 = vmatprep.subr.mxu0 0.0
  %8416 = vmatpush1.msra.mxu0 0.0
  %8417 = vmatprep.subr.mxu0 0.0
  %8418 = vmatpush1.msra.mxu0 0.0
  %8419 = vmatprep.subr.mxu0 0.0
  %8420 = vmatpush1.msra.mxu0 0.0
  %8421 = vmatprep.subr.mxu0 0.0
  %8422 = vmatpush1.msra.mxu0 %v2104
  %8423 = vmatprep.subr.mxu0 0.0
  %8424 = vmatpush1.msra.mxu0 %v1909
  %8425 = vmatprep.subr.mxu0 0.0
  %8426 = vmatpush1.msra.mxu0 %v1908
  %8427 = vmatprep.subr.mxu0 0.0
  %8428 = vmatpush1.msra.mxu0 %v1907
  %8429 = vmatprep.subr.mxu0 0.0
  %8430 = vmatpush2.msra.mxu0 0.0
  %8431 = vmatprep.subr.mxu0 0.0
  %8432 = vmatpush2.msra.mxu0 0.0
  %8433 = vmatprep.subr.mxu0 0.0
  %8434 = vmatpush2.msra.mxu0 0.0
  %8435 = vmatprep.subr.mxu0 0.0
  %8436 = vmatpush2.msra.mxu0 0.0
  %8437 = vmatprep.subr.mxu0 0.0
  %8438 = vmatpush2.msra.mxu0 0.0
  %8439 = vmatprep.subr.mxu0 0.0
  %8440 = vmatpush2.msra.mxu0 0.0
  %8441 = vmatprep.subr.mxu0 0.0
  %8442 = vmatpush2.msra.mxu0 0.0
  %8443 = vmatprep.subr.mxu0 0.0
  %8444 = vmatpush2.msra.mxu0 0.0
  %8445 = vmatprep.subr.mxu0 0.0
  %8446 = vmatpush2.msra.mxu0 0.0
  %8447 = vmatprep.subr.mxu0 0.0
  %8448 = vmatpush2.msra.mxu0 0.0
  %8449 = vmatprep.subr.mxu0 0.0
  %8450 = vmatpush2.msra.mxu0 0.0
  %8451 = vmatprep.subr.mxu0 0.0
  %8452 = vmatpush2.msra.mxu0 0.0
  %8453 = vmatprep.subr.mxu0 0.0
  %8454 = vmatpush2.msra.mxu0 0.0
  %8455 = vmatprep.subr.mxu0 0.0
  %8456 = vmatpush2.msra.mxu0 0.0
  %8457 = vmatprep.subr.mxu0 0.0
  %8458 = vmatpush2.msra.mxu0 0.0
  %8459 = vmatprep.subr.mxu0 0.0
  %8460 = vmatpush2.msra.mxu0 0.0
  %8461 = vmatprep.mubr.f32.mxu0 0.0
  %8462 = vmatmul.mubr.f32.gmra.mxu0 %v8365
  %v8463 = vpop.f32.mrf.mxu0
  %v8464 = vadd.f32 0.0, %v8463
  %v8465 = vpop.f32.mrf.mxu0
  %8466 = vmatprep.mubr.f32.mxu0 0.0
  %8467 = vmatmul.mubr.f32.gmra.mxu0 %v8368
  %v8468 = vpop.f32.mrf.mxu0
  %v8469 = vadd.f32 0.0, %v8468
  %v8470 = vpop.f32.mrf.mxu0
  %8471 = vmatprep.mubr.f32.mxu0 0.0
  %8472 = vmatmul.mubr.f32.gmra.mxu0 %v8371
  %v8473 = vpop.f32.mrf.mxu0
  %v8474 = vadd.f32 0.0, %v8473
  %v8475 = vpop.f32.mrf.mxu0
  %8476 = vmatprep.mubr.f32.mxu0 0.0
  %8477 = vmatmul.mubr.f32.gmra.mxu0 %v8374
  %v8478 = vpop.f32.mrf.mxu0
  %v8479 = vadd.f32 0.0, %v8478
  %v8480 = vpop.f32.mrf.mxu0
  %8481 = vmatprep.mubr.f32.mxu0 0.0
  %8482 = vmatmul.mubr.f32.gmra.mxu0 %v8377
  %v8483 = vpop.f32.mrf.mxu0
  %v8484 = vadd.f32 0.0, %v8483
  %v8485 = vpop.f32.mrf.mxu0
  %8486 = vmatprep.mubr.f32.mxu0 0.0
  %8487 = vmatmul.mubr.f32.gmra.mxu0 %v8380
  %v8488 = vpop.f32.mrf.mxu0
  %v8489 = vadd.f32 0.0, %v8488
  %v8490 = vpop.f32.mrf.mxu0
  %8491 = vmatprep.mubr.f32.mxu0 0.0
  %8492 = vmatmul.mubr.f32.gmra.mxu0 %v8383
  %v8493 = vpop.f32.mrf.mxu0
  %v8494 = vadd.f32 0.0, %v8493
  %v8495 = vpop.f32.mrf.mxu0
  %8496 = vmatprep.mubr.f32.mxu0 0.0
  %8497 = vmatmul.mubr.f32.gmra.mxu0 %v8386
  %v8498 = vpop.f32.mrf.mxu0
  %v8499 = vadd.f32 0.0, %v8498
  %v8500 = vpop.f32.mrf.mxu0
  %8501 = vmatprep.mubr.f32.mxu0 0.0
  %8502 = vmatmul.mubr.f32.gmra.mxu0 %v8389
  %v8503 = vpop.f32.mrf.mxu0
  %v8504 = vadd.f32 0.0, %v8503
  %v8505 = vpop.f32.mrf.mxu0
  %8506 = vmatprep.mubr.f32.mxu0 0.0
  %8507 = vmatmul.mubr.f32.gmra.mxu0 %v8392
  %v8508 = vpop.f32.mrf.mxu0
  %v8509 = vadd.f32 0.0, %v8508
  %v8510 = vpop.f32.mrf.mxu0
  %8511 = vmatprep.mubr.f32.mxu0 0.0
  %8512 = vmatmul.mubr.f32.gmra.mxu0 %v8395
  %v8513 = vpop.f32.mrf.mxu0
  %v8514 = vadd.f32 0.0, %v8513
  %v8515 = vpop.f32.mrf.mxu0
  %8516 = vdwg.mxu0
  %v8517 = vld [vmem:[%s3] sm:$0xff]
  %v8518 = vld [vmem:[%s3 + $0x20] sm:$0xff]
  %v8519 = vld [vmem:[%s3 + $0x40] sm:$0xff]
  %v8520 = vld [vmem:[%s3 + $0x60] sm:$0xff]
  %v8521 = vld [vmem:[%s3 + $0x80] sm:$0xff]
  %v8522 = vld [vmem:[%s3 + $0xa0] sm:$0xff]
  %v8523 = vld [vmem:[%s3 + $0xc0] sm:$0xff]
  %v8524 = vld [vmem:[%s3 + $0xe0] sm:$0xff]
  %v8525 = vld [vmem:[%s3 + $0x100] sm:$0xff]
  %v8526 = vld [vmem:[%s3 + $0x120] sm:$0xff]
  %v8527 = vld [vmem:[%s3 + $0x140] sm:$0xff]
  %v8528 = vld [vmem:[%s3 + $0x160] sm:$0xff]
  %v8529 = vld [vmem:[%s3 + $0x180] sm:$0xff]
  %v8530 = vld [vmem:[%s3 + $0x1a0] sm:$0xff]
  %v8531 = vld [vmem:[%s3 + $0x1c0] sm:$0xff]
  %v8532 = vld [vmem:[%s3 + $0x1e0] sm:$0xff]
  %v8533 = vld [vmem:[%s3 + $0x200] sm:$0xff]
  %v8534 = vld [vmem:[%s3 + $0x220] sm:$0xff]
  %v8535 = vld [vmem:[%s3 + $0x240] sm:$0xff]
  %v8536 = vld [vmem:[%s3 + $0x260] sm:$0xff]
  %v8537 = vld [vmem:[%s3 + $0x8] sm:$0xff]
  %v8538 = vld [vmem:[%s3 + $0x28] sm:$0xff]
  %v8539 = vld [vmem:[%s3 + $0x48] sm:$0xff]
  %v8540 = vld [vmem:[%s3 + $0x68] sm:$0xff]
  %v8541 = vld [vmem:[%s3 + $0x88] sm:$0xff]
  %v8542 = vld [vmem:[%s3 + $0xa8] sm:$0xff]
  %v8543 = vld [vmem:[%s3 + $0xc8] sm:$0xff]
  %v8544 = vld [vmem:[%s3 + $0xe8] sm:$0xff]
  %v8545 = vld [vmem:[%s3 + $0x108] sm:$0xff]
  %v8546 = vld [vmem:[%s3 + $0x128] sm:$0xff]
  %v8547 = vld [vmem:[%s3 + $0x148] sm:$0xff]
  %v8548 = vld [vmem:[%s3 + $0x168] sm:$0xff]
  %v8549 = vld [vmem:[%s3 + $0x188] sm:$0xff]
  %v8550 = vld [vmem:[%s3 + $0x1a8] sm:$0xff]
  %v8551 = vld [vmem:[%s3 + $0x1c8] sm:$0xff]
  %v8552 = vld [vmem:[%s3 + $0x1e8] sm:$0xff]
  %v8553 = vld [vmem:[%s3 + $0x208] sm:$0xff]
  %v8554 = vld [vmem:[%s3 + $0x228] sm:$0xff]
  %v8555 = vld [vmem:[%s3 + $0x248] sm:$0xff]
  %v8556 = vld [vmem:[%s3 + $0x268] sm:$0xff]
  %8597 = vrot.lane.b32.xlu0 %v8517, 40
  %v8598 = vpop.permute.xlu0 %8597
  %8599 = vrot.lane.b32.xlu0 %v8537, 40
  %v8600 = vpop.permute.xlu0 %8599
  %8601 = vrot.lane.b32.xlu0 %v8518, 40
  %v8602 = vpop.permute.xlu0 %8601
  %8603 = vrot.lane.b32.xlu0 %v8538, 40
  %v8604 = vpop.permute.xlu0 %8603
  %8605 = vrot.lane.b32.xlu0 %v8519, 40
  %v8606 = vpop.permute.xlu0 %8605
  %8607 = vrot.lane.b32.xlu0 %v8539, 40
  %v8608 = vpop.permute.xlu0 %8607
  %8609 = vrot.lane.b32.xlu0 %v8520, 40
  %v8610 = vpop.permute.xlu0 %8609
  %8611 = vrot.lane.b32.xlu0 %v8540, 40
  %v8612 = vpop.permute.xlu0 %8611
  %8613 = vrot.lane.b32.xlu0 %v8521, 40
  %v8614 = vpop.permute.xlu0 %8613
  %8615 = vrot.lane.b32.xlu0 %v8541, 40
  %v8616 = vpop.permute.xlu0 %8615
  %8617 = vrot.lane.b32.xlu0 %v8522, 40
  %v8618 = vpop.permute.xlu0 %8617
  %8619 = vrot.lane.b32.xlu0 %v8542, 40
  %v8620 = vpop.permute.xlu0 %8619
  %8621 = vrot.lane.b32.xlu0 %v8523, 40
  %v8622 = vpop.permute.xlu0 %8621
  %8623 = vrot.lane.b32.xlu0 %v8543, 40
  %v8624 = vpop.permute.xlu0 %8623
  %8625 = vrot.lane.b32.xlu0 %v8524, 40
  %v8626 = vpop.permute.xlu0 %8625
  %8627 = vrot.lane.b32.xlu0 %v8544, 40
  %v8628 = vpop.permute.xlu0 %8627
  %8629 = vrot.lane.b32.xlu0 %v8525, 40
  %v8630 = vpop.permute.xlu0 %8629
  %8631 = vrot.lane.b32.xlu0 %v8545, 40
  %v8632 = vpop.permute.xlu0 %8631
  %8633 = vrot.lane.b32.xlu0 %v8526, 40
  %v8634 = vpop.permute.xlu0 %8633
  %8635 = vrot.lane.b32.xlu0 %v8546, 40
  %v8636 = vpop.permute.xlu0 %8635
  %8637 = vrot.lane.b32.xlu0 %v8527, 40
  %v8638 = vpop.permute.xlu0 %8637
  %8639 = vrot.lane.b32.xlu0 %v8547, 40
  %v8640 = vpop.permute.xlu0 %8639
  %8641 = vrot.lane.b32.xlu0 %v8528, 40
  %v8642 = vpop.permute.xlu0 %8641
  %8643 = vrot.lane.b32.xlu0 %v8548, 40
  %v8644 = vpop.permute.xlu0 %8643
  %8645 = vrot.lane.b32.xlu0 %v8529, 40
  %v8646 = vpop.permute.xlu0 %8645
  %8647 = vrot.lane.b32.xlu0 %v8549, 40
  %v8648 = vpop.permute.xlu0 %8647
  %8649 = vrot.lane.b32.xlu0 %v8530, 40
  %v8650 = vpop.permute.xlu0 %8649
  %8651 = vrot.lane.b32.xlu0 %v8550, 40
  %v8652 = vpop.permute.xlu0 %8651
  %8653 = vrot.lane.b32.xlu0 %v8531, 40
  %v8654 = vpop.permute.xlu0 %8653
  %8655 = vrot.lane.b32.xlu0 %v8551, 40
  %v8656 = vpop.permute.xlu0 %8655
  %8657 = vrot.lane.b32.xlu0 %v8532, 40
  %v8658 = vpop.permute.xlu0 %8657
  %8659 = vrot.lane.b32.xlu0 %v8552, 40
  %v8660 = vpop.permute.xlu0 %8659
  %8661 = vrot.lane.b32.xlu0 %v8533, 40
  %v8662 = vpop.permute.xlu0 %8661
  %8663 = vrot.lane.b32.xlu0 %v8553, 40
  %v8664 = vpop.permute.xlu0 %8663
  %8665 = vrot.lane.b32.xlu0 %v8534, 40
  %v8666 = vpop.permute.xlu0 %8665
  %8667 = vrot.lane.b32.xlu0 %v8554, 40
  %v8668 = vpop.permute.xlu0 %8667
  %8669 = vrot.lane.b32.xlu0 %v8535, 40
  %v8670 = vpop.permute.xlu0 %8669
  %8671 = vrot.lane.b32.xlu0 %v8555, 40
  %v8672 = vpop.permute.xlu0 %8671
  %8673 = vrot.lane.b32.xlu0 %v8536, 40
  %v8674 = vpop.permute.xlu0 %8673
  %8675 = vrot.lane.b32.xlu0 %v8556, 40
  %v8676 = vpop.permute.xlu0 %8675
  %v8677 = vsel %vm2386, %v8598, %v8600
  %v8678 = vsel %vm2386, %v8602, %v8604
  %v8679 = vsel %vm2386, %v8606, %v8608
  %v8680 = vsel %vm2386, %v8610, %v8612
  %v8681 = vsel %vm2386, %v8614, %v8616
  %v8682 = vsel %vm2386, %v8618, %v8620
  %v8683 = vsel %vm2386, %v8622, %v8624
  %v8684 = vsel %vm2386, %v8626, %v8628
  %v8685 = vsel %vm2386, %v8630, %v8632
  %v8686 = vsel %vm2386, %v8634, %v8636
  %v8687 = vsel %vm2386, %v8638, %v8640
  %v8688 = vsel %vm2386, %v8642, %v8644
  %v8689 = vsel %vm2386, %v8646, %v8648
  %v8690 = vsel %vm2386, %v8650, %v8652
  %v8691 = vsel %vm2386, %v8654, %v8656
  %v8692 = vsel %vm2386, %v8658, %v8660
  %v8693 = vsel %vm2386, %v8662, %v8664
  %v8694 = vsel %vm2386, %v8666, %v8668
  %v8695 = vsel %vm2386, %v8670, %v8672
  %v8696 = vsel %vm2386, %v8674, %v8676
  %8708 = vrot.lane.b32.xlu0 %v8464, 127
  %v8709 = vpop.permute.xlu0 %8708
  %8710 = vrot.lane.b32.xlu0 %v8469, 127
  %v8711 = vpop.permute.xlu0 %8710
  %8712 = vrot.lane.b32.xlu0 %v8474, 127
  %v8713 = vpop.permute.xlu0 %8712
  %8714 = vrot.lane.b32.xlu0 %v8479, 127
  %v8715 = vpop.permute.xlu0 %8714
  %8716 = vrot.lane.b32.xlu0 %v8484, 127
  %v8717 = vpop.permute.xlu0 %8716
  %8718 = vrot.lane.b32.xlu0 %v8489, 127
  %v8719 = vpop.permute.xlu0 %8718
  %8720 = vrot.lane.b32.xlu0 %v8494, 127
  %v8721 = vpop.permute.xlu0 %8720
  %8722 = vrot.lane.b32.xlu0 %v8499, 127
  %v8723 = vpop.permute.xlu0 %8722
  %8724 = vrot.lane.b32.xlu0 %v8504, 127
  %v8725 = vpop.permute.xlu0 %8724
  %8726 = vrot.lane.b32.xlu0 %v8509, 127
  %v8727 = vpop.permute.xlu0 %8726
  %8728 = vrot.lane.b32.xlu0 %v8514, 127
  %v8729 = vpop.permute.xlu0 %8728
  %v8741 = vsel %vm2451, %v8677, 0
  %v8743 = vsel %vm2451, %v8678, 0
  %v8745 = vsel %vm2451, %v8679, 0
  %v8747 = vsel %vm2451, %v8680, 0
  %v8749 = vsel %vm2451, %v8681, 0
  %v8751 = vsel %vm2451, %v8682, 0
  %v8753 = vsel %vm2451, %v8683, 0
  %v8755 = vsel %vm2451, %v8684, 0
  %v8757 = vsel %vm2451, %v8685, 0
  %v8759 = vsel %vm2451, %v8686, 0
  %v8761 = vsel %vm2451, %v8687, 0
  %v8763 = vsel %vm2451, %v8688, 0
  %v8765 = vsel %vm2451, %v8689, 0
  %v8767 = vsel %vm2451, %v8690, 0
  %v8769 = vsel %vm2451, %v8691, 0
  %v8771 = vsel %vm2451, %v8692, 0
  %v8773 = vsel %vm2451, %v8693, 0
  %v8775 = vsel %vm2451, %v8694, 0
  %v8777 = vsel %vm2451, %v8695, 0
  %v8779 = vsel %vm2451, %v8696, 0
  %8781 = vmatprep.subr.mxu0 0.0
  %8782 = vmatpush1.msra.mxu0 0.0
  %8783 = vmatprep.subr.mxu0 0.0
  %8784 = vmatpush1.msra.mxu0 0.0
  %8785 = vmatprep.subr.mxu0 0.0
  %8786 = vmatpush1.msra.mxu0 0.0
  %8787 = vmatprep.subr.mxu0 0.0
  %8788 = vmatpush1.msra.mxu0 0.0
  %8789 = vmatprep.subr.mxu0 0.0
  %8790 = vmatpush1.msra.mxu0 0.0
  %8791 = vmatprep.subr.mxu0 0.0
  %8792 = vmatpush1.msra.mxu0 %v8729
  %8793 = vmatprep.subr.mxu0 0.0
  %8794 = vmatpush1.msra.mxu0 %v8727
  %8795 = vmatprep.subr.mxu0 0.0
  %8796 = vmatpush1.msra.mxu0 %v8725
  %8797 = vmatprep.subr.mxu0 0.0
  %8798 = vmatpush1.msra.mxu0 %v8723
  %8799 = vmatprep.subr.mxu0 0.0
  %8800 = vmatpush1.msra.mxu0 %v8721
  %8801 = vmatprep.subr.mxu0 0.0
  %8802 = vmatpush1.msra.mxu0 %v8719
  %8803 = vmatprep.subr.mxu0 0.0
  %8804 = vmatpush1.msra.mxu0 %v8717
  %8805 = vmatprep.subr.mxu0 0.0
  %8806 = vmatpush1.msra.mxu0 %v8715
  %8807 = vmatprep.subr.mxu0 0.0
  %8808 = vmatpush1.msra.mxu0 %v8713
  %8809 = vmatprep.subr.mxu0 0.0
  %8810 = vmatpush1.msra.mxu0 %v8711
  %8811 = vmatprep.subr.mxu0 0.0
  %8812 = vmatpush1.msra.mxu0 %v8709
  %8813 = vmatprep.subr.mxu0 0.0
  %8814 = vmatpush2.msra.mxu0 0.0
  %8815 = vmatprep.subr.mxu0 0.0
  %8816 = vmatpush2.msra.mxu0 0.0
  %8817 = vmatprep.subr.mxu0 0.0
  %8818 = vmatpush2.msra.mxu0 0.0
  %8819 = vmatprep.subr.mxu0 0.0
  %8820 = vmatpush2.msra.mxu0 0.0
  %8821 = vmatprep.subr.mxu0 0.0
  %8822 = vmatpush2.msra.mxu0 0.0
  %8823 = vmatprep.subr.mxu0 0.0
  %8824 = vmatpush2.msra.mxu0 0.0
  %8825 = vmatprep.subr.mxu0 0.0
  %8826 = vmatpush2.msra.mxu0 0.0
  %8827 = vmatprep.subr.mxu0 0.0
  %8828 = vmatpush2.msra.mxu0 0.0
  %8829 = vmatprep.subr.mxu0 0.0
  %8830 = vmatpush2.msra.mxu0 0.0
  %8831 = vmatprep.subr.mxu0 0.0
  %8832 = vmatpush2.msra.mxu0 0.0
  %8833 = vmatprep.subr.mxu0 0.0
  %8834 = vmatpush2.msra.mxu0 0.0
  %8835 = vmatprep.subr.mxu0 0.0
  %8836 = vmatpush2.msra.mxu0 0.0
  %8837 = vmatprep.subr.mxu0 0.0
  %8838 = vmatpush2.msra.mxu0 0.0
  %8839 = vmatprep.subr.mxu0 0.0
  %8840 = vmatpush2.msra.mxu0 0.0
  %8841 = vmatprep.subr.mxu0 0.0
  %8842 = vmatpush2.msra.mxu0 0.0
  %8843 = vmatprep.subr.mxu0 0.0
  %8844 = vmatpush2.msra.mxu0 0.0
  %8845 = vmatprep.mubr.f32.mxu0 0.0
  %8846 = vmatmul.mubr.f32.gmra.mxu0 %v8741
  %v8847 = vpop.f32.mrf.mxu0
  %v8848 = vadd.f32 0.0, %v8847
  %v8849 = vpop.f32.mrf.mxu0
  %8850 = vmatprep.mubr.f32.mxu0 0.0
  %8851 = vmatmul.mubr.f32.gmra.mxu0 %v8743
  %v8852 = vpop.f32.mrf.mxu0
  %v8853 = vadd.f32 0.0, %v8852
  %v8854 = vpop.f32.mrf.mxu0
  %8855 = vmatprep.mubr.f32.mxu0 0.0
  %8856 = vmatmul.mubr.f32.gmra.mxu0 %v8745
  %v8857 = vpop.f32.mrf.mxu0
  %v8858 = vadd.f32 0.0, %v8857
  %v8859 = vpop.f32.mrf.mxu0
  %8860 = vmatprep.mubr.f32.mxu0 0.0
  %8861 = vmatmul.mubr.f32.gmra.mxu0 %v8747
  %v8862 = vpop.f32.mrf.mxu0
  %v8863 = vadd.f32 0.0, %v8862
  %v8864 = vpop.f32.mrf.mxu0
  %8865 = vmatprep.mubr.f32.mxu0 0.0
  %8866 = vmatmul.mubr.f32.gmra.mxu0 %v8749
  %v8867 = vpop.f32.mrf.mxu0
  %v8868 = vadd.f32 0.0, %v8867
  %v8869 = vpop.f32.mrf.mxu0
  %8870 = vmatprep.mubr.f32.mxu0 0.0
  %8871 = vmatmul.mubr.f32.gmra.mxu0 %v8751
  %v8872 = vpop.f32.mrf.mxu0
  %v8873 = vadd.f32 0.0, %v8872
  %v8874 = vpop.f32.mrf.mxu0
  %8875 = vmatprep.mubr.f32.mxu0 0.0
  %8876 = vmatmul.mubr.f32.gmra.mxu0 %v8753
  %v8877 = vpop.f32.mrf.mxu0
  %v8878 = vadd.f32 0.0, %v8877
  %v8879 = vpop.f32.mrf.mxu0
  %8880 = vmatprep.mubr.f32.mxu0 0.0
  %8881 = vmatmul.mubr.f32.gmra.mxu0 %v8755
  %v8882 = vpop.f32.mrf.mxu0
  %v8883 = vadd.f32 0.0, %v8882
  %v8884 = vpop.f32.mrf.mxu0
  %8885 = vmatprep.mubr.f32.mxu0 0.0
  %8886 = vmatmul.mubr.f32.gmra.mxu0 %v8757
  %v8887 = vpop.f32.mrf.mxu0
  %v8888 = vadd.f32 0.0, %v8887
  %v8889 = vpop.f32.mrf.mxu0
  %8890 = vmatprep.mubr.f32.mxu0 0.0
  %8891 = vmatmul.mubr.f32.gmra.mxu0 %v8759
  %v8892 = vpop.f32.mrf.mxu0
  %v8893 = vadd.f32 0.0, %v8892
  %v8894 = vpop.f32.mrf.mxu0
  %8895 = vmatprep.mubr.f32.mxu0 0.0
  %8896 = vmatmul.mubr.f32.gmra.mxu0 %v8761
  %v8897 = vpop.f32.mrf.mxu0
  %v8898 = vadd.f32 0.0, %v8897
  %v8899 = vpop.f32.mrf.mxu0
  %8900 = vmatprep.mubr.f32.mxu0 0.0
  %8901 = vmatmul.mubr.f32.gmra.mxu0 %v8763
  %v8902 = vpop.f32.mrf.mxu0
  %v8903 = vadd.f32 0.0, %v8902
  %v8904 = vpop.f32.mrf.mxu0
  %8905 = vmatprep.mubr.f32.mxu0 0.0
  %8906 = vmatmul.mubr.f32.gmra.mxu0 %v8765
  %v8907 = vpop.f32.mrf.mxu0
  %v8908 = vadd.f32 0.0, %v8907
  %v8909 = vpop.f32.mrf.mxu0
  %8910 = vmatprep.mubr.f32.mxu0 0.0
  %8911 = vmatmul.mubr.f32.gmra.mxu0 %v8767
  %v8912 = vpop.f32.mrf.mxu0
  %v8913 = vadd.f32 0.0, %v8912
  %v8914 = vpop.f32.mrf.mxu0
  %8915 = vmatprep.mubr.f32.mxu0 0.0
  %8916 = vmatmul.mubr.f32.gmra.mxu0 %v8769
  %v8917 = vpop.f32.mrf.mxu0
  %v8918 = vadd.f32 0.0, %v8917
  %v8919 = vpop.f32.mrf.mxu0
  %8920 = vmatprep.mubr.f32.mxu0 0.0
  %8921 = vmatmul.mubr.f32.gmra.mxu0 %v8771
  %v8922 = vpop.f32.mrf.mxu0
  %v8923 = vadd.f32 0.0, %v8922
  %v8924 = vpop.f32.mrf.mxu0
  %8925 = vmatprep.mubr.f32.mxu0 0.0
  %8926 = vmatmul.mubr.f32.gmra.mxu0 %v8773
  %v8927 = vpop.f32.mrf.mxu0
  %v8928 = vadd.f32 0.0, %v8927
  %v8929 = vpop.f32.mrf.mxu0
  %8930 = vmatprep.mubr.f32.mxu0 0.0
  %8931 = vmatmul.mubr.f32.gmra.mxu0 %v8775
  %v8932 = vpop.f32.mrf.mxu0
  %v8933 = vadd.f32 0.0, %v8932
  %v8934 = vpop.f32.mrf.mxu0
  %8935 = vmatprep.mubr.f32.mxu0 0.0
  %8936 = vmatmul.mubr.f32.gmra.mxu0 %v8777
  %v8937 = vpop.f32.mrf.mxu0
  %v8938 = vadd.f32 0.0, %v8937
  %v8939 = vpop.f32.mrf.mxu0
  %8940 = vmatprep.mubr.f32.mxu0 0.0
  %8941 = vmatmul.mubr.f32.gmra.mxu0 %v8779
  %v8942 = vpop.f32.mrf.mxu0
  %v8943 = vadd.f32 0.0, %v8942
  %v8944 = vpop.f32.mrf.mxu0
  %8945 = vdwg.mxu0
  %v8946 = vsel %vm2451, %v8517, 0
  %v8948 = vsel %vm2451, %v8518, 0
  %v8950 = vsel %vm2451, %v8519, 0
  %v8952 = vsel %vm2451, %v8520, 0
  %v8954 = vsel %vm2451, %v8521, 0
  %v8956 = vsel %vm2451, %v8522, 0
  %v8958 = vsel %vm2451, %v8523, 0
  %v8960 = vsel %vm2451, %v8524, 0
  %v8962 = vsel %vm2451, %v8525, 0
  %v8964 = vsel %vm2451, %v8526, 0
  %v8966 = vsel %vm2451, %v8527, 0
  %v8968 = vsel %vm2451, %v8528, 0
  %v8970 = vsel %vm2451, %v8529, 0
  %v8972 = vsel %vm2451, %v8530, 0
  %v8974 = vsel %vm2451, %v8531, 0
  %v8976 = vsel %vm2451, %v8532, 0
  %v8978 = vsel %vm2451, %v8533, 0
  %v8980 = vsel %vm2451, %v8534, 0
  %v8982 = vsel %vm2451, %v8535, 0
  %v8984 = vsel %vm2451, %v8536, 0
  %8986 = vmatprep.subr.mxu0 0.0
  %8987 = vmatpush1.msra.mxu0 0.0
  %8988 = vmatprep.subr.mxu0 0.0
  %8989 = vmatpush1.msra.mxu0 0.0
  %8990 = vmatprep.subr.mxu0 0.0
  %8991 = vmatpush1.msra.mxu0 0.0
  %8992 = vmatprep.subr.mxu0 0.0
  %8993 = vmatpush1.msra.mxu0 0.0
  %8994 = vmatprep.subr.mxu0 0.0
  %8995 = vmatpush1.msra.mxu0 0.0
  %8996 = vmatprep.subr.mxu0 0.0
  %8997 = vmatpush1.msra.mxu0 %v8514
  %8998 = vmatprep.subr.mxu0 0.0
  %8999 = vmatpush1.msra.mxu0 %v8509
  %9000 = vmatprep.subr.mxu0 0.0
  %9001 = vmatpush1.msra.mxu0 %v8504
  %9002 = vmatprep.subr.mxu0 0.0
  %9003 = vmatpush1.msra.mxu0 %v8499
  %9004 = vmatprep.subr.mxu0 0.0
  %9005 = vmatpush1.msra.mxu0 %v8494
  %9006 = vmatprep.subr.mxu0 0.0
  %9007 = vmatpush1.msra.mxu0 %v8489
  %9008 = vmatprep.subr.mxu0 0.0
  %9009 = vmatpush1.msra.mxu0 %v8484
  %9010 = vmatprep.subr.mxu0 0.0
  %9011 = vmatpush1.msra.mxu0 %v8479
  %9012 = vmatprep.subr.mxu0 0.0
  %9013 = vmatpush1.msra.mxu0 %v8474
  %9014 = vmatprep.subr.mxu0 0.0
  %9015 = vmatpush1.msra.mxu0 %v8469
  %9016 = vmatprep.subr.mxu0 0.0
  %9017 = vmatpush1.msra.mxu0 %v8464
  %9018 = vmatprep.subr.mxu0 0.0
  %9019 = vmatpush2.msra.mxu0 0.0
  %9020 = vmatprep.subr.mxu0 0.0
  %9021 = vmatpush2.msra.mxu0 0.0
  %9022 = vmatprep.subr.mxu0 0.0
  %9023 = vmatpush2.msra.mxu0 0.0
  %9024 = vmatprep.subr.mxu0 0.0
  %9025 = vmatpush2.msra.mxu0 0.0
  %9026 = vmatprep.subr.mxu0 0.0
  %9027 = vmatpush2.msra.mxu0 0.0
  %9028 = vmatprep.subr.mxu0 0.0
  %9029 = vmatpush2.msra.mxu0 0.0
  %9030 = vmatprep.subr.mxu0 0.0
  %9031 = vmatpush2.msra.mxu0 0.0
  %9032 = vmatprep.subr.mxu0 0.0
  %9033 = vmatpush2.msra.mxu0 0.0
  %9034 = vmatprep.subr.mxu0 0.0
  %9035 = vmatpush2.msra.mxu0 0.0
  %9036 = vmatprep.subr.mxu0 0.0
  %9037 = vmatpush2.msra.mxu0 0.0
  %9038 = vmatprep.subr.mxu0 0.0
  %9039 = vmatpush2.msra.mxu0 0.0
  %9040 = vmatprep.subr.mxu0 0.0
  %9041 = vmatpush2.msra.mxu0 0.0
  %9042 = vmatprep.subr.mxu0 0.0
  %9043 = vmatpush2.msra.mxu0 0.0
  %9044 = vmatprep.subr.mxu0 0.0
  %9045 = vmatpush2.msra.mxu0 0.0
  %9046 = vmatprep.subr.mxu0 0.0
  %9047 = vmatpush2.msra.mxu0 0.0
  %9048 = vmatprep.subr.mxu0 0.0
  %9049 = vmatpush2.msra.mxu0 0.0
  %9050 = vmatprep.mubr.f32.mxu0 0.0
  %9051 = vmatmul.mubr.f32.gmra.mxu0 %v8946
  %v9052 = vpop.f32.mrf.mxu0
  %v9053 = vadd.f32 %v8848, %v9052
  %v9054 = vpop.f32.mrf.mxu0
  %9055 = vmatprep.mubr.f32.mxu0 0.0
  %9056 = vmatmul.mubr.f32.gmra.mxu0 %v8948
  %v9057 = vpop.f32.mrf.mxu0
  %v9058 = vadd.f32 %v8853, %v9057
  %v9059 = vpop.f32.mrf.mxu0
  %9060 = vmatprep.mubr.f32.mxu0 0.0
  %9061 = vmatmul.mubr.f32.gmra.mxu0 %v8950
  %v9062 = vpop.f32.mrf.mxu0
  %v9063 = vadd.f32 %v8858, %v9062
  %v9064 = vpop.f32.mrf.mxu0
  %9065 = vmatprep.mubr.f32.mxu0 0.0
  %9066 = vmatmul.mubr.f32.gmra.mxu0 %v8952
  %v9067 = vpop.f32.mrf.mxu0
  %v9068 = vadd.f32 %v8863, %v9067
  %v9069 = vpop.f32.mrf.mxu0
  %9070 = vmatprep.mubr.f32.mxu0 0.0
  %9071 = vmatmul.mubr.f32.gmra.mxu0 %v8954
  %v9072 = vpop.f32.mrf.mxu0
  %v9073 = vadd.f32 %v8868, %v9072
  %v9074 = vpop.f32.mrf.mxu0
  %9075 = vmatprep.mubr.f32.mxu0 0.0
  %9076 = vmatmul.mubr.f32.gmra.mxu0 %v8956
  %v9077 = vpop.f32.mrf.mxu0
  %v9078 = vadd.f32 %v8873, %v9077
  %v9079 = vpop.f32.mrf.mxu0
  %9080 = vmatprep.mubr.f32.mxu0 0.0
  %9081 = vmatmul.mubr.f32.gmra.mxu0 %v8958
  %v9082 = vpop.f32.mrf.mxu0
  %v9083 = vadd.f32 %v8878, %v9082
  %v9084 = vpop.f32.mrf.mxu0
  %9085 = vmatprep.mubr.f32.mxu0 0.0
  %9086 = vmatmul.mubr.f32.gmra.mxu0 %v8960
  %v9087 = vpop.f32.mrf.mxu0
  %v9088 = vadd.f32 %v8883, %v9087
  %v9089 = vpop.f32.mrf.mxu0
  %9090 = vmatprep.mubr.f32.mxu0 0.0
  %9091 = vmatmul.mubr.f32.gmra.mxu0 %v8962
  %v9092 = vpop.f32.mrf.mxu0
  %v9093 = vadd.f32 %v8888, %v9092
  %v9094 = vpop.f32.mrf.mxu0
  %9095 = vmatprep.mubr.f32.mxu0 0.0
  %9096 = vmatmul.mubr.f32.gmra.mxu0 %v8964
  %v9097 = vpop.f32.mrf.mxu0
  %v9098 = vadd.f32 %v8893, %v9097
  %v9099 = vpop.f32.mrf.mxu0
  %9100 = vmatprep.mubr.f32.mxu0 0.0
  %9101 = vmatmul.mubr.f32.gmra.mxu0 %v8966
  %v9102 = vpop.f32.mrf.mxu0
  %v9103 = vadd.f32 %v8898, %v9102
  %v9104 = vpop.f32.mrf.mxu0
  %9105 = vmatprep.mubr.f32.mxu0 0.0
  %9106 = vmatmul.mubr.f32.gmra.mxu0 %v8968
  %v9107 = vpop.f32.mrf.mxu0
  %v9108 = vadd.f32 %v8903, %v9107
  %v9109 = vpop.f32.mrf.mxu0
  %9110 = vmatprep.mubr.f32.mxu0 0.0
  %9111 = vmatmul.mubr.f32.gmra.mxu0 %v8970
  %v9112 = vpop.f32.mrf.mxu0
  %v9113 = vadd.f32 %v8908, %v9112
  %v9114 = vpop.f32.mrf.mxu0
  %9115 = vmatprep.mubr.f32.mxu0 0.0
  %9116 = vmatmul.mubr.f32.gmra.mxu0 %v8972
  %v9117 = vpop.f32.mrf.mxu0
  %v9118 = vadd.f32 %v8913, %v9117
  %v9119 = vpop.f32.mrf.mxu0
  %9120 = vmatprep.mubr.f32.mxu0 0.0
  %9121 = vmatmul.mubr.f32.gmra.mxu0 %v8974
  %v9122 = vpop.f32.mrf.mxu0
  %v9123 = vadd.f32 %v8918, %v9122
  %v9124 = vpop.f32.mrf.mxu0
  %9125 = vmatprep.mubr.f32.mxu0 0.0
  %9126 = vmatmul.mubr.f32.gmra.mxu0 %v8976
  %v9127 = vpop.f32.mrf.mxu0
  %v9128 = vadd.f32 %v8923, %v9127
  %v9129 = vpop.f32.mrf.mxu0
  %9130 = vmatprep.mubr.f32.mxu0 0.0
  %9131 = vmatmul.mubr.f32.gmra.mxu0 %v8978
  %v9132 = vpop.f32.mrf.mxu0
  %v9133 = vadd.f32 %v8928, %v9132
  %v9134 = vpop.f32.mrf.mxu0
  %9135 = vmatprep.mubr.f32.mxu0 0.0
  %9136 = vmatmul.mubr.f32.gmra.mxu0 %v8980
  %v9137 = vpop.f32.mrf.mxu0
  %v9138 = vadd.f32 %v8933, %v9137
  %v9139 = vpop.f32.mrf.mxu0
  %9140 = vmatprep.mubr.f32.mxu0 0.0
  %9141 = vmatmul.mubr.f32.gmra.mxu0 %v8982
  %v9142 = vpop.f32.mrf.mxu0
  %v9143 = vadd.f32 %v8938, %v9142
  %v9144 = vpop.f32.mrf.mxu0
  %9145 = vmatprep.mubr.f32.mxu0 0.0
  %9146 = vmatmul.mubr.f32.gmra.mxu0 %v8984
  %v9147 = vpop.f32.mrf.mxu0
  %v9148 = vadd.f32 %v8943, %v9147
  %v9149 = vpop.f32.mrf.mxu0
  %9150 = vdwg.mxu0
  %v9151 = vld [vmem:[%s3 + $0x8] sm:$0xff]
  %v9152 = vld [vmem:[%s3 + $0x10] sm:$0xff]
  %v9153 = vld [vmem:[%s3 + $0x28] sm:$0xff]
  %v9154 = vld [vmem:[%s3 + $0x30] sm:$0xff]
  %v9155 = vld [vmem:[%s3 + $0x48] sm:$0xff]
  %v9156 = vld [vmem:[%s3 + $0x50] sm:$0xff]
  %v9157 = vld [vmem:[%s3 + $0x68] sm:$0xff]
  %v9158 = vld [vmem:[%s3 + $0x70] sm:$0xff]
  %v9159 = vld [vmem:[%s3 + $0x88] sm:$0xff]
  %v9160 = vld [vmem:[%s3 + $0x90] sm:$0xff]
  %v9161 = vld [vmem:[%s3 + $0xa8] sm:$0xff]
  %v9162 = vld [vmem:[%s3 + $0xb0] sm:$0xff]
  %v9163 = vld [vmem:[%s3 + $0xc8] sm:$0xff]
  %v9164 = vld [vmem:[%s3 + $0xd0] sm:$0xff]
  %v9165 = vld [vmem:[%s3 + $0xe8] sm:$0xff]
  %v9166 = vld [vmem:[%s3 + $0xf0] sm:$0xff]
  %v9167 = vld [vmem:[%s3 + $0x108] sm:$0xff]
  %v9168 = vld [vmem:[%s3 + $0x110] sm:$0xff]
  %v9169 = vld [vmem:[%s3 + $0x128] sm:$0xff]
  %v9170 = vld [vmem:[%s3 + $0x130] sm:$0xff]
  %v9171 = vld [vmem:[%s3 + $0x148] sm:$0xff]
  %v9172 = vld [vmem:[%s3 + $0x150] sm:$0xff]
  %v9173 = vld [vmem:[%s3 + $0x168] sm:$0xff]
  %v9174 = vld [vmem:[%s3 + $0x170] sm:$0xff]
  %v9175 = vld [vmem:[%s3 + $0x188] sm:$0xff]
  %v9176 = vld [vmem:[%s3 + $0x190] sm:$0xff]
  %v9177 = vld [vmem:[%s3 + $0x1a8] sm:$0xff]
  %v9178 = vld [vmem:[%s3 + $0x1b0] sm:$0xff]
  %v9179 = vld [vmem:[%s3 + $0x1c8] sm:$0xff]
  %v9180 = vld [vmem:[%s3 + $0x1d0] sm:$0xff]
  %v9181 = vld [vmem:[%s3 + $0x1e8] sm:$0xff]
  %v9182 = vld [vmem:[%s3 + $0x1f0] sm:$0xff]
  %v9183 = vld [vmem:[%s3 + $0x208] sm:$0xff]
  %v9184 = vld [vmem:[%s3 + $0x210] sm:$0xff]
  %v9185 = vld [vmem:[%s3 + $0x228] sm:$0xff]
  %v9186 = vld [vmem:[%s3 + $0x230] sm:$0xff]
  %v9187 = vld [vmem:[%s3 + $0x248] sm:$0xff]
  %v9188 = vld [vmem:[%s3 + $0x250] sm:$0xff]
  %v9189 = vld [vmem:[%s3 + $0x268] sm:$0xff]
  %v9190 = vld [vmem:[%s3 + $0x270] sm:$0xff]
  %9231 = vrot.lane.b32.xlu0 %v9151, 80
  %v9232 = vpop.permute.xlu0 %9231
  %9233 = vrot.lane.b32.xlu0 %v9152, 80
  %v9234 = vpop.permute.xlu0 %9233
  %9235 = vrot.lane.b32.xlu0 %v9153, 80
  %v9236 = vpop.permute.xlu0 %9235
  %9237 = vrot.lane.b32.xlu0 %v9154, 80
  %v9238 = vpop.permute.xlu0 %9237
  %9239 = vrot.lane.b32.xlu0 %v9155, 80
  %v9240 = vpop.permute.xlu0 %9239
  %9241 = vrot.lane.b32.xlu0 %v9156, 80
  %v9242 = vpop.permute.xlu0 %9241
  %9243 = vrot.lane.b32.xlu0 %v9157, 80
  %v9244 = vpop.permute.xlu0 %9243
  %9245 = vrot.lane.b32.xlu0 %v9158, 80
  %v9246 = vpop.permute.xlu0 %9245
  %9247 = vrot.lane.b32.xlu0 %v9159, 80
  %v9248 = vpop.permute.xlu0 %9247
  %9249 = vrot.lane.b32.xlu0 %v9160, 80
  %v9250 = vpop.permute.xlu0 %9249
  %9251 = vrot.lane.b32.xlu0 %v9161, 80
  %v9252 = vpop.permute.xlu0 %9251
  %9253 = vrot.lane.b32.xlu0 %v9162, 80
  %v9254 = vpop.permute.xlu0 %9253
  %9255 = vrot.lane.b32.xlu0 %v9163, 80
  %v9256 = vpop.permute.xlu0 %9255
  %9257 = vrot.lane.b32.xlu0 %v9164, 80
  %v9258 = vpop.permute.xlu0 %9257
  %9259 = vrot.lane.b32.xlu0 %v9165, 80
  %v9260 = vpop.permute.xlu0 %9259
  %9261 = vrot.lane.b32.xlu0 %v9166, 80
  %v9262 = vpop.permute.xlu0 %9261
  %9263 = vrot.lane.b32.xlu0 %v9167, 80
  %v9264 = vpop.permute.xlu0 %9263
  %9265 = vrot.lane.b32.xlu0 %v9168, 80
  %v9266 = vpop.permute.xlu0 %9265
  %9267 = vrot.lane.b32.xlu0 %v9169, 80
  %v9268 = vpop.permute.xlu0 %9267
  %9269 = vrot.lane.b32.xlu0 %v9170, 80
  %v9270 = vpop.permute.xlu0 %9269
  %9271 = vrot.lane.b32.xlu0 %v9171, 80
  %v9272 = vpop.permute.xlu0 %9271
  %9273 = vrot.lane.b32.xlu0 %v9172, 80
  %v9274 = vpop.permute.xlu0 %9273
  %9275 = vrot.lane.b32.xlu0 %v9173, 80
  %v9276 = vpop.permute.xlu0 %9275
  %9277 = vrot.lane.b32.xlu0 %v9174, 80
  %v9278 = vpop.permute.xlu0 %9277
  %9279 = vrot.lane.b32.xlu0 %v9175, 80
  %v9280 = vpop.permute.xlu0 %9279
  %9281 = vrot.lane.b32.xlu0 %v9176, 80
  %v9282 = vpop.permute.xlu0 %9281
  %9283 = vrot.lane.b32.xlu0 %v9177, 80
  %v9284 = vpop.permute.xlu0 %9283
  %9285 = vrot.lane.b32.xlu0 %v9178, 80
  %v9286 = vpop.permute.xlu0 %9285
  %9287 = vrot.lane.b32.xlu0 %v9179, 80
  %v9288 = vpop.permute.xlu0 %9287
  %9289 = vrot.lane.b32.xlu0 %v9180, 80
  %v9290 = vpop.permute.xlu0 %9289
  %9291 = vrot.lane.b32.xlu0 %v9181, 80
  %v9292 = vpop.permute.xlu0 %9291
  %9293 = vrot.lane.b32.xlu0 %v9182, 80
  %v9294 = vpop.permute.xlu0 %9293
  %9295 = vrot.lane.b32.xlu0 %v9183, 80
  %v9296 = vpop.permute.xlu0 %9295
  %9297 = vrot.lane.b32.xlu0 %v9184, 80
  %v9298 = vpop.permute.xlu0 %9297
  %9299 = vrot.lane.b32.xlu0 %v9185, 80
  %v9300 = vpop.permute.xlu0 %9299
  %9301 = vrot.lane.b32.xlu0 %v9186, 80
  %v9302 = vpop.permute.xlu0 %9301
  %9303 = vrot.lane.b32.xlu0 %v9187, 80
  %v9304 = vpop.permute.xlu0 %9303
  %9305 = vrot.lane.b32.xlu0 %v9188, 80
  %v9306 = vpop.permute.xlu0 %9305
  %9307 = vrot.lane.b32.xlu0 %v9189, 80
  %v9308 = vpop.permute.xlu0 %9307
  %9309 = vrot.lane.b32.xlu0 %v9190, 80
  %v9310 = vpop.permute.xlu0 %9309
  %v9311 = vsel %vm3022, %v9232, %v9234
  %v9312 = vsel %vm3022, %v9236, %v9238
  %v9313 = vsel %vm3022, %v9240, %v9242
  %v9314 = vsel %vm3022, %v9244, %v9246
  %v9315 = vsel %vm3022, %v9248, %v9250
  %v9316 = vsel %vm3022, %v9252, %v9254
  %v9317 = vsel %vm3022, %v9256, %v9258
  %v9318 = vsel %vm3022, %v9260, %v9262
  %v9319 = vsel %vm3022, %v9264, %v9266
  %v9320 = vsel %vm3022, %v9268, %v9270
  %v9321 = vsel %vm3022, %v9272, %v9274
  %v9322 = vsel %vm3022, %v9276, %v9278
  %v9323 = vsel %vm3022, %v9280, %v9282
  %v9324 = vsel %vm3022, %v9284, %v9286
  %v9325 = vsel %vm3022, %v9288, %v9290
  %v9326 = vsel %vm3022, %v9292, %v9294
  %v9327 = vsel %vm3022, %v9296, %v9298
  %v9328 = vsel %vm3022, %v9300, %v9302
  %v9329 = vsel %vm3022, %v9304, %v9306
  %v9330 = vsel %vm3022, %v9308, %v9310
  %9331 = vrot.lane.b32.xlu0 %v8464, 126
  %v9332 = vpop.permute.xlu0 %9331
  %9333 = vrot.lane.b32.xlu0 %v8469, 126
  %v9334 = vpop.permute.xlu0 %9333
  %9335 = vrot.lane.b32.xlu0 %v8474, 126
  %v9336 = vpop.permute.xlu0 %9335
  %9337 = vrot.lane.b32.xlu0 %v8479, 126
  %v9338 = vpop.permute.xlu0 %9337
  %9339 = vrot.lane.b32.xlu0 %v8484, 126
  %v9340 = vpop.permute.xlu0 %9339
  %9341 = vrot.lane.b32.xlu0 %v8489, 126
  %v9342 = vpop.permute.xlu0 %9341
  %9343 = vrot.lane.b32.xlu0 %v8494, 126
  %v9344 = vpop.permute.xlu0 %9343
  %9345 = vrot.lane.b32.xlu0 %v8499, 126
  %v9346 = vpop.permute.xlu0 %9345
  %9347 = vrot.lane.b32.xlu0 %v8504, 126
  %v9348 = vpop.permute.xlu0 %9347
  %9349 = vrot.lane.b32.xlu0 %v8509, 126
  %v9350 = vpop.permute.xlu0 %9349
  %9351 = vrot.lane.b32.xlu0 %v8514, 126
  %v9352 = vpop.permute.xlu0 %9351
  %v9364 = vsel %vm2451, %v9311, 0
  %v9366 = vsel %vm2451, %v9312, 0
  %v9368 = vsel %vm2451, %v9313, 0
  %v9370 = vsel %vm2451, %v9314, 0
  %v9372 = vsel %vm2451, %v9315, 0
  %v9374 = vsel %vm2451, %v9316, 0
  %v9376 = vsel %vm2451, %v9317, 0
  %v9378 = vsel %vm2451, %v9318, 0
  %v9380 = vsel %vm2451, %v9319, 0
  %v9382 = vsel %vm2451, %v9320, 0
  %v9384 = vsel %vm2451, %v9321, 0
  %v9386 = vsel %vm2451, %v9322, 0
  %v9388 = vsel %vm2451, %v9323, 0
  %v9390 = vsel %vm2451, %v9324, 0
  %v9392 = vsel %vm2451, %v9325, 0
  %v9394 = vsel %vm2451, %v9326, 0
  %v9396 = vsel %vm2451, %v9327, 0
  %v9398 = vsel %vm2451, %v9328, 0
  %v9400 = vsel %vm2451, %v9329, 0
  %v9402 = vsel %vm2451, %v9330, 0
  %9404 = vmatprep.subr.mxu0 0.0
  %9405 = vmatpush1.msra.mxu0 0.0
  %9406 = vmatprep.subr.mxu0 0.0
  %9407 = vmatpush1.msra.mxu0 0.0
  %9408 = vmatprep.subr.mxu0 0.0
  %9409 = vmatpush1.msra.mxu0 0.0
  %9410 = vmatprep.subr.mxu0 0.0
  %9411 = vmatpush1.msra.mxu0 0.0
  %9412 = vmatprep.subr.mxu0 0.0
  %9413 = vmatpush1.msra.mxu0 0.0
  %9414 = vmatprep.subr.mxu0 0.0
  %9415 = vmatpush1.msra.mxu0 %v9352
  %9416 = vmatprep.subr.mxu0 0.0
  %9417 = vmatpush1.msra.mxu0 %v9350
  %9418 = vmatprep.subr.mxu0 0.0
  %9419 = vmatpush1.msra.mxu0 %v9348
  %9420 = vmatprep.subr.mxu0 0.0
  %9421 = vmatpush1.msra.mxu0 %v9346
  %9422 = vmatprep.subr.mxu0 0.0
  %9423 = vmatpush1.msra.mxu0 %v9344
  %9424 = vmatprep.subr.mxu0 0.0
  %9425 = vmatpush1.msra.mxu0 %v9342
  %9426 = vmatprep.subr.mxu0 0.0
  %9427 = vmatpush1.msra.mxu0 %v9340
  %9428 = vmatprep.subr.mxu0 0.0
  %9429 = vmatpush1.msra.mxu0 %v9338
  %9430 = vmatprep.subr.mxu0 0.0
  %9431 = vmatpush1.msra.mxu0 %v9336
  %9432 = vmatprep.subr.mxu0 0.0
  %9433 = vmatpush1.msra.mxu0 %v9334
  %9434 = vmatprep.subr.mxu0 0.0
  %9435 = vmatpush1.msra.mxu0 %v9332
  %9436 = vmatprep.subr.mxu0 0.0
  %9437 = vmatpush2.msra.mxu0 0.0
  %9438 = vmatprep.subr.mxu0 0.0
  %9439 = vmatpush2.msra.mxu0 0.0
  %9440 = vmatprep.subr.mxu0 0.0
  %9441 = vmatpush2.msra.mxu0 0.0
  %9442 = vmatprep.subr.mxu0 0.0
  %9443 = vmatpush2.msra.mxu0 0.0
  %9444 = vmatprep.subr.mxu0 0.0
  %9445 = vmatpush2.msra.mxu0 0.0
  %9446 = vmatprep.subr.mxu0 0.0
  %9447 = vmatpush2.msra.mxu0 0.0
  %9448 = vmatprep.subr.mxu0 0.0
  %9449 = vmatpush2.msra.mxu0 0.0
  %9450 = vmatprep.subr.mxu0 0.0
  %9451 = vmatpush2.msra.mxu0 0.0
  %9452 = vmatprep.subr.mxu0 0.0
  %9453 = vmatpush2.msra.mxu0 0.0
  %9454 = vmatprep.subr.mxu0 0.0
  %9455 = vmatpush2.msra.mxu0 0.0
  %9456 = vmatprep.subr.mxu0 0.0
  %9457 = vmatpush2.msra.mxu0 0.0
  %9458 = vmatprep.subr.mxu0 0.0
  %9459 = vmatpush2.msra.mxu0 0.0
  %9460 = vmatprep.subr.mxu0 0.0
  %9461 = vmatpush2.msra.mxu0 0.0
  %9462 = vmatprep.subr.mxu0 0.0
  %9463 = vmatpush2.msra.mxu0 0.0
  %9464 = vmatprep.subr.mxu0 0.0
  %9465 = vmatpush2.msra.mxu0 0.0
  %9466 = vmatprep.subr.mxu0 0.0
  %9467 = vmatpush2.msra.mxu0 0.0
  %9468 = vmatprep.mubr.f32.mxu0 0.0
  %9469 = vmatmul.mubr.f32.gmra.mxu0 %v9364
  %v9470 = vpop.f32.mrf.mxu0
  %v9471 = vadd.f32 0.0, %v9470
  %v9472 = vpop.f32.mrf.mxu0
  %9473 = vmatprep.mubr.f32.mxu0 0.0
  %9474 = vmatmul.mubr.f32.gmra.mxu0 %v9366
  %v9475 = vpop.f32.mrf.mxu0
  %v9476 = vadd.f32 0.0, %v9475
  %v9477 = vpop.f32.mrf.mxu0
  %9478 = vmatprep.mubr.f32.mxu0 0.0
  %9479 = vmatmul.mubr.f32.gmra.mxu0 %v9368
  %v9480 = vpop.f32.mrf.mxu0
  %v9481 = vadd.f32 0.0, %v9480
  %v9482 = vpop.f32.mrf.mxu0
  %9483 = vmatprep.mubr.f32.mxu0 0.0
  %9484 = vmatmul.mubr.f32.gmra.mxu0 %v9370
  %v9485 = vpop.f32.mrf.mxu0
  %v9486 = vadd.f32 0.0, %v9485
  %v9487 = vpop.f32.mrf.mxu0
  %9488 = vmatprep.mubr.f32.mxu0 0.0
  %9489 = vmatmul.mubr.f32.gmra.mxu0 %v9372
  %v9490 = vpop.f32.mrf.mxu0
  %v9491 = vadd.f32 0.0, %v9490
  %v9492 = vpop.f32.mrf.mxu0
  %9493 = vmatprep.mubr.f32.mxu0 0.0
  %9494 = vmatmul.mubr.f32.gmra.mxu0 %v9374
  %v9495 = vpop.f32.mrf.mxu0
  %v9496 = vadd.f32 0.0, %v9495
  %v9497 = vpop.f32.mrf.mxu0
  %9498 = vmatprep.mubr.f32.mxu0 0.0
  %9499 = vmatmul.mubr.f32.gmra.mxu0 %v9376
  %v9500 = vpop.f32.mrf.mxu0
  %v9501 = vadd.f32 0.0, %v9500
  %v9502 = vpop.f32.mrf.mxu0
  %9503 = vmatprep.mubr.f32.mxu0 0.0
  %9504 = vmatmul.mubr.f32.gmra.mxu0 %v9378
  %v9505 = vpop.f32.mrf.mxu0
  %v9506 = vadd.f32 0.0, %v9505
  %v9507 = vpop.f32.mrf.mxu0
  %9508 = vmatprep.mubr.f32.mxu0 0.0
  %9509 = vmatmul.mubr.f32.gmra.mxu0 %v9380
  %v9510 = vpop.f32.mrf.mxu0
  %v9511 = vadd.f32 0.0, %v9510
  %v9512 = vpop.f32.mrf.mxu0
  %9513 = vmatprep.mubr.f32.mxu0 0.0
  %9514 = vmatmul.mubr.f32.gmra.mxu0 %v9382
  %v9515 = vpop.f32.mrf.mxu0
  %v9516 = vadd.f32 0.0, %v9515
  %v9517 = vpop.f32.mrf.mxu0
  %9518 = vmatprep.mubr.f32.mxu0 0.0
  %9519 = vmatmul.mubr.f32.gmra.mxu0 %v9384
  %v9520 = vpop.f32.mrf.mxu0
  %v9521 = vadd.f32 0.0, %v9520
  %v9522 = vpop.f32.mrf.mxu0
  %9523 = vmatprep.mubr.f32.mxu0 0.0
  %9524 = vmatmul.mubr.f32.gmra.mxu0 %v9386
  %v9525 = vpop.f32.mrf.mxu0
  %v9526 = vadd.f32 0.0, %v9525
  %v9527 = vpop.f32.mrf.mxu0
  %9528 = vmatprep.mubr.f32.mxu0 0.0
  %9529 = vmatmul.mubr.f32.gmra.mxu0 %v9388
  %v9530 = vpop.f32.mrf.mxu0
  %v9531 = vadd.f32 0.0, %v9530
  %v9532 = vpop.f32.mrf.mxu0
  %9533 = vmatprep.mubr.f32.mxu0 0.0
  %9534 = vmatmul.mubr.f32.gmra.mxu0 %v9390
  %v9535 = vpop.f32.mrf.mxu0
  %v9536 = vadd.f32 0.0, %v9535
  %v9537 = vpop.f32.mrf.mxu0
  %9538 = vmatprep.mubr.f32.mxu0 0.0
  %9539 = vmatmul.mubr.f32.gmra.mxu0 %v9392
  %v9540 = vpop.f32.mrf.mxu0
  %v9541 = vadd.f32 0.0, %v9540
  %v9542 = vpop.f32.mrf.mxu0
  %9543 = vmatprep.mubr.f32.mxu0 0.0
  %9544 = vmatmul.mubr.f32.gmra.mxu0 %v9394
  %v9545 = vpop.f32.mrf.mxu0
  %v9546 = vadd.f32 0.0, %v9545
  %v9547 = vpop.f32.mrf.mxu0
  %9548 = vmatprep.mubr.f32.mxu0 0.0
  %9549 = vmatmul.mubr.f32.gmra.mxu0 %v9396
  %v9550 = vpop.f32.mrf.mxu0
  %v9551 = vadd.f32 0.0, %v9550
  %v9552 = vpop.f32.mrf.mxu0
  %9553 = vmatprep.mubr.f32.mxu0 0.0
  %9554 = vmatmul.mubr.f32.gmra.mxu0 %v9398
  %v9555 = vpop.f32.mrf.mxu0
  %v9556 = vadd.f32 0.0, %v9555
  %v9557 = vpop.f32.mrf.mxu0
  %9558 = vmatprep.mubr.f32.mxu0 0.0
  %9559 = vmatmul.mubr.f32.gmra.mxu0 %v9400
  %v9560 = vpop.f32.mrf.mxu0
  %v9561 = vadd.f32 0.0, %v9560
  %v9562 = vpop.f32.mrf.mxu0
  %9563 = vmatprep.mubr.f32.mxu0 0.0
  %9564 = vmatmul.mubr.f32.gmra.mxu0 %v9402
  %v9565 = vpop.f32.mrf.mxu0
  %v9566 = vadd.f32 0.0, %v9565
  %v9567 = vpop.f32.mrf.mxu0
  %9568 = vdwg.mxu0
  %v9569 = vadd.f32 %v9053, %v9471
  %v9570 = vadd.f32 %v9058, %v9476
  %v9571 = vadd.f32 %v9063, %v9481
  %v9572 = vadd.f32 %v9068, %v9486
  %v9573 = vadd.f32 %v9073, %v9491
  %v9574 = vadd.f32 %v9078, %v9496
  %v9575 = vadd.f32 %v9083, %v9501
  %v9576 = vadd.f32 %v9088, %v9506
  %v9577 = vadd.f32 %v9093, %v9511
  %v9578 = vadd.f32 %v9098, %v9516
  %v9579 = vadd.f32 %v9103, %v9521
  %v9580 = vadd.f32 %v9108, %v9526
  %v9581 = vadd.f32 %v9113, %v9531
  %v9582 = vadd.f32 %v9118, %v9536
  %v9583 = vadd.f32 %v9123, %v9541
  %v9584 = vadd.f32 %v9128, %v9546
  %v9585 = vadd.f32 %v9133, %v9551
  %v9586 = vadd.f32 %v9138, %v9556
  %v9587 = vadd.f32 %v9143, %v9561
  %v9588 = vadd.f32 %v9148, %v9566
  %9589 = vrot.lane.b32.xlu0 %v9152, 120
  %v9590 = vpop.permute.xlu0 %9589
  %9591 = vrot.lane.b32.xlu0 %v9154, 120
  %v9592 = vpop.permute.xlu0 %9591
  %9593 = vrot.lane.b32.xlu0 %v9156, 120
  %v9594 = vpop.permute.xlu0 %9593
  %9595 = vrot.lane.b32.xlu0 %v9158, 120
  %v9596 = vpop.permute.xlu0 %9595
  %9597 = vrot.lane.b32.xlu0 %v9160, 120
  %v9598 = vpop.permute.xlu0 %9597
  %9599 = vrot.lane.b32.xlu0 %v9162, 120
  %v9600 = vpop.permute.xlu0 %9599
  %9601 = vrot.lane.b32.xlu0 %v9164, 120
  %v9602 = vpop.permute.xlu0 %9601
  %9603 = vrot.lane.b32.xlu0 %v9166, 120
  %v9604 = vpop.permute.xlu0 %9603
  %9605 = vrot.lane.b32.xlu0 %v9168, 120
  %v9606 = vpop.permute.xlu0 %9605
  %9607 = vrot.lane.b32.xlu0 %v9170, 120
  %v9608 = vpop.permute.xlu0 %9607
  %9609 = vrot.lane.b32.xlu0 %v9172, 120
  %v9610 = vpop.permute.xlu0 %9609
  %9611 = vrot.lane.b32.xlu0 %v9174, 120
  %v9612 = vpop.permute.xlu0 %9611
  %9613 = vrot.lane.b32.xlu0 %v9176, 120
  %v9614 = vpop.permute.xlu0 %9613
  %9615 = vrot.lane.b32.xlu0 %v9178, 120
  %v9616 = vpop.permute.xlu0 %9615
  %9617 = vrot.lane.b32.xlu0 %v9180, 120
  %v9618 = vpop.permute.xlu0 %9617
  %9619 = vrot.lane.b32.xlu0 %v9182, 120
  %v9620 = vpop.permute.xlu0 %9619
  %9621 = vrot.lane.b32.xlu0 %v9184, 120
  %v9622 = vpop.permute.xlu0 %9621
  %9623 = vrot.lane.b32.xlu0 %v9186, 120
  %v9624 = vpop.permute.xlu0 %9623
  %9625 = vrot.lane.b32.xlu0 %v9188, 120
  %v9626 = vpop.permute.xlu0 %9625
  %9627 = vrot.lane.b32.xlu0 %v9190, 120
  %v9628 = vpop.permute.xlu0 %9627
  %9629 = vrot.lane.b32.xlu0 %v8464, 125
  %v9630 = vpop.permute.xlu0 %9629
  %9631 = vrot.lane.b32.xlu0 %v8469, 125
  %v9632 = vpop.permute.xlu0 %9631
  %9633 = vrot.lane.b32.xlu0 %v8474, 125
  %v9634 = vpop.permute.xlu0 %9633
  %9635 = vrot.lane.b32.xlu0 %v8479, 125
  %v9636 = vpop.permute.xlu0 %9635
  %9637 = vrot.lane.b32.xlu0 %v8484, 125
  %v9638 = vpop.permute.xlu0 %9637
  %9639 = vrot.lane.b32.xlu0 %v8489, 125
  %v9640 = vpop.permute.xlu0 %9639
  %9641 = vrot.lane.b32.xlu0 %v8494, 125
  %v9642 = vpop.permute.xlu0 %9641
  %9643 = vrot.lane.b32.xlu0 %v8499, 125
  %v9644 = vpop.permute.xlu0 %9643
  %9645 = vrot.lane.b32.xlu0 %v8504, 125
  %v9646 = vpop.permute.xlu0 %9645
  %9647 = vrot.lane.b32.xlu0 %v8509, 125
  %v9648 = vpop.permute.xlu0 %9647
  %9649 = vrot.lane.b32.xlu0 %v8514, 125
  %v9650 = vpop.permute.xlu0 %9649
  %v9662 = vsel %vm2451, %v9590, 0
  %v9664 = vsel %vm2451, %v9592, 0
  %v9666 = vsel %vm2451, %v9594, 0
  %v9668 = vsel %vm2451, %v9596, 0
  %v9670 = vsel %vm2451, %v9598, 0
  %v9672 = vsel %vm2451, %v9600, 0
  %v9674 = vsel %vm2451, %v9602, 0
  %v9676 = vsel %vm2451, %v9604, 0
  %v9678 = vsel %vm2451, %v9606, 0
  %v9680 = vsel %vm2451, %v9608, 0
  %v9682 = vsel %vm2451, %v9610, 0
  %v9684 = vsel %vm2451, %v9612, 0
  %v9686 = vsel %vm2451, %v9614, 0
  %v9688 = vsel %vm2451, %v9616, 0
  %v9690 = vsel %vm2451, %v9618, 0
  %v9692 = vsel %vm2451, %v9620, 0
  %v9694 = vsel %vm2451, %v9622, 0
  %v9696 = vsel %vm2451, %v9624, 0
  %v9698 = vsel %vm2451, %v9626, 0
  %v9700 = vsel %vm2451, %v9628, 0
  %9702 = vmatprep.subr.mxu0 0.0
  %9703 = vmatpush1.msra.mxu0 0.0
  %9704 = vmatprep.subr.mxu0 0.0
  %9705 = vmatpush1.msra.mxu0 0.0
  %9706 = vmatprep.subr.mxu0 0.0
  %9707 = vmatpush1.msra.mxu0 0.0
  %9708 = vmatprep.subr.mxu0 0.0
  %9709 = vmatpush1.msra.mxu0 0.0
  %9710 = vmatprep.subr.mxu0 0.0
  %9711 = vmatpush1.msra.mxu0 0.0
  %9712 = vmatprep.subr.mxu0 0.0
  %9713 = vmatpush1.msra.mxu0 %v9650
  %9714 = vmatprep.subr.mxu0 0.0
  %9715 = vmatpush1.msra.mxu0 %v9648
  %9716 = vmatprep.subr.mxu0 0.0
  %9717 = vmatpush1.msra.mxu0 %v9646
  %9718 = vmatprep.subr.mxu0 0.0
  %9719 = vmatpush1.msra.mxu0 %v9644
  %9720 = vmatprep.subr.mxu0 0.0
  %9721 = vmatpush1.msra.mxu0 %v9642
  %9722 = vmatprep.subr.mxu0 0.0
  %9723 = vmatpush1.msra.mxu0 %v9640
  %9724 = vmatprep.subr.mxu0 0.0
  %9725 = vmatpush1.msra.mxu0 %v9638
  %9726 = vmatprep.subr.mxu0 0.0
  %9727 = vmatpush1.msra.mxu0 %v9636
  %9728 = vmatprep.subr.mxu0 0.0
  %9729 = vmatpush1.msra.mxu0 %v9634
  %9730 = vmatprep.subr.mxu0 0.0
  %9731 = vmatpush1.msra.mxu0 %v9632
  %9732 = vmatprep.subr.mxu0 0.0
  %9733 = vmatpush1.msra.mxu0 %v9630
  %9734 = vmatprep.subr.mxu0 0.0
  %9735 = vmatpush2.msra.mxu0 0.0
  %9736 = vmatprep.subr.mxu0 0.0
  %9737 = vmatpush2.msra.mxu0 0.0
  %9738 = vmatprep.subr.mxu0 0.0
  %9739 = vmatpush2.msra.mxu0 0.0
  %9740 = vmatprep.subr.mxu0 0.0
  %9741 = vmatpush2.msra.mxu0 0.0
  %9742 = vmatprep.subr.mxu0 0.0
  %9743 = vmatpush2.msra.mxu0 0.0
  %9744 = vmatprep.subr.mxu0 0.0
  %9745 = vmatpush2.msra.mxu0 0.0
  %9746 = vmatprep.subr.mxu0 0.0
  %9747 = vmatpush2.msra.mxu0 0.0
  %9748 = vmatprep.subr.mxu0 0.0
  %9749 = vmatpush2.msra.mxu0 0.0
  %9750 = vmatprep.subr.mxu0 0.0
  %9751 = vmatpush2.msra.mxu0 0.0
  %9752 = vmatprep.subr.mxu0 0.0
  %9753 = vmatpush2.msra.mxu0 0.0
  %9754 = vmatprep.subr.mxu0 0.0
  %9755 = vmatpush2.msra.mxu0 0.0
  %9756 = vmatprep.subr.mxu0 0.0
  %9757 = vmatpush2.msra.mxu0 0.0
  %9758 = vmatprep.subr.mxu0 0.0
  %9759 = vmatpush2.msra.mxu0 0.0
  %9760 = vmatprep.subr.mxu0 0.0
  %9761 = vmatpush2.msra.mxu0 0.0
  %9762 = vmatprep.subr.mxu0 0.0
  %9763 = vmatpush2.msra.mxu0 0.0
  %9764 = vmatprep.subr.mxu0 0.0
  %9765 = vmatpush2.msra.mxu0 0.0
  %9766 = vmatprep.mubr.f32.mxu0 0.0
  %9767 = vmatmul.mubr.f32.gmra.mxu0 %v9662
  %v9768 = vpop.f32.mrf.mxu0
  %v9769 = vadd.f32 0.0, %v9768
  %v9770 = vpop.f32.mrf.mxu0
  %9771 = vmatprep.mubr.f32.mxu0 0.0
  %9772 = vmatmul.mubr.f32.gmra.mxu0 %v9664
  %v9773 = vpop.f32.mrf.mxu0
  %v9774 = vadd.f32 0.0, %v9773
  %v9775 = vpop.f32.mrf.mxu0
  %9776 = vmatprep.mubr.f32.mxu0 0.0
  %9777 = vmatmul.mubr.f32.gmra.mxu0 %v9666
  %v9778 = vpop.f32.mrf.mxu0
  %v9779 = vadd.f32 0.0, %v9778
  %v9780 = vpop.f32.mrf.mxu0
  %9781 = vmatprep.mubr.f32.mxu0 0.0
  %9782 = vmatmul.mubr.f32.gmra.mxu0 %v9668
  %v9783 = vpop.f32.mrf.mxu0
  %v9784 = vadd.f32 0.0, %v9783
  %v9785 = vpop.f32.mrf.mxu0
  %9786 = vmatprep.mubr.f32.mxu0 0.0
  %9787 = vmatmul.mubr.f32.gmra.mxu0 %v9670
  %v9788 = vpop.f32.mrf.mxu0
  %v9789 = vadd.f32 0.0, %v9788
  %v9790 = vpop.f32.mrf.mxu0
  %9791 = vmatprep.mubr.f32.mxu0 0.0
  %9792 = vmatmul.mubr.f32.gmra.mxu0 %v9672
  %v9793 = vpop.f32.mrf.mxu0
  %v9794 = vadd.f32 0.0, %v9793
  %v9795 = vpop.f32.mrf.mxu0
  %9796 = vmatprep.mubr.f32.mxu0 0.0
  %9797 = vmatmul.mubr.f32.gmra.mxu0 %v9674
  %v9798 = vpop.f32.mrf.mxu0
  %v9799 = vadd.f32 0.0, %v9798
  %v9800 = vpop.f32.mrf.mxu0
  %9801 = vmatprep.mubr.f32.mxu0 0.0
  %9802 = vmatmul.mubr.f32.gmra.mxu0 %v9676
  %v9803 = vpop.f32.mrf.mxu0
  %v9804 = vadd.f32 0.0, %v9803
  %v9805 = vpop.f32.mrf.mxu0
  %9806 = vmatprep.mubr.f32.mxu0 0.0
  %9807 = vmatmul.mubr.f32.gmra.mxu0 %v9678
  %v9808 = vpop.f32.mrf.mxu0
  %v9809 = vadd.f32 0.0, %v9808
  %v9810 = vpop.f32.mrf.mxu0
  %9811 = vmatprep.mubr.f32.mxu0 0.0
  %9812 = vmatmul.mubr.f32.gmra.mxu0 %v9680
  %v9813 = vpop.f32.mrf.mxu0
  %v9814 = vadd.f32 0.0, %v9813
  %v9815 = vpop.f32.mrf.mxu0
  %9816 = vmatprep.mubr.f32.mxu0 0.0
  %9817 = vmatmul.mubr.f32.gmra.mxu0 %v9682
  %v9818 = vpop.f32.mrf.mxu0
  %v9819 = vadd.f32 0.0, %v9818
  %v9820 = vpop.f32.mrf.mxu0
  %9821 = vmatprep.mubr.f32.mxu0 0.0
  %9822 = vmatmul.mubr.f32.gmra.mxu0 %v9684
  %v9823 = vpop.f32.mrf.mxu0
  %v9824 = vadd.f32 0.0, %v9823
  %v9825 = vpop.f32.mrf.mxu0
  %9826 = vmatprep.mubr.f32.mxu0 0.0
  %9827 = vmatmul.mubr.f32.gmra.mxu0 %v9686
  %v9828 = vpop.f32.mrf.mxu0
  %v9829 = vadd.f32 0.0, %v9828
  %v9830 = vpop.f32.mrf.mxu0
  %9831 = vmatprep.mubr.f32.mxu0 0.0
  %9832 = vmatmul.mubr.f32.gmra.mxu0 %v9688
  %v9833 = vpop.f32.mrf.mxu0
  %v9834 = vadd.f32 0.0, %v9833
  %v9835 = vpop.f32.mrf.mxu0
  %9836 = vmatprep.mubr.f32.mxu0 0.0
  %9837 = vmatmul.mubr.f32.gmra.mxu0 %v9690
  %v9838 = vpop.f32.mrf.mxu0
  %v9839 = vadd.f32 0.0, %v9838
  %v9840 = vpop.f32.mrf.mxu0
  %9841 = vmatprep.mubr.f32.mxu0 0.0
  %9842 = vmatmul.mubr.f32.gmra.mxu0 %v9692
  %v9843 = vpop.f32.mrf.mxu0
  %v9844 = vadd.f32 0.0, %v9843
  %v9845 = vpop.f32.mrf.mxu0
  %9846 = vmatprep.mubr.f32.mxu0 0.0
  %9847 = vmatmul.mubr.f32.gmra.mxu0 %v9694
  %v9848 = vpop.f32.mrf.mxu0
  %v9849 = vadd.f32 0.0, %v9848
  %v9850 = vpop.f32.mrf.mxu0
  %9851 = vmatprep.mubr.f32.mxu0 0.0
  %9852 = vmatmul.mubr.f32.gmra.mxu0 %v9696
  %v9853 = vpop.f32.mrf.mxu0
  %v9854 = vadd.f32 0.0, %v9853
  %v9855 = vpop.f32.mrf.mxu0
  %9856 = vmatprep.mubr.f32.mxu0 0.0
  %9857 = vmatmul.mubr.f32.gmra.mxu0 %v9698
  %v9858 = vpop.f32.mrf.mxu0
  %v9859 = vadd.f32 0.0, %v9858
  %v9860 = vpop.f32.mrf.mxu0
  %9861 = vmatprep.mubr.f32.mxu0 0.0
  %9862 = vmatmul.mubr.f32.gmra.mxu0 %v9700
  %v9863 = vpop.f32.mrf.mxu0
  %v9864 = vadd.f32 0.0, %v9863
  %v9865 = vpop.f32.mrf.mxu0
  %9866 = vdwg.mxu0
  %v9867 = vadd.f32 %v9569, %v9769
  %v9868 = vadd.f32 %v9570, %v9774
  %v9869 = vadd.f32 %v9571, %v9779
  %v9870 = vadd.f32 %v9572, %v9784
  %v9871 = vadd.f32 %v9573, %v9789
  %v9872 = vadd.f32 %v9574, %v9794
  %v9873 = vadd.f32 %v9575, %v9799
  %v9874 = vadd.f32 %v9576, %v9804
  %v9875 = vadd.f32 %v9577, %v9809
  %v9876 = vadd.f32 %v9578, %v9814
  %v9877 = vadd.f32 %v9579, %v9819
  %v9878 = vadd.f32 %v9580, %v9824
  %v9879 = vadd.f32 %v9581, %v9829
  %v9880 = vadd.f32 %v9582, %v9834
  %v9881 = vadd.f32 %v9583, %v9839
  %v9882 = vadd.f32 %v9584, %v9844
  %v9883 = vadd.f32 %v9585, %v9849
  %v9884 = vadd.f32 %v9586, %v9854
  %v9885 = vadd.f32 %v9587, %v9859
  %v9886 = vadd.f32 %v9588, %v9864
  %v9887 = vld [vmem:[%s3 + $0x10] sm:$0xff]
  %v9888 = vld [vmem:[%s3 + $0x18] sm:$0xff]
  %v9889 = vld [vmem:[%s3 + $0x30] sm:$0xff]
  %v9890 = vld [vmem:[%s3 + $0x38] sm:$0xff]
  %v9891 = vld [vmem:[%s3 + $0x50] sm:$0xff]
  %v9892 = vld [vmem:[%s3 + $0x58] sm:$0xff]
  %v9893 = vld [vmem:[%s3 + $0x70] sm:$0xff]
  %v9894 = vld [vmem:[%s3 + $0x78] sm:$0xff]
  %v9895 = vld [vmem:[%s3 + $0x90] sm:$0xff]
  %v9896 = vld [vmem:[%s3 + $0x98] sm:$0xff]
  %v9897 = vld [vmem:[%s3 + $0xb0] sm:$0xff]
  %v9898 = vld [vmem:[%s3 + $0xb8] sm:$0xff]
  %v9899 = vld [vmem:[%s3 + $0xd0] sm:$0xff]
  %v9900 = vld [vmem:[%s3 + $0xd8] sm:$0xff]
  %v9901 = vld [vmem:[%s3 + $0xf0] sm:$0xff]
  %v9902 = vld [vmem:[%s3 + $0xf8] sm:$0xff]
  %v9903 = vld [vmem:[%s3 + $0x110] sm:$0xff]
  %v9904 = vld [vmem:[%s3 + $0x118] sm:$0xff]
  %v9905 = vld [vmem:[%s3 + $0x130] sm:$0xff]
  %v9906 = vld [vmem:[%s3 + $0x138] sm:$0xff]
  %v9907 = vld [vmem:[%s3 + $0x150] sm:$0xff]
  %v9908 = vld [vmem:[%s3 + $0x158] sm:$0xff]
  %v9909 = vld [vmem:[%s3 + $0x170] sm:$0xff]
  %v9910 = vld [vmem:[%s3 + $0x178] sm:$0xff]
  %v9911 = vld [vmem:[%s3 + $0x190] sm:$0xff]
  %v9912 = vld [vmem:[%s3 + $0x198] sm:$0xff]
  %v9913 = vld [vmem:[%s3 + $0x1b0] sm:$0xff]
  %v9914 = vld [vmem:[%s3 + $0x1b8] sm:$0xff]
  %v9915 = vld [vmem:[%s3 + $0x1d0] sm:$0xff]
  %v9916 = vld [vmem:[%s3 + $0x1d8] sm:$0xff]
  %v9917 = vld [vmem:[%s3 + $0x1f0] sm:$0xff]
  %v9918 = vld [vmem:[%s3 + $0x1f8] sm:$0xff]
  %v9919 = vld [vmem:[%s3 + $0x210] sm:$0xff]
  %v9920 = vld [vmem:[%s3 + $0x218] sm:$0xff]
  %v9921 = vld [vmem:[%s3 + $0x230] sm:$0xff]
  %v9922 = vld [vmem:[%s3 + $0x238] sm:$0xff]
  %v9923 = vld [vmem:[%s3 + $0x250] sm:$0xff]
  %v9924 = vld [vmem:[%s3 + $0x258] sm:$0xff]
  %v9925 = vld [vmem:[%s3 + $0x270] sm:$0xff]
  %v9926 = vld [vmem:[%s3 + $0x278] sm:$0xff]
  %9967 = vrot.lane.b32.xlu0 %v9887, 32
  %v9968 = vpop.permute.xlu0 %9967
  %9969 = vrot.lane.b32.xlu0 %v9888, 32
  %v9970 = vpop.permute.xlu0 %9969
  %9971 = vrot.lane.b32.xlu0 %v9889, 32
  %v9972 = vpop.permute.xlu0 %9971
  %9973 = vrot.lane.b32.xlu0 %v9890, 32
  %v9974 = vpop.permute.xlu0 %9973
  %9975 = vrot.lane.b32.xlu0 %v9891, 32
  %v9976 = vpop.permute.xlu0 %9975
  %9977 = vrot.lane.b32.xlu0 %v9892, 32
  %v9978 = vpop.permute.xlu0 %9977
  %9979 = vrot.lane.b32.xlu0 %v9893, 32
  %v9980 = vpop.permute.xlu0 %9979
  %9981 = vrot.lane.b32.xlu0 %v9894, 32
  %v9982 = vpop.permute.xlu0 %9981
  %9983 = vrot.lane.b32.xlu0 %v9895, 32
  %v9984 = vpop.permute.xlu0 %9983
  %9985 = vrot.lane.b32.xlu0 %v9896, 32
  %v9986 = vpop.permute.xlu0 %9985
  %9987 = vrot.lane.b32.xlu0 %v9897, 32
  %v9988 = vpop.permute.xlu0 %9987
  %9989 = vrot.lane.b32.xlu0 %v9898, 32
  %v9990 = vpop.permute.xlu0 %9989
  %9991 = vrot.lane.b32.xlu0 %v9899, 32
  %v9992 = vpop.permute.xlu0 %9991
  %9993 = vrot.lane.b32.xlu0 %v9900, 32
  %v9994 = vpop.permute.xlu0 %9993
  %9995 = vrot.lane.b32.xlu0 %v9901, 32
  %v9996 = vpop.permute.xlu0 %9995
  %9997 = vrot.lane.b32.xlu0 %v9902, 32
  %v9998 = vpop.permute.xlu0 %9997
  %9999 = vrot.lane.b32.xlu0 %v9903, 32
  %v10000 = vpop.permute.xlu0 %9999
  %10001 = vrot.lane.b32.xlu0 %v9904, 32
  %v10002 = vpop.permute.xlu0 %10001
  %10003 = vrot.lane.b32.xlu0 %v9905, 32
  %v10004 = vpop.permute.xlu0 %10003
  %10005 = vrot.lane.b32.xlu0 %v9906, 32
  %v10006 = vpop.permute.xlu0 %10005
  %10007 = vrot.lane.b32.xlu0 %v9907, 32
  %v10008 = vpop.permute.xlu0 %10007
  %10009 = vrot.lane.b32.xlu0 %v9908, 32
  %v10010 = vpop.permute.xlu0 %10009
  %10011 = vrot.lane.b32.xlu0 %v9909, 32
  %v10012 = vpop.permute.xlu0 %10011
  %10013 = vrot.lane.b32.xlu0 %v9910, 32
  %v10014 = vpop.permute.xlu0 %10013
  %10015 = vrot.lane.b32.xlu0 %v9911, 32
  %v10016 = vpop.permute.xlu0 %10015
  %10017 = vrot.lane.b32.xlu0 %v9912, 32
  %v10018 = vpop.permute.xlu0 %10017
  %10019 = vrot.lane.b32.xlu0 %v9913, 32
  %v10020 = vpop.permute.xlu0 %10019
  %10021 = vrot.lane.b32.xlu0 %v9914, 32
  %v10022 = vpop.permute.xlu0 %10021
  %10023 = vrot.lane.b32.xlu0 %v9915, 32
  %v10024 = vpop.permute.xlu0 %10023
  %10025 = vrot.lane.b32.xlu0 %v9916, 32
  %v10026 = vpop.permute.xlu0 %10025
  %10027 = vrot.lane.b32.xlu0 %v9917, 32
  %v10028 = vpop.permute.xlu0 %10027
  %10029 = vrot.lane.b32.xlu0 %v9918, 32
  %v10030 = vpop.permute.xlu0 %10029
  %10031 = vrot.lane.b32.xlu0 %v9919, 32
  %v10032 = vpop.permute.xlu0 %10031
  %10033 = vrot.lane.b32.xlu0 %v9920, 32
  %v10034 = vpop.permute.xlu0 %10033
  %10035 = vrot.lane.b32.xlu0 %v9921, 32
  %v10036 = vpop.permute.xlu0 %10035
  %10037 = vrot.lane.b32.xlu0 %v9922, 32
  %v10038 = vpop.permute.xlu0 %10037
  %10039 = vrot.lane.b32.xlu0 %v9923, 32
  %v10040 = vpop.permute.xlu0 %10039
  %10041 = vrot.lane.b32.xlu0 %v9924, 32
  %v10042 = vpop.permute.xlu0 %10041
  %10043 = vrot.lane.b32.xlu0 %v9925, 32
  %v10044 = vpop.permute.xlu0 %10043
  %10045 = vrot.lane.b32.xlu0 %v9926, 32
  %v10046 = vpop.permute.xlu0 %10045
  %v10047 = vsel %vm142, %v9968, %v9970
  %v10048 = vsel %vm142, %v9972, %v9974
  %v10049 = vsel %vm142, %v9976, %v9978
  %v10050 = vsel %vm142, %v9980, %v9982
  %v10051 = vsel %vm142, %v9984, %v9986
  %v10052 = vsel %vm142, %v9988, %v9990
  %v10053 = vsel %vm142, %v9992, %v9994
  %v10054 = vsel %vm142, %v9996, %v9998
  %v10055 = vsel %vm142, %v10000, %v10002
  %v10056 = vsel %vm142, %v10004, %v10006
  %v10057 = vsel %vm142, %v10008, %v10010
  %v10058 = vsel %vm142, %v10012, %v10014
  %v10059 = vsel %vm142, %v10016, %v10018
  %v10060 = vsel %vm142, %v10020, %v10022
  %v10061 = vsel %vm142, %v10024, %v10026
  %v10062 = vsel %vm142, %v10028, %v10030
  %v10063 = vsel %vm142, %v10032, %v10034
  %v10064 = vsel %vm142, %v10036, %v10038
  %v10065 = vsel %vm142, %v10040, %v10042
  %v10066 = vsel %vm142, %v10044, %v10046
  %10067 = vrot.lane.b32.xlu0 %v8464, 124
  %v10068 = vpop.permute.xlu0 %10067
  %10069 = vrot.lane.b32.xlu0 %v8469, 124
  %v10070 = vpop.permute.xlu0 %10069
  %10071 = vrot.lane.b32.xlu0 %v8474, 124
  %v10072 = vpop.permute.xlu0 %10071
  %10073 = vrot.lane.b32.xlu0 %v8479, 124
  %v10074 = vpop.permute.xlu0 %10073
  %10075 = vrot.lane.b32.xlu0 %v8484, 124
  %v10076 = vpop.permute.xlu0 %10075
  %10077 = vrot.lane.b32.xlu0 %v8489, 124
  %v10078 = vpop.permute.xlu0 %10077
  %10079 = vrot.lane.b32.xlu0 %v8494, 124
  %v10080 = vpop.permute.xlu0 %10079
  %10081 = vrot.lane.b32.xlu0 %v8499, 124
  %v10082 = vpop.permute.xlu0 %10081
  %10083 = vrot.lane.b32.xlu0 %v8504, 124
  %v10084 = vpop.permute.xlu0 %10083
  %10085 = vrot.lane.b32.xlu0 %v8509, 124
  %v10086 = vpop.permute.xlu0 %10085
  %10087 = vrot.lane.b32.xlu0 %v8514, 124
  %v10088 = vpop.permute.xlu0 %10087
  %v10100 = vsel %vm2451, %v10047, 0
  %v10102 = vsel %vm2451, %v10048, 0
  %v10104 = vsel %vm2451, %v10049, 0
  %v10106 = vsel %vm2451, %v10050, 0
  %v10108 = vsel %vm2451, %v10051, 0
  %v10110 = vsel %vm2451, %v10052, 0
  %v10112 = vsel %vm2451, %v10053, 0
  %v10114 = vsel %vm2451, %v10054, 0
  %v10116 = vsel %vm2451, %v10055, 0
  %v10118 = vsel %vm2451, %v10056, 0
  %v10120 = vsel %vm2451, %v10057, 0
  %v10122 = vsel %vm2451, %v10058, 0
  %v10124 = vsel %vm2451, %v10059, 0
  %v10126 = vsel %vm2451, %v10060, 0
  %v10128 = vsel %vm2451, %v10061, 0
  %v10130 = vsel %vm2451, %v10062, 0
  %v10132 = vsel %vm2451, %v10063, 0
  %v10134 = vsel %vm2451, %v10064, 0
  %v10136 = vsel %vm2451, %v10065, 0
  %v10138 = vsel %vm2451, %v10066, 0
  %10140 = vmatprep.subr.mxu0 0.0
  %10141 = vmatpush1.msra.mxu0 0.0
  %10142 = vmatprep.subr.mxu0 0.0
  %10143 = vmatpush1.msra.mxu0 0.0
  %10144 = vmatprep.subr.mxu0 0.0
  %10145 = vmatpush1.msra.mxu0 0.0
  %10146 = vmatprep.subr.mxu0 0.0
  %10147 = vmatpush1.msra.mxu0 0.0
  %10148 = vmatprep.subr.mxu0 0.0
  %10149 = vmatpush1.msra.mxu0 0.0
  %10150 = vmatprep.subr.mxu0 0.0
  %10151 = vmatpush1.msra.mxu0 %v10088
  %10152 = vmatprep.subr.mxu0 0.0
  %10153 = vmatpush1.msra.mxu0 %v10086
  %10154 = vmatprep.subr.mxu0 0.0
  %10155 = vmatpush1.msra.mxu0 %v10084
  %10156 = vmatprep.subr.mxu0 0.0
  %10157 = vmatpush1.msra.mxu0 %v10082
  %10158 = vmatprep.subr.mxu0 0.0
  %10159 = vmatpush1.msra.mxu0 %v10080
  %10160 = vmatprep.subr.mxu0 0.0
  %10161 = vmatpush1.msra.mxu0 %v10078
  %10162 = vmatprep.subr.mxu0 0.0
  %10163 = vmatpush1.msra.mxu0 %v10076
  %10164 = vmatprep.subr.mxu0 0.0
  %10165 = vmatpush1.msra.mxu0 %v10074
  %10166 = vmatprep.subr.mxu0 0.0
  %10167 = vmatpush1.msra.mxu0 %v10072
  %10168 = vmatprep.subr.mxu0 0.0
  %10169 = vmatpush1.msra.mxu0 %v10070
  %10170 = vmatprep.subr.mxu0 0.0
  %10171 = vmatpush1.msra.mxu0 %v10068
  %10172 = vmatprep.subr.mxu0 0.0
  %10173 = vmatpush2.msra.mxu0 0.0
  %10174 = vmatprep.subr.mxu0 0.0
  %10175 = vmatpush2.msra.mxu0 0.0
  %10176 = vmatprep.subr.mxu0 0.0
  %10177 = vmatpush2.msra.mxu0 0.0
  %10178 = vmatprep.subr.mxu0 0.0
  %10179 = vmatpush2.msra.mxu0 0.0
  %10180 = vmatprep.subr.mxu0 0.0
  %10181 = vmatpush2.msra.mxu0 0.0
  %10182 = vmatprep.subr.mxu0 0.0
  %10183 = vmatpush2.msra.mxu0 0.0
  %10184 = vmatprep.subr.mxu0 0.0
  %10185 = vmatpush2.msra.mxu0 0.0
  %10186 = vmatprep.subr.mxu0 0.0
  %10187 = vmatpush2.msra.mxu0 0.0
  %10188 = vmatprep.subr.mxu0 0.0
  %10189 = vmatpush2.msra.mxu0 0.0
  %10190 = vmatprep.subr.mxu0 0.0
  %10191 = vmatpush2.msra.mxu0 0.0
  %10192 = vmatprep.subr.mxu0 0.0
  %10193 = vmatpush2.msra.mxu0 0.0
  %10194 = vmatprep.subr.mxu0 0.0
  %10195 = vmatpush2.msra.mxu0 0.0
  %10196 = vmatprep.subr.mxu0 0.0
  %10197 = vmatpush2.msra.mxu0 0.0
  %10198 = vmatprep.subr.mxu0 0.0
  %10199 = vmatpush2.msra.mxu0 0.0
  %10200 = vmatprep.subr.mxu0 0.0
  %10201 = vmatpush2.msra.mxu0 0.0
  %10202 = vmatprep.subr.mxu0 0.0
  %10203 = vmatpush2.msra.mxu0 0.0
  %10204 = vmatprep.mubr.f32.mxu0 0.0
  %10205 = vmatmul.mubr.f32.gmra.mxu0 %v10100
  %v10206 = vpop.f32.mrf.mxu0
  %v10207 = vadd.f32 0.0, %v10206
  %v10208 = vpop.f32.mrf.mxu0
  %10209 = vmatprep.mubr.f32.mxu0 0.0
  %10210 = vmatmul.mubr.f32.gmra.mxu0 %v10102
  %v10211 = vpop.f32.mrf.mxu0
  %v10212 = vadd.f32 0.0, %v10211
  %v10213 = vpop.f32.mrf.mxu0
  %10214 = vmatprep.mubr.f32.mxu0 0.0
  %10215 = vmatmul.mubr.f32.gmra.mxu0 %v10104
  %v10216 = vpop.f32.mrf.mxu0
  %v10217 = vadd.f32 0.0, %v10216
  %v10218 = vpop.f32.mrf.mxu0
  %10219 = vmatprep.mubr.f32.mxu0 0.0
  %10220 = vmatmul.mubr.f32.gmra.mxu0 %v10106
  %v10221 = vpop.f32.mrf.mxu0
  %v10222 = vadd.f32 0.0, %v10221
  %v10223 = vpop.f32.mrf.mxu0
  %10224 = vmatprep.mubr.f32.mxu0 0.0
  %10225 = vmatmul.mubr.f32.gmra.mxu0 %v10108
  %v10226 = vpop.f32.mrf.mxu0
  %v10227 = vadd.f32 0.0, %v10226
  %v10228 = vpop.f32.mrf.mxu0
  %10229 = vmatprep.mubr.f32.mxu0 0.0
  %10230 = vmatmul.mubr.f32.gmra.mxu0 %v10110
  %v10231 = vpop.f32.mrf.mxu0
  %v10232 = vadd.f32 0.0, %v10231
  %v10233 = vpop.f32.mrf.mxu0
  %10234 = vmatprep.mubr.f32.mxu0 0.0
  %10235 = vmatmul.mubr.f32.gmra.mxu0 %v10112
  %v10236 = vpop.f32.mrf.mxu0
  %v10237 = vadd.f32 0.0, %v10236
  %v10238 = vpop.f32.mrf.mxu0
  %10239 = vmatprep.mubr.f32.mxu0 0.0
  %10240 = vmatmul.mubr.f32.gmra.mxu0 %v10114
  %v10241 = vpop.f32.mrf.mxu0
  %v10242 = vadd.f32 0.0, %v10241
  %v10243 = vpop.f32.mrf.mxu0
  %10244 = vmatprep.mubr.f32.mxu0 0.0
  %10245 = vmatmul.mubr.f32.gmra.mxu0 %v10116
  %v10246 = vpop.f32.mrf.mxu0
  %v10247 = vadd.f32 0.0, %v10246
  %v10248 = vpop.f32.mrf.mxu0
  %10249 = vmatprep.mubr.f32.mxu0 0.0
  %10250 = vmatmul.mubr.f32.gmra.mxu0 %v10118
  %v10251 = vpop.f32.mrf.mxu0
  %v10252 = vadd.f32 0.0, %v10251
  %v10253 = vpop.f32.mrf.mxu0
  %10254 = vmatprep.mubr.f32.mxu0 0.0
  %10255 = vmatmul.mubr.f32.gmra.mxu0 %v10120
  %v10256 = vpop.f32.mrf.mxu0
  %v10257 = vadd.f32 0.0, %v10256
  %v10258 = vpop.f32.mrf.mxu0
  %10259 = vmatprep.mubr.f32.mxu0 0.0
  %10260 = vmatmul.mubr.f32.gmra.mxu0 %v10122
  %v10261 = vpop.f32.mrf.mxu0
  %v10262 = vadd.f32 0.0, %v10261
  %v10263 = vpop.f32.mrf.mxu0
  %10264 = vmatprep.mubr.f32.mxu0 0.0
  %10265 = vmatmul.mubr.f32.gmra.mxu0 %v10124
  %v10266 = vpop.f32.mrf.mxu0
  %v10267 = vadd.f32 0.0, %v10266
  %v10268 = vpop.f32.mrf.mxu0
  %10269 = vmatprep.mubr.f32.mxu0 0.0
  %10270 = vmatmul.mubr.f32.gmra.mxu0 %v10126
  %v10271 = vpop.f32.mrf.mxu0
  %v10272 = vadd.f32 0.0, %v10271
  %v10273 = vpop.f32.mrf.mxu0
  %10274 = vmatprep.mubr.f32.mxu0 0.0
  %10275 = vmatmul.mubr.f32.gmra.mxu0 %v10128
  %v10276 = vpop.f32.mrf.mxu0
  %v10277 = vadd.f32 0.0, %v10276
  %v10278 = vpop.f32.mrf.mxu0
  %10279 = vmatprep.mubr.f32.mxu0 0.0
  %10280 = vmatmul.mubr.f32.gmra.mxu0 %v10130
  %v10281 = vpop.f32.mrf.mxu0
  %v10282 = vadd.f32 0.0, %v10281
  %v10283 = vpop.f32.mrf.mxu0
  %10284 = vmatprep.mubr.f32.mxu0 0.0
  %10285 = vmatmul.mubr.f32.gmra.mxu0 %v10132
  %v10286 = vpop.f32.mrf.mxu0
  %v10287 = vadd.f32 0.0, %v10286
  %v10288 = vpop.f32.mrf.mxu0
  %10289 = vmatprep.mubr.f32.mxu0 0.0
  %10290 = vmatmul.mubr.f32.gmra.mxu0 %v10134
  %v10291 = vpop.f32.mrf.mxu0
  %v10292 = vadd.f32 0.0, %v10291
  %v10293 = vpop.f32.mrf.mxu0
  %10294 = vmatprep.mubr.f32.mxu0 0.0
  %10295 = vmatmul.mubr.f32.gmra.mxu0 %v10136
  %v10296 = vpop.f32.mrf.mxu0
  %v10297 = vadd.f32 0.0, %v10296
  %v10298 = vpop.f32.mrf.mxu0
  %10299 = vmatprep.mubr.f32.mxu0 0.0
  %10300 = vmatmul.mubr.f32.gmra.mxu0 %v10138
  %v10301 = vpop.f32.mrf.mxu0
  %v10302 = vadd.f32 0.0, %v10301
  %v10303 = vpop.f32.mrf.mxu0
  %10304 = vdwg.mxu0
  %v10305 = vadd.f32 %v9867, %v10207
  %v10306 = vadd.f32 %v9868, %v10212
  %v10307 = vadd.f32 %v9869, %v10217
  %v10308 = vadd.f32 %v9870, %v10222
  %v10309 = vadd.f32 %v9871, %v10227
  %v10310 = vadd.f32 %v9872, %v10232
  %v10311 = vadd.f32 %v9873, %v10237
  %v10312 = vadd.f32 %v9874, %v10242
  %v10313 = vadd.f32 %v9875, %v10247
  %v10314 = vadd.f32 %v9876, %v10252
  %v10315 = vadd.f32 %v9877, %v10257
  %v10316 = vadd.f32 %v9878, %v10262
  %v10317 = vadd.f32 %v9879, %v10267
  %v10318 = vadd.f32 %v9880, %v10272
  %v10319 = vadd.f32 %v9881, %v10277
  %v10320 = vadd.f32 %v9882, %v10282
  %v10321 = vadd.f32 %v9883, %v10287
  %v10322 = vadd.f32 %v9884, %v10292
  %v10323 = vadd.f32 %v9885, %v10297
  %v10324 = vadd.f32 %v9886, %v10302
  %v10325 = vld [vmem:[%s4] sm:$0xff]
  %v10326 = vld [vmem:[%s4 + $0x8] sm:$0xff]
  %v10327 = vld [vmem:[%s4 + $0x10] sm:$0xff]
  %v10328 = vld [vmem:[%s4 + $0x18] sm:$0xff]
  %v10329 = vld [vmem:[%s4 + $0x20] sm:$0xff]
  %v10330 = vld [vmem:[%s4 + $0x28] sm:$0xff]
  %v10331 = vld [vmem:[%s4 + $0x30] sm:$0xff]
  %v10332 = vld [vmem:[%s4 + $0x38] sm:$0xff]
  %v10333 = vld [vmem:[%s4 + $0x40] sm:$0xff]
  %v10334 = vld [vmem:[%s4 + $0x48] sm:$0xff]
  %v10335 = vld [vmem:[%s4 + $0x50] sm:$0xff]
  %v10336 = vld [vmem:[%s4 + $0x58] sm:$0xff]
  %v10337 = vld [vmem:[%s4 + $0x60] sm:$0xff]
  %v10338 = vld [vmem:[%s4 + $0x68] sm:$0xff]
  %v10339 = vld [vmem:[%s4 + $0x70] sm:$0xff]
  %v10340 = vld [vmem:[%s4 + $0x78] sm:$0xff]
  %v10341 = vld [vmem:[%s4 + $0x80] sm:$0xff]
  %v10342 = vld [vmem:[%s4 + $0x88] sm:$0xff]
  %v10343 = vld [vmem:[%s4 + $0x90] sm:$0xff]
  %v10344 = vld [vmem:[%s4 + $0x98] sm:$0xff]
  %10346 = vset.pattern.permute.xlu0 0
  %10347 = vperm.xlu0 %10346, %v10325
  %v10348 = vpop.permute.xlu0 %10347
  %10351 = vset.pattern.permute.xlu0 0
  %10352 = vperm.xlu0 %10351, %v10326
  %v10353 = vpop.permute.xlu0 %10352
  %10356 = vset.pattern.permute.xlu0 0
  %10357 = vperm.xlu0 %10356, %v10327
  %v10358 = vpop.permute.xlu0 %10357
  %10361 = vset.pattern.permute.xlu0 0
  %10362 = vperm.xlu0 %10361, %v10328
  %v10363 = vpop.permute.xlu0 %10362
  %10366 = vset.pattern.permute.xlu0 0
  %10367 = vperm.xlu0 %10366, %v10329
  %v10368 = vpop.permute.xlu0 %10367
  %10371 = vset.pattern.permute.xlu0 0
  %10372 = vperm.xlu0 %10371, %v10330
  %v10373 = vpop.permute.xlu0 %10372
  %10376 = vset.pattern.permute.xlu0 0
  %10377 = vperm.xlu0 %10376, %v10331
  %v10378 = vpop.permute.xlu0 %10377
  %10381 = vset.pattern.permute.xlu0 0
  %10382 = vperm.xlu0 %10381, %v10332
  %v10383 = vpop.permute.xlu0 %10382
  %10386 = vset.pattern.permute.xlu0 0
  %10387 = vperm.xlu0 %10386, %v10333
  %v10388 = vpop.permute.xlu0 %10387
  %10391 = vset.pattern.permute.xlu0 0
  %10392 = vperm.xlu0 %10391, %v10334
  %v10393 = vpop.permute.xlu0 %10392
  %10396 = vset.pattern.permute.xlu0 0
  %10397 = vperm.xlu0 %10396, %v10335
  %v10398 = vpop.permute.xlu0 %10397
  %10401 = vset.pattern.permute.xlu0 0
  %10402 = vperm.xlu0 %10401, %v10336
  %v10403 = vpop.permute.xlu0 %10402
  %10406 = vset.pattern.permute.xlu0 0
  %10407 = vperm.xlu0 %10406, %v10337
  %v10408 = vpop.permute.xlu0 %10407
  %10411 = vset.pattern.permute.xlu0 0
  %10412 = vperm.xlu0 %10411, %v10338
  %v10413 = vpop.permute.xlu0 %10412
  %10416 = vset.pattern.permute.xlu0 0
  %10417 = vperm.xlu0 %10416, %v10339
  %v10418 = vpop.permute.xlu0 %10417
  %10421 = vset.pattern.permute.xlu0 0
  %10422 = vperm.xlu0 %10421, %v10340
  %v10423 = vpop.permute.xlu0 %10422
  %10426 = vset.pattern.permute.xlu0 0
  %10427 = vperm.xlu0 %10426, %v10341
  %v10428 = vpop.permute.xlu0 %10427
  %10431 = vset.pattern.permute.xlu0 0
  %10432 = vperm.xlu0 %10431, %v10342
  %v10433 = vpop.permute.xlu0 %10432
  %10436 = vset.pattern.permute.xlu0 0
  %10437 = vperm.xlu0 %10436, %v10343
  %v10438 = vpop.permute.xlu0 %10437
  %10441 = vset.pattern.permute.xlu0 0
  %10442 = vperm.xlu0 %10441, %v10344
  %v10443 = vpop.permute.xlu0 %10442
  %v10445 = vadd.f32 %v10305, %v10348
  %v10446 = vadd.f32 %v10306, %v10353
  %v10447 = vadd.f32 %v10307, %v10358
  %v10448 = vadd.f32 %v10308, %v10363
  %v10449 = vadd.f32 %v10309, %v10368
  %v10450 = vadd.f32 %v10310, %v10373
  %v10451 = vadd.f32 %v10311, %v10378
  %v10452 = vadd.f32 %v10312, %v10383
  %v10453 = vadd.f32 %v10313, %v10388
  %v10454 = vadd.f32 %v10314, %v10393
  %v10455 = vadd.f32 %v10315, %v10398
  %v10456 = vadd.f32 %v10316, %v10403
  %v10457 = vadd.f32 %v10317, %v10408
  %v10458 = vadd.f32 %v10318, %v10413
  %v10459 = vadd.f32 %v10319, %v10418
  %v10460 = vadd.f32 %v10320, %v10423
  %v10461 = vadd.f32 %v10321, %v10428
  %v10462 = vadd.f32 %v10322, %v10433
  %v10463 = vadd.f32 %v10323, %v10438
  %v10464 = vadd.f32 %v10324, %v10443
  %v10465 = vmax.f32 %v10445, 0.0
  %v10466 = vmax.f32 %v10446, 0.0
  %v10467 = vmax.f32 %v10447, 0.0
  %v10468 = vmax.f32 %v10448, 0.0
  %v10469 = vmax.f32 %v10449, 0.0
  %v10470 = vmax.f32 %v10450, 0.0
  %v10471 = vmax.f32 %v10451, 0.0
  %v10472 = vmax.f32 %v10452, 0.0
  %v10473 = vmax.f32 %v10453, 0.0
  %v10474 = vmax.f32 %v10454, 0.0
  %v10475 = vmax.f32 %v10455, 0.0
  %v10476 = vmax.f32 %v10456, 0.0
  %v10477 = vmax.f32 %v10457, 0.0
  %v10478 = vmax.f32 %v10458, 0.0
  %v10479 = vmax.f32 %v10459, 0.0
  %v10480 = vmax.f32 %v10460, 0.0
  %v10481 = vmax.f32 %v10461, 0.0
  %v10482 = vmax.f32 %v10462, 0.0
  %v10483 = vmax.f32 %v10463, 0.0
  %v10484 = vmax.f32 %v10464, 0.0
  %10505 = vrot.lane.b32.xlu0 %v10465, 127
  %v10506 = vpop.permute.xlu0 %10505
  %10507 = vrot.lane.b32.xlu0 %v10466, 127
  %v10508 = vpop.permute.xlu0 %10507
  %10509 = vrot.lane.b32.xlu0 %v10467, 127
  %v10510 = vpop.permute.xlu0 %10509
  %10511 = vrot.lane.b32.xlu0 %v10468, 127
  %v10512 = vpop.permute.xlu0 %10511
  %10513 = vrot.lane.b32.xlu0 %v10469, 127
  %v10514 = vpop.permute.xlu0 %10513
  %10515 = vrot.lane.b32.xlu0 %v10470, 127
  %v10516 = vpop.permute.xlu0 %10515
  %10517 = vrot.lane.b32.xlu0 %v10471, 127
  %v10518 = vpop.permute.xlu0 %10517
  %10519 = vrot.lane.b32.xlu0 %v10472, 127
  %v10520 = vpop.permute.xlu0 %10519
  %10521 = vrot.lane.b32.xlu0 %v10473, 127
  %v10522 = vpop.permute.xlu0 %10521
  %10523 = vrot.lane.b32.xlu0 %v10474, 127
  %v10524 = vpop.permute.xlu0 %10523
  %10525 = vrot.lane.b32.xlu0 %v10475, 127
  %v10526 = vpop.permute.xlu0 %10525
  %10527 = vrot.lane.b32.xlu0 %v10476, 127
  %v10528 = vpop.permute.xlu0 %10527
  %10529 = vrot.lane.b32.xlu0 %v10477, 127
  %v10530 = vpop.permute.xlu0 %10529
  %10531 = vrot.lane.b32.xlu0 %v10478, 127
  %v10532 = vpop.permute.xlu0 %10531
  %10533 = vrot.lane.b32.xlu0 %v10479, 127
  %v10534 = vpop.permute.xlu0 %10533
  %10535 = vrot.lane.b32.xlu0 %v10480, 127
  %v10536 = vpop.permute.xlu0 %10535
  %10537 = vrot.lane.b32.xlu0 %v10481, 127
  %v10538 = vpop.permute.xlu0 %10537
  %10539 = vrot.lane.b32.xlu0 %v10482, 127
  %v10540 = vpop.permute.xlu0 %10539
  %10541 = vrot.lane.b32.xlu0 %v10483, 127
  %v10542 = vpop.permute.xlu0 %10541
  %10543 = vrot.lane.b32.xlu0 %v10484, 127
  %v10544 = vpop.permute.xlu0 %10543
  %v10565 = vmax.f32 %v10465, %v10506
  %v10566 = vmax.f32 %v10466, %v10508
  %v10567 = vmax.f32 %v10467, %v10510
  %v10568 = vmax.f32 %v10468, %v10512
  %v10569 = vmax.f32 %v10469, %v10514
  %v10570 = vmax.f32 %v10470, %v10516
  %v10571 = vmax.f32 %v10471, %v10518
  %v10572 = vmax.f32 %v10472, %v10520
  %v10573 = vmax.f32 %v10473, %v10522
  %v10574 = vmax.f32 %v10474, %v10524
  %v10575 = vmax.f32 %v10475, %v10526
  %v10576 = vmax.f32 %v10476, %v10528
  %v10577 = vmax.f32 %v10477, %v10530
  %v10578 = vmax.f32 %v10478, %v10532
  %v10579 = vmax.f32 %v10479, %v10534
  %v10580 = vmax.f32 %v10480, %v10536
  %v10581 = vmax.f32 %v10481, %v10538
  %v10582 = vmax.f32 %v10482, %v10540
  %v10583 = vmax.f32 %v10483, %v10542
  %v10584 = vmax.f32 %v10484, %v10544
  %v10605 = vrot.slane %v10565, 1
  %v10606 = vrot.slane %v10566, 1
  %v10607 = vsel %vm1722, %v10605, %v10606
  %v10608 = vrot.slane %v10567, 1
  %v10609 = vsel %vm1722, %v10606, %v10608
  %v10610 = vrot.slane %v10568, 1
  %v10611 = vsel %vm1722, %v10608, %v10610
  %v10612 = vrot.slane %v10569, 1
  %v10613 = vsel %vm1722, %v10610, %v10612
  %v10614 = vrot.slane %v10570, 1
  %v10615 = vsel %vm1722, %v10612, %v10614
  %v10616 = vrot.slane %v10571, 1
  %v10617 = vsel %vm1722, %v10614, %v10616
  %v10618 = vrot.slane %v10572, 1
  %v10619 = vsel %vm1722, %v10616, %v10618
  %v10620 = vrot.slane %v10573, 1
  %v10621 = vsel %vm1722, %v10618, %v10620
  %v10622 = vrot.slane %v10574, 1
  %v10623 = vsel %vm1722, %v10620, %v10622
  %v10624 = vrot.slane %v10575, 1
  %v10625 = vsel %vm1722, %v10622, %v10624
  %v10626 = vrot.slane %v10576, 1
  %v10627 = vsel %vm1722, %v10624, %v10626
  %v10628 = vrot.slane %v10577, 1
  %v10629 = vsel %vm1722, %v10626, %v10628
  %v10630 = vrot.slane %v10578, 1
  %v10631 = vsel %vm1722, %v10628, %v10630
  %v10632 = vrot.slane %v10579, 1
  %v10633 = vsel %vm1722, %v10630, %v10632
  %v10634 = vrot.slane %v10580, 1
  %v10635 = vsel %vm1722, %v10632, %v10634
  %v10636 = vrot.slane %v10581, 1
  %v10637 = vsel %vm1722, %v10634, %v10636
  %v10638 = vrot.slane %v10582, 1
  %v10639 = vsel %vm1722, %v10636, %v10638
  %v10640 = vrot.slane %v10583, 1
  %v10641 = vsel %vm1722, %v10638, %v10640
  %v10642 = vrot.slane %v10584, 1
  %v10643 = vsel %vm1722, %v10640, %v10642
  %v10664 = vmax.f32 %v10565, %v10607
  %v10665 = vmax.f32 %v10566, %v10609
  %v10666 = vmax.f32 %v10567, %v10611
  %v10667 = vmax.f32 %v10568, %v10613
  %v10668 = vmax.f32 %v10569, %v10615
  %v10669 = vmax.f32 %v10570, %v10617
  %v10670 = vmax.f32 %v10571, %v10619
  %v10671 = vmax.f32 %v10572, %v10621
  %v10672 = vmax.f32 %v10573, %v10623
  %v10673 = vmax.f32 %v10574, %v10625
  %v10674 = vmax.f32 %v10575, %v10627
  %v10675 = vmax.f32 %v10576, %v10629
  %v10676 = vmax.f32 %v10577, %v10631
  %v10677 = vmax.f32 %v10578, %v10633
  %v10678 = vmax.f32 %v10579, %v10635
  %v10679 = vmax.f32 %v10580, %v10637
  %v10680 = vmax.f32 %v10581, %v10639
  %v10681 = vmax.f32 %v10582, %v10641
  %v10682 = vmax.f32 %v10583, %v10643
  %v10683 = vmax.f32 %v10584, %v10642
  %v10685 = vsel %vm1722, %v10683, 0
  %10687 = vmatprep.subr.mxu0 0.0
  %10688 = vmatpush1.msra.mxu0 %v10679
  %10689 = vmatprep.subr.mxu0 0.0
  %10690 = vmatpush1.msra.mxu0 %v10678
  %10691 = vmatprep.subr.mxu0 0.0
  %10692 = vmatpush1.msra.mxu0 %v10677
  %10693 = vmatprep.subr.mxu0 0.0
  %10694 = vmatpush1.msra.mxu0 %v10676
  %10695 = vmatprep.subr.mxu0 0.0
  %10696 = vmatpush1.msra.mxu0 %v10675
  %10697 = vmatprep.subr.mxu0 0.0
  %10698 = vmatpush1.msra.mxu0 %v10674
  %10699 = vmatprep.subr.mxu0 0.0
  %10700 = vmatpush1.msra.mxu0 %v10673
  %10701 = vmatprep.subr.mxu0 0.0
  %10702 = vmatpush1.msra.mxu0 %v10672
  %10703 = vmatprep.subr.mxu0 0.0
  %10704 = vmatpush1.msra.mxu0 %v10671
  %10705 = vmatprep.subr.mxu0 0.0
  %10706 = vmatpush1.msra.mxu0 %v10670
  %10707 = vmatprep.subr.mxu0 0.0
  %10708 = vmatpush1.msra.mxu0 %v10669
  %10709 = vmatprep.subr.mxu0 0.0
  %10710 = vmatpush1.msra.mxu0 %v10668
  %10711 = vmatprep.subr.mxu0 0.0
  %10712 = vmatpush1.msra.mxu0 %v10667
  %10713 = vmatprep.subr.mxu0 0.0
  %10714 = vmatpush1.msra.mxu0 %v10666
  %10715 = vmatprep.subr.mxu0 0.0
  %10716 = vmatpush1.msra.mxu0 %v10665
  %10717 = vmatprep.subr.mxu0 0.0
  %10718 = vmatpush1.msra.mxu0 %v10664
  %10719 = vmatprep.subr.mxu0 0.0
  %10720 = vmatpush2.msra.mxu0 0.0
  %10721 = vmatprep.subr.mxu0 0.0
  %10722 = vmatpush2.msra.mxu0 0.0
  %10723 = vmatprep.subr.mxu0 0.0
  %10724 = vmatpush2.msra.mxu0 0.0
  %10725 = vmatprep.subr.mxu0 0.0
  %10726 = vmatpush2.msra.mxu0 0.0
  %10727 = vmatprep.subr.mxu0 0.0
  %10728 = vmatpush2.msra.mxu0 0.0
  %10729 = vmatprep.subr.mxu0 0.0
  %10730 = vmatpush2.msra.mxu0 0.0
  %10731 = vmatprep.subr.mxu0 0.0
  %10732 = vmatpush2.msra.mxu0 0.0
  %10733 = vmatprep.subr.mxu0 0.0
  %10734 = vmatpush2.msra.mxu0 0.0
  %10735 = vmatprep.subr.mxu0 0.0
  %10736 = vmatpush2.msra.mxu0 0.0
  %10737 = vmatprep.subr.mxu0 0.0
  %10738 = vmatpush2.msra.mxu0 0.0
  %10739 = vmatprep.subr.mxu0 0.0
  %10740 = vmatpush2.msra.mxu0 0.0
  %10741 = vmatprep.subr.mxu0 0.0
  %10742 = vmatpush2.msra.mxu0 0.0
  %10743 = vmatprep.subr.mxu0 0.0
  %10744 = vmatpush2.msra.mxu0 %v10685
  %10745 = vmatprep.subr.mxu0 0.0
  %10746 = vmatpush2.msra.mxu0 %v10682
  %10747 = vmatprep.subr.mxu0 0.0
  %10748 = vmatpush2.msra.mxu0 %v10681
  %10749 = vmatprep.subr.mxu0 0.0
  %10750 = vmatpush2.msra.mxu0 %v10680
  %10751 = vmatprep.mubr.f32.mxu0 %v4397
  %10752 = vmatmul.mubr.f32.gmra.mxu0 %v1876
  %v10753 = vpop.f32.mrf.mxu0
  %v10754 = vadd.f32 0.0, %v10753
  %v10755 = vpop.f32.mrf.mxu0
  %10756 = vmatprep.mubr.f32.mxu0 %v4399
  %10757 = vmatmul.mubr.f32.gmra.mxu0 %v1878
  %v10758 = vpop.f32.mrf.mxu0
  %v10759 = vadd.f32 0.0, %v10758
  %v10760 = vpop.f32.mrf.mxu0
  %10761 = vmatprep.mubr.f32.mxu0 %v4401
  %10762 = vmatmul.mubr.f32.gmra.mxu0 %v1880
  %v10763 = vpop.f32.mrf.mxu0
  %v10764 = vadd.f32 0.0, %v10763
  %v10765 = vpop.f32.mrf.mxu0
  %10766 = vmatprep.mubr.f32.mxu0 %v4403
  %10767 = vmatmul.mubr.f32.gmra.mxu0 %v1882
  %v10768 = vpop.f32.mrf.mxu0
  %v10769 = vadd.f32 0.0, %v10768
  %v10770 = vpop.f32.mrf.mxu0
  %10771 = vmatprep.mubr.f32.mxu0 %v4405
  %10772 = vmatmul.mubr.f32.gmra.mxu0 %v1884
  %v10773 = vpop.f32.mrf.mxu0
  %v10774 = vadd.f32 0.0, %v10773
  %v10775 = vpop.f32.mrf.mxu0
  %10776 = vmatprep.mubr.f32.mxu0 %v4407
  %10777 = vmatmul.mubr.f32.gmra.mxu0 %v1886
  %v10778 = vpop.f32.mrf.mxu0
  %v10779 = vadd.f32 0.0, %v10778
  %v10780 = vpop.f32.mrf.mxu0
  %10781 = vmatprep.mubr.f32.mxu0 %v4409
  %10782 = vmatmul.mubr.f32.gmra.mxu0 %v1888
  %v10783 = vpop.f32.mrf.mxu0
  %v10784 = vadd.f32 0.0, %v10783
  %v10785 = vpop.f32.mrf.mxu0
  %10786 = vmatprep.mubr.f32.mxu0 %v4411
  %10787 = vmatmul.mubr.f32.gmra.mxu0 %v1890
  %v10788 = vpop.f32.mrf.mxu0
  %v10789 = vadd.f32 0.0, %v10788
  %v10790 = vpop.f32.mrf.mxu0
  %10791 = vmatprep.mubr.f32.mxu0 %v4413
  %10792 = vmatmul.mubr.f32.gmra.mxu0 %v1892
  %v10793 = vpop.f32.mrf.mxu0
  %v10794 = vadd.f32 0.0, %v10793
  %v10795 = vpop.f32.mrf.mxu0
  %10796 = vmatprep.mubr.f32.mxu0 %v4415
  %10797 = vmatmul.mubr.f32.gmra.mxu0 %v1894
  %v10798 = vpop.f32.mrf.mxu0
  %v10799 = vadd.f32 0.0, %v10798
  %v10800 = vpop.f32.mrf.mxu0
  %10801 = vdwg.mxu0
  %v10803 = vsel %vm4535, %v10754, 0
  %v10806 = vsel %vm4535, %v10759, 0
  %v10809 = vsel %vm4535, %v10764, 0
  %v10812 = vsel %vm4535, %v10769, 0
  %v10815 = vsel %vm4535, %v10774, 0
  %v10818 = vsel %vm4535, %v10779, 0
  %v10821 = vsel %vm4535, %v10784, 0
  %v10824 = vsel %vm4535, %v10789, 0
  %v10827 = vsel %vm4535, %v10794, 0
  %v10830 = vsel %vm4535, %v10799, 0
  %10832 = vmatprep.subr.mxu0 0.0
  %10833 = vmatpush1.msra.mxu0 0.0
  %10834 = vmatprep.subr.mxu0 0.0
  %10835 = vmatpush1.msra.mxu0 0.0
  %10836 = vmatprep.subr.mxu0 0.0
  %10837 = vmatpush1.msra.mxu0 0.0
  %10838 = vmatprep.subr.mxu0 0.0
  %10839 = vmatpush1.msra.mxu0 0.0
  %10840 = vmatprep.subr.mxu0 0.0
  %10841 = vmatpush1.msra.mxu0 0.0
  %10842 = vmatprep.subr.mxu0 0.0
  %10843 = vmatpush1.msra.mxu0 0.0
  %10844 = vmatprep.subr.mxu0 0.0
  %10845 = vmatpush1.msra.mxu0 0.0
  %10846 = vmatprep.subr.mxu0 0.0
  %10847 = vmatpush1.msra.mxu0 0.0
  %10848 = vmatprep.subr.mxu0 0.0
  %10849 = vmatpush1.msra.mxu0 0.0
  %10850 = vmatprep.subr.mxu0 0.0
  %10851 = vmatpush1.msra.mxu0 0.0
  %10852 = vmatprep.subr.mxu0 0.0
  %10853 = vmatpush1.msra.mxu0 0.0
  %10854 = vmatprep.subr.mxu0 0.0
  %10855 = vmatpush1.msra.mxu0 0.0
  %10856 = vmatprep.subr.mxu0 0.0
  %10857 = vmatpush1.msra.mxu0 0.0
  %10858 = vmatprep.subr.mxu0 0.0
  %10859 = vmatpush1.msra.mxu0 0.0
  %10860 = vmatprep.subr.mxu0 0.0
  %10861 = vmatpush1.msra.mxu0 %v4568
  %10862 = vmatprep.subr.mxu0 0.0
  %10863 = vmatpush1.msra.mxu0 %v1907
  %10864 = vmatprep.subr.mxu0 0.0
  %10865 = vmatpush2.msra.mxu0 0.0
  %10866 = vmatprep.subr.mxu0 0.0
  %10867 = vmatpush2.msra.mxu0 0.0
  %10868 = vmatprep.subr.mxu0 0.0
  %10869 = vmatpush2.msra.mxu0 0.0
  %10870 = vmatprep.subr.mxu0 0.0
  %10871 = vmatpush2.msra.mxu0 0.0
  %10872 = vmatprep.subr.mxu0 0.0
  %10873 = vmatpush2.msra.mxu0 0.0
  %10874 = vmatprep.subr.mxu0 0.0
  %10875 = vmatpush2.msra.mxu0 0.0
  %10876 = vmatprep.subr.mxu0 0.0
  %10877 = vmatpush2.msra.mxu0 0.0
  %10878 = vmatprep.subr.mxu0 0.0
  %10879 = vmatpush2.msra.mxu0 0.0
  %10880 = vmatprep.subr.mxu0 0.0
  %10881 = vmatpush2.msra.mxu0 0.0
  %10882 = vmatprep.subr.mxu0 0.0
  %10883 = vmatpush2.msra.mxu0 0.0
  %10884 = vmatprep.subr.mxu0 0.0
  %10885 = vmatpush2.msra.mxu0 0.0
  %10886 = vmatprep.subr.mxu0 0.0
  %10887 = vmatpush2.msra.mxu0 0.0
  %10888 = vmatprep.subr.mxu0 0.0
  %10889 = vmatpush2.msra.mxu0 0.0
  %10890 = vmatprep.subr.mxu0 0.0
  %10891 = vmatpush2.msra.mxu0 0.0
  %10892 = vmatprep.subr.mxu0 0.0
  %10893 = vmatpush2.msra.mxu0 0.0
  %10894 = vmatprep.subr.mxu0 0.0
  %10895 = vmatpush2.msra.mxu0 0.0
  %10896 = vmatprep.mubr.f32.mxu0 0.0
  %10897 = vmatmul.mubr.f32.gmra.mxu0 %v10803
  %v10898 = vpop.f32.mrf.mxu0
  %v10899 = vadd.f32 0.0, %v10898
  %v10900 = vpop.f32.mrf.mxu0
  %10901 = vmatprep.mubr.f32.mxu0 0.0
  %10902 = vmatmul.mubr.f32.gmra.mxu0 %v10806
  %v10903 = vpop.f32.mrf.mxu0
  %v10904 = vadd.f32 0.0, %v10903
  %v10905 = vpop.f32.mrf.mxu0
  %10906 = vmatprep.mubr.f32.mxu0 0.0
  %10907 = vmatmul.mubr.f32.gmra.mxu0 %v10809
  %v10908 = vpop.f32.mrf.mxu0
  %v10909 = vadd.f32 0.0, %v10908
  %v10910 = vpop.f32.mrf.mxu0
  %10911 = vmatprep.mubr.f32.mxu0 0.0
  %10912 = vmatmul.mubr.f32.gmra.mxu0 %v10812
  %v10913 = vpop.f32.mrf.mxu0
  %v10914 = vadd.f32 0.0, %v10913
  %v10915 = vpop.f32.mrf.mxu0
  %10916 = vmatprep.mubr.f32.mxu0 0.0
  %10917 = vmatmul.mubr.f32.gmra.mxu0 %v10815
  %v10918 = vpop.f32.mrf.mxu0
  %v10919 = vadd.f32 0.0, %v10918
  %v10920 = vpop.f32.mrf.mxu0
  %10921 = vmatprep.mubr.f32.mxu0 0.0
  %10922 = vmatmul.mubr.f32.gmra.mxu0 %v10818
  %v10923 = vpop.f32.mrf.mxu0
  %v10924 = vadd.f32 0.0, %v10923
  %v10925 = vpop.f32.mrf.mxu0
  %10926 = vmatprep.mubr.f32.mxu0 0.0
  %10927 = vmatmul.mubr.f32.gmra.mxu0 %v10821
  %v10928 = vpop.f32.mrf.mxu0
  %v10929 = vadd.f32 0.0, %v10928
  %v10930 = vpop.f32.mrf.mxu0
  %10931 = vmatprep.mubr.f32.mxu0 0.0
  %10932 = vmatmul.mubr.f32.gmra.mxu0 %v10824
  %v10933 = vpop.f32.mrf.mxu0
  %v10934 = vadd.f32 0.0, %v10933
  %v10935 = vpop.f32.mrf.mxu0
  %10936 = vmatprep.mubr.f32.mxu0 0.0
  %10937 = vmatmul.mubr.f32.gmra.mxu0 %v10827
  %v10938 = vpop.f32.mrf.mxu0
  %v10939 = vadd.f32 0.0, %v10938
  %v10940 = vpop.f32.mrf.mxu0
  %10941 = vmatprep.mubr.f32.mxu0 0.0
  %10942 = vmatmul.mubr.f32.gmra.mxu0 %v10830
  %v10943 = vpop.f32.mrf.mxu0
  %v10944 = vadd.f32 0.0, %v10943
  %v10945 = vpop.f32.mrf.mxu0
  %10946 = vdwg.mxu0
  %v10947 = vld [vmem:[%s5] sm:$0xff]
  %v10948 = vld [vmem:[%s5 + $0x20] sm:$0xff]
  %v10949 = vld [vmem:[%s5 + $0x40] sm:$0xff]
  %v10950 = vld [vmem:[%s5 + $0x60] sm:$0xff]
  %v10951 = vld [vmem:[%s5 + $0x80] sm:$0xff]
  %v10952 = vld [vmem:[%s5 + $0xa0] sm:$0xff]
  %v10953 = vld [vmem:[%s5 + $0xc0] sm:$0xff]
  %v10954 = vld [vmem:[%s5 + $0xe0] sm:$0xff]
  %v10955 = vld [vmem:[%s5 + $0x100] sm:$0xff]
  %v10956 = vld [vmem:[%s5 + $0x120] sm:$0xff]
  %v10957 = vld [vmem:[%s5 + $0x140] sm:$0xff]
  %v10958 = vld [vmem:[%s5 + $0x160] sm:$0xff]
  %v10959 = vld [vmem:[%s5 + $0x180] sm:$0xff]
  %v10960 = vld [vmem:[%s5 + $0x1a0] sm:$0xff]
  %v10961 = vld [vmem:[%s5 + $0x1c0] sm:$0xff]
  %v10962 = vld [vmem:[%s5 + $0x8] sm:$0xff]
  %v10963 = vld [vmem:[%s5 + $0x28] sm:$0xff]
  %v10964 = vld [vmem:[%s5 + $0x48] sm:$0xff]
  %v10965 = vld [vmem:[%s5 + $0x68] sm:$0xff]
  %v10966 = vld [vmem:[%s5 + $0x88] sm:$0xff]
  %v10967 = vld [vmem:[%s5 + $0xa8] sm:$0xff]
  %v10968 = vld [vmem:[%s5 + $0xc8] sm:$0xff]
  %v10969 = vld [vmem:[%s5 + $0xe8] sm:$0xff]
  %v10970 = vld [vmem:[%s5 + $0x108] sm:$0xff]
  %v10971 = vld [vmem:[%s5 + $0x128] sm:$0xff]
  %v10972 = vld [vmem:[%s5 + $0x148] sm:$0xff]
  %v10973 = vld [vmem:[%s5 + $0x168] sm:$0xff]
  %v10974 = vld [vmem:[%s5 + $0x188] sm:$0xff]
  %v10975 = vld [vmem:[%s5 + $0x1a8] sm:$0xff]
  %v10976 = vld [vmem:[%s5 + $0x1c8] sm:$0xff]
  %11007 = vrot.lane.b32.xlu0 %v10947, 48
  %v11008 = vpop.permute.xlu0 %11007
  %11009 = vrot.lane.b32.xlu0 %v10962, 48
  %v11010 = vpop.permute.xlu0 %11009
  %11011 = vrot.lane.b32.xlu0 %v10948, 48
  %v11012 = vpop.permute.xlu0 %11011
  %11013 = vrot.lane.b32.xlu0 %v10963, 48
  %v11014 = vpop.permute.xlu0 %11013
  %11015 = vrot.lane.b32.xlu0 %v10949, 48
  %v11016 = vpop.permute.xlu0 %11015
  %11017 = vrot.lane.b32.xlu0 %v10964, 48
  %v11018 = vpop.permute.xlu0 %11017
  %11019 = vrot.lane.b32.xlu0 %v10950, 48
  %v11020 = vpop.permute.xlu0 %11019
  %11021 = vrot.lane.b32.xlu0 %v10965, 48
  %v11022 = vpop.permute.xlu0 %11021
  %11023 = vrot.lane.b32.xlu0 %v10951, 48
  %v11024 = vpop.permute.xlu0 %11023
  %11025 = vrot.lane.b32.xlu0 %v10966, 48
  %v11026 = vpop.permute.xlu0 %11025
  %11027 = vrot.lane.b32.xlu0 %v10952, 48
  %v11028 = vpop.permute.xlu0 %11027
  %11029 = vrot.lane.b32.xlu0 %v10967, 48
  %v11030 = vpop.permute.xlu0 %11029
  %11031 = vrot.lane.b32.xlu0 %v10953, 48
  %v11032 = vpop.permute.xlu0 %11031
  %11033 = vrot.lane.b32.xlu0 %v10968, 48
  %v11034 = vpop.permute.xlu0 %11033
  %11035 = vrot.lane.b32.xlu0 %v10954, 48
  %v11036 = vpop.permute.xlu0 %11035
  %11037 = vrot.lane.b32.xlu0 %v10969, 48
  %v11038 = vpop.permute.xlu0 %11037
  %11039 = vrot.lane.b32.xlu0 %v10955, 48
  %v11040 = vpop.permute.xlu0 %11039
  %11041 = vrot.lane.b32.xlu0 %v10970, 48
  %v11042 = vpop.permute.xlu0 %11041
  %11043 = vrot.lane.b32.xlu0 %v10956, 48
  %v11044 = vpop.permute.xlu0 %11043
  %11045 = vrot.lane.b32.xlu0 %v10971, 48
  %v11046 = vpop.permute.xlu0 %11045
  %11047 = vrot.lane.b32.xlu0 %v10957, 48
  %v11048 = vpop.permute.xlu0 %11047
  %11049 = vrot.lane.b32.xlu0 %v10972, 48
  %v11050 = vpop.permute.xlu0 %11049
  %11051 = vrot.lane.b32.xlu0 %v10958, 48
  %v11052 = vpop.permute.xlu0 %11051
  %11053 = vrot.lane.b32.xlu0 %v10973, 48
  %v11054 = vpop.permute.xlu0 %11053
  %11055 = vrot.lane.b32.xlu0 %v10959, 48
  %v11056 = vpop.permute.xlu0 %11055
  %11057 = vrot.lane.b32.xlu0 %v10974, 48
  %v11058 = vpop.permute.xlu0 %11057
  %11059 = vrot.lane.b32.xlu0 %v10960, 48
  %v11060 = vpop.permute.xlu0 %11059
  %11061 = vrot.lane.b32.xlu0 %v10975, 48
  %v11062 = vpop.permute.xlu0 %11061
  %11063 = vrot.lane.b32.xlu0 %v10961, 48
  %v11064 = vpop.permute.xlu0 %11063
  %11065 = vrot.lane.b32.xlu0 %v10976, 48
  %v11066 = vpop.permute.xlu0 %11065
  %v11067 = vsel %vm4805, %v11008, %v11010
  %v11068 = vsel %vm4805, %v11012, %v11014
  %v11069 = vsel %vm4805, %v11016, %v11018
  %v11070 = vsel %vm4805, %v11020, %v11022
  %v11071 = vsel %vm4805, %v11024, %v11026
  %v11072 = vsel %vm4805, %v11028, %v11030
  %v11073 = vsel %vm4805, %v11032, %v11034
  %v11074 = vsel %vm4805, %v11036, %v11038
  %v11075 = vsel %vm4805, %v11040, %v11042
  %v11076 = vsel %vm4805, %v11044, %v11046
  %v11077 = vsel %vm4805, %v11048, %v11050
  %v11078 = vsel %vm4805, %v11052, %v11054
  %v11079 = vsel %vm4805, %v11056, %v11058
  %v11080 = vsel %vm4805, %v11060, %v11062
  %v11081 = vsel %vm4805, %v11064, %v11066
  %11092 = vrot.lane.b32.xlu0 %v10899, 127
  %v11093 = vpop.permute.xlu0 %11092
  %11094 = vrot.lane.b32.xlu0 %v10904, 127
  %v11095 = vpop.permute.xlu0 %11094
  %11096 = vrot.lane.b32.xlu0 %v10909, 127
  %v11097 = vpop.permute.xlu0 %11096
  %11098 = vrot.lane.b32.xlu0 %v10914, 127
  %v11099 = vpop.permute.xlu0 %11098
  %11100 = vrot.lane.b32.xlu0 %v10919, 127
  %v11101 = vpop.permute.xlu0 %11100
  %11102 = vrot.lane.b32.xlu0 %v10924, 127
  %v11103 = vpop.permute.xlu0 %11102
  %11104 = vrot.lane.b32.xlu0 %v10929, 127
  %v11105 = vpop.permute.xlu0 %11104
  %11106 = vrot.lane.b32.xlu0 %v10934, 127
  %v11107 = vpop.permute.xlu0 %11106
  %11108 = vrot.lane.b32.xlu0 %v10939, 127
  %v11109 = vpop.permute.xlu0 %11108
  %11110 = vrot.lane.b32.xlu0 %v10944, 127
  %v11111 = vpop.permute.xlu0 %11110
  %v11122 = vsel %vm3022, %v11067, 0
  %v11124 = vsel %vm3022, %v11068, 0
  %v11126 = vsel %vm3022, %v11069, 0
  %v11128 = vsel %vm3022, %v11070, 0
  %v11130 = vsel %vm3022, %v11071, 0
  %v11132 = vsel %vm3022, %v11072, 0
  %v11134 = vsel %vm3022, %v11073, 0
  %v11136 = vsel %vm3022, %v11074, 0
  %v11138 = vsel %vm3022, %v11075, 0
  %v11140 = vsel %vm3022, %v11076, 0
  %v11142 = vsel %vm3022, %v11077, 0
  %v11144 = vsel %vm3022, %v11078, 0
  %v11146 = vsel %vm3022, %v11079, 0
  %v11148 = vsel %vm3022, %v11080, 0
  %v11150 = vsel %vm3022, %v11081, 0
  %11152 = vmatprep.subr.mxu0 0.0
  %11153 = vmatpush1.msra.mxu0 0.0
  %11154 = vmatprep.subr.mxu0 0.0
  %11155 = vmatpush1.msra.mxu0 0.0
  %11156 = vmatprep.subr.mxu0 0.0
  %11157 = vmatpush1.msra.mxu0 0.0
  %11158 = vmatprep.subr.mxu0 0.0
  %11159 = vmatpush1.msra.mxu0 0.0
  %11160 = vmatprep.subr.mxu0 0.0
  %11161 = vmatpush1.msra.mxu0 0.0
  %11162 = vmatprep.subr.mxu0 0.0
  %11163 = vmatpush1.msra.mxu0 0.0
  %11164 = vmatprep.subr.mxu0 0.0
  %11165 = vmatpush1.msra.mxu0 %v11111
  %11166 = vmatprep.subr.mxu0 0.0
  %11167 = vmatpush1.msra.mxu0 %v11109
  %11168 = vmatprep.subr.mxu0 0.0
  %11169 = vmatpush1.msra.mxu0 %v11107
  %11170 = vmatprep.subr.mxu0 0.0
  %11171 = vmatpush1.msra.mxu0 %v11105
  %11172 = vmatprep.subr.mxu0 0.0
  %11173 = vmatpush1.msra.mxu0 %v11103
  %11174 = vmatprep.subr.mxu0 0.0
  %11175 = vmatpush1.msra.mxu0 %v11101
  %11176 = vmatprep.subr.mxu0 0.0
  %11177 = vmatpush1.msra.mxu0 %v11099
  %11178 = vmatprep.subr.mxu0 0.0
  %11179 = vmatpush1.msra.mxu0 %v11097
  %11180 = vmatprep.subr.mxu0 0.0
  %11181 = vmatpush1.msra.mxu0 %v11095
  %11182 = vmatprep.subr.mxu0 0.0
  %11183 = vmatpush1.msra.mxu0 %v11093
  %11184 = vmatprep.subr.mxu0 0.0
  %11185 = vmatpush2.msra.mxu0 0.0
  %11186 = vmatprep.subr.mxu0 0.0
  %11187 = vmatpush2.msra.mxu0 0.0
  %11188 = vmatprep.subr.mxu0 0.0
  %11189 = vmatpush2.msra.mxu0 0.0
  %11190 = vmatprep.subr.mxu0 0.0
  %11191 = vmatpush2.msra.mxu0 0.0
  %11192 = vmatprep.subr.mxu0 0.0
  %11193 = vmatpush2.msra.mxu0 0.0
  %11194 = vmatprep.subr.mxu0 0.0
  %11195 = vmatpush2.msra.mxu0 0.0
  %11196 = vmatprep.subr.mxu0 0.0
  %11197 = vmatpush2.msra.mxu0 0.0
  %11198 = vmatprep.subr.mxu0 0.0
  %11199 = vmatpush2.msra.mxu0 0.0
  %11200 = vmatprep.subr.mxu0 0.0
  %11201 = vmatpush2.msra.mxu0 0.0
  %11202 = vmatprep.subr.mxu0 0.0
  %11203 = vmatpush2.msra.mxu0 0.0
  %11204 = vmatprep.subr.mxu0 0.0
  %11205 = vmatpush2.msra.mxu0 0.0
  %11206 = vmatprep.subr.mxu0 0.0
  %11207 = vmatpush2.msra.mxu0 0.0
  %11208 = vmatprep.subr.mxu0 0.0
  %11209 = vmatpush2.msra.mxu0 0.0
  %11210 = vmatprep.subr.mxu0 0.0
  %11211 = vmatpush2.msra.mxu0 0.0
  %11212 = vmatprep.subr.mxu0 0.0
  %11213 = vmatpush2.msra.mxu0 0.0
  %11214 = vmatprep.subr.mxu0 0.0
  %11215 = vmatpush2.msra.mxu0 0.0
  %11216 = vmatprep.mubr.f32.mxu0 0.0
  %11217 = vmatmul.mubr.f32.gmra.mxu0 %v11122
  %v11218 = vpop.f32.mrf.mxu0
  %v11219 = vadd.f32 0.0, %v11218
  %v11220 = vpop.f32.mrf.mxu0
  %11221 = vmatprep.mubr.f32.mxu0 0.0
  %11222 = vmatmul.mubr.f32.gmra.mxu0 %v11124
  %v11223 = vpop.f32.mrf.mxu0
  %v11224 = vadd.f32 0.0, %v11223
  %v11225 = vpop.f32.mrf.mxu0
  %11226 = vmatprep.mubr.f32.mxu0 0.0
  %11227 = vmatmul.mubr.f32.gmra.mxu0 %v11126
  %v11228 = vpop.f32.mrf.mxu0
  %v11229 = vadd.f32 0.0, %v11228
  %v11230 = vpop.f32.mrf.mxu0
  %11231 = vmatprep.mubr.f32.mxu0 0.0
  %11232 = vmatmul.mubr.f32.gmra.mxu0 %v11128
  %v11233 = vpop.f32.mrf.mxu0
  %v11234 = vadd.f32 0.0, %v11233
  %v11235 = vpop.f32.mrf.mxu0
  %11236 = vmatprep.mubr.f32.mxu0 0.0
  %11237 = vmatmul.mubr.f32.gmra.mxu0 %v11130
  %v11238 = vpop.f32.mrf.mxu0
  %v11239 = vadd.f32 0.0, %v11238
  %v11240 = vpop.f32.mrf.mxu0
  %11241 = vmatprep.mubr.f32.mxu0 0.0
  %11242 = vmatmul.mubr.f32.gmra.mxu0 %v11132
  %v11243 = vpop.f32.mrf.mxu0
  %v11244 = vadd.f32 0.0, %v11243
  %v11245 = vpop.f32.mrf.mxu0
  %11246 = vmatprep.mubr.f32.mxu0 0.0
  %11247 = vmatmul.mubr.f32.gmra.mxu0 %v11134
  %v11248 = vpop.f32.mrf.mxu0
  %v11249 = vadd.f32 0.0, %v11248
  %v11250 = vpop.f32.mrf.mxu0
  %11251 = vmatprep.mubr.f32.mxu0 0.0
  %11252 = vmatmul.mubr.f32.gmra.mxu0 %v11136
  %v11253 = vpop.f32.mrf.mxu0
  %v11254 = vadd.f32 0.0, %v11253
  %v11255 = vpop.f32.mrf.mxu0
  %11256 = vmatprep.mubr.f32.mxu0 0.0
  %11257 = vmatmul.mubr.f32.gmra.mxu0 %v11138
  %v11258 = vpop.f32.mrf.mxu0
  %v11259 = vadd.f32 0.0, %v11258
  %v11260 = vpop.f32.mrf.mxu0
  %11261 = vmatprep.mubr.f32.mxu0 0.0
  %11262 = vmatmul.mubr.f32.gmra.mxu0 %v11140
  %v11263 = vpop.f32.mrf.mxu0
  %v11264 = vadd.f32 0.0, %v11263
  %v11265 = vpop.f32.mrf.mxu0
  %11266 = vmatprep.mubr.f32.mxu0 0.0
  %11267 = vmatmul.mubr.f32.gmra.mxu0 %v11142
  %v11268 = vpop.f32.mrf.mxu0
  %v11269 = vadd.f32 0.0, %v11268
  %v11270 = vpop.f32.mrf.mxu0
  %11271 = vmatprep.mubr.f32.mxu0 0.0
  %11272 = vmatmul.mubr.f32.gmra.mxu0 %v11144
  %v11273 = vpop.f32.mrf.mxu0
  %v11274 = vadd.f32 0.0, %v11273
  %v11275 = vpop.f32.mrf.mxu0
  %11276 = vmatprep.mubr.f32.mxu0 0.0
  %11277 = vmatmul.mubr.f32.gmra.mxu0 %v11146
  %v11278 = vpop.f32.mrf.mxu0
  %v11279 = vadd.f32 0.0, %v11278
  %v11280 = vpop.f32.mrf.mxu0
  %11281 = vmatprep.mubr.f32.mxu0 0.0
  %11282 = vmatmul.mubr.f32.gmra.mxu0 %v11148
  %v11283 = vpop.f32.mrf.mxu0
  %v11284 = vadd.f32 0.0, %v11283
  %v11285 = vpop.f32.mrf.mxu0
  %11286 = vmatprep.mubr.f32.mxu0 0.0
  %11287 = vmatmul.mubr.f32.gmra.mxu0 %v11150
  %v11288 = vpop.f32.mrf.mxu0
  %v11289 = vadd.f32 0.0, %v11288
  %v11290 = vpop.f32.mrf.mxu0
  %11291 = vdwg.mxu0
  %v11292 = vsel %vm3022, %v10947, 0
  %v11294 = vsel %vm3022, %v10948, 0
  %v11296 = vsel %vm3022, %v10949, 0
  %v11298 = vsel %vm3022, %v10950, 0
  %v11300 = vsel %vm3022, %v10951, 0
  %v11302 = vsel %vm3022, %v10952, 0
  %v11304 = vsel %vm3022, %v10953, 0
  %v11306 = vsel %vm3022, %v10954, 0
  %v11308 = vsel %vm3022, %v10955, 0
  %v11310 = vsel %vm3022, %v10956, 0
  %v11312 = vsel %vm3022, %v10957, 0
  %v11314 = vsel %vm3022, %v10958, 0
  %v11316 = vsel %vm3022, %v10959, 0
  %v11318 = vsel %vm3022, %v10960, 0
  %v11320 = vsel %vm3022, %v10961, 0
  %11322 = vmatprep.subr.mxu0 0.0
  %11323 = vmatpush1.msra.mxu0 0.0
  %11324 = vmatprep.subr.mxu0 0.0
  %11325 = vmatpush1.msra.mxu0 0.0
  %11326 = vmatprep.subr.mxu0 0.0
  %11327 = vmatpush1.msra.mxu0 0.0
  %11328 = vmatprep.subr.mxu0 0.0
  %11329 = vmatpush1.msra.mxu0 0.0
  %11330 = vmatprep.subr.mxu0 0.0
  %11331 = vmatpush1.msra.mxu0 0.0
  %11332 = vmatprep.subr.mxu0 0.0
  %11333 = vmatpush1.msra.mxu0 0.0
  %11334 = vmatprep.subr.mxu0 0.0
  %11335 = vmatpush1.msra.mxu0 %v10944
  %11336 = vmatprep.subr.mxu0 0.0
  %11337 = vmatpush1.msra.mxu0 %v10939
  %11338 = vmatprep.subr.mxu0 0.0
  %11339 = vmatpush1.msra.mxu0 %v10934
  %11340 = vmatprep.subr.mxu0 0.0
  %11341 = vmatpush1.msra.mxu0 %v10929
  %11342 = vmatprep.subr.mxu0 0.0
  %11343 = vmatpush1.msra.mxu0 %v10924
  %11344 = vmatprep.subr.mxu0 0.0
  %11345 = vmatpush1.msra.mxu0 %v10919
  %11346 = vmatprep.subr.mxu0 0.0
  %11347 = vmatpush1.msra.mxu0 %v10914
  %11348 = vmatprep.subr.mxu0 0.0
  %11349 = vmatpush1.msra.mxu0 %v10909
  %11350 = vmatprep.subr.mxu0 0.0
  %11351 = vmatpush1.msra.mxu0 %v10904
  %11352 = vmatprep.subr.mxu0 0.0
  %11353 = vmatpush1.msra.mxu0 %v10899
  %11354 = vmatprep.subr.mxu0 0.0
  %11355 = vmatpush2.msra.mxu0 0.0
  %11356 = vmatprep.subr.mxu0 0.0
  %11357 = vmatpush2.msra.mxu0 0.0
  %11358 = vmatprep.subr.mxu0 0.0
  %11359 = vmatpush2.msra.mxu0 0.0
  %11360 = vmatprep.subr.mxu0 0.0
  %11361 = vmatpush2.msra.mxu0 0.0
  %11362 = vmatprep.subr.mxu0 0.0
  %11363 = vmatpush2.msra.mxu0 0.0
  %11364 = vmatprep.subr.mxu0 0.0
  %11365 = vmatpush2.msra.mxu0 0.0
  %11366 = vmatprep.subr.mxu0 0.0
  %11367 = vmatpush2.msra.mxu0 0.0
  %11368 = vmatprep.subr.mxu0 0.0
  %11369 = vmatpush2.msra.mxu0 0.0
  %11370 = vmatprep.subr.mxu0 0.0
  %11371 = vmatpush2.msra.mxu0 0.0
  %11372 = vmatprep.subr.mxu0 0.0
  %11373 = vmatpush2.msra.mxu0 0.0
  %11374 = vmatprep.subr.mxu0 0.0
  %11375 = vmatpush2.msra.mxu0 0.0
  %11376 = vmatprep.subr.mxu0 0.0
  %11377 = vmatpush2.msra.mxu0 0.0
  %11378 = vmatprep.subr.mxu0 0.0
  %11379 = vmatpush2.msra.mxu0 0.0
  %11380 = vmatprep.subr.mxu0 0.0
  %11381 = vmatpush2.msra.mxu0 0.0
  %11382 = vmatprep.subr.mxu0 0.0
  %11383 = vmatpush2.msra.mxu0 0.0
  %11384 = vmatprep.subr.mxu0 0.0
  %11385 = vmatpush2.msra.mxu0 0.0
  %11386 = vmatprep.mubr.f32.mxu0 0.0
  %11387 = vmatmul.mubr.f32.gmra.mxu0 %v11292
  %v11388 = vpop.f32.mrf.mxu0
  %v11389 = vadd.f32 %v11219, %v11388
  %v11390 = vpop.f32.mrf.mxu0
  %11391 = vmatprep.mubr.f32.mxu0 0.0
  %11392 = vmatmul.mubr.f32.gmra.mxu0 %v11294
  %v11393 = vpop.f32.mrf.mxu0
  %v11394 = vadd.f32 %v11224, %v11393
  %v11395 = vpop.f32.mrf.mxu0
  %11396 = vmatprep.mubr.f32.mxu0 0.0
  %11397 = vmatmul.mubr.f32.gmra.mxu0 %v11296
  %v11398 = vpop.f32.mrf.mxu0
  %v11399 = vadd.f32 %v11229, %v11398
  %v11400 = vpop.f32.mrf.mxu0
  %11401 = vmatprep.mubr.f32.mxu0 0.0
  %11402 = vmatmul.mubr.f32.gmra.mxu0 %v11298
  %v11403 = vpop.f32.mrf.mxu0
  %v11404 = vadd.f32 %v11234, %v11403
  %v11405 = vpop.f32.mrf.mxu0
  %11406 = vmatprep.mubr.f32.mxu0 0.0
  %11407 = vmatmul.mubr.f32.gmra.mxu0 %v11300
  %v11408 = vpop.f32.mrf.mxu0
  %v11409 = vadd.f32 %v11239, %v11408
  %v11410 = vpop.f32.mrf.mxu0
  %11411 = vmatprep.mubr.f32.mxu0 0.0
  %11412 = vmatmul.mubr.f32.gmra.mxu0 %v11302
  %v11413 = vpop.f32.mrf.mxu0
  %v11414 = vadd.f32 %v11244, %v11413
  %v11415 = vpop.f32.mrf.mxu0
  %11416 = vmatprep.mubr.f32.mxu0 0.0
  %11417 = vmatmul.mubr.f32.gmra.mxu0 %v11304
  %v11418 = vpop.f32.mrf.mxu0
  %v11419 = vadd.f32 %v11249, %v11418
  %v11420 = vpop.f32.mrf.mxu0
  %11421 = vmatprep.mubr.f32.mxu0 0.0
  %11422 = vmatmul.mubr.f32.gmra.mxu0 %v11306
  %v11423 = vpop.f32.mrf.mxu0
  %v11424 = vadd.f32 %v11254, %v11423
  %v11425 = vpop.f32.mrf.mxu0
  %11426 = vmatprep.mubr.f32.mxu0 0.0
  %11427 = vmatmul.mubr.f32.gmra.mxu0 %v11308
  %v11428 = vpop.f32.mrf.mxu0
  %v11429 = vadd.f32 %v11259, %v11428
  %v11430 = vpop.f32.mrf.mxu0
  %11431 = vmatprep.mubr.f32.mxu0 0.0
  %11432 = vmatmul.mubr.f32.gmra.mxu0 %v11310
  %v11433 = vpop.f32.mrf.mxu0
  %v11434 = vadd.f32 %v11264, %v11433
  %v11435 = vpop.f32.mrf.mxu0
  %11436 = vmatprep.mubr.f32.mxu0 0.0
  %11437 = vmatmul.mubr.f32.gmra.mxu0 %v11312
  %v11438 = vpop.f32.mrf.mxu0
  %v11439 = vadd.f32 %v11269, %v11438
  %v11440 = vpop.f32.mrf.mxu0
  %11441 = vmatprep.mubr.f32.mxu0 0.0
  %11442 = vmatmul.mubr.f32.gmra.mxu0 %v11314
  %v11443 = vpop.f32.mrf.mxu0
  %v11444 = vadd.f32 %v11274, %v11443
  %v11445 = vpop.f32.mrf.mxu0
  %11446 = vmatprep.mubr.f32.mxu0 0.0
  %11447 = vmatmul.mubr.f32.gmra.mxu0 %v11316
  %v11448 = vpop.f32.mrf.mxu0
  %v11449 = vadd.f32 %v11279, %v11448
  %v11450 = vpop.f32.mrf.mxu0
  %11451 = vmatprep.mubr.f32.mxu0 0.0
  %11452 = vmatmul.mubr.f32.gmra.mxu0 %v11318
  %v11453 = vpop.f32.mrf.mxu0
  %v11454 = vadd.f32 %v11284, %v11453
  %v11455 = vpop.f32.mrf.mxu0
  %11456 = vmatprep.mubr.f32.mxu0 0.0
  %11457 = vmatmul.mubr.f32.gmra.mxu0 %v11320
  %v11458 = vpop.f32.mrf.mxu0
  %v11459 = vadd.f32 %v11289, %v11458
  %v11460 = vpop.f32.mrf.mxu0
  %11461 = vdwg.mxu0
  %11462 = vrot.lane.b32.xlu0 %v10962, 96
  %v11463 = vpop.permute.xlu0 %11462
  %11464 = vrot.lane.b32.xlu0 %v10963, 96
  %v11465 = vpop.permute.xlu0 %11464
  %11466 = vrot.lane.b32.xlu0 %v10964, 96
  %v11467 = vpop.permute.xlu0 %11466
  %11468 = vrot.lane.b32.xlu0 %v10965, 96
  %v11469 = vpop.permute.xlu0 %11468
  %11470 = vrot.lane.b32.xlu0 %v10966, 96
  %v11471 = vpop.permute.xlu0 %11470
  %11472 = vrot.lane.b32.xlu0 %v10967, 96
  %v11473 = vpop.permute.xlu0 %11472
  %11474 = vrot.lane.b32.xlu0 %v10968, 96
  %v11475 = vpop.permute.xlu0 %11474
  %11476 = vrot.lane.b32.xlu0 %v10969, 96
  %v11477 = vpop.permute.xlu0 %11476
  %11478 = vrot.lane.b32.xlu0 %v10970, 96
  %v11479 = vpop.permute.xlu0 %11478
  %11480 = vrot.lane.b32.xlu0 %v10971, 96
  %v11481 = vpop.permute.xlu0 %11480
  %11482 = vrot.lane.b32.xlu0 %v10972, 96
  %v11483 = vpop.permute.xlu0 %11482
  %11484 = vrot.lane.b32.xlu0 %v10973, 96
  %v11485 = vpop.permute.xlu0 %11484
  %11486 = vrot.lane.b32.xlu0 %v10974, 96
  %v11487 = vpop.permute.xlu0 %11486
  %11488 = vrot.lane.b32.xlu0 %v10975, 96
  %v11489 = vpop.permute.xlu0 %11488
  %11490 = vrot.lane.b32.xlu0 %v10976, 96
  %v11491 = vpop.permute.xlu0 %11490
  %11492 = vrot.lane.b32.xlu0 %v10899, 126
  %v11493 = vpop.permute.xlu0 %11492
  %11494 = vrot.lane.b32.xlu0 %v10904, 126
  %v11495 = vpop.permute.xlu0 %11494
  %11496 = vrot.lane.b32.xlu0 %v10909, 126
  %v11497 = vpop.permute.xlu0 %11496
  %11498 = vrot.lane.b32.xlu0 %v10914, 126
  %v11499 = vpop.permute.xlu0 %11498
  %11500 = vrot.lane.b32.xlu0 %v10919, 126
  %v11501 = vpop.permute.xlu0 %11500
  %11502 = vrot.lane.b32.xlu0 %v10924, 126
  %v11503 = vpop.permute.xlu0 %11502
  %11504 = vrot.lane.b32.xlu0 %v10929, 126
  %v11505 = vpop.permute.xlu0 %11504
  %11506 = vrot.lane.b32.xlu0 %v10934, 126
  %v11507 = vpop.permute.xlu0 %11506
  %11508 = vrot.lane.b32.xlu0 %v10939, 126
  %v11509 = vpop.permute.xlu0 %11508
  %11510 = vrot.lane.b32.xlu0 %v10944, 126
  %v11511 = vpop.permute.xlu0 %11510
  %v11522 = vsel %vm3022, %v11463, 0
  %v11524 = vsel %vm3022, %v11465, 0
  %v11526 = vsel %vm3022, %v11467, 0
  %v11528 = vsel %vm3022, %v11469, 0
  %v11530 = vsel %vm3022, %v11471, 0
  %v11532 = vsel %vm3022, %v11473, 0
  %v11534 = vsel %vm3022, %v11475, 0
  %v11536 = vsel %vm3022, %v11477, 0
  %v11538 = vsel %vm3022, %v11479, 0
  %v11540 = vsel %vm3022, %v11481, 0
  %v11542 = vsel %vm3022, %v11483, 0
  %v11544 = vsel %vm3022, %v11485, 0
  %v11546 = vsel %vm3022, %v11487, 0
  %v11548 = vsel %vm3022, %v11489, 0
  %v11550 = vsel %vm3022, %v11491, 0
  %11552 = vmatprep.subr.mxu0 0.0
  %11553 = vmatpush1.msra.mxu0 0.0
  %11554 = vmatprep.subr.mxu0 0.0
  %11555 = vmatpush1.msra.mxu0 0.0
  %11556 = vmatprep.subr.mxu0 0.0
  %11557 = vmatpush1.msra.mxu0 0.0
  %11558 = vmatprep.subr.mxu0 0.0
  %11559 = vmatpush1.msra.mxu0 0.0
  %11560 = vmatprep.subr.mxu0 0.0
  %11561 = vmatpush1.msra.mxu0 0.0
  %11562 = vmatprep.subr.mxu0 0.0
  %11563 = vmatpush1.msra.mxu0 0.0
  %11564 = vmatprep.subr.mxu0 0.0
  %11565 = vmatpush1.msra.mxu0 %v11511
  %11566 = vmatprep.subr.mxu0 0.0
  %11567 = vmatpush1.msra.mxu0 %v11509
  %11568 = vmatprep.subr.mxu0 0.0
  %11569 = vmatpush1.msra.mxu0 %v11507
  %11570 = vmatprep.subr.mxu0 0.0
  %11571 = vmatpush1.msra.mxu0 %v11505
  %11572 = vmatprep.subr.mxu0 0.0
  %11573 = vmatpush1.msra.mxu0 %v11503
  %11574 = vmatprep.subr.mxu0 0.0
  %11575 = vmatpush1.msra.mxu0 %v11501
  %11576 = vmatprep.subr.mxu0 0.0
  %11577 = vmatpush1.msra.mxu0 %v11499
  %11578 = vmatprep.subr.mxu0 0.0
  %11579 = vmatpush1.msra.mxu0 %v11497
  %11580 = vmatprep.subr.mxu0 0.0
  %11581 = vmatpush1.msra.mxu0 %v11495
  %11582 = vmatprep.subr.mxu0 0.0
  %11583 = vmatpush1.msra.mxu0 %v11493
  %11584 = vmatprep.subr.mxu0 0.0
  %11585 = vmatpush2.msra.mxu0 0.0
  %11586 = vmatprep.subr.mxu0 0.0
  %11587 = vmatpush2.msra.mxu0 0.0
  %11588 = vmatprep.subr.mxu0 0.0
  %11589 = vmatpush2.msra.mxu0 0.0
  %11590 = vmatprep.subr.mxu0 0.0
  %11591 = vmatpush2.msra.mxu0 0.0
  %11592 = vmatprep.subr.mxu0 0.0
  %11593 = vmatpush2.msra.mxu0 0.0
  %11594 = vmatprep.subr.mxu0 0.0
  %11595 = vmatpush2.msra.mxu0 0.0
  %11596 = vmatprep.subr.mxu0 0.0
  %11597 = vmatpush2.msra.mxu0 0.0
  %11598 = vmatprep.subr.mxu0 0.0
  %11599 = vmatpush2.msra.mxu0 0.0
  %11600 = vmatprep.subr.mxu0 0.0
  %11601 = vmatpush2.msra.mxu0 0.0
  %11602 = vmatprep.subr.mxu0 0.0
  %11603 = vmatpush2.msra.mxu0 0.0
  %11604 = vmatprep.subr.mxu0 0.0
  %11605 = vmatpush2.msra.mxu0 0.0
  %11606 = vmatprep.subr.mxu0 0.0
  %11607 = vmatpush2.msra.mxu0 0.0
  %11608 = vmatprep.subr.mxu0 0.0
  %11609 = vmatpush2.msra.mxu0 0.0
  %11610 = vmatprep.subr.mxu0 0.0
  %11611 = vmatpush2.msra.mxu0 0.0
  %11612 = vmatprep.subr.mxu0 0.0
  %11613 = vmatpush2.msra.mxu0 0.0
  %11614 = vmatprep.subr.mxu0 0.0
  %11615 = vmatpush2.msra.mxu0 0.0
  %11616 = vmatprep.mubr.f32.mxu0 0.0
  %11617 = vmatmul.mubr.f32.gmra.mxu0 %v11522
  %v11618 = vpop.f32.mrf.mxu0
  %v11619 = vadd.f32 0.0, %v11618
  %v11620 = vpop.f32.mrf.mxu0
  %11621 = vmatprep.mubr.f32.mxu0 0.0
  %11622 = vmatmul.mubr.f32.gmra.mxu0 %v11524
  %v11623 = vpop.f32.mrf.mxu0
  %v11624 = vadd.f32 0.0, %v11623
  %v11625 = vpop.f32.mrf.mxu0
  %11626 = vmatprep.mubr.f32.mxu0 0.0
  %11627 = vmatmul.mubr.f32.gmra.mxu0 %v11526
  %v11628 = vpop.f32.mrf.mxu0
  %v11629 = vadd.f32 0.0, %v11628
  %v11630 = vpop.f32.mrf.mxu0
  %11631 = vmatprep.mubr.f32.mxu0 0.0
  %11632 = vmatmul.mubr.f32.gmra.mxu0 %v11528
  %v11633 = vpop.f32.mrf.mxu0
  %v11634 = vadd.f32 0.0, %v11633
  %v11635 = vpop.f32.mrf.mxu0
  %11636 = vmatprep.mubr.f32.mxu0 0.0
  %11637 = vmatmul.mubr.f32.gmra.mxu0 %v11530
  %v11638 = vpop.f32.mrf.mxu0
  %v11639 = vadd.f32 0.0, %v11638
  %v11640 = vpop.f32.mrf.mxu0
  %11641 = vmatprep.mubr.f32.mxu0 0.0
  %11642 = vmatmul.mubr.f32.gmra.mxu0 %v11532
  %v11643 = vpop.f32.mrf.mxu0
  %v11644 = vadd.f32 0.0, %v11643
  %v11645 = vpop.f32.mrf.mxu0
  %11646 = vmatprep.mubr.f32.mxu0 0.0
  %11647 = vmatmul.mubr.f32.gmra.mxu0 %v11534
  %v11648 = vpop.f32.mrf.mxu0
  %v11649 = vadd.f32 0.0, %v11648
  %v11650 = vpop.f32.mrf.mxu0
  %11651 = vmatprep.mubr.f32.mxu0 0.0
  %11652 = vmatmul.mubr.f32.gmra.mxu0 %v11536
  %v11653 = vpop.f32.mrf.mxu0
  %v11654 = vadd.f32 0.0, %v11653
  %v11655 = vpop.f32.mrf.mxu0
  %11656 = vmatprep.mubr.f32.mxu0 0.0
  %11657 = vmatmul.mubr.f32.gmra.mxu0 %v11538
  %v11658 = vpop.f32.mrf.mxu0
  %v11659 = vadd.f32 0.0, %v11658
  %v11660 = vpop.f32.mrf.mxu0
  %11661 = vmatprep.mubr.f32.mxu0 0.0
  %11662 = vmatmul.mubr.f32.gmra.mxu0 %v11540
  %v11663 = vpop.f32.mrf.mxu0
  %v11664 = vadd.f32 0.0, %v11663
  %v11665 = vpop.f32.mrf.mxu0
  %11666 = vmatprep.mubr.f32.mxu0 0.0
  %11667 = vmatmul.mubr.f32.gmra.mxu0 %v11542
  %v11668 = vpop.f32.mrf.mxu0
  %v11669 = vadd.f32 0.0, %v11668
  %v11670 = vpop.f32.mrf.mxu0
  %11671 = vmatprep.mubr.f32.mxu0 0.0
  %11672 = vmatmul.mubr.f32.gmra.mxu0 %v11544
  %v11673 = vpop.f32.mrf.mxu0
  %v11674 = vadd.f32 0.0, %v11673
  %v11675 = vpop.f32.mrf.mxu0
  %11676 = vmatprep.mubr.f32.mxu0 0.0
  %11677 = vmatmul.mubr.f32.gmra.mxu0 %v11546
  %v11678 = vpop.f32.mrf.mxu0
  %v11679 = vadd.f32 0.0, %v11678
  %v11680 = vpop.f32.mrf.mxu0
  %11681 = vmatprep.mubr.f32.mxu0 0.0
  %11682 = vmatmul.mubr.f32.gmra.mxu0 %v11548
  %v11683 = vpop.f32.mrf.mxu0
  %v11684 = vadd.f32 0.0, %v11683
  %v11685 = vpop.f32.mrf.mxu0
  %11686 = vmatprep.mubr.f32.mxu0 0.0
  %11687 = vmatmul.mubr.f32.gmra.mxu0 %v11550
  %v11688 = vpop.f32.mrf.mxu0
  %v11689 = vadd.f32 0.0, %v11688
  %v11690 = vpop.f32.mrf.mxu0
  %11691 = vdwg.mxu0
  %v11692 = vadd.f32 %v11389, %v11619
  %v11693 = vadd.f32 %v11394, %v11624
  %v11694 = vadd.f32 %v11399, %v11629
  %v11695 = vadd.f32 %v11404, %v11634
  %v11696 = vadd.f32 %v11409, %v11639
  %v11697 = vadd.f32 %v11414, %v11644
  %v11698 = vadd.f32 %v11419, %v11649
  %v11699 = vadd.f32 %v11424, %v11654
  %v11700 = vadd.f32 %v11429, %v11659
  %v11701 = vadd.f32 %v11434, %v11664
  %v11702 = vadd.f32 %v11439, %v11669
  %v11703 = vadd.f32 %v11444, %v11674
  %v11704 = vadd.f32 %v11449, %v11679
  %v11705 = vadd.f32 %v11454, %v11684
  %v11706 = vadd.f32 %v11459, %v11689
  %v11707 = vld [vmem:[%s5 + $0x8] sm:$0xff]
  %v11708 = vld [vmem:[%s5 + $0x10] sm:$0xff]
  %v11709 = vld [vmem:[%s5 + $0x28] sm:$0xff]
  %v11710 = vld [vmem:[%s5 + $0x30] sm:$0xff]
  %v11711 = vld [vmem:[%s5 + $0x48] sm:$0xff]
  %v11712 = vld [vmem:[%s5 + $0x50] sm:$0xff]
  %v11713 = vld [vmem:[%s5 + $0x68] sm:$0xff]
  %v11714 = vld [vmem:[%s5 + $0x70] sm:$0xff]
  %v11715 = vld [vmem:[%s5 + $0x88] sm:$0xff]
  %v11716 = vld [vmem:[%s5 + $0x90] sm:$0xff]
  %v11717 = vld [vmem:[%s5 + $0xa8] sm:$0xff]
  %v11718 = vld [vmem:[%s5 + $0xb0] sm:$0xff]
  %v11719 = vld [vmem:[%s5 + $0xc8] sm:$0xff]
  %v11720 = vld [vmem:[%s5 + $0xd0] sm:$0xff]
  %v11721 = vld [vmem:[%s5 + $0xe8] sm:$0xff]
  %v11722 = vld [vmem:[%s5 + $0xf0] sm:$0xff]
  %v11723 = vld [vmem:[%s5 + $0x108] sm:$0xff]
  %v11724 = vld [vmem:[%s5 + $0x110] sm:$0xff]
  %v11725 = vld [vmem:[%s5 + $0x128] sm:$0xff]
  %v11726 = vld [vmem:[%s5 + $0x130] sm:$0xff]
  %v11727 = vld [vmem:[%s5 + $0x148] sm:$0xff]
  %v11728 = vld [vmem:[%s5 + $0x150] sm:$0xff]
  %v11729 = vld [vmem:[%s5 + $0x168] sm:$0xff]
  %v11730 = vld [vmem:[%s5 + $0x170] sm:$0xff]
  %v11731 = vld [vmem:[%s5 + $0x188] sm:$0xff]
  %v11732 = vld [vmem:[%s5 + $0x190] sm:$0xff]
  %v11733 = vld [vmem:[%s5 + $0x1a8] sm:$0xff]
  %v11734 = vld [vmem:[%s5 + $0x1b0] sm:$0xff]
  %v11735 = vld [vmem:[%s5 + $0x1c8] sm:$0xff]
  %v11736 = vld [vmem:[%s5 + $0x1d0] sm:$0xff]
  %11767 = vrot.lane.b32.xlu0 %v11707, 16
  %v11768 = vpop.permute.xlu0 %11767
  %11769 = vrot.lane.b32.xlu0 %v11708, 16
  %v11770 = vpop.permute.xlu0 %11769
  %11771 = vrot.lane.b32.xlu0 %v11709, 16
  %v11772 = vpop.permute.xlu0 %11771
  %11773 = vrot.lane.b32.xlu0 %v11710, 16
  %v11774 = vpop.permute.xlu0 %11773
  %11775 = vrot.lane.b32.xlu0 %v11711, 16
  %v11776 = vpop.permute.xlu0 %11775
  %11777 = vrot.lane.b32.xlu0 %v11712, 16
  %v11778 = vpop.permute.xlu0 %11777
  %11779 = vrot.lane.b32.xlu0 %v11713, 16
  %v11780 = vpop.permute.xlu0 %11779
  %11781 = vrot.lane.b32.xlu0 %v11714, 16
  %v11782 = vpop.permute.xlu0 %11781
  %11783 = vrot.lane.b32.xlu0 %v11715, 16
  %v11784 = vpop.permute.xlu0 %11783
  %11785 = vrot.lane.b32.xlu0 %v11716, 16
  %v11786 = vpop.permute.xlu0 %11785
  %11787 = vrot.lane.b32.xlu0 %v11717, 16
  %v11788 = vpop.permute.xlu0 %11787
  %11789 = vrot.lane.b32.xlu0 %v11718, 16
  %v11790 = vpop.permute.xlu0 %11789
  %11791 = vrot.lane.b32.xlu0 %v11719, 16
  %v11792 = vpop.permute.xlu0 %11791
  %11793 = vrot.lane.b32.xlu0 %v11720, 16
  %v11794 = vpop.permute.xlu0 %11793
  %11795 = vrot.lane.b32.xlu0 %v11721, 16
  %v11796 = vpop.permute.xlu0 %11795
  %11797 = vrot.lane.b32.xlu0 %v11722, 16
  %v11798 = vpop.permute.xlu0 %11797
  %11799 = vrot.lane.b32.xlu0 %v11723, 16
  %v11800 = vpop.permute.xlu0 %11799
  %11801 = vrot.lane.b32.xlu0 %v11724, 16
  %v11802 = vpop.permute.xlu0 %11801
  %11803 = vrot.lane.b32.xlu0 %v11725, 16
  %v11804 = vpop.permute.xlu0 %11803
  %11805 = vrot.lane.b32.xlu0 %v11726, 16
  %v11806 = vpop.permute.xlu0 %11805
  %11807 = vrot.lane.b32.xlu0 %v11727, 16
  %v11808 = vpop.permute.xlu0 %11807
  %11809 = vrot.lane.b32.xlu0 %v11728, 16
  %v11810 = vpop.permute.xlu0 %11809
  %11811 = vrot.lane.b32.xlu0 %v11729, 16
  %v11812 = vpop.permute.xlu0 %11811
  %11813 = vrot.lane.b32.xlu0 %v11730, 16
  %v11814 = vpop.permute.xlu0 %11813
  %11815 = vrot.lane.b32.xlu0 %v11731, 16
  %v11816 = vpop.permute.xlu0 %11815
  %11817 = vrot.lane.b32.xlu0 %v11732, 16
  %v11818 = vpop.permute.xlu0 %11817
  %11819 = vrot.lane.b32.xlu0 %v11733, 16
  %v11820 = vpop.permute.xlu0 %11819
  %11821 = vrot.lane.b32.xlu0 %v11734, 16
  %v11822 = vpop.permute.xlu0 %11821
  %11823 = vrot.lane.b32.xlu0 %v11735, 16
  %v11824 = vpop.permute.xlu0 %11823
  %11825 = vrot.lane.b32.xlu0 %v11736, 16
  %v11826 = vpop.permute.xlu0 %11825
  %v11827 = vsel %vm5566, %v11768, %v11770
  %v11828 = vsel %vm5566, %v11772, %v11774
  %v11829 = vsel %vm5566, %v11776, %v11778
  %v11830 = vsel %vm5566, %v11780, %v11782
  %v11831 = vsel %vm5566, %v11784, %v11786
  %v11832 = vsel %vm5566, %v11788, %v11790
  %v11833 = vsel %vm5566, %v11792, %v11794
  %v11834 = vsel %vm5566, %v11796, %v11798
  %v11835 = vsel %vm5566, %v11800, %v11802
  %v11836 = vsel %vm5566, %v11804, %v11806
  %v11837 = vsel %vm5566, %v11808, %v11810
  %v11838 = vsel %vm5566, %v11812, %v11814
  %v11839 = vsel %vm5566, %v11816, %v11818
  %v11840 = vsel %vm5566, %v11820, %v11822
  %v11841 = vsel %vm5566, %v11824, %v11826
  %11842 = vrot.lane.b32.xlu0 %v10899, 125
  %v11843 = vpop.permute.xlu0 %11842
  %11844 = vrot.lane.b32.xlu0 %v10904, 125
  %v11845 = vpop.permute.xlu0 %11844
  %11846 = vrot.lane.b32.xlu0 %v10909, 125
  %v11847 = vpop.permute.xlu0 %11846
  %11848 = vrot.lane.b32.xlu0 %v10914, 125
  %v11849 = vpop.permute.xlu0 %11848
  %11850 = vrot.lane.b32.xlu0 %v10919, 125
  %v11851 = vpop.permute.xlu0 %11850
  %11852 = vrot.lane.b32.xlu0 %v10924, 125
  %v11853 = vpop.permute.xlu0 %11852
  %11854 = vrot.lane.b32.xlu0 %v10929, 125
  %v11855 = vpop.permute.xlu0 %11854
  %11856 = vrot.lane.b32.xlu0 %v10934, 125
  %v11857 = vpop.permute.xlu0 %11856
  %11858 = vrot.lane.b32.xlu0 %v10939, 125
  %v11859 = vpop.permute.xlu0 %11858
  %11860 = vrot.lane.b32.xlu0 %v10944, 125
  %v11861 = vpop.permute.xlu0 %11860
  %v11872 = vsel %vm3022, %v11827, 0
  %v11874 = vsel %vm3022, %v11828, 0
  %v11876 = vsel %vm3022, %v11829, 0
  %v11878 = vsel %vm3022, %v11830, 0
  %v11880 = vsel %vm3022, %v11831, 0
  %v11882 = vsel %vm3022, %v11832, 0
  %v11884 = vsel %vm3022, %v11833, 0
  %v11886 = vsel %vm3022, %v11834, 0
  %v11888 = vsel %vm3022, %v11835, 0
  %v11890 = vsel %vm3022, %v11836, 0
  %v11892 = vsel %vm3022, %v11837, 0
  %v11894 = vsel %vm3022, %v11838, 0
  %v11896 = vsel %vm3022, %v11839, 0
  %v11898 = vsel %vm3022, %v11840, 0
  %v11900 = vsel %vm3022, %v11841, 0
  %11902 = vmatprep.subr.mxu0 0.0
  %11903 = vmatpush1.msra.mxu0 0.0
  %11904 = vmatprep.subr.mxu0 0.0
  %11905 = vmatpush1.msra.mxu0 0.0
  %11906 = vmatprep.subr.mxu0 0.0
  %11907 = vmatpush1.msra.mxu0 0.0
  %11908 = vmatprep.subr.mxu0 0.0
  %11909 = vmatpush1.msra.mxu0 0.0
  %11910 = vmatprep.subr.mxu0 0.0
  %11911 = vmatpush1.msra.mxu0 0.0
  %11912 = vmatprep.subr.mxu0 0.0
  %11913 = vmatpush1.msra.mxu0 0.0
  %11914 = vmatprep.subr.mxu0 0.0
  %11915 = vmatpush1.msra.mxu0 %v11861
  %11916 = vmatprep.subr.mxu0 0.0
  %11917 = vmatpush1.msra.mxu0 %v11859
  %11918 = vmatprep.subr.mxu0 0.0
  %11919 = vmatpush1.msra.mxu0 %v11857
  %11920 = vmatprep.subr.mxu0 0.0
  %11921 = vmatpush1.msra.mxu0 %v11855
  %11922 = vmatprep.subr.mxu0 0.0
  %11923 = vmatpush1.msra.mxu0 %v11853
  %11924 = vmatprep.subr.mxu0 0.0
  %11925 = vmatpush1.msra.mxu0 %v11851
  %11926 = vmatprep.subr.mxu0 0.0
  %11927 = vmatpush1.msra.mxu0 %v11849
  %11928 = vmatprep.subr.mxu0 0.0
  %11929 = vmatpush1.msra.mxu0 %v11847
  %11930 = vmatprep.subr.mxu0 0.0
  %11931 = vmatpush1.msra.mxu0 %v11845
  %11932 = vmatprep.subr.mxu0 0.0
  %11933 = vmatpush1.msra.mxu0 %v11843
  %11934 = vmatprep.subr.mxu0 0.0
  %11935 = vmatpush2.msra.mxu0 0.0
  %11936 = vmatprep.subr.mxu0 0.0
  %11937 = vmatpush2.msra.mxu0 0.0
  %11938 = vmatprep.subr.mxu0 0.0
  %11939 = vmatpush2.msra.mxu0 0.0
  %11940 = vmatprep.subr.mxu0 0.0
  %11941 = vmatpush2.msra.mxu0 0.0
  %11942 = vmatprep.subr.mxu0 0.0
  %11943 = vmatpush2.msra.mxu0 0.0
  %11944 = vmatprep.subr.mxu0 0.0
  %11945 = vmatpush2.msra.mxu0 0.0
  %11946 = vmatprep.subr.mxu0 0.0
  %11947 = vmatpush2.msra.mxu0 0.0
  %11948 = vmatprep.subr.mxu0 0.0
  %11949 = vmatpush2.msra.mxu0 0.0
  %11950 = vmatprep.subr.mxu0 0.0
  %11951 = vmatpush2.msra.mxu0 0.0
  %11952 = vmatprep.subr.mxu0 0.0
  %11953 = vmatpush2.msra.mxu0 0.0
  %11954 = vmatprep.subr.mxu0 0.0
  %11955 = vmatpush2.msra.mxu0 0.0
  %11956 = vmatprep.subr.mxu0 0.0
  %11957 = vmatpush2.msra.mxu0 0.0
  %11958 = vmatprep.subr.mxu0 0.0
  %11959 = vmatpush2.msra.mxu0 0.0
  %11960 = vmatprep.subr.mxu0 0.0
  %11961 = vmatpush2.msra.mxu0 0.0
  %11962 = vmatprep.subr.mxu0 0.0
  %11963 = vmatpush2.msra.mxu0 0.0
  %11964 = vmatprep.subr.mxu0 0.0
  %11965 = vmatpush2.msra.mxu0 0.0
  %11966 = vmatprep.mubr.f32.mxu0 0.0
  %11967 = vmatmul.mubr.f32.gmra.mxu0 %v11872
  %v11968 = vpop.f32.mrf.mxu0
  %v11969 = vadd.f32 0.0, %v11968
  %v11970 = vpop.f32.mrf.mxu0
  %11971 = vmatprep.mubr.f32.mxu0 0.0
  %11972 = vmatmul.mubr.f32.gmra.mxu0 %v11874
  %v11973 = vpop.f32.mrf.mxu0
  %v11974 = vadd.f32 0.0, %v11973
  %v11975 = vpop.f32.mrf.mxu0
  %11976 = vmatprep.mubr.f32.mxu0 0.0
  %11977 = vmatmul.mubr.f32.gmra.mxu0 %v11876
  %v11978 = vpop.f32.mrf.mxu0
  %v11979 = vadd.f32 0.0, %v11978
  %v11980 = vpop.f32.mrf.mxu0
  %11981 = vmatprep.mubr.f32.mxu0 0.0
  %11982 = vmatmul.mubr.f32.gmra.mxu0 %v11878
  %v11983 = vpop.f32.mrf.mxu0
  %v11984 = vadd.f32 0.0, %v11983
  %v11985 = vpop.f32.mrf.mxu0
  %11986 = vmatprep.mubr.f32.mxu0 0.0
  %11987 = vmatmul.mubr.f32.gmra.mxu0 %v11880
  %v11988 = vpop.f32.mrf.mxu0
  %v11989 = vadd.f32 0.0, %v11988
  %v11990 = vpop.f32.mrf.mxu0
  %11991 = vmatprep.mubr.f32.mxu0 0.0
  %11992 = vmatmul.mubr.f32.gmra.mxu0 %v11882
  %v11993 = vpop.f32.mrf.mxu0
  %v11994 = vadd.f32 0.0, %v11993
  %v11995 = vpop.f32.mrf.mxu0
  %11996 = vmatprep.mubr.f32.mxu0 0.0
  %11997 = vmatmul.mubr.f32.gmra.mxu0 %v11884
  %v11998 = vpop.f32.mrf.mxu0
  %v11999 = vadd.f32 0.0, %v11998
  %v12000 = vpop.f32.mrf.mxu0
  %12001 = vmatprep.mubr.f32.mxu0 0.0
  %12002 = vmatmul.mubr.f32.gmra.mxu0 %v11886
  %v12003 = vpop.f32.mrf.mxu0
  %v12004 = vadd.f32 0.0, %v12003
  %v12005 = vpop.f32.mrf.mxu0
  %12006 = vmatprep.mubr.f32.mxu0 0.0
  %12007 = vmatmul.mubr.f32.gmra.mxu0 %v11888
  %v12008 = vpop.f32.mrf.mxu0
  %v12009 = vadd.f32 0.0, %v12008
  %v12010 = vpop.f32.mrf.mxu0
  %12011 = vmatprep.mubr.f32.mxu0 0.0
  %12012 = vmatmul.mubr.f32.gmra.mxu0 %v11890
  %v12013 = vpop.f32.mrf.mxu0
  %v12014 = vadd.f32 0.0, %v12013
  %v12015 = vpop.f32.mrf.mxu0
  %12016 = vmatprep.mubr.f32.mxu0 0.0
  %12017 = vmatmul.mubr.f32.gmra.mxu0 %v11892
  %v12018 = vpop.f32.mrf.mxu0
  %v12019 = vadd.f32 0.0, %v12018
  %v12020 = vpop.f32.mrf.mxu0
  %12021 = vmatprep.mubr.f32.mxu0 0.0
  %12022 = vmatmul.mubr.f32.gmra.mxu0 %v11894
  %v12023 = vpop.f32.mrf.mxu0
  %v12024 = vadd.f32 0.0, %v12023
  %v12025 = vpop.f32.mrf.mxu0
  %12026 = vmatprep.mubr.f32.mxu0 0.0
  %12027 = vmatmul.mubr.f32.gmra.mxu0 %v11896
  %v12028 = vpop.f32.mrf.mxu0
  %v12029 = vadd.f32 0.0, %v12028
  %v12030 = vpop.f32.mrf.mxu0
  %12031 = vmatprep.mubr.f32.mxu0 0.0
  %12032 = vmatmul.mubr.f32.gmra.mxu0 %v11898
  %v12033 = vpop.f32.mrf.mxu0
  %v12034 = vadd.f32 0.0, %v12033
  %v12035 = vpop.f32.mrf.mxu0
  %12036 = vmatprep.mubr.f32.mxu0 0.0
  %12037 = vmatmul.mubr.f32.gmra.mxu0 %v11900
  %v12038 = vpop.f32.mrf.mxu0
  %v12039 = vadd.f32 0.0, %v12038
  %v12040 = vpop.f32.mrf.mxu0
  %12041 = vdwg.mxu0
  %v12042 = vadd.f32 %v11692, %v11969
  %v12043 = vadd.f32 %v11693, %v11974
  %v12044 = vadd.f32 %v11694, %v11979
  %v12045 = vadd.f32 %v11695, %v11984
  %v12046 = vadd.f32 %v11696, %v11989
  %v12047 = vadd.f32 %v11697, %v11994
  %v12048 = vadd.f32 %v11698, %v11999
  %v12049 = vadd.f32 %v11699, %v12004
  %v12050 = vadd.f32 %v11700, %v12009
  %v12051 = vadd.f32 %v11701, %v12014
  %v12052 = vadd.f32 %v11702, %v12019
  %v12053 = vadd.f32 %v11703, %v12024
  %v12054 = vadd.f32 %v11704, %v12029
  %v12055 = vadd.f32 %v11705, %v12034
  %v12056 = vadd.f32 %v11706, %v12039
  %v12057 = vld [vmem:[%s5 + $0x10] sm:$0xff]
  %v12058 = vld [vmem:[%s5 + $0x18] sm:$0xff]
  %v12059 = vld [vmem:[%s5 + $0x30] sm:$0xff]
  %v12060 = vld [vmem:[%s5 + $0x38] sm:$0xff]
  %v12061 = vld [vmem:[%s5 + $0x50] sm:$0xff]
  %v12062 = vld [vmem:[%s5 + $0x58] sm:$0xff]
  %v12063 = vld [vmem:[%s5 + $0x70] sm:$0xff]
  %v12064 = vld [vmem:[%s5 + $0x78] sm:$0xff]
  %v12065 = vld [vmem:[%s5 + $0x90] sm:$0xff]
  %v12066 = vld [vmem:[%s5 + $0x98] sm:$0xff]
  %v12067 = vld [vmem:[%s5 + $0xb0] sm:$0xff]
  %v12068 = vld [vmem:[%s5 + $0xb8] sm:$0xff]
  %v12069 = vld [vmem:[%s5 + $0xd0] sm:$0xff]
  %v12070 = vld [vmem:[%s5 + $0xd8] sm:$0xff]
  %v12071 = vld [vmem:[%s5 + $0xf0] sm:$0xff]
  %v12072 = vld [vmem:[%s5 + $0xf8] sm:$0xff]
  %v12073 = vld [vmem:[%s5 + $0x110] sm:$0xff]
  %v12074 = vld [vmem:[%s5 + $0x118] sm:$0xff]
  %v12075 = vld [vmem:[%s5 + $0x130] sm:$0xff]
  %v12076 = vld [vmem:[%s5 + $0x138] sm:$0xff]
  %v12077 = vld [vmem:[%s5 + $0x150] sm:$0xff]
  %v12078 = vld [vmem:[%s5 + $0x158] sm:$0xff]
  %v12079 = vld [vmem:[%s5 + $0x170] sm:$0xff]
  %v12080 = vld [vmem:[%s5 + $0x178] sm:$0xff]
  %v12081 = vld [vmem:[%s5 + $0x190] sm:$0xff]
  %v12082 = vld [vmem:[%s5 + $0x198] sm:$0xff]
  %v12083 = vld [vmem:[%s5 + $0x1b0] sm:$0xff]
  %v12084 = vld [vmem:[%s5 + $0x1b8] sm:$0xff]
  %v12085 = vld [vmem:[%s5 + $0x1d0] sm:$0xff]
  %v12086 = vld [vmem:[%s5 + $0x1d8] sm:$0xff]
  %12117 = vrot.lane.b32.xlu0 %v12057, 64
  %v12118 = vpop.permute.xlu0 %12117
  %12119 = vrot.lane.b32.xlu0 %v12058, 64
  %v12120 = vpop.permute.xlu0 %12119
  %12121 = vrot.lane.b32.xlu0 %v12059, 64
  %v12122 = vpop.permute.xlu0 %12121
  %12123 = vrot.lane.b32.xlu0 %v12060, 64
  %v12124 = vpop.permute.xlu0 %12123
  %12125 = vrot.lane.b32.xlu0 %v12061, 64
  %v12126 = vpop.permute.xlu0 %12125
  %12127 = vrot.lane.b32.xlu0 %v12062, 64
  %v12128 = vpop.permute.xlu0 %12127
  %12129 = vrot.lane.b32.xlu0 %v12063, 64
  %v12130 = vpop.permute.xlu0 %12129
  %12131 = vrot.lane.b32.xlu0 %v12064, 64
  %v12132 = vpop.permute.xlu0 %12131
  %12133 = vrot.lane.b32.xlu0 %v12065, 64
  %v12134 = vpop.permute.xlu0 %12133
  %12135 = vrot.lane.b32.xlu0 %v12066, 64
  %v12136 = vpop.permute.xlu0 %12135
  %12137 = vrot.lane.b32.xlu0 %v12067, 64
  %v12138 = vpop.permute.xlu0 %12137
  %12139 = vrot.lane.b32.xlu0 %v12068, 64
  %v12140 = vpop.permute.xlu0 %12139
  %12141 = vrot.lane.b32.xlu0 %v12069, 64
  %v12142 = vpop.permute.xlu0 %12141
  %12143 = vrot.lane.b32.xlu0 %v12070, 64
  %v12144 = vpop.permute.xlu0 %12143
  %12145 = vrot.lane.b32.xlu0 %v12071, 64
  %v12146 = vpop.permute.xlu0 %12145
  %12147 = vrot.lane.b32.xlu0 %v12072, 64
  %v12148 = vpop.permute.xlu0 %12147
  %12149 = vrot.lane.b32.xlu0 %v12073, 64
  %v12150 = vpop.permute.xlu0 %12149
  %12151 = vrot.lane.b32.xlu0 %v12074, 64
  %v12152 = vpop.permute.xlu0 %12151
  %12153 = vrot.lane.b32.xlu0 %v12075, 64
  %v12154 = vpop.permute.xlu0 %12153
  %12155 = vrot.lane.b32.xlu0 %v12076, 64
  %v12156 = vpop.permute.xlu0 %12155
  %12157 = vrot.lane.b32.xlu0 %v12077, 64
  %v12158 = vpop.permute.xlu0 %12157
  %12159 = vrot.lane.b32.xlu0 %v12078, 64
  %v12160 = vpop.permute.xlu0 %12159
  %12161 = vrot.lane.b32.xlu0 %v12079, 64
  %v12162 = vpop.permute.xlu0 %12161
  %12163 = vrot.lane.b32.xlu0 %v12080, 64
  %v12164 = vpop.permute.xlu0 %12163
  %12165 = vrot.lane.b32.xlu0 %v12081, 64
  %v12166 = vpop.permute.xlu0 %12165
  %12167 = vrot.lane.b32.xlu0 %v12082, 64
  %v12168 = vpop.permute.xlu0 %12167
  %12169 = vrot.lane.b32.xlu0 %v12083, 64
  %v12170 = vpop.permute.xlu0 %12169
  %12171 = vrot.lane.b32.xlu0 %v12084, 64
  %v12172 = vpop.permute.xlu0 %12171
  %12173 = vrot.lane.b32.xlu0 %v12085, 64
  %v12174 = vpop.permute.xlu0 %12173
  %12175 = vrot.lane.b32.xlu0 %v12086, 64
  %v12176 = vpop.permute.xlu0 %12175
  %v12177 = vsel %vm5917, %v12118, %v12120
  %v12178 = vsel %vm5917, %v12122, %v12124
  %v12179 = vsel %vm5917, %v12126, %v12128
  %v12180 = vsel %vm5917, %v12130, %v12132
  %v12181 = vsel %vm5917, %v12134, %v12136
  %v12182 = vsel %vm5917, %v12138, %v12140
  %v12183 = vsel %vm5917, %v12142, %v12144
  %v12184 = vsel %vm5917, %v12146, %v12148
  %v12185 = vsel %vm5917, %v12150, %v12152
  %v12186 = vsel %vm5917, %v12154, %v12156
  %v12187 = vsel %vm5917, %v12158, %v12160
  %v12188 = vsel %vm5917, %v12162, %v12164
  %v12189 = vsel %vm5917, %v12166, %v12168
  %v12190 = vsel %vm5917, %v12170, %v12172
  %v12191 = vsel %vm5917, %v12174, %v12176
  %12192 = vrot.lane.b32.xlu0 %v10899, 124
  %v12193 = vpop.permute.xlu0 %12192
  %12194 = vrot.lane.b32.xlu0 %v10904, 124
  %v12195 = vpop.permute.xlu0 %12194
  %12196 = vrot.lane.b32.xlu0 %v10909, 124
  %v12197 = vpop.permute.xlu0 %12196
  %12198 = vrot.lane.b32.xlu0 %v10914, 124
  %v12199 = vpop.permute.xlu0 %12198
  %12200 = vrot.lane.b32.xlu0 %v10919, 124
  %v12201 = vpop.permute.xlu0 %12200
  %12202 = vrot.lane.b32.xlu0 %v10924, 124
  %v12203 = vpop.permute.xlu0 %12202
  %12204 = vrot.lane.b32.xlu0 %v10929, 124
  %v12205 = vpop.permute.xlu0 %12204
  %12206 = vrot.lane.b32.xlu0 %v10934, 124
  %v12207 = vpop.permute.xlu0 %12206
  %12208 = vrot.lane.b32.xlu0 %v10939, 124
  %v12209 = vpop.permute.xlu0 %12208
  %12210 = vrot.lane.b32.xlu0 %v10944, 124
  %v12211 = vpop.permute.xlu0 %12210
  %v12222 = vsel %vm3022, %v12177, 0
  %v12224 = vsel %vm3022, %v12178, 0
  %v12226 = vsel %vm3022, %v12179, 0
  %v12228 = vsel %vm3022, %v12180, 0
  %v12230 = vsel %vm3022, %v12181, 0
  %v12232 = vsel %vm3022, %v12182, 0
  %v12234 = vsel %vm3022, %v12183, 0
  %v12236 = vsel %vm3022, %v12184, 0
  %v12238 = vsel %vm3022, %v12185, 0
  %v12240 = vsel %vm3022, %v12186, 0
  %v12242 = vsel %vm3022, %v12187, 0
  %v12244 = vsel %vm3022, %v12188, 0
  %v12246 = vsel %vm3022, %v12189, 0
  %v12248 = vsel %vm3022, %v12190, 0
  %v12250 = vsel %vm3022, %v12191, 0
  %12252 = vmatprep.subr.mxu0 0.0
  %12253 = vmatpush1.msra.mxu0 0.0
  %12254 = vmatprep.subr.mxu0 0.0
  %12255 = vmatpush1.msra.mxu0 0.0
  %12256 = vmatprep.subr.mxu0 0.0
  %12257 = vmatpush1.msra.mxu0 0.0
  %12258 = vmatprep.subr.mxu0 0.0
  %12259 = vmatpush1.msra.mxu0 0.0
  %12260 = vmatprep.subr.mxu0 0.0
  %12261 = vmatpush1.msra.mxu0 0.0
  %12262 = vmatprep.subr.mxu0 0.0
  %12263 = vmatpush1.msra.mxu0 0.0
  %12264 = vmatprep.subr.mxu0 0.0
  %12265 = vmatpush1.msra.mxu0 %v12211
  %12266 = vmatprep.subr.mxu0 0.0
  %12267 = vmatpush1.msra.mxu0 %v12209
  %12268 = vmatprep.subr.mxu0 0.0
  %12269 = vmatpush1.msra.mxu0 %v12207
  %12270 = vmatprep.subr.mxu0 0.0
  %12271 = vmatpush1.msra.mxu0 %v12205
  %12272 = vmatprep.subr.mxu0 0.0
  %12273 = vmatpush1.msra.mxu0 %v12203
  %12274 = vmatprep.subr.mxu0 0.0
  %12275 = vmatpush1.msra.mxu0 %v12201
  %12276 = vmatprep.subr.mxu0 0.0
  %12277 = vmatpush1.msra.mxu0 %v12199
  %12278 = vmatprep.subr.mxu0 0.0
  %12279 = vmatpush1.msra.mxu0 %v12197
  %12280 = vmatprep.subr.mxu0 0.0
  %12281 = vmatpush1.msra.mxu0 %v12195
  %12282 = vmatprep.subr.mxu0 0.0
  %12283 = vmatpush1.msra.mxu0 %v12193
  %12284 = vmatprep.subr.mxu0 0.0
  %12285 = vmatpush2.msra.mxu0 0.0
  %12286 = vmatprep.subr.mxu0 0.0
  %12287 = vmatpush2.msra.mxu0 0.0
  %12288 = vmatprep.subr.mxu0 0.0
  %12289 = vmatpush2.msra.mxu0 0.0
  %12290 = vmatprep.subr.mxu0 0.0
  %12291 = vmatpush2.msra.mxu0 0.0
  %12292 = vmatprep.subr.mxu0 0.0
  %12293 = vmatpush2.msra.mxu0 0.0
  %12294 = vmatprep.subr.mxu0 0.0
  %12295 = vmatpush2.msra.mxu0 0.0
  %12296 = vmatprep.subr.mxu0 0.0
  %12297 = vmatpush2.msra.mxu0 0.0
  %12298 = vmatprep.subr.mxu0 0.0
  %12299 = vmatpush2.msra.mxu0 0.0
  %12300 = vmatprep.subr.mxu0 0.0
  %12301 = vmatpush2.msra.mxu0 0.0
  %12302 = vmatprep.subr.mxu0 0.0
  %12303 = vmatpush2.msra.mxu0 0.0
  %12304 = vmatprep.subr.mxu0 0.0
  %12305 = vmatpush2.msra.mxu0 0.0
  %12306 = vmatprep.subr.mxu0 0.0
  %12307 = vmatpush2.msra.mxu0 0.0
  %12308 = vmatprep.subr.mxu0 0.0
  %12309 = vmatpush2.msra.mxu0 0.0
  %12310 = vmatprep.subr.mxu0 0.0
  %12311 = vmatpush2.msra.mxu0 0.0
  %12312 = vmatprep.subr.mxu0 0.0
  %12313 = vmatpush2.msra.mxu0 0.0
  %12314 = vmatprep.subr.mxu0 0.0
  %12315 = vmatpush2.msra.mxu0 0.0
  %12316 = vmatprep.mubr.f32.mxu0 0.0
  %12317 = vmatmul.mubr.f32.gmra.mxu0 %v12222
  %v12318 = vpop.f32.mrf.mxu0
  %v12319 = vadd.f32 0.0, %v12318
  %v12320 = vpop.f32.mrf.mxu0
  %12321 = vmatprep.mubr.f32.mxu0 0.0
  %12322 = vmatmul.mubr.f32.gmra.mxu0 %v12224
  %v12323 = vpop.f32.mrf.mxu0
  %v12324 = vadd.f32 0.0, %v12323
  %v12325 = vpop.f32.mrf.mxu0
  %12326 = vmatprep.mubr.f32.mxu0 0.0
  %12327 = vmatmul.mubr.f32.gmra.mxu0 %v12226
  %v12328 = vpop.f32.mrf.mxu0
  %v12329 = vadd.f32 0.0, %v12328
  %v12330 = vpop.f32.mrf.mxu0
  %12331 = vmatprep.mubr.f32.mxu0 0.0
  %12332 = vmatmul.mubr.f32.gmra.mxu0 %v12228
  %v12333 = vpop.f32.mrf.mxu0
  %v12334 = vadd.f32 0.0, %v12333
  %v12335 = vpop.f32.mrf.mxu0
  %12336 = vmatprep.mubr.f32.mxu0 0.0
  %12337 = vmatmul.mubr.f32.gmra.mxu0 %v12230
  %v12338 = vpop.f32.mrf.mxu0
  %v12339 = vadd.f32 0.0, %v12338
  %v12340 = vpop.f32.mrf.mxu0
  %12341 = vmatprep.mubr.f32.mxu0 0.0
  %12342 = vmatmul.mubr.f32.gmra.mxu0 %v12232
  %v12343 = vpop.f32.mrf.mxu0
  %v12344 = vadd.f32 0.0, %v12343
  %v12345 = vpop.f32.mrf.mxu0
  %12346 = vmatprep.mubr.f32.mxu0 0.0
  %12347 = vmatmul.mubr.f32.gmra.mxu0 %v12234
  %v12348 = vpop.f32.mrf.mxu0
  %v12349 = vadd.f32 0.0, %v12348
  %v12350 = vpop.f32.mrf.mxu0
  %12351 = vmatprep.mubr.f32.mxu0 0.0
  %12352 = vmatmul.mubr.f32.gmra.mxu0 %v12236
  %v12353 = vpop.f32.mrf.mxu0
  %v12354 = vadd.f32 0.0, %v12353
  %v12355 = vpop.f32.mrf.mxu0
  %12356 = vmatprep.mubr.f32.mxu0 0.0
  %12357 = vmatmul.mubr.f32.gmra.mxu0 %v12238
  %v12358 = vpop.f32.mrf.mxu0
  %v12359 = vadd.f32 0.0, %v12358
  %v12360 = vpop.f32.mrf.mxu0
  %12361 = vmatprep.mubr.f32.mxu0 0.0
  %12362 = vmatmul.mubr.f32.gmra.mxu0 %v12240
  %v12363 = vpop.f32.mrf.mxu0
  %v12364 = vadd.f32 0.0, %v12363
  %v12365 = vpop.f32.mrf.mxu0
  %12366 = vmatprep.mubr.f32.mxu0 0.0
  %12367 = vmatmul.mubr.f32.gmra.mxu0 %v12242
  %v12368 = vpop.f32.mrf.mxu0
  %v12369 = vadd.f32 0.0, %v12368
  %v12370 = vpop.f32.mrf.mxu0
  %12371 = vmatprep.mubr.f32.mxu0 0.0
  %12372 = vmatmul.mubr.f32.gmra.mxu0 %v12244
  %v12373 = vpop.f32.mrf.mxu0
  %v12374 = vadd.f32 0.0, %v12373
  %v12375 = vpop.f32.mrf.mxu0
  %12376 = vmatprep.mubr.f32.mxu0 0.0
  %12377 = vmatmul.mubr.f32.gmra.mxu0 %v12246
  %v12378 = vpop.f32.mrf.mxu0
  %v12379 = vadd.f32 0.0, %v12378
  %v12380 = vpop.f32.mrf.mxu0
  %12381 = vmatprep.mubr.f32.mxu0 0.0
  %12382 = vmatmul.mubr.f32.gmra.mxu0 %v12248
  %v12383 = vpop.f32.mrf.mxu0
  %v12384 = vadd.f32 0.0, %v12383
  %v12385 = vpop.f32.mrf.mxu0
  %12386 = vmatprep.mubr.f32.mxu0 0.0
  %12387 = vmatmul.mubr.f32.gmra.mxu0 %v12250
  %v12388 = vpop.f32.mrf.mxu0
  %v12389 = vadd.f32 0.0, %v12388
  %v12390 = vpop.f32.mrf.mxu0
  %12391 = vdwg.mxu0
  %v12392 = vadd.f32 %v12042, %v12319
  %v12393 = vadd.f32 %v12043, %v12324
  %v12394 = vadd.f32 %v12044, %v12329
  %v12395 = vadd.f32 %v12045, %v12334
  %v12396 = vadd.f32 %v12046, %v12339
  %v12397 = vadd.f32 %v12047, %v12344
  %v12398 = vadd.f32 %v12048, %v12349
  %v12399 = vadd.f32 %v12049, %v12354
  %v12400 = vadd.f32 %v12050, %v12359
  %v12401 = vadd.f32 %v12051, %v12364
  %v12402 = vadd.f32 %v12052, %v12369
  %v12403 = vadd.f32 %v12053, %v12374
  %v12404 = vadd.f32 %v12054, %v12379
  %v12405 = vadd.f32 %v12055, %v12384
  %v12406 = vadd.f32 %v12056, %v12389
  %v12407 = vld [vmem:[%s6] sm:$0xff]
  %v12408 = vld [vmem:[%s6 + $0x8] sm:$0xff]
  %v12409 = vld [vmem:[%s6 + $0x10] sm:$0xff]
  %v12410 = vld [vmem:[%s6 + $0x18] sm:$0xff]
  %v12411 = vld [vmem:[%s6 + $0x20] sm:$0xff]
  %v12412 = vld [vmem:[%s6 + $0x28] sm:$0xff]
  %v12413 = vld [vmem:[%s6 + $0x30] sm:$0xff]
  %v12414 = vld [vmem:[%s6 + $0x38] sm:$0xff]
  %v12415 = vld [vmem:[%s6 + $0x40] sm:$0xff]
  %v12416 = vld [vmem:[%s6 + $0x48] sm:$0xff]
  %v12417 = vld [vmem:[%s6 + $0x50] sm:$0xff]
  %v12418 = vld [vmem:[%s6 + $0x58] sm:$0xff]
  %v12419 = vld [vmem:[%s6 + $0x60] sm:$0xff]
  %v12420 = vld [vmem:[%s6 + $0x68] sm:$0xff]
  %v12421 = vld [vmem:[%s6 + $0x70] sm:$0xff]
  %v12422 = vadd.f32 %v12392, %v12407
  %v12423 = vadd.f32 %v12393, %v12408
  %v12424 = vadd.f32 %v12394, %v12409
  %v12425 = vadd.f32 %v12395, %v12410
  %v12426 = vadd.f32 %v12396, %v12411
  %v12427 = vadd.f32 %v12397, %v12412
  %v12428 = vadd.f32 %v12398, %v12413
  %v12429 = vadd.f32 %v12399, %v12414
  %v12430 = vadd.f32 %v12400, %v12415
  %v12431 = vadd.f32 %v12401, %v12416
  %v12432 = vadd.f32 %v12402, %v12417
  %v12433 = vadd.f32 %v12403, %v12418
  %v12434 = vadd.f32 %v12404, %v12419
  %v12435 = vadd.f32 %v12405, %v12420
  %v12436 = vadd.f32 %v12406, %v12421
  %v12437 = vmax.f32 %v12422, 0.0
  %v12438 = vmax.f32 %v12423, 0.0
  %v12439 = vmax.f32 %v12424, 0.0
  %v12440 = vmax.f32 %v12425, 0.0
  %v12441 = vmax.f32 %v12426, 0.0
  %v12442 = vmax.f32 %v12427, 0.0
  %v12443 = vmax.f32 %v12428, 0.0
  %v12444 = vmax.f32 %v12429, 0.0
  %v12445 = vmax.f32 %v12430, 0.0
  %v12446 = vmax.f32 %v12431, 0.0
  %v12447 = vmax.f32 %v12432, 0.0
  %v12448 = vmax.f32 %v12433, 0.0
  %v12449 = vmax.f32 %v12434, 0.0
  %v12450 = vmax.f32 %v12435, 0.0
  %v12451 = vmax.f32 %v12436, 0.0
  %v12452 = vld [vmem:[%s7] sm:$0xff]
  %v12453 = vld [vmem:[%s7 + $0x8] sm:$0xff]
  %v12454 = vld [vmem:[%s7 + $0x10] sm:$0xff]
  %v12455 = vld [vmem:[%s7 + $0x18] sm:$0xff]
  %v12456 = vld [vmem:[%s7 + $0x20] sm:$0xff]
  %v12457 = vld [vmem:[%s7 + $0x28] sm:$0xff]
  %v12458 = vld [vmem:[%s7 + $0x30] sm:$0xff]
  %v12459 = vld [vmem:[%s7 + $0x38] sm:$0xff]
  %v12460 = vld [vmem:[%s7 + $0x40] sm:$0xff]
  %v12461 = vld [vmem:[%s7 + $0x48] sm:$0xff]
  %v12462 = vld [vmem:[%s7 + $0x50] sm:$0xf]
  %v12463 = vld [vmem:[%s8] sm:$0xff]
  %v12464 = vld [vmem:[%s8 + $0x8] sm:$0xff]
  %v12465 = vld [vmem:[%s8 + $0x10] sm:$0xff]
  %v12466 = vld [vmem:[%s8 + $0x18] sm:$0xff]
  %v12467 = vld [vmem:[%s8 + $0x20] sm:$0xff]
  %v12468 = vld [vmem:[%s8 + $0x28] sm:$0xff]
  %v12469 = vld [vmem:[%s8 + $0x30] sm:$0xff]
  %v12470 = vld [vmem:[%s8 + $0x38] sm:$0xff]
  %v12471 = vld [vmem:[%s8 + $0x40] sm:$0xff]
  %v12472 = vld [vmem:[%s8 + $0x48] sm:$0xff]
  %v12473 = vld [vmem:[%s8 + $0x50] sm:$0xf]
  %v12475 = vsel %vm6215, %v12452, 0
  %v12478 = vsel %vm6215, %v12453, 0
  %v12481 = vsel %vm6215, %v12454, 0
  %v12484 = vsel %vm6215, %v12455, 0
  %v12487 = vsel %vm6215, %v12456, 0
  %v12490 = vsel %vm6215, %v12457, 0
  %v12493 = vsel %vm6215, %v12458, 0
  %v12496 = vsel %vm6215, %v12459, 0
  %v12499 = vsel %vm6215, %v12460, 0
  %v12502 = vsel %vm6215, %v12461, 0
  %v12505 = vsel %vm6215, %v12462, 0
  %12507 = vmatprep.subr.mxu0 0.0
  %12508 = vmatpush1.msra.mxu0 0.0
  %12509 = vmatprep.subr.mxu0 0.0
  %12510 = vmatpush1.msra.mxu0 %v12451
  %12511 = vmatprep.subr.mxu0 0.0
  %12512 = vmatpush1.msra.mxu0 %v12450
  %12513 = vmatprep.subr.mxu0 0.0
  %12514 = vmatpush1.msra.mxu0 %v12449
  %12515 = vmatprep.subr.mxu0 0.0
  %12516 = vmatpush1.msra.mxu0 %v12448
  %12517 = vmatprep.subr.mxu0 0.0
  %12518 = vmatpush1.msra.mxu0 %v12447
  %12519 = vmatprep.subr.mxu0 0.0
  %12520 = vmatpush1.msra.mxu0 %v12446
  %12521 = vmatprep.subr.mxu0 0.0
  %12522 = vmatpush1.msra.mxu0 %v12445
  %12523 = vmatprep.subr.mxu0 0.0
  %12524 = vmatpush1.msra.mxu0 %v12444
  %12525 = vmatprep.subr.mxu0 0.0
  %12526 = vmatpush1.msra.mxu0 %v12443
  %12527 = vmatprep.subr.mxu0 0.0
  %12528 = vmatpush1.msra.mxu0 %v12442
  %12529 = vmatprep.subr.mxu0 0.0
  %12530 = vmatpush1.msra.mxu0 %v12441
  %12531 = vmatprep.subr.mxu0 0.0
  %12532 = vmatpush1.msra.mxu0 %v12440
  %12533 = vmatprep.subr.mxu0 0.0
  %12534 = vmatpush1.msra.mxu0 %v12439
  %12535 = vmatprep.subr.mxu0 0.0
  %12536 = vmatpush1.msra.mxu0 %v12438
  %12537 = vmatprep.subr.mxu0 0.0
  %12538 = vmatpush1.msra.mxu0 %v12437
  %12539 = vmatprep.subr.mxu0 0.0
  %12540 = vmatpush2.msra.mxu0 0.0
  %12541 = vmatprep.subr.mxu0 0.0
  %12542 = vmatpush2.msra.mxu0 0.0
  %12543 = vmatprep.subr.mxu0 0.0
  %12544 = vmatpush2.msra.mxu0 0.0
  %12545 = vmatprep.subr.mxu0 0.0
  %12546 = vmatpush2.msra.mxu0 0.0
  %12547 = vmatprep.subr.mxu0 0.0
  %12548 = vmatpush2.msra.mxu0 0.0
  %12549 = vmatprep.subr.mxu0 0.0
  %12550 = vmatpush2.msra.mxu0 0.0
  %12551 = vmatprep.subr.mxu0 0.0
  %12552 = vmatpush2.msra.mxu0 0.0
  %12553 = vmatprep.subr.mxu0 0.0
  %12554 = vmatpush2.msra.mxu0 0.0
  %12555 = vmatprep.subr.mxu0 0.0
  %12556 = vmatpush2.msra.mxu0 0.0
  %12557 = vmatprep.subr.mxu0 0.0
  %12558 = vmatpush2.msra.mxu0 0.0
  %12559 = vmatprep.subr.mxu0 0.0
  %12560 = vmatpush2.msra.mxu0 0.0
  %12561 = vmatprep.subr.mxu0 0.0
  %12562 = vmatpush2.msra.mxu0 0.0
  %12563 = vmatprep.subr.mxu0 0.0
  %12564 = vmatpush2.msra.mxu0 0.0
  %12565 = vmatprep.subr.mxu0 0.0
  %12566 = vmatpush2.msra.mxu0 0.0
  %12567 = vmatprep.subr.mxu0 0.0
  %12568 = vmatpush2.msra.mxu0 0.0
  %12569 = vmatprep.subr.mxu0 0.0
  %12570 = vmatpush2.msra.mxu0 0.0
  %12571 = vmatprep.mubr.f32.mxu0 0.0
  %12572 = vmatmul.mubr.f32.gmra.mxu0 %v12475
  %v12573 = vpop.f32.mrf.mxu0
  %v12574 = vadd.f32 %v12463, %v12573
  %v12575 = vpop.f32.mrf.mxu0
  %12576 = vmatprep.mubr.f32.mxu0 0.0
  %12577 = vmatmul.mubr.f32.gmra.mxu0 %v12478
  %v12578 = vpop.f32.mrf.mxu0
  %v12579 = vadd.f32 %v12464, %v12578
  %v12580 = vpop.f32.mrf.mxu0
  %12581 = vmatprep.mubr.f32.mxu0 0.0
  %12582 = vmatmul.mubr.f32.gmra.mxu0 %v12481
  %v12583 = vpop.f32.mrf.mxu0
  %v12584 = vadd.f32 %v12465, %v12583
  %v12585 = vpop.f32.mrf.mxu0
  %12586 = vmatprep.mubr.f32.mxu0 0.0
  %12587 = vmatmul.mubr.f32.gmra.mxu0 %v12484
  %v12588 = vpop.f32.mrf.mxu0
  %v12589 = vadd.f32 %v12466, %v12588
  %v12590 = vpop.f32.mrf.mxu0
  %12591 = vmatprep.mubr.f32.mxu0 0.0
  %12592 = vmatmul.mubr.f32.gmra.mxu0 %v12487
  %v12593 = vpop.f32.mrf.mxu0
  %v12594 = vadd.f32 %v12467, %v12593
  %v12595 = vpop.f32.mrf.mxu0
  %12596 = vmatprep.mubr.f32.mxu0 0.0
  %12597 = vmatmul.mubr.f32.gmra.mxu0 %v12490
  %v12598 = vpop.f32.mrf.mxu0
  %v12599 = vadd.f32 %v12468, %v12598
  %v12600 = vpop.f32.mrf.mxu0
  %12601 = vmatprep.mubr.f32.mxu0 0.0
  %12602 = vmatmul.mubr.f32.gmra.mxu0 %v12493
  %v12603 = vpop.f32.mrf.mxu0
  %v12604 = vadd.f32 %v12469, %v12603
  %v12605 = vpop.f32.mrf.mxu0
  %12606 = vmatprep.mubr.f32.mxu0 0.0
  %12607 = vmatmul.mubr.f32.gmra.mxu0 %v12496
  %v12608 = vpop.f32.mrf.mxu0
  %v12609 = vadd.f32 %v12470, %v12608
  %v12610 = vpop.f32.mrf.mxu0
  %12611 = vmatprep.mubr.f32.mxu0 0.0
  %12612 = vmatmul.mubr.f32.gmra.mxu0 %v12499
  %v12613 = vpop.f32.mrf.mxu0
  %v12614 = vadd.f32 %v12471, %v12613
  %v12615 = vpop.f32.mrf.mxu0
  %12616 = vmatprep.mubr.f32.mxu0 0.0
  %12617 = vmatmul.mubr.f32.gmra.mxu0 %v12502
  %v12618 = vpop.f32.mrf.mxu0
  %v12619 = vadd.f32 %v12472, %v12618
  %v12620 = vpop.f32.mrf.mxu0
  %12621 = vmatprep.mubr.f32.mxu0 0.0
  %12622 = vmatmul.mubr.f32.gmra.mxu0 %v12505
  %v12623 = vpop.f32.mrf.mxu0
  %v12624 = vadd.f32 %v12473, %v12623
  %v12625 = vpop.f32.mrf.mxu0
  %12626 = vdwg.mxu0
  %v12627 = vmax.f32 %v12574, 0.0
  %v12628 = vmax.f32 %v12579, 0.0
  %v12629 = vmax.f32 %v12584, 0.0
  %v12630 = vmax.f32 %v12589, 0.0
  %v12631 = vmax.f32 %v12594, 0.0
  %v12632 = vmax.f32 %v12599, 0.0
  %v12633 = vmax.f32 %v12604, 0.0
  %v12634 = vmax.f32 %v12609, 0.0
  %v12635 = vmax.f32 %v12614, 0.0
  %v12636 = vmax.f32 %v12619, 0.0
  %v12637 = vmax.f32 %v12624, 0.0
  %v12638 = vld [vmem:[%s9] sm:$0xff]
  %v12639 = vld [vmem:[%s9 + $0x8] sm:$0x3]
  %v12640 = vld [vmem:[%s10] sm:$0xff]
  %v12641 = vld [vmem:[%s10 + $0x8] sm:$0x3]
  %v12643 = vsel %vm6384, %v12638, 0
  %v12646 = vsel %vm6384, %v12639, 0
  %v12649 = vsel %vm6391, %v12637, 0
  %12651 = vmatprep.subr.mxu0 0.0
  %12652 = vmatpush1.msra.mxu0 0.0
  %12653 = vmatprep.subr.mxu0 0.0
  %12654 = vmatpush1.msra.mxu0 0.0
  %12655 = vmatprep.subr.mxu0 0.0
  %12656 = vmatpush1.msra.mxu0 0.0
  %12657 = vmatprep.subr.mxu0 0.0
  %12658 = vmatpush1.msra.mxu0 0.0
  %12659 = vmatprep.subr.mxu0 0.0
  %12660 = vmatpush1.msra.mxu0 0.0
  %12661 = vmatprep.subr.mxu0 0.0
  %12662 = vmatpush1.msra.mxu0 %v12649
  %12663 = vmatprep.subr.mxu0 0.0
  %12664 = vmatpush1.msra.mxu0 %v12636
  %12665 = vmatprep.subr.mxu0 0.0
  %12666 = vmatpush1.msra.mxu0 %v12635
  %12667 = vmatprep.subr.mxu0 0.0
  %12668 = vmatpush1.msra.mxu0 %v12634
  %12669 = vmatprep.subr.mxu0 0.0
  %12670 = vmatpush1.msra.mxu0 %v12633
  %12671 = vmatprep.subr.mxu0 0.0
  %12672 = vmatpush1.msra.mxu0 %v12632
  %12673 = vmatprep.subr.mxu0 0.0
  %12674 = vmatpush1.msra.mxu0 %v12631
  %12675 = vmatprep.subr.mxu0 0.0
  %12676 = vmatpush1.msra.mxu0 %v12630
  %12677 = vmatprep.subr.mxu0 0.0
  %12678 = vmatpush1.msra.mxu0 %v12629
  %12679 = vmatprep.subr.mxu0 0.0
  %12680 = vmatpush1.msra.mxu0 %v12628
  %12681 = vmatprep.subr.mxu0 0.0
  %12682 = vmatpush1.msra.mxu0 %v12627
  %12683 = vmatprep.subr.mxu0 0.0
  %12684 = vmatpush2.msra.mxu0 0.0
  %12685 = vmatprep.subr.mxu0 0.0
  %12686 = vmatpush2.msra.mxu0 0.0
  %12687 = vmatprep.subr.mxu0 0.0
  %12688 = vmatpush2.msra.mxu0 0.0
  %12689 = vmatprep.subr.mxu0 0.0
  %12690 = vmatpush2.msra.mxu0 0.0
  %12691 = vmatprep.subr.mxu0 0.0
  %12692 = vmatpush2.msra.mxu0 0.0
  %12693 = vmatprep.subr.mxu0 0.0
  %12694 = vmatpush2.msra.mxu0 0.0
  %12695 = vmatprep.subr.mxu0 0.0
  %12696 = vmatpush2.msra.mxu0 0.0
  %12697 = vmatprep.subr.mxu0 0.0
  %12698 = vmatpush2.msra.mxu0 0.0
  %12699 = vmatprep.subr.mxu0 0.0
  %12700 = vmatpush2.msra.mxu0 0.0
  %12701 = vmatprep.subr.mxu0 0.0
  %12702 = vmatpush2.msra.mxu0 0.0
  %12703 = vmatprep.subr.mxu0 0.0
  %12704 = vmatpush2.msra.mxu0 0.0
  %12705 = vmatprep.subr.mxu0 0.0
  %12706 = vmatpush2.msra.mxu0 0.0
  %12707 = vmatprep.subr.mxu0 0.0
  %12708 = vmatpush2.msra.mxu0 0.0
  %12709 = vmatprep.subr.mxu0 0.0
  %12710 = vmatpush2.msra.mxu0 0.0
  %12711 = vmatprep.subr.mxu0 0.0
  %12712 = vmatpush2.msra.mxu0 0.0
  %12713 = vmatprep.subr.mxu0 0.0
  %12714 = vmatpush2.msra.mxu0 0.0
  %12715 = vmatprep.mubr.f32.mxu0 0.0
  %12716 = vmatmul.mubr.f32.gmra.mxu0 %v12643
  %v12717 = vpop.f32.mrf.mxu0
  %v12718 = vadd.f32 %v12640, %v12717
  %v12719 = vpop.f32.mrf.mxu0
  %12720 = vmatprep.mubr.f32.mxu0 0.0
  %12721 = vmatmul.mubr.f32.gmra.mxu0 %v12646
  %v12722 = vpop.f32.mrf.mxu0
  %v12723 = vadd.f32 %v12641, %v12722
  %v12724 = vpop.f32.mrf.mxu0
  %12725 = vdwg.mxu0
  %12728 = vrot.lane.b32.xlu0 %v12718, 1
  %v12729 = vpop.permute.xlu0 %12728
  %12730 = vrot.lane.b32.xlu0 %v12723, 1
  %v12731 = vpop.permute.xlu0 %12730
  %vm12734 = vcmask 15368
  %12735 = vst.msk [vmem:[%s11] sm:$0xff] %vm12734, %v12729
  %vm12736 = vcmask 9224
  %12737 = vst.msk [vmem:[%s11 + $0x8] sm:$0x3] %vm12736, %v12731
  // Predicated region
  $region46: #{net_forward.1} parent=0 // pred_check
    _
  $region47: #{net_forward.1} parent=0 // pred_check_branch
    %12739 = sbr.rel (0) target = $region49
  $region48: #{net_forward.1} parent=0 // pred_region
    _
  $region49: #{net_forward.1} parent=0 // pred_fallthru
    _
  // Predicated region
  $region50: #{net_forward.1} parent=0 // pred_check
    _
  $region51: #{net_forward.1} parent=0 // pred_check_branch
    %12741 = sbr.rel (0) target = $region53
  $region52: #{net_forward.1} parent=0 // pred_region
    _
  $region53: #{net_forward.1} parent=0 // pred_fallthru
    _

</llo_original>
